<compile_context>
chip_gen: v7x
topology: tpu7x:2x2x1
jax: 0.10.0
libtpu: 0.0.40
codegen_flags: <defaults>
</compile_context>

<pallas_src>
import functools

import jax
import jax.numpy as jnp
from jax.experimental import pallas as pl
from jax.experimental.pallas import tpu as pltpu

_LANES = 128
_VMEM_LIMIT = 32 * 1024 * 1024  # safe on v5e / v6e / v7x


def _round_up(x, m):
    return ((x + m - 1) // m) * m


def _cparams():
    # All grids below are 1-D and embarrassingly parallel.
    return pltpu.CompilerParams(
        dimension_semantics=("parallel",),
        vmem_limit_bytes=_VMEM_LIMIT,
    )


def _flat_divmod(idx_f32, n):
    """Exact (quotient, remainder) for small non-negative integers carried as
    f32.  Uses mul/floor (plain VPU ops) instead of vector integer division."""
    q = jnp.floor((idx_f32 + 0.5) * (1.0 / n))
    return q, idx_f32 - q * n


# ----------------------------------------------------------------------------
# Space-to-depth "parity planes" (plane-flat layout) for stride-2 3x3 windows.
# planes_flat[n, ((a*2+b)*Hq + i)*Wq + j, c] == xpad[n, 2*i + a, 2*j + b, c],
# so every stride-2 tap is a static contiguous slice inside the kernels.
# ----------------------------------------------------------------------------
def to_planes_flat(x_flat, H, W):
    B, HW, C = x_flat.shape
    assert HW == H * W and H % 2 == 0 and W % 2 == 0
    Ho, Wo = H // 2, W // 2
    Hq, Wq = Ho + 1, Wo + 1
    x = x_flat.reshape(B, H, W, C)
    xp = jnp.pad(x, ((0, 0), (1, 1), (1, 1), (0, 0)))
    planes = xp.reshape(B, Hq, 2, Wq, 2, C).transpose(0, 2, 4, 1, 3, 5)
    return planes.reshape(B, 4 * Hq * Wq, C), Hq, Wq, Ho, Wo


# ----------------------------------------------------------------------------
# Kernel 1: stem matmul (im2col'd 3x3 s2 conv) + folded BN + ReLU.
# bf16 operands, f32 MXU accumulation, lane-dense (128-padded) N.
# ----------------------------------------------------------------------------
def _matmul_bias_relu_kernel(x_ref, w_ref, b_ref, o_ref):
    y = jnp.dot(x_ref[...], w_ref[...], preferred_element_type=jnp.float32)
    o_ref[...] = jnp.maximum(y + b_ref[...], 0.0).astype(o_ref.dtype)


def conv3x3_bn_relu_s2_stem(x_nhwc, w, bias):
    # TODO(synk): im2col duplicates the 3-channel stem input 9x; acceptable
    # for the dense stem only.
    B, H, W, Cin = x_nhwc.shape
    Ho, Wo = H // 2, W // 2
    xp = jnp.pad(x_nhwc, ((0, 0), (1, 1), (1, 1), (0, 0)))
    taps = [xp[:, dh::2, dw::2, :][:, :Ho, :Wo, :]
            for dh in range(3) for dw in range(3)]
    cols = jnp.stack(taps, axis=3).reshape(B * Ho * Wo, 9 * Cin)

    M, K = cols.shape
    C0 = w.shape[1]
    Kp = _round_up(K, 32)
    Np = _round_up(C0, _LANES)
    cols = jnp.pad(cols, ((0, 0), (0, Kp - K)))
    wp = jnp.pad(w, ((0, Kp - K), (0, Np - C0)))
    bp = jnp.pad(bias, (0, Np - C0)).reshape(1, Np)

    # 256-row tiles feed the 2x256 MXU on v6e/v7x; fall back gracefully.
    if M % 256 == 0:
        tm = 256
    elif M % 128 == 0:
        tm = 128
    else:
        tm = _round_up(M, 8)
    Mp = _round_up(M, tm)
    if Mp != M:
        cols = jnp.pad(cols, ((0, Mp - M), (0, 0)))

    out = pl.pallas_call(
        _matmul_bias_relu_kernel,
        out_shape=jax.ShapeDtypeStruct((Mp, Np), jnp.bfloat16),
        grid=(Mp // tm,),
        in_specs=[
            pl.BlockSpec((tm, Kp), lambda i: (i, 0)),
            pl.BlockSpec((Kp, Np), lambda i: (0, 0)),
            pl.BlockSpec((1, Np), lambda i: (0, 0)),
        ],
        out_specs=pl.BlockSpec((tm, Np), lambda i: (i, 0)),
        compiler_params=_cparams(),
    )(cols.astype(jnp.bfloat16), wp.astype(jnp.bfloat16), bp.astype(jnp.float32))
    out = out[:M, :C0].reshape(B, Ho * Wo, C0)
    return out, Ho, Wo


# ----------------------------------------------------------------------------
# Kernel 2: max-pool 3x3 stride 2 pad 1 on the plane-flat layout.
# TODO(synk): pad positions are 0 (not -inf); valid because inputs are
# post-ReLU (>= 0), matching PyTorch's implicit -inf padding semantics here.
# ----------------------------------------------------------------------------
def _maxpool_kernel(p_ref, o_ref, *, Hq, Wq, Ho, Wo):
    L = (Ho - 1) * Wq + Wo
    p = p_ref[0].astype(jnp.float32)
    m = None
    for dh in range(3):
        for dw in range(3):
            start = (2 * (dh % 2) + (dw % 2)) * Hq * Wq + (dh // 2) * Wq + (dw // 2)
            tap = p[start:start + L, :]
            m = tap if m is None else jnp.maximum(m, tap)
    rows = [m[k * Wq:k * Wq + Wo, :] for k in range(Ho)]
    out = rows[0] if Ho == 1 else jnp.concatenate(rows, axis=0)
    o_ref[0] = out.astype(o_ref.dtype)


def maxpool3x3_s2(x_flat, H, W):
    planes, Hq, Wq, Ho, Wo = to_planes_flat(x_flat, H, W)
    B, Rf, C = planes.shape
    out = pl.pallas_call(
        functools.partial(_maxpool_kernel, Hq=Hq, Wq=Wq, Ho=Ho, Wo=Wo),
        out_shape=jax.ShapeDtypeStruct((B, Ho * Wo, C), jnp.bfloat16),
        grid=(B,),
        in_specs=[pl.BlockSpec((1, Rf, C), lambda n: (n, 0, 0))],
        out_specs=pl.BlockSpec((1, Ho * Wo, C), lambda n: (n, 0, 0)),
        compiler_params=_cparams(),
    )(planes)
    return out, Ho, Wo


# ----------------------------------------------------------------------------
# Kernel 3: fused stride-2 InvertedResidual (branch1 + branch2 + shuffle).
# ----------------------------------------------------------------------------
def _block_s2_kernel(p_ref, wdw1_ref, bdw1_ref, wpw1_ref, bpw1_ref,
                     wpw21_ref, bpw21_ref, wdw2_ref, bdw2_ref,
                     wpw22_ref, bpw22_ref, o_ref, *, Hq, Wq, Ho, Wo):
    L = (Ho - 1) * Wq + Wo
    p = p_ref[0]                                      # (Rf, Cin) bf16
    Rf, cin = p.shape
    bf = wpw21_ref.shape[1]

    # branch2 first 1x1 + BN + ReLU applied directly on the parity planes
    # (1x1 is pointwise, so it commutes with the spatial rearrangement).
    y2 = jnp.dot(p, wpw21_ref[...], preferred_element_type=jnp.float32)
    y2 = jnp.maximum(y2 + bpw21_ref[...], 0.0)        # (Rf, bf)

    # Zero the plane rows that came from the zero padding of the image
    # (otherwise ReLU(bias) leaks into the depthwise taps).  Masks built
    # in-kernel from iota -- no mask DMA.
    ridx = jax.lax.broadcasted_iota(jnp.int32, (Rf, 1), 0).astype(jnp.float32)
    q1, rem = _flat_divmod(ridx, Hq * Wq)             # plane index, in-plane offset
    q2, j = _flat_divmod(rem, Wq)                     # row, col inside the plane
    p_lt2 = q1 < 1.5
    p_even = (q1 < 0.5) | ((q1 > 1.5) & (q1 < 2.5))
    pad = ((p_lt2 & (q2 < 0.5))
           | (jnp.logical_not(p_lt2) & (q2 > Hq - 1.5))
           | (p_even & (j < 0.5))
           | (jnp.logical_not(p_even) & (j > Wq - 1.5)))
    y2 = y2 * (1.0 - pad.astype(jnp.float32))

    # Both depthwise 3x3 stride-2 convs: each tap is a static contiguous slice
    # of the plane-flat layout; interleaved "gap" rows are garbage and dropped
    # by the extraction below.
    pf = p.astype(jnp.float32)
    acc1 = jnp.zeros((L, cin), jnp.float32)
    acc2 = jnp.zeros((L, bf), jnp.float32)
    for dh in range(3):
        for dw in range(3):
            t = dh * 3 + dw
            start = ((2 * (dh % 2) + (dw % 2)) * Hq * Wq
                     + (dh // 2) * Wq + (dw // 2))
            acc1 = acc1 + pf[start:start + L, :] * wdw1_ref[t]
            acc2 = acc2 + y2[start:start + L, :] * wdw2_ref[t]

    def extract(a):
        rows = [a[k * Wq:k * Wq + Wo, :] for k in range(Ho)]
        return rows[0] if Ho == 1 else jnp.concatenate(rows, axis=0)

    z1 = extract(acc1) + bdw1_ref[...]                # branch1 dw + BN
    z2 = extract(acc2) + bdw2_ref[...]                # branch2 dw + BN

    # Per-branch final 1x1 + BN + ReLU; the weights/biases are pre-scattered to
    # even (branch1) / odd (branch2) output columns, so the sum below directly
    # realizes channel_shuffle(concat(b1, b2), groups=2).
    o1 = jnp.dot(z1.astype(jnp.bfloat16), wpw1_ref[...],
                 preferred_element_type=jnp.float32)
    o1 = jnp.maximum(o1 + bpw1_ref[...], 0.0)
    o2 = jnp.dot(z2.astype(jnp.bfloat16), wpw22_ref[...],
                 preferred_element_type=jnp.float32)
    o2 = jnp.maximum(o2 + bpw22_ref[...], 0.0)
    o_ref[0] = (o1 + o2).astype(o_ref.dtype)


def block_s2(p, x_flat, H, W):
    B, _, Cin = x_flat.shape
    planes, Hq, Wq, Ho, Wo = to_planes_flat(x_flat, H, W)
    Rf = planes.shape[1]
    bf = p["b2_pw1_w"].shape[1]
    out = pl.pallas_call(
        functools.partial(_block_s2_kernel, Hq=Hq, Wq=Wq, Ho=Ho, Wo=Wo),
        out_shape=jax.ShapeDtypeStruct((B, Ho * Wo, 2 * bf), jnp.bfloat16),
        grid=(B,),
        in_specs=[
            pl.BlockSpec((1, Rf, Cin), lambda n: (n, 0, 0)),
            pl.BlockSpec((9, 1, Cin), lambda n: (0, 0, 0)),
            pl.BlockSpec((1, Cin), lambda n: (0, 0)),
            pl.BlockSpec((Cin, 2 * bf), lambda n: (0, 0)),
            pl.BlockSpec((1, 2 * bf), lambda n: (0, 0)),
            pl.BlockSpec((Cin, bf), lambda n: (0, 0)),
            pl.BlockSpec((1, bf), lambda n: (0, 0)),
            pl.BlockSpec((9, 1, bf), lambda n: (0, 0, 0)),
            pl.BlockSpec((1, bf), lambda n: (0, 0)),
            pl.BlockSpec((bf, 2 * bf), lambda n: (0, 0)),
            pl.BlockSpec((1, 2 * bf), lambda n: (0, 0)),
        ],
        out_specs=pl.BlockSpec((1, Ho * Wo, 2 * bf), lambda n: (n, 0, 0)),
        compiler_params=_cparams(),
    )(planes, p["b1_dw_w"], p["b1_dw_b"], p["b1_pw_w"], p["b1_pw_b"],
      p["b2_pw1_w"], p["b2_pw1_b"], p["b2_dw_w"], p["b2_dw_b"],
      p["b2_pw2_w"], p["b2_pw2_b"])
    return out, Ho, Wo


# ----------------------------------------------------------------------------
# Kernel 4: fused stride-1 InvertedResidual (split + branch2 + shuffle).
# ----------------------------------------------------------------------------
def _block_s1_kernel(x_ref, w1_ref, b1_ref, wdw_ref, bdw_ref, w2_ref, b2_ref,
                     o_ref, *, H, W):
    HW = H * W
    x = x_ref[0]                                      # (HW, 2*bf) bf16
    bf = x.shape[1] // 2
    x1 = x[:, :bf]                                    # passthrough half
    x2 = x[:, bf:]                                    # branch2 input half

    # branch2: 1x1 + BN + ReLU.
    y = jnp.dot(x2, w1_ref[...], preferred_element_type=jnp.float32)
    y = jnp.maximum(y + b1_ref[...], 0.0)             # (HW, bf)

    # Depthwise 3x3 s1 p1 on the flattened layout: vertical padding via zero
    # extension, horizontal wrap killed by in-kernel iota column masks.
    ridx = jax.lax.broadcasted_iota(jnp.int32, (HW, 1), 0).astype(jnp.float32)
    _, col = _flat_divmod(ridx, W)
    not_left = (col >= 0.5).astype(jnp.float32)       # col >= 1
    not_right = (col <= W - 1.5).astype(jnp.float32)  # col <= W - 2
    zext = jnp.zeros((W + 1, bf), jnp.float32)
    yp = jnp.concatenate([zext, y, zext], axis=0)     # (HW + 2W + 2, bf)
    acc = jnp.zeros((HW, bf), jnp.float32)
    # TODO(synk): unaligned sublane slices; row-tile / pltpu.roll at large HW.
    for dh in range(3):
        for dw in range(3):
            s = dh * W + dw
            tap = yp[s:s + HW, :]
            if dw == 0:
                tap = tap * not_left
            elif dw == 2:
                tap = tap * not_right
            acc = acc + tap * wdw_ref[dh * 3 + dw]
    z = acc + bdw_ref[...]                            # dw + BN, no ReLU

    # branch2: final 1x1 + BN + ReLU, pre-scattered to odd output columns.
    o2 = jnp.dot(z.astype(jnp.bfloat16), w2_ref[...],
                 preferred_element_type=jnp.float32)
    o2 = jnp.maximum(o2 + b2_ref[...], 0.0)           # (HW, 2*bf)

    # x1 passthrough scattered to even output columns (= channel_shuffle).
    rowi = jax.lax.broadcasted_iota(jnp.int32, (bf, 2 * bf), 0)
    coli = jax.lax.broadcasted_iota(jnp.int32, (bf, 2 * bf), 1)
    sel = (coli == 2 * rowi).astype(jnp.bfloat16)
    o1 = jnp.dot(x1, sel, preferred_element_type=jnp.float32)

    o_ref[0] = (o1 + o2).astype(o_ref.dtype)


def block_s1(p, x_flat, H, W):
    B, HW, C = x_flat.shape
    bf = C // 2
    return pl.pallas_call(
        functools.partial(_block_s1_kernel, H=H, W=W),
        out_shape=jax.ShapeDtypeStruct((B, HW, C), jnp.bfloat16),
        grid=(B,),
        in_specs=[
            pl.BlockSpec((1, HW, C), lambda n: (n, 0, 0)),
            pl.BlockSpec((bf, bf), lambda n: (0, 0)),
            pl.BlockSpec((1, bf), lambda n: (0, 0)),
            pl.BlockSpec((9, 1, bf), lambda n: (0, 0, 0)),
            pl.BlockSpec((1, bf), lambda n: (0, 0)),
            pl.BlockSpec((bf, C), lambda n: (0, 0)),
            pl.BlockSpec((1, C), lambda n: (0, 0)),
        ],
        out_specs=pl.BlockSpec((1, HW, C), lambda n: (n, 0, 0)),
        compiler_params=_cparams(),
    )(x_flat, p["b2_pw1_w"], p["b2_pw1_b"], p["b2_dw_w"], p["b2_dw_b"],
      p["b2_pw2_w"], p["b2_pw2_b"])


# ----------------------------------------------------------------------------
# Kernel 5: fused conv5 (1x1 + BN + ReLU) + global spatial mean + FC.
# ----------------------------------------------------------------------------
def _head_kernel(x_ref, w5_ref, b5_ref, wfc_ref, bfc_ref, o_ref, *, inv_hw):
    x = x_ref[0]                                      # (HW, C) bf16
    y = jnp.dot(x, w5_ref[...], preferred_element_type=jnp.float32)
    y = jnp.maximum(y + b5_ref[...], 0.0)             # (HW, C5)
    m = jnp.sum(y, axis=0, keepdims=True) * inv_hw    # (1, C5)
    logits = jnp.dot(m.astype(jnp.bfloat16), wfc_ref[...],
                     preferred_element_type=jnp.float32)
    o_ref[0] = (logits + bfc_ref[...]).astype(o_ref.dtype)


def head(x_flat, w5, b5, wfc, bfc, num_classes):
    B, HW, C = x_flat.shape
    C5 = w5.shape[1]
    Np = wfc.shape[1]
    out = pl.pallas_call(
        functools.partial(_head_kernel, inv_hw=1.0 / HW),
        out_shape=jax.ShapeDtypeStruct((B, 1, Np), jnp.float32),
        grid=(B,),
        in_specs=[
            pl.BlockSpec((1, HW, C), lambda n: (n, 0, 0)),
            pl.BlockSpec((C, C5), lambda n: (0, 0)),
            pl.BlockSpec((1, C5), lambda n: (0, 0)),
            pl.BlockSpec((C5, Np), lambda n: (0, 0)),
            pl.BlockSpec((1, Np), lambda n: (0, 0)),
        ],
        out_specs=pl.BlockSpec((1, 1, Np), lambda n: (n, 0, 0)),
        compiler_params=_cparams(),
    )(x_flat, w5, b5, wfc, bfc)
    return out.reshape(B, Np)[:, :num_classes]


# ----------------------------------------------------------------------------
# Parameters (deterministic init, BN folded, shuffle folded into weights).
# ----------------------------------------------------------------------------
def _bn_fold(key, c, eps=1e-5):
    k1, k2, k3, k4 = jax.random.split(key, 4)
    gamma = 1.0 + 0.1 * jax.random.normal(k1, (c,), jnp.float32)
    beta = 0.1 * jax.random.normal(k2, (c,), jnp.float32)
    mean = 0.1 * jax.random.normal(k3, (c,), jnp.float32)
    var = 1.0 + 0.1 * jnp.abs(jax.random.normal(k4, (c,), jnp.float32))
    scale = gamma / jnp.sqrt(var + eps)
    bias = beta - mean * scale
    return scale, bias


def _w(key, shape, fan_in):
    return jax.random.normal(key, shape, jnp.float32) * (1.0 / jnp.sqrt(fan_in))


def _scatter_cols(w, b, parity):
    """Place (Cin, bf) weight columns / (bf,) bias at columns 2*j + parity of a
    2*bf-wide output, so branch outputs land pre-shuffled."""
    cin, bf = w.shape
    w2 = jnp.zeros((cin, 2 * bf), w.dtype).at[:, parity::2].set(w)
    b2 = jnp.zeros((2 * bf,), b.dtype).at[parity::2].set(b)
    return w2, b2


def init_block(key, inp, oup, stride):
    bf = oup // 2
    if stride == 1 and inp != (bf << 1):
        raise ValueError("invalid stride/inp/oup combination")
    keys = jax.random.split(key, 10)
    p = {"stride": stride}
    if stride > 1:
        s, b = _bn_fold(keys[1], inp)
        p["b1_dw_w"] = (_w(keys[0], (9, 1, inp), 9.0) * s).astype(jnp.float32)
        p["b1_dw_b"] = b.reshape(1, inp).astype(jnp.float32)
        s, b = _bn_fold(keys[3], bf)
        w_, b_ = _scatter_cols(_w(keys[2], (inp, bf), inp) * s, b, parity=0)
        p["b1_pw_w"] = w_.astype(jnp.bfloat16)
        p["b1_pw_b"] = b_.reshape(1, 2 * bf).astype(jnp.float32)
    cin2 = inp if stride > 1 else bf
    s, b = _bn_fold(keys[5], bf)
    p["b2_pw1_w"] = (_w(keys[4], (cin2, bf), cin2) * s).astype(jnp.bfloat16)
    p["b2_pw1_b"] = b.reshape(1, bf).astype(jnp.float32)
    s, b = _bn_fold(keys[7], bf)
    p["b2_dw_w"] = (_w(keys[6], (9, 1, bf), 9.0) * s).astype(jnp.float32)
    p["b2_dw_b"] = b.reshape(1, bf).astype(jnp.float32)
    s, b = _bn_fold(keys[9], bf)
    w_, b_ = _scatter_cols(_w(keys[8], (bf, bf), bf) * s, b, parity=1)
    p["b2_pw2_w"] = w_.astype(jnp.bfloat16)
    p["b2_pw2_b"] = b_.reshape(1, 2 * bf).astype(jnp.float32)
    return p


def init_shufflenet(key, stages_repeats, stages_out_channels, num_classes):
    assert len(stages_repeats) == 3 and len(stages_out_channels) == 5
    params = {"num_classes": num_classes}
    keys = jax.random.split(key, 8)
    c0 = stages_out_channels[0]
    s, b = _bn_fold(keys[1], c0)
    params["conv1_w"] = (_w(keys[0], (27, c0), 27.0) * s).astype(jnp.float32)
    params["conv1_b"] = b.astype(jnp.float32)
    input_channels = c0
    stage_keys = jax.random.split(keys[2], 3)
    stages = []
    for si, (repeats, out_c) in enumerate(
        zip(stages_repeats, stages_out_channels[1:4])
    ):
        bkeys = jax.random.split(stage_keys[si], repeats)
        blocks = [init_block(bkeys[0], input_channels, out_c, 2)]
        for r in range(1, repeats):
            blocks.append(init_block(bkeys[r], out_c, out_c, 1))
        stages.append(blocks)
        input_channels = out_c
    params["stages"] = stages
    c5 = stages_out_channels[-1]
    s, b = _bn_fold(keys[4], c5)
    params["conv5_w"] = (
        _w(keys[3], (input_channels, c5), input_channels) * s
    ).astype(jnp.bfloat16)
    params["conv5_b"] = b.reshape(1, c5).astype(jnp.float32)
    ncls_p = _round_up(num_classes, _LANES)
    fc_w = _w(keys[5], (c5, num_classes), c5)
    fc_b = 0.1 * jax.random.normal(keys[6], (num_classes,), jnp.float32)
    params["fc_w"] = jnp.pad(fc_w, ((0, 0), (0, ncls_p - num_classes))
                             ).astype(jnp.bfloat16)
    params["fc_b"] = jnp.pad(fc_b, (0, ncls_p - num_classes)
                             ).reshape(1, ncls_p).astype(jnp.float32)
    return params


# ----------------------------------------------------------------------------
# Forward pass.  Activations travel as flat (B, H*W, C) bf16 between kernels.
# ----------------------------------------------------------------------------
def shufflenet_v2_forward(params, x_nchw):
    x = jnp.transpose(x_nchw, (0, 2, 3, 1)).astype(jnp.bfloat16)   # NHWC
    x, H, W = conv3x3_bn_relu_s2_stem(x, params["conv1_w"], params["conv1_b"])
    x, H, W = maxpool3x3_s2(x, H, W)
    for blocks in params["stages"]:
        for bp in blocks:
            if bp["stride"] == 2:
                x, H, W = block_s2(bp, x, H, W)
            else:
                x = block_s1(bp, x, H, W)
    return head(x, params["conv5_w"], params["conv5_b"],
                params["fc_w"], params["fc_b"], params["num_classes"])


# ----------------------------------------------------------------------------
if __name__ == "__main__":
    key = jax.random.PRNGKey(0)
    pkey, xkey = jax.random.split(key)

    stages_repeats = [2, 2, 2]
    stages_out_channels = [8, 16, 32, 64, 128]
    num_classes = 10

    params = init_shufflenet(pkey, stages_repeats, stages_out_channels,
                             num_classes)

    # Input follows the PyTorch NCHW convention: (batch=2, channels=3, 32, 32).
    x = jax.random.normal(xkey, (2, 3, 32, 32), jnp.float32)

    fwd = jax.jit(functools.partial(shufflenet_v2_forward, params))
    out = jax.block_until_ready(fwd(x))

    assert out.shape == (2, num_classes), out.shape
    assert bool(jnp.all(jnp.isfinite(out)))
    print("KERNEL_OK")
</pallas_src>

<mosaic_0001>
module attributes {stable_mosaic.version = 11 : i64} {
  func.func @_matmul_bias_relu_kernel(%arg0: i32, %arg1: memref<256x32xbf16, #tpu.memory_space<vmem>>, %arg2: memref<32x128xbf16, #tpu.memory_space<vmem>>, %arg3: memref<1x128xf32, #tpu.memory_space<vmem>>, %arg4: memref<256x128xbf16, #tpu.memory_space<vmem>>) attributes {dimension_semantics = [#tpu.dimension_semantics<parallel>], iteration_bounds = array<i64: 2>, scalar_prefetch = 0 : i64, scratch_operands = 0 : i64, tpu.core_type = #tpu.core_type<tc>, window_params = [{transform_indices = @transform_0, window_bounds = array<i64: 256, 32>}, {pipeline_mode = #tpu.pipeline_mode<synchronous>, transform_indices = @transform_1, window_bounds = array<i64: 32, 128>}, {pipeline_mode = #tpu.pipeline_mode<synchronous>, transform_indices = @transform_2, window_bounds = array<i64: 1, 128>}, {transform_indices = @transform_3, window_bounds = array<i64: 256, 128>}]} {
    %c0 = arith.constant 0 : index
    %c0_0 = arith.constant 0 : index
    %0 = vector.load %arg1[%c0, %c0_0] : memref<256x32xbf16, #tpu.memory_space<vmem>>, vector<256x32xbf16>
    %c0_1 = arith.constant 0 : index
    %c0_2 = arith.constant 0 : index
    %1 = vector.load %arg2[%c0_1, %c0_2] : memref<32x128xbf16, #tpu.memory_space<vmem>>, vector<32x128xbf16>
    %cst = arith.constant dense<0.000000e+00> : vector<256x128xf32>
    %2 = tpu.matmul %0, %1, %cst {dimension_numbers = #tpu.dot_dimension_numbers<[1], [0], [0], [1], [0, 0, 1, 1], [], []>} : vector<256x32xbf16>, vector<32x128xbf16>, vector<256x128xf32> -> vector<256x128xf32>
    %c0_3 = arith.constant 0 : index
    %c0_4 = arith.constant 0 : index
    %3 = vector.load %arg3[%c0_3, %c0_4] : memref<1x128xf32, #tpu.memory_space<vmem>>, vector<1x128xf32>
    %4 = vector.broadcast %3 : vector<1x128xf32> to vector<256x128xf32>
    %5 = arith.addf %2, %4 : vector<256x128xf32>
    %cst_5 = arith.constant 0.000000e+00 : f32
    %6 = vector.broadcast %cst_5 : f32 to vector<256x128xf32>
    %7 = arith.maximumf %5, %6 : vector<256x128xf32>
    %8 = arith.truncf %7 : vector<256x128xf32> to vector<256x128xbf16>
    %c0_6 = arith.constant 0 : index
    %c0_7 = arith.constant 0 : index
    %9 = vector.load %arg4[%c0_6, %c0_7] : memref<256x128xbf16, #tpu.memory_space<vmem>>, vector<256x128xbf16>
    tpu.vector_store %arg4[%c0_6, %c0_7], %8 {strides = array<i32>} : memref<256x128xbf16, #tpu.memory_space<vmem>>, vector<256x128xbf16>,
    return
  }
  func.func @transform_0(%arg0: i32) -> (i32, i32) {
    %c0_i32 = arith.constant 0 : i32
    %c0_i32_0 = arith.constant 0 : i32
    return %arg0, %c0_i32 : i32, i32
  }
  func.func @transform_1(%arg0: i32) -> (i32, i32) {
    %c0_i32 = arith.constant 0 : i32
    %c0_i32_0 = arith.constant 0 : i32
    %c0_i32_1 = arith.constant 0 : i32
    return %c0_i32, %c0_i32_0 : i32, i32
  }
  func.func @transform_2(%arg0: i32) -> (i32, i32) {
    %c0_i32 = arith.constant 0 : i32
    %c0_i32_0 = arith.constant 0 : i32
    %c0_i32_1 = arith.constant 0 : i32
    return %c0_i32, %c0_i32_0 : i32, i32
  }
  func.func @transform_3(%arg0: i32) -> (i32, i32) {
    %c0_i32 = arith.constant 0 : i32
    %c0_i32_0 = arith.constant 0 : i32
    return %arg0, %c0_i32 : i32, i32
  }
}

module attributes {stable_mosaic.version = 11 : i64} {
  func.func @_maxpool_kernel(%arg0: i32, %arg1: memref<1x324x8xbf16, #tpu.memory_space<vmem>>, %arg2: memref<1x64x8xbf16, #tpu.memory_space<vmem>>) attributes {dimension_semantics = [#tpu.dimension_semantics<parallel>], iteration_bounds = array<i64: 2>, scalar_prefetch = 0 : i64, scratch_operands = 0 : i64, tpu.core_type = #tpu.core_type<tc>, window_params = [{transform_indices = @transform_0, window_bounds = array<i64: 1, 324, 8>}, {transform_indices = @transform_1, window_bounds = array<i64: 1, 64, 8>}]} {
    %c0 = arith.constant 0 : index
    %c0_0 = arith.constant 0 : index
    %c0_1 = arith.constant 0 : index
    %0 = vector.load %arg1[%c0, %c0_0, %c0_1] : memref<1x324x8xbf16, #tpu.memory_space<vmem>>, vector<1x324x8xbf16>
    %1 = vector.shape_cast %0 : vector<1x324x8xbf16> to vector<324x8xbf16>
    %2 = arith.extf %1 : vector<324x8xbf16> to vector<324x8xf32>
    %3 = vector.extract_strided_slice %2 {offsets = [0, 0], sizes = [71, 8], strides = [1, 1]} : vector<324x8xf32> to vector<71x8xf32>
    %4 = vector.extract_strided_slice %2 {offsets = [81, 0], sizes = [71, 8], strides = [1, 1]} : vector<324x8xf32> to vector<71x8xf32>
    %5 = arith.maximumf %3, %4 : vector<71x8xf32>
    %6 = vector.extract_strided_slice %2 {offsets = [1, 0], sizes = [71, 8], strides = [1, 1]} : vector<324x8xf32> to vector<71x8xf32>
    %7 = arith.maximumf %5, %6 : vector<71x8xf32>
    %8 = vector.extract_strided_slice %2 {offsets = [162, 0], sizes = [71, 8], strides = [1, 1]} : vector<324x8xf32> to vector<71x8xf32>
    %9 = arith.maximumf %7, %8 : vector<71x8xf32>
    %10 = vector.extract_strided_slice %2 {offsets = [243, 0], sizes = [71, 8], strides = [1, 1]} : vector<324x8xf32> to vector<71x8xf32>
    %11 = arith.maximumf %9, %10 : vector<71x8xf32>
    %12 = vector.extract_strided_slice %2 {offsets = [163, 0], sizes = [71, 8], strides = [1, 1]} : vector<324x8xf32> to vector<71x8xf32>
    %13 = arith.maximumf %11, %12 : vector<71x8xf32>
    %14 = vector.extract_strided_slice %2 {offsets = [9, 0], sizes = [71, 8], strides = [1, 1]} : vector<324x8xf32> to vector<71x8xf32>
    %15 = arith.maximumf %13, %14 : vector<71x8xf32>
    %16 = vector.extract_strided_slice %2 {offsets = [90, 0], sizes = [71, 8], strides = [1, 1]} : vector<324x8xf32> to vector<71x8xf32>
    %17 = arith.maximumf %15, %16 : vector<71x8xf32>
    %18 = vector.extract_strided_slice %2 {offsets = [10, 0], sizes = [71, 8], strides = [1, 1]} : vector<324x8xf32> to vector<71x8xf32>
    %19 = arith.maximumf %17, %18 : vector<71x8xf32>
    %20 = vector.extract_strided_slice %19 {offsets = [0, 0], sizes = [8, 8], strides = [1, 1]} : vector<71x8xf32> to vector<8x8xf32>
    %21 = vector.extract_strided_slice %19 {offsets = [9, 0], sizes = [8, 8], strides = [1, 1]} : vector<71x8xf32> to vector<8x8xf32>
    %22 = vector.extract_strided_slice %19 {offsets = [18, 0], sizes = [8, 8], strides = [1, 1]} : vector<71x8xf32> to vector<8x8xf32>
    %23 = vector.extract_strided_slice %19 {offsets = [27, 0], sizes = [8, 8], strides = [1, 1]} : vector<71x8xf32> to vector<8x8xf32>
    %24 = vector.extract_strided_slice %19 {offsets = [36, 0], sizes = [8, 8], strides = [1, 1]} : vector<71x8xf32> to vector<8x8xf32>
    %25 = vector.extract_strided_slice %19 {offsets = [45, 0], sizes = [8, 8], strides = [1, 1]} : vector<71x8xf32> to vector<8x8xf32>
    %26 = vector.extract_strided_slice %19 {offsets = [54, 0], sizes = [8, 8], strides = [1, 1]} : vector<71x8xf32> to vector<8x8xf32>
    %27 = vector.extract_strided_slice %19 {offsets = [63, 0], sizes = [8, 8], strides = [1, 1]} : vector<71x8xf32> to vector<8x8xf32>
    %28 = tpu.concatenate %20, %21, %22, %23, %24, %25, %26, %27 in 0 : vector<8x8xf32>, vector<8x8xf32>, vector<8x8xf32>, vector<8x8xf32>, vector<8x8xf32>, vector<8x8xf32>, vector<8x8xf32>, vector<8x8xf32> -> vector<64x8xf32>
    %29 = arith.truncf %28 : vector<64x8xf32> to vector<64x8xbf16>
    %c0_2 = arith.constant 0 : index
    %c0_3 = arith.constant 0 : index
    %c0_4 = arith.constant 0 : index
    %30 = vector.load %arg2[%c0_2, %c0_3, %c0_4] : memref<1x64x8xbf16, #tpu.memory_space<vmem>>, vector<1x64x8xbf16>
    %31 = vector.shape_cast %30 : vector<1x64x8xbf16> to vector<64x8xbf16>
    %32 = vector.shape_cast %29 : vector<64x8xbf16> to vector<1x64x8xbf16>
    tpu.vector_store %arg2[%c0_2, %c0_3, %c0_4], %32 {strides = array<i32>} : memref<1x64x8xbf16, #tpu.memory_space<vmem>>, vector<1x64x8xbf16>,
    return
  }
  func.func @transform_0(%arg0: i32) -> (i32, i32, i32) {
    %c0_i32 = arith.constant 0 : i32
    %c0_i32_0 = arith.constant 0 : i32
    %c0_i32_1 = arith.constant 0 : i32
    return %arg0, %c0_i32, %c0_i32_0 : i32, i32, i32
  }
  func.func @transform_1(%arg0: i32) -> (i32, i32, i32) {
    %c0_i32 = arith.constant 0 : i32
    %c0_i32_0 = arith.constant 0 : i32
    %c0_i32_1 = arith.constant 0 : i32
    return %arg0, %c0_i32, %c0_i32_0 : i32, i32, i32
  }
}

module attributes {stable_mosaic.version = 11 : i64} {
  func.func @_block_s2_kernel(%arg0: i32, %arg1: memref<1x100x8xbf16, #tpu.memory_space<vmem>>, %arg2: memref<9x1x8xf32, #tpu.memory_space<vmem>>, %arg3: memref<1x8xf32, #tpu.memory_space<vmem>>, %arg4: memref<8x16xbf16, #tpu.memory_space<vmem>>, %arg5: memref<1x16xf32, #tpu.memory_space<vmem>>, %arg6: memref<8x8xbf16, #tpu.memory_space<vmem>>, %arg7: memref<1x8xf32, #tpu.memory_space<vmem>>, %arg8: memref<9x1x8xf32, #tpu.memory_space<vmem>>, %arg9: memref<1x8xf32, #tpu.memory_space<vmem>>, %arg10: memref<8x16xbf16, #tpu.memory_space<vmem>>, %arg11: memref<1x16xf32, #tpu.memory_space<vmem>>, %arg12: memref<1x16x16xbf16, #tpu.memory_space<vmem>>) attributes {dimension_semantics = [#tpu.dimension_semantics<parallel>], iteration_bounds = array<i64: 2>, scalar_prefetch = 0 : i64, scratch_operands = 0 : i64, tpu.core_type = #tpu.core_type<tc>, window_params = [{transform_indices = @transform_0, window_bounds = array<i64: 1, 100, 8>}, {pipeline_mode = #tpu.pipeline_mode<synchronous>, transform_indices = @transform_1, window_bounds = array<i64: 9, 1, 8>}, {pipeline_mode = #tpu.pipeline_mode<synchronous>, transform_indices = @transform_2, window_bounds = array<i64: 1, 8>}, {pipeline_mode = #tpu.pipeline_mode<synchronous>, transform_indices = @transform_3, window_bounds = array<i64: 8, 16>}, {pipeline_mode = #tpu.pipeline_mode<synchronous>, transform_indices = @transform_4, window_bounds = array<i64: 1, 16>}, {pipeline_mode = #tpu.pipeline_mode<synchronous>, transform_indices = @transform_5, window_bounds = array<i64: 8, 8>}, {pipeline_mode = #tpu.pipeline_mode<synchronous>, transform_indices = @transform_6, window_bounds = array<i64: 1, 8>}, {pipeline_mode = #tpu.pipeline_mode<synchronous>, transform_indices = @transform_7, window_bounds = array<i64: 9, 1, 8>}, {pipeline_mode = #tpu.pipeline_mode<synchronous>, transform_indices = @transform_8, window_bounds = array<i64: 1, 8>}, {pipeline_mode = #tpu.pipeline_mode<synchronous>, transform_indices = @transform_9, window_bounds = array<i64: 8, 16>}, {pipeline_mode = #tpu.pipeline_mode<synchronous>, transform_indices = @transform_10, window_bounds = array<i64: 1, 16>}, {transform_indices = @transform_11, window_bounds = array<i64: 1, 16, 16>}]} {
    %c0 = arith.constant 0 : index
    %c0_0 = arith.constant 0 : index
    %c0_1 = arith.constant 0 : index
    %0 = vector.load %arg1[%c0, %c0_0, %c0_1] : memref<1x100x8xbf16, #tpu.memory_space<vmem>>, vector<1x100x8xbf16>
    %1 = vector.shape_cast %0 : vector<1x100x8xbf16> to vector<100x8xbf16>
    %c0_2 = arith.constant 0 : index
    %c0_3 = arith.constant 0 : index
    %2 = vector.load %arg6[%c0_2, %c0_3] : memref<8x8xbf16, #tpu.memory_space<vmem>>, vector<8x8xbf16>
    %cst = arith.constant dense<0.000000e+00> : vector<100x8xf32>
    %3 = tpu.matmul %1, %2, %cst {dimension_numbers = #tpu.dot_dimension_numbers<[1], [0], [0], [1], [0, 0, 1, 1], [], []>} : vector<100x8xbf16>, vector<8x8xbf16>, vector<100x8xf32> -> vector<100x8xf32>
    %c0_4 = arith.constant 0 : index
    %c0_5 = arith.constant 0 : index
    %4 = vector.load %arg7[%c0_4, %c0_5] : memref<1x8xf32, #tpu.memory_space<vmem>>, vector<1x8xf32>
    %5 = vector.broadcast %4 : vector<1x8xf32> to vector<100x8xf32>
    %6 = arith.addf %3, %5 : vector<100x8xf32>
    %cst_6 = arith.constant 0.000000e+00 : f32
    %7 = vector.broadcast %cst_6 : f32 to vector<100x8xf32>
    %8 = arith.maximumf %6, %7 : vector<100x8xf32>
    %9 = tpu.iota {dimensions = array<i32: 0>} : vector<100x1xi32>
    %10 = arith.sitofp %9 : vector<100x1xi32> to vector<100x1xf32>
    %cst_7 = arith.constant 5.000000e-01 : f32
    %11 = vector.broadcast %cst_7 : f32 to vector<100x1xf32>
    %12 = arith.addf %10, %11 : vector<100x1xf32>
    %cst_8 = arith.constant 4.000000e-02 : f32
    %13 = vector.broadcast %cst_8 : f32 to vector<100x1xf32>
    %14 = arith.mulf %12, %13 : vector<100x1xf32>
    %15 = math.floor %14 : vector<100x1xf32>
    %cst_9 = arith.constant 2.500000e+01 : f32
    %16 = vector.broadcast %cst_9 : f32 to vector<100x1xf32>
    %17 = arith.mulf %15, %16 : vector<100x1xf32>
    %18 = arith.subf %10, %17 : vector<100x1xf32>
    %cst_10 = arith.constant 5.000000e-01 : f32
    %19 = vector.broadcast %cst_10 : f32 to vector<100x1xf32>
    %20 = arith.addf %18, %19 : vector<100x1xf32>
    %cst_11 = arith.constant 2.000000e-01 : f32
    %21 = vector.broadcast %cst_11 : f32 to vector<100x1xf32>
    %22 = arith.mulf %20, %21 : vector<100x1xf32>
    %23 = math.floor %22 : vector<100x1xf32>
    %cst_12 = arith.constant 5.000000e+00 : f32
    %24 = vector.broadcast %cst_12 : f32 to vector<100x1xf32>
    %25 = arith.mulf %23, %24 : vector<100x1xf32>
    %26 = arith.subf %18, %25 : vector<100x1xf32>
    %cst_13 = arith.constant 1.500000e+00 : f32
    %27 = vector.broadcast %cst_13 : f32 to vector<100x1xf32>
    %28 = arith.cmpf olt, %15, %27 : vector<100x1xf32>
    %cst_14 = arith.constant 5.000000e-01 : f32
    %29 = vector.broadcast %cst_14 : f32 to vector<100x1xf32>
    %30 = arith.cmpf olt, %15, %29 : vector<100x1xf32>
    %cst_15 = arith.constant 1.500000e+00 : f32
    %31 = vector.broadcast %cst_15 : f32 to vector<100x1xf32>
    %32 = arith.cmpf ogt, %15, %31 : vector<100x1xf32>
    %cst_16 = arith.constant 2.500000e+00 : f32
    %33 = vector.broadcast %cst_16 : f32 to vector<100x1xf32>
    %34 = arith.cmpf olt, %15, %33 : vector<100x1xf32>
    %35 = arith.andi %32, %34 : vector<100x1xi1>
    %36 = arith.ori %30, %35 : vector<100x1xi1>
    %cst_17 = arith.constant 5.000000e-01 : f32
    %37 = vector.broadcast %cst_17 : f32 to vector<100x1xf32>
    %38 = arith.cmpf olt, %23, %37 : vector<100x1xf32>
    %39 = arith.andi %28, %38 : vector<100x1xi1>
    %cst_18 = arith.constant dense<true> : vector<100x1xi1>
    %40 = arith.xori %28, %cst_18 : vector<100x1xi1>
    %cst_19 = arith.constant 3.500000e+00 : f32
    %41 = vector.broadcast %cst_19 : f32 to vector<100x1xf32>
    %42 = arith.cmpf ogt, %23, %41 : vector<100x1xf32>
    %43 = arith.andi %40, %42 : vector<100x1xi1>
    %44 = arith.ori %39, %43 : vector<100x1xi1>
    %cst_20 = arith.constant 5.000000e-01 : f32
    %45 = vector.broadcast %cst_20 : f32 to vector<100x1xf32>
    %46 = arith.cmpf olt, %26, %45 : vector<100x1xf32>
    %47 = arith.andi %36, %46 : vector<100x1xi1>
    %48 = arith.ori %44, %47 : vector<100x1xi1>
    %cst_21 = arith.constant dense<true> : vector<100x1xi1>
    %49 = arith.xori %36, %cst_21 : vector<100x1xi1>
    %cst_22 = arith.constant 3.500000e+00 : f32
    %50 = vector.broadcast %cst_22 : f32 to vector<100x1xf32>
    %51 = arith.cmpf ogt, %26, %50 : vector<100x1xf32>
    %52 = arith.andi %49, %51 : vector<100x1xi1>
    %53 = arith.ori %48, %52 : vector<100x1xi1>
    %54 = arith.extui %53 : vector<100x1xi1> to vector<100x1xi32>
    %55 = arith.sitofp %54 : vector<100x1xi32> to vector<100x1xf32>
    %cst_23 = arith.constant 1.000000e+00 : f32
    %56 = vector.broadcast %cst_23 : f32 to vector<100x1xf32>
    %57 = arith.subf %56, %55 : vector<100x1xf32>
    %58 = vector.broadcast %57 : vector<100x1xf32> to vector<100x8xf32>
    %59 = arith.mulf %8, %58 : vector<100x8xf32>
    %60 = arith.extf %1 : vector<100x8xbf16> to vector<100x8xf32>
    %cst_24 = arith.constant 0.000000e+00 : f32
    %61 = vector.broadcast %cst_24 : f32 to vector<19x8xf32>
    %cst_25 = arith.constant 0.000000e+00 : f32
    %62 = vector.broadcast %cst_25 : f32 to vector<19x8xf32>
    %63 = vector.extract_strided_slice %60 {offsets = [0, 0], sizes = [19, 8], strides = [1, 1]} : vector<100x8xf32> to vector<19x8xf32>
    %c0_26 = arith.constant 0 : index
    %c0_27 = arith.constant 0 : index
    %c0_28 = arith.constant 0 : index
    %64 = vector.load %arg2[%c0_26, %c0_27, %c0_28] : memref<9x1x8xf32, #tpu.memory_space<vmem>>, vector<1x1x8xf32>
    %65 = vector.shape_cast %64 : vector<1x1x8xf32> to vector<1x8xf32>
    %66 = vector.broadcast %65 : vector<1x8xf32> to vector<19x8xf32>
    %67 = arith.mulf %63, %66 : vector<19x8xf32>
    %68 = arith.addf %61, %67 : vector<19x8xf32>
    %69 = vector.extract_strided_slice %59 {offsets = [0, 0], sizes = [19, 8], strides = [1, 1]} : vector<100x8xf32> to vector<19x8xf32>
    %c0_29 = arith.constant 0 : index
    %c0_30 = arith.constant 0 : index
    %c0_31 = arith.constant 0 : index
    %70 = vector.load %arg8[%c0_29, %c0_30, %c0_31] : memref<9x1x8xf32, #tpu.memory_space<vmem>>, vector<1x1x8xf32>
    %71 = vector.shape_cast %70 : vector<1x1x8xf32> to vector<1x8xf32>
    %72 = vector.broadcast %71 : vector<1x8xf32> to vector<19x8xf32>
    %73 = arith.mulf %69, %72 : vector<19x8xf32>
    %74 = arith.addf %62, %73 : vector<19x8xf32>
    %75 = vector.extract_strided_slice %60 {offsets = [25, 0], sizes = [19, 8], strides = [1, 1]} : vector<100x8xf32> to vector<19x8xf32>
    %c1 = arith.constant 1 : index
    %c0_32 = arith.constant 0 : index
    %c0_33 = arith.constant 0 : index
    %76 = vector.load %arg2[%c1, %c0_32, %c0_33] : memref<9x1x8xf32, #tpu.memory_space<vmem>>, vector<1x1x8xf32>
    %77 = vector.shape_cast %76 : vector<1x1x8xf32> to vector<1x8xf32>
    %78 = vector.broadcast %77 : vector<1x8xf32> to vector<19x8xf32>
    %79 = arith.mulf %75, %78 : vector<19x8xf32>
    %80 = arith.addf %68, %79 : vector<19x8xf32>
    %81 = vector.extract_strided_slice %59 {offsets = [25, 0], sizes = [19, 8], strides = [1, 1]} : vector<100x8xf32> to vector<19x8xf32>
    %c1_34 = arith.constant 1 : index
    %c0_35 = arith.constant 0 : index
    %c0_36 = arith.constant 0 : index
    %82 = vector.load %arg8[%c1_34, %c0_35, %c0_36] : memref<9x1x8xf32, #tpu.memory_space<vmem>>, vector<1x1x8xf32>
    %83 = vector.shape_cast %82 : vector<1x1x8xf32> to vector<1x8xf32>
    %84 = vector.broadcast %83 : vector<1x8xf32> to vector<19x8xf32>
    %85 = arith.mulf %81, %84 : vector<19x8xf32>
    %86 = arith.addf %74, %85 : vector<19x8xf32>
    %87 = vector.extract_strided_slice %60 {offsets = [1, 0], sizes = [19, 8], strides = [1, 1]} : vector<100x8xf32> to vector<19x8xf32>
    %c2 = arith.constant 2 : index
    %c0_37 = arith.constant 0 : index
    %c0_38 = arith.constant 0 : index
    %88 = vector.load %arg2[%c2, %c0_37, %c0_38] : memref<9x1x8xf32, #tpu.memory_space<vmem>>, vector<1x1x8xf32>
    %89 = vector.shape_cast %88 : vector<1x1x8xf32> to vector<1x8xf32>
    %90 = vector.broadcast %89 : vector<1x8xf32> to vector<19x8xf32>
    %91 = arith.mulf %87, %90 : vector<19x8xf32>
    %92 = arith.addf %80, %91 : vector<19x8xf32>
    %93 = vector.extract_strided_slice %59 {offsets = [1, 0], sizes = [19, 8], strides = [1, 1]} : vector<100x8xf32> to vector<19x8xf32>
    %c2_39 = arith.constant 2 : index
    %c0_40 = arith.constant 0 : index
    %c0_41 = arith.constant 0 : index
    %94 = vector.load %arg8[%c2_39, %c0_40, %c0_41] : memref<9x1x8xf32, #tpu.memory_space<vmem>>, vector<1x1x8xf32>
    %95 = vector.shape_cast %94 : vector<1x1x8xf32> to vector<1x8xf32>
    %96 = vector.broadcast %95 : vector<1x8xf32> to vector<19x8xf32>
    %97 = arith.mulf %93, %96 : vector<19x8xf32>
    %98 = arith.addf %86, %97 : vector<19x8xf32>
    %99 = vector.extract_strided_slice %60 {offsets = [50, 0], sizes = [19, 8], strides = [1, 1]} : vector<100x8xf32> to vector<19x8xf32>
    %c3 = arith.constant 3 : index
    %c0_42 = arith.constant 0 : index
    %c0_43 = arith.constant 0 : index
    %100 = vector.load %arg2[%c3, %c0_42, %c0_43] : memref<9x1x8xf32, #tpu.memory_space<vmem>>, vector<1x1x8xf32>
    %101 = vector.shape_cast %100 : vector<1x1x8xf32> to vector<1x8xf32>
    %102 = vector.broadcast %101 : vector<1x8xf32> to vector<19x8xf32>
    %103 = arith.mulf %99, %102 : vector<19x8xf32>
    %104 = arith.addf %92, %103 : vector<19x8xf32>
    %105 = vector.extract_strided_slice %59 {offsets = [50, 0], sizes = [19, 8], strides = [1, 1]} : vector<100x8xf32> to vector<19x8xf32>
    %c3_44 = arith.constant 3 : index
    %c0_45 = arith.constant 0 : index
    %c0_46 = arith.constant 0 : index
    %106 = vector.load %arg8[%c3_44, %c0_45, %c0_46] : memref<9x1x8xf32, #tpu.memory_space<vmem>>, vector<1x1x8xf32>
    %107 = vector.shape_cast %106 : vector<1x1x8xf32> to vector<1x8xf32>
    %108 = vector.broadcast %107 : vector<1x8xf32> to vector<19x8xf32>
    %109 = arith.mulf %105, %108 : vector<19x8xf32>
    %110 = arith.addf %98, %109 : vector<19x8xf32>
    %111 = vector.extract_strided_slice %60 {offsets = [75, 0], sizes = [19, 8], strides = [1, 1]} : vector<100x8xf32> to vector<19x8xf32>
    %c4 = arith.constant 4 : index
    %c0_47 = arith.constant 0 : index
    %c0_48 = arith.constant 0 : index
    %112 = vector.load %arg2[%c4, %c0_47, %c0_48] : memref<9x1x8xf32, #tpu.memory_space<vmem>>, vector<1x1x8xf32>
    %113 = vector.shape_cast %112 : vector<1x1x8xf32> to vector<1x8xf32>
    %114 = vector.broadcast %113 : vector<1x8xf32> to vector<19x8xf32>
    %115 = arith.mulf %111, %114 : vector<19x8xf32>
    %116 = arith.addf %104, %115 : vector<19x8xf32>
    %117 = vector.extract_strided_slice %59 {offsets = [75, 0], sizes = [19, 8], strides = [1, 1]} : vector<100x8xf32> to vector<19x8xf32>
    %c4_49 = arith.constant 4 : index
    %c0_50 = arith.constant 0 : index
    %c0_51 = arith.constant 0 : index
    %118 = vector.load %arg8[%c4_49, %c0_50, %c0_51] : memref<9x1x8xf32, #tpu.memory_space<vmem>>, vector<1x1x8xf32>
    %119 = vector.shape_cast %118 : vector<1x1x8xf32> to vector<1x8xf32>
    %120 = vector.broadcast %119 : vector<1x8xf32> to vector<19x8xf32>
    %121 = arith.mulf %117, %120 : vector<19x8xf32>
    %122 = arith.addf %110, %121 : vector<19x8xf32>
    %123 = vector.extract_strided_slice %60 {offsets = [51, 0], sizes = [19, 8], strides = [1, 1]} : vector<100x8xf32> to vector<19x8xf32>
    %c5 = arith.constant 5 : index
    %c0_52 = arith.constant 0 : index
    %c0_53 = arith.constant 0 : index
    %124 = vector.load %arg2[%c5, %c0_52, %c0_53] : memref<9x1x8xf32, #tpu.memory_space<vmem>>, vector<1x1x8xf32>
    %125 = vector.shape_cast %124 : vector<1x1x8xf32> to vector<1x8xf32>
    %126 = vector.broadcast %125 : vector<1x8xf32> to vector<19x8xf32>
    %127 = arith.mulf %123, %126 : vector<19x8xf32>
    %128 = arith.addf %116, %127 : vector<19x8xf32>
    %129 = vector.extract_strided_slice %59 {offsets = [51, 0], sizes = [19, 8], strides = [1, 1]} : vector<100x8xf32> to vector<19x8xf32>
    %c5_54 = arith.constant 5 : index
    %c0_55 = arith.constant 0 : index
    %c0_56 = arith.constant 0 : index
    %130 = vector.load %arg8[%c5_54, %c0_55, %c0_56] : memref<9x1x8xf32, #tpu.memory_space<vmem>>, vector<1x1x8xf32>
    %131 = vector.shape_cast %130 : vector<1x1x8xf32> to vector<1x8xf32>
    %132 = vector.broadcast %131 : vector<1x8xf32> to vector<19x8xf32>
    %133 = arith.mulf %129, %132 : vector<19x8xf32>
    %134 = arith.addf %122, %133 : vector<19x8xf32>
    %135 = vector.extract_strided_slice %60 {offsets = [5, 0], sizes = [19, 8], strides = [1, 1]} : vector<100x8xf32> to vector<19x8xf32>
    %c6 = arith.constant 6 : index
    %c0_57 = arith.constant 0 : index
    %c0_58 = arith.constant 0 : index
    %136 = vector.load %arg2[%c6, %c0_57, %c0_58] : memref<9x1x8xf32, #tpu.memory_space<vmem>>, vector<1x1x8xf32>
    %137 = vector.shape_cast %136 : vector<1x1x8xf32> to vector<1x8xf32>
    %138 = vector.broadcast %137 : vector<1x8xf32> to vector<19x8xf32>
    %139 = arith.mulf %135, %138 : vector<19x8xf32>
    %140 = arith.addf %128, %139 : vector<19x8xf32>
    %141 = vector.extract_strided_slice %59 {offsets = [5, 0], sizes = [19, 8], strides = [1, 1]} : vector<100x8xf32> to vector<19x8xf32>
    %c6_59 = arith.constant 6 : index
    %c0_60 = arith.constant 0 : index
    %c0_61 = arith.constant 0 : index
    %142 = vector.load %arg8[%c6_59, %c0_60, %c0_61] : memref<9x1x8xf32, #tpu.memory_space<vmem>>, vector<1x1x8xf32>
    %143 = vector.shape_cast %142 : vector<1x1x8xf32> to vector<1x8xf32>
    %144 = vector.broadcast %143 : vector<1x8xf32> to vector<19x8xf32>
    %145 = arith.mulf %141, %144 : vector<19x8xf32>
    %146 = arith.addf %134, %145 : vector<19x8xf32>
    %147 = vector.extract_strided_slice %60 {offsets = [30, 0], sizes = [19, 8], strides = [1, 1]} : vector<100x8xf32> to vector<19x8xf32>
    %c7 = arith.constant 7 : index
    %c0_62 = arith.constant 0 : index
    %c0_63 = arith.constant 0 : index
    %148 = vector.load %arg2[%c7, %c0_62, %c0_63] : memref<9x1x8xf32, #tpu.memory_space<vmem>>, vector<1x1x8xf32>
    %149 = vector.shape_cast %148 : vector<1x1x8xf32> to vector<1x8xf32>
    %150 = vector.broadcast %149 : vector<1x8xf32> to vector<19x8xf32>
    %151 = arith.mulf %147, %150 : vector<19x8xf32>
    %152 = arith.addf %140, %151 : vector<19x8xf32>
    %153 = vector.extract_strided_slice %59 {offsets = [30, 0], sizes = [19, 8], strides = [1, 1]} : vector<100x8xf32> to vector<19x8xf32>
    %c7_64 = arith.constant 7 : index
    %c0_65 = arith.constant 0 : index
    %c0_66 = arith.constant 0 : index
    %154 = vector.load %arg8[%c7_64, %c0_65, %c0_66] : memref<9x1x8xf32, #tpu.memory_space<vmem>>, vector<1x1x8xf32>
    %155 = vector.shape_cast %154 : vector<1x1x8xf32> to vector<1x8xf32>
    %156 = vector.broadcast %155 : vector<1x8xf32> to vector<19x8xf32>
    %157 = arith.mulf %153, %156 : vector<19x8xf32>
    %158 = arith.addf %146, %157 : vector<19x8xf32>
    %159 = vector.extract_strided_slice %60 {offsets = [6, 0], sizes = [19, 8], strides = [1, 1]} : vector<100x8xf32> to vector<19x8xf32>
    %c8 = arith.constant 8 : index
    %c0_67 = arith.constant 0 : index
    %c0_68 = arith.constant 0 : index
    %160 = vector.load %arg2[%c8, %c0_67, %c0_68] : memref<9x1x8xf32, #tpu.memory_space<vmem>>, vector<1x1x8xf32>
    %161 = vector.shape_cast %160 : vector<1x1x8xf32> to vector<1x8xf32>
    %162 = vector.broadcast %161 : vector<1x8xf32> to vector<19x8xf32>
    %163 = arith.mulf %159, %162 : vector<19x8xf32>
    %164 = arith.addf %152, %163 : vector<19x8xf32>
    %165 = vector.extract_strided_slice %59 {offsets = [6, 0], sizes = [19, 8], strides = [1, 1]} : vector<100x8xf32> to vector<19x8xf32>
    %c8_69 = arith.constant 8 : index
    %c0_70 = arith.constant 0 : index
    %c0_71 = arith.constant 0 : index
    %166 = vector.load %arg8[%c8_69, %c0_70, %c0_71] : memref<9x1x8xf32, #tpu.memory_space<vmem>>, vector<1x1x8xf32>
    %167 = vector.shape_cast %166 : vector<1x1x8xf32> to vector<1x8xf32>
    %168 = vector.broadcast %167 : vector<1x8xf32> to vector<19x8xf32>
    %169 = arith.mulf %165, %168 : vector<19x8xf32>
    %170 = arith.addf %158, %169 : vector<19x8xf32>
    %171 = vector.extract_strided_slice %164 {offsets = [0, 0], sizes = [4, 8], strides = [1, 1]} : vector<19x8xf32> to vector<4x8xf32>
    %172 = vector.extract_strided_slice %164 {offsets = [5, 0], sizes = [4, 8], strides = [1, 1]} : vector<19x8xf32> to vector<4x8xf32>
    %173 = vector.extract_strided_slice %164 {offsets = [10, 0], sizes = [4, 8], strides = [1, 1]} : vector<19x8xf32> to vector<4x8xf32>
    %174 = vector.extract_strided_slice %164 {offsets = [15, 0], sizes = [4, 8], strides = [1, 1]} : vector<19x8xf32> to vector<4x8xf32>
    %175 = tpu.concatenate %171, %172, %173, %174 in 0 : vector<4x8xf32>, vector<4x8xf32>, vector<4x8xf32>, vector<4x8xf32> -> vector<16x8xf32>
    %c0_72 = arith.constant 0 : index
    %c0_73 = arith.constant 0 : index
    %176 = vector.load %arg3[%c0_72, %c0_73] : memref<1x8xf32, #tpu.memory_space<vmem>>, vector<1x8xf32>
    %177 = vector.broadcast %176 : vector<1x8xf32> to vector<16x8xf32>
    %178 = arith.addf %175, %177 : vector<16x8xf32>
    %179 = vector.extract_strided_slice %170 {offsets = [0, 0], sizes = [4, 8], strides = [1, 1]} : vector<19x8xf32> to vector<4x8xf32>
    %180 = vector.extract_strided_slice %170 {offsets = [5, 0], sizes = [4, 8], strides = [1, 1]} : vector<19x8xf32> to vector<4x8xf32>
    %181 = vector.extract_strided_slice %170 {offsets = [10, 0], sizes = [4, 8], strides = [1, 1]} : vector<19x8xf32> to vector<4x8xf32>
    %182 = vector.extract_strided_slice %170 {offsets = [15, 0], sizes = [4, 8], strides = [1, 1]} : vector<19x8xf32> to vector<4x8xf32>
    %183 = tpu.concatenate %179, %180, %181, %182 in 0 : vector<4x8xf32>, vector<4x8xf32>, vector<4x8xf32>, vector<4x8xf32> -> vector<16x8xf32>
    %c0_74 = arith.constant 0 : index
    %c0_75 = arith.constant 0 : index
    %184 = vector.load %arg9[%c0_74, %c0_75] : memref<1x8xf32, #tpu.memory_space<vmem>>, vector<1x8xf32>
    %185 = vector.broadcast %184 : vector<1x8xf32> to vector<16x8xf32>
    %186 = arith.addf %183, %185 : vector<16x8xf32>
    %187 = arith.truncf %178 : vector<16x8xf32> to vector<16x8xbf16>
    %c0_76 = arith.constant 0 : index
    %c0_77 = arith.constant 0 : index
    %188 = vector.load %arg4[%c0_76, %c0_77] : memref<8x16xbf16, #tpu.memory_space<vmem>>, vector<8x16xbf16>
    %cst_78 = arith.constant dense<0.000000e+00> : vector<16x16xf32>
    %189 = tpu.matmul %187, %188, %cst_78 {dimension_numbers = #tpu.dot_dimension_numbers<[1], [0], [0], [1], [0, 0, 1, 1], [], []>} : vector<16x8xbf16>, vector<8x16xbf16>, vector<16x16xf32> -> vector<16x16xf32>
    %c0_79 = arith.constant 0 : index
    %c0_80 = arith.constant 0 : index
    %190 = vector.load %arg5[%c0_79, %c0_80] : memref<1x16xf32, #tpu.memory_space<vmem>>, vector<1x16xf32>
    %191 = vector.broadcast %190 : vector<1x16xf32> to vector<16x16xf32>
    %192 = arith.addf %189, %191 : vector<16x16xf32>
    %cst_81 = arith.constant 0.000000e+00 : f32
    %193 = vector.broadcast %cst_81 : f32 to vector<16x16xf32>
    %194 = arith.maximumf %192, %193 : vector<16x16xf32>
    %195 = arith.truncf %186 : vector<16x8xf32> to vector<16x8xbf16>
    %c0_82 = arith.constant 0 : index
    %c0_83 = arith.constant 0 : index
    %196 = vector.load %arg10[%c0_82, %c0_83] : memref<8x16xbf16, #tpu.memory_space<vmem>>, vector<8x16xbf16>
    %cst_84 = arith.constant dense<0.000000e+00> : vector<16x16xf32>
    %197 = tpu.matmul %195, %196, %cst_84 {dimension_numbers = #tpu.dot_dimension_numbers<[1], [0], [0], [1], [0, 0, 1, 1], [], []>} : vector<16x8xbf16>, vector<8x16xbf16>, vector<16x16xf32> -> vector<16x16xf32>
    %c0_85 = arith.constant 0 : index
    %c0_86 = arith.constant 0 : index
    %198 = vector.load %arg11[%c0_85, %c0_86] : memref<1x16xf32, #tpu.memory_space<vmem>>, vector<1x16xf32>
    %199 = vector.broadcast %198 : vector<1x16xf32> to vector<16x16xf32>
    %200 = arith.addf %197, %199 : vector<16x16xf32>
    %cst_87 = arith.constant 0.000000e+00 : f32
    %201 = vector.broadcast %cst_87 : f32 to vector<16x16xf32>
    %202 = arith.maximumf %200, %201 : vector<16x16xf32>
    %203 = arith.addf %194, %202 : vector<16x16xf32>
    %204 = arith.truncf %203 : vector<16x16xf32> to vector<16x16xbf16>
    %c0_88 = arith.constant 0 : index
    %c0_89 = arith.constant 0 : index
    %c0_90 = arith.constant 0 : index
    %205 = vector.load %arg12[%c0_88, %c0_89, %c0_90] : memref<1x16x16xbf16, #tpu.memory_space<vmem>>, vector<1x16x16xbf16>
    %206 = vector.shape_cast %205 : vector<1x16x16xbf16> to vector<16x16xbf16>
    %207 = vector.shape_cast %204 : vector<16x16xbf16> to vector<1x16x16xbf16>
    tpu.vector_store %arg12[%c0_88, %c0_89, %c0_90], %207 {strides = array<i32>} : memref<1x16x16xbf16, #tpu.memory_space<vmem>>, vector<1x16x16xbf16>,
    return
  }
  func.func @transform_0(%arg0: i32) -> (i32, i32, i32) {
    %c0_i32 = arith.constant 0 : i32
    %c0_i32_0 = arith.constant 0 : i32
    %c0_i32_1 = arith.constant 0 : i32
    return %arg0, %c0_i32, %c0_i32_0 : i32, i32, i32
  }
  func.func @transform_1(%arg0: i32) -> (i32, i32, i32) {
    %c0_i32 = arith.constant 0 : i32
    %c0_i32_0 = arith.constant 0 : i32
    %c0_i32_1 = arith.constant 0 : i32
    %c0_i32_2 = arith.constant 0 : i32
    return %c0_i32, %c0_i32_0, %c0_i32_1 : i32, i32, i32
  }
  func.func @transform_2(%arg0: i32) -> (i32, i32) {
    %c0_i32 = arith.constant 0 : i32
    %c0_i32_0 = arith.constant 0 : i32
    %c0_i32_1 = arith.constant 0 : i32
    return %c0_i32, %c0_i32_0 : i32, i32
  }
  func.func @transform_3(%arg0: i32) -> (i32, i32) {
    %c0_i32 = arith.constant 0 : i32
    %c0_i32_0 = arith.constant 0 : i32
    %c0_i32_1 = arith.constant 0 : i32
    return %c0_i32, %c0_i32_0 : i32, i32
  }
  func.func @transform_4(%arg0: i32) -> (i32, i32) {
    %c0_i32 = arith.constant 0 : i32
    %c0_i32_0 = arith.constant 0 : i32
    %c0_i32_1 = arith.constant 0 : i32
    return %c0_i32, %c0_i32_0 : i32, i32
  }
  func.func @transform_5(%arg0: i32) -> (i32, i32) {
    %c0_i32 = arith.constant 0 : i32
    %c0_i32_0 = arith.constant 0 : i32
    %c0_i32_1 = arith.constant 0 : i32
    return %c0_i32, %c0_i32_0 : i32, i32
  }
  func.func @transform_6(%arg0: i32) -> (i32, i32) {
    %c0_i32 = arith.constant 0 : i32
    %c0_i32_0 = arith.constant 0 : i32
    %c0_i32_1 = arith.constant 0 : i32
    return %c0_i32, %c0_i32_0 : i32, i32
  }
  func.func @transform_7(%arg0: i32) -> (i32, i32, i32) {
    %c0_i32 = arith.constant 0 : i32
    %c0_i32_0 = arith.constant 0 : i32
    %c0_i32_1 = arith.constant 0 : i32
    %c0_i32_2 = arith.constant 0 : i32
    return %c0_i32, %c0_i32_0, %c0_i32_1 : i32, i32, i32
  }
  func.func @transform_8(%arg0: i32) -> (i32, i32) {
    %c0_i32 = arith.constant 0 : i32
    %c0_i32_0 = arith.constant 0 : i32
    %c0_i32_1 = arith.constant 0 : i32
    return %c0_i32, %c0_i32_0 : i32, i32
  }
  func.func @transform_9(%arg0: i32) -> (i32, i32) {
    %c0_i32 = arith.constant 0 : i32
    %c0_i32_0 = arith.constant 0 : i32
    %c0_i32_1 = arith.constant 0 : i32
    return %c0_i32, %c0_i32_0 : i32, i32
  }
  func.func @transform_10(%arg0: i32) -> (i32, i32) {
    %c0_i32 = arith.constant 0 : i32
    %c0_i32_0 = arith.constant 0 : i32
    %c0_i32_1 = arith.constant 0 : i32
    return %c0_i32, %c0_i32_0 : i32, i32
  }
  func.func @transform_11(%arg0: i32) -> (i32, i32, i32) {
    %c0_i32 = arith.constant 0 : i32
    %c0_i32_0 = arith.constant 0 : i32
    %c0_i32_1 = arith.constant 0 : i32
    return %arg0, %c0_i32, %c0_i32_0 : i32, i32, i32
  }
}

module attributes {stable_mosaic.version = 11 : i64} {
  func.func @_block_s1_kernel(%arg0: i32, %arg1: memref<1x16x16xbf16, #tpu.memory_space<vmem>>, %arg2: memref<8x8xbf16, #tpu.memory_space<vmem>>, %arg3: memref<1x8xf32, #tpu.memory_space<vmem>>, %arg4: memref<9x1x8xf32, #tpu.memory_space<vmem>>, %arg5: memref<1x8xf32, #tpu.memory_space<vmem>>, %arg6: memref<8x16xbf16, #tpu.memory_space<vmem>>, %arg7: memref<1x16xf32, #tpu.memory_space<vmem>>, %arg8: memref<1x16x16xbf16, #tpu.memory_space<vmem>>) attributes {dimension_semantics = [#tpu.dimension_semantics<parallel>], iteration_bounds = array<i64: 2>, scalar_prefetch = 0 : i64, scratch_operands = 0 : i64, tpu.core_type = #tpu.core_type<tc>, window_params = [{transform_indices = @transform_0, window_bounds = array<i64: 1, 16, 16>}, {pipeline_mode = #tpu.pipeline_mode<synchronous>, transform_indices = @transform_1, window_bounds = array<i64: 8, 8>}, {pipeline_mode = #tpu.pipeline_mode<synchronous>, transform_indices = @transform_2, window_bounds = array<i64: 1, 8>}, {pipeline_mode = #tpu.pipeline_mode<synchronous>, transform_indices = @transform_3, window_bounds = array<i64: 9, 1, 8>}, {pipeline_mode = #tpu.pipeline_mode<synchronous>, transform_indices = @transform_4, window_bounds = array<i64: 1, 8>}, {pipeline_mode = #tpu.pipeline_mode<synchronous>, transform_indices = @transform_5, window_bounds = array<i64: 8, 16>}, {pipeline_mode = #tpu.pipeline_mode<synchronous>, transform_indices = @transform_6, window_bounds = array<i64: 1, 16>}, {transform_indices = @transform_7, window_bounds = array<i64: 1, 16, 16>}]} {
    %c0 = arith.constant 0 : index
    %c0_0 = arith.constant 0 : index
    %c0_1 = arith.constant 0 : index
    %0 = vector.load %arg1[%c0, %c0_0, %c0_1] : memref<1x16x16xbf16, #tpu.memory_space<vmem>>, vector<1x16x16xbf16>
    %1 = vector.shape_cast %0 : vector<1x16x16xbf16> to vector<16x16xbf16>
    %2 = vector.extract_strided_slice %1 {offsets = [0, 0], sizes = [16, 8], strides = [1, 1]} : vector<16x16xbf16> to vector<16x8xbf16>
    %3 = vector.extract_strided_slice %1 {offsets = [0, 8], sizes = [16, 8], strides = [1, 1]} : vector<16x16xbf16> to vector<16x8xbf16>
    %c0_2 = arith.constant 0 : index
    %c0_3 = arith.constant 0 : index
    %4 = vector.load %arg2[%c0_2, %c0_3] : memref<8x8xbf16, #tpu.memory_space<vmem>>, vector<8x8xbf16>
    %cst = arith.constant dense<0.000000e+00> : vector<16x8xf32>
    %5 = tpu.matmul %3, %4, %cst {dimension_numbers = #tpu.dot_dimension_numbers<[1], [0], [0], [1], [0, 0, 1, 1], [], []>} : vector<16x8xbf16>, vector<8x8xbf16>, vector<16x8xf32> -> vector<16x8xf32>
    %c0_4 = arith.constant 0 : index
    %c0_5 = arith.constant 0 : index
    %6 = vector.load %arg3[%c0_4, %c0_5] : memref<1x8xf32, #tpu.memory_space<vmem>>, vector<1x8xf32>
    %7 = vector.broadcast %6 : vector<1x8xf32> to vector<16x8xf32>
    %8 = arith.addf %5, %7 : vector<16x8xf32>
    %cst_6 = arith.constant 0.000000e+00 : f32
    %9 = vector.broadcast %cst_6 : f32 to vector<16x8xf32>
    %10 = arith.maximumf %8, %9 : vector<16x8xf32>
    %11 = tpu.iota {dimensions = array<i32: 0>} : vector<16x1xi32>
    %12 = arith.sitofp %11 : vector<16x1xi32> to vector<16x1xf32>
    %cst_7 = arith.constant 5.000000e-01 : f32
    %13 = vector.broadcast %cst_7 : f32 to vector<16x1xf32>
    %14 = arith.addf %12, %13 : vector<16x1xf32>
    %cst_8 = arith.constant 2.500000e-01 : f32
    %15 = vector.broadcast %cst_8 : f32 to vector<16x1xf32>
    %16 = arith.mulf %14, %15 : vector<16x1xf32>
    %17 = math.floor %16 : vector<16x1xf32>
    %cst_9 = arith.constant 4.000000e+00 : f32
    %18 = vector.broadcast %cst_9 : f32 to vector<16x1xf32>
    %19 = arith.mulf %17, %18 : vector<16x1xf32>
    %20 = arith.subf %12, %19 : vector<16x1xf32>
    %cst_10 = arith.constant 5.000000e-01 : f32
    %21 = vector.broadcast %cst_10 : f32 to vector<16x1xf32>
    %22 = arith.cmpf oge, %20, %21 : vector<16x1xf32>
    %23 = arith.extui %22 : vector<16x1xi1> to vector<16x1xi32>
    %24 = arith.sitofp %23 : vector<16x1xi32> to vector<16x1xf32>
    %cst_11 = arith.constant 2.500000e+00 : f32
    %25 = vector.broadcast %cst_11 : f32 to vector<16x1xf32>
    %26 = arith.cmpf ole, %20, %25 : vector<16x1xf32>
    %27 = arith.extui %26 : vector<16x1xi1> to vector<16x1xi32>
    %28 = arith.sitofp %27 : vector<16x1xi32> to vector<16x1xf32>
    %cst_12 = arith.constant 0.000000e+00 : f32
    %29 = vector.broadcast %cst_12 : f32 to vector<5x8xf32>
    %30 = tpu.concatenate %29, %10, %29 in 0 : vector<5x8xf32>, vector<16x8xf32>, vector<5x8xf32> -> vector<26x8xf32>
    %cst_13 = arith.constant 0.000000e+00 : f32
    %31 = vector.broadcast %cst_13 : f32 to vector<16x8xf32>
    %32 = vector.extract_strided_slice %30 {offsets = [0, 0], sizes = [16, 8], strides = [1, 1]} : vector<26x8xf32> to vector<16x8xf32>
    %33 = vector.broadcast %24 : vector<16x1xf32> to vector<16x8xf32>
    %34 = arith.mulf %32, %33 : vector<16x8xf32>
    %c0_14 = arith.constant 0 : index
    %c0_15 = arith.constant 0 : index
    %c0_16 = arith.constant 0 : index
    %35 = vector.load %arg4[%c0_14, %c0_15, %c0_16] : memref<9x1x8xf32, #tpu.memory_space<vmem>>, vector<1x1x8xf32>
    %36 = vector.shape_cast %35 : vector<1x1x8xf32> to vector<1x8xf32>
    %37 = vector.broadcast %36 : vector<1x8xf32> to vector<16x8xf32>
    %38 = arith.mulf %34, %37 : vector<16x8xf32>
    %39 = arith.addf %31, %38 : vector<16x8xf32>
    %40 = vector.extract_strided_slice %30 {offsets = [1, 0], sizes = [16, 8], strides = [1, 1]} : vector<26x8xf32> to vector<16x8xf32>
    %c1 = arith.constant 1 : index
    %c0_17 = arith.constant 0 : index
    %c0_18 = arith.constant 0 : index
    %41 = vector.load %arg4[%c1, %c0_17, %c0_18] : memref<9x1x8xf32, #tpu.memory_space<vmem>>, vector<1x1x8xf32>
    %42 = vector.shape_cast %41 : vector<1x1x8xf32> to vector<1x8xf32>
    %43 = vector.broadcast %42 : vector<1x8xf32> to vector<16x8xf32>
    %44 = arith.mulf %40, %43 : vector<16x8xf32>
    %45 = arith.addf %39, %44 : vector<16x8xf32>
    %46 = vector.extract_strided_slice %30 {offsets = [2, 0], sizes = [16, 8], strides = [1, 1]} : vector<26x8xf32> to vector<16x8xf32>
    %47 = vector.broadcast %28 : vector<16x1xf32> to vector<16x8xf32>
    %48 = arith.mulf %46, %47 : vector<16x8xf32>
    %c2 = arith.constant 2 : index
    %c0_19 = arith.constant 0 : index
    %c0_20 = arith.constant 0 : index
    %49 = vector.load %arg4[%c2, %c0_19, %c0_20] : memref<9x1x8xf32, #tpu.memory_space<vmem>>, vector<1x1x8xf32>
    %50 = vector.shape_cast %49 : vector<1x1x8xf32> to vector<1x8xf32>
    %51 = vector.broadcast %50 : vector<1x8xf32> to vector<16x8xf32>
    %52 = arith.mulf %48, %51 : vector<16x8xf32>
    %53 = arith.addf %45, %52 : vector<16x8xf32>
    %54 = vector.extract_strided_slice %30 {offsets = [4, 0], sizes = [16, 8], strides = [1, 1]} : vector<26x8xf32> to vector<16x8xf32>
    %55 = vector.broadcast %24 : vector<16x1xf32> to vector<16x8xf32>
    %56 = arith.mulf %54, %55 : vector<16x8xf32>
    %c3 = arith.constant 3 : index
    %c0_21 = arith.constant 0 : index
    %c0_22 = arith.constant 0 : index
    %57 = vector.load %arg4[%c3, %c0_21, %c0_22] : memref<9x1x8xf32, #tpu.memory_space<vmem>>, vector<1x1x8xf32>
    %58 = vector.shape_cast %57 : vector<1x1x8xf32> to vector<1x8xf32>
    %59 = vector.broadcast %58 : vector<1x8xf32> to vector<16x8xf32>
    %60 = arith.mulf %56, %59 : vector<16x8xf32>
    %61 = arith.addf %53, %60 : vector<16x8xf32>
    %62 = vector.extract_strided_slice %30 {offsets = [5, 0], sizes = [16, 8], strides = [1, 1]} : vector<26x8xf32> to vector<16x8xf32>
    %c4 = arith.constant 4 : index
    %c0_23 = arith.constant 0 : index
    %c0_24 = arith.constant 0 : index
    %63 = vector.load %arg4[%c4, %c0_23, %c0_24] : memref<9x1x8xf32, #tpu.memory_space<vmem>>, vector<1x1x8xf32>
    %64 = vector.shape_cast %63 : vector<1x1x8xf32> to vector<1x8xf32>
    %65 = vector.broadcast %64 : vector<1x8xf32> to vector<16x8xf32>
    %66 = arith.mulf %62, %65 : vector<16x8xf32>
    %67 = arith.addf %61, %66 : vector<16x8xf32>
    %68 = vector.extract_strided_slice %30 {offsets = [6, 0], sizes = [16, 8], strides = [1, 1]} : vector<26x8xf32> to vector<16x8xf32>
    %69 = vector.broadcast %28 : vector<16x1xf32> to vector<16x8xf32>
    %70 = arith.mulf %68, %69 : vector<16x8xf32>
    %c5 = arith.constant 5 : index
    %c0_25 = arith.constant 0 : index
    %c0_26 = arith.constant 0 : index
    %71 = vector.load %arg4[%c5, %c0_25, %c0_26] : memref<9x1x8xf32, #tpu.memory_space<vmem>>, vector<1x1x8xf32>
    %72 = vector.shape_cast %71 : vector<1x1x8xf32> to vector<1x8xf32>
    %73 = vector.broadcast %72 : vector<1x8xf32> to vector<16x8xf32>
    %74 = arith.mulf %70, %73 : vector<16x8xf32>
    %75 = arith.addf %67, %74 : vector<16x8xf32>
    %76 = vector.extract_strided_slice %30 {offsets = [8, 0], sizes = [16, 8], strides = [1, 1]} : vector<26x8xf32> to vector<16x8xf32>
    %77 = vector.broadcast %24 : vector<16x1xf32> to vector<16x8xf32>
    %78 = arith.mulf %76, %77 : vector<16x8xf32>
    %c6 = arith.constant 6 : index
    %c0_27 = arith.constant 0 : index
    %c0_28 = arith.constant 0 : index
    %79 = vector.load %arg4[%c6, %c0_27, %c0_28] : memref<9x1x8xf32, #tpu.memory_space<vmem>>, vector<1x1x8xf32>
    %80 = vector.shape_cast %79 : vector<1x1x8xf32> to vector<1x8xf32>
    %81 = vector.broadcast %80 : vector<1x8xf32> to vector<16x8xf32>
    %82 = arith.mulf %78, %81 : vector<16x8xf32>
    %83 = arith.addf %75, %82 : vector<16x8xf32>
    %84 = vector.extract_strided_slice %30 {offsets = [9, 0], sizes = [16, 8], strides = [1, 1]} : vector<26x8xf32> to vector<16x8xf32>
    %c7 = arith.constant 7 : index
    %c0_29 = arith.constant 0 : index
    %c0_30 = arith.constant 0 : index
    %85 = vector.load %arg4[%c7, %c0_29, %c0_30] : memref<9x1x8xf32, #tpu.memory_space<vmem>>, vector<1x1x8xf32>
    %86 = vector.shape_cast %85 : vector<1x1x8xf32> to vector<1x8xf32>
    %87 = vector.broadcast %86 : vector<1x8xf32> to vector<16x8xf32>
    %88 = arith.mulf %84, %87 : vector<16x8xf32>
    %89 = arith.addf %83, %88 : vector<16x8xf32>
    %90 = vector.extract_strided_slice %30 {offsets = [10, 0], sizes = [16, 8], strides = [1, 1]} : vector<26x8xf32> to vector<16x8xf32>
    %91 = vector.broadcast %28 : vector<16x1xf32> to vector<16x8xf32>
    %92 = arith.mulf %90, %91 : vector<16x8xf32>
    %c8 = arith.constant 8 : index
    %c0_31 = arith.constant 0 : index
    %c0_32 = arith.constant 0 : index
    %93 = vector.load %arg4[%c8, %c0_31, %c0_32] : memref<9x1x8xf32, #tpu.memory_space<vmem>>, vector<1x1x8xf32>
    %94 = vector.shape_cast %93 : vector<1x1x8xf32> to vector<1x8xf32>
    %95 = vector.broadcast %94 : vector<1x8xf32> to vector<16x8xf32>
    %96 = arith.mulf %92, %95 : vector<16x8xf32>
    %97 = arith.addf %89, %96 : vector<16x8xf32>
    %c0_33 = arith.constant 0 : index
    %c0_34 = arith.constant 0 : index
    %98 = vector.load %arg5[%c0_33, %c0_34] : memref<1x8xf32, #tpu.memory_space<vmem>>, vector<1x8xf32>
    %99 = vector.broadcast %98 : vector<1x8xf32> to vector<16x8xf32>
    %100 = arith.addf %97, %99 : vector<16x8xf32>
    %101 = arith.truncf %100 : vector<16x8xf32> to vector<16x8xbf16>
    %c0_35 = arith.constant 0 : index
    %c0_36 = arith.constant 0 : index
    %102 = vector.load %arg6[%c0_35, %c0_36] : memref<8x16xbf16, #tpu.memory_space<vmem>>, vector<8x16xbf16>
    %cst_37 = arith.constant dense<0.000000e+00> : vector<16x16xf32>
    %103 = tpu.matmul %101, %102, %cst_37 {dimension_numbers = #tpu.dot_dimension_numbers<[1], [0], [0], [1], [0, 0, 1, 1], [], []>} : vector<16x8xbf16>, vector<8x16xbf16>, vector<16x16xf32> -> vector<16x16xf32>
    %c0_38 = arith.constant 0 : index
    %c0_39 = arith.constant 0 : index
    %104 = vector.load %arg7[%c0_38, %c0_39] : memref<1x16xf32, #tpu.memory_space<vmem>>, vector<1x16xf32>
    %105 = vector.broadcast %104 : vector<1x16xf32> to vector<16x16xf32>
    %106 = arith.addf %103, %105 : vector<16x16xf32>
    %cst_40 = arith.constant 0.000000e+00 : f32
    %107 = vector.broadcast %cst_40 : f32 to vector<16x16xf32>
    %108 = arith.maximumf %106, %107 : vector<16x16xf32>
    %109 = tpu.iota {dimensions = array<i32: 0>} : vector<8x16xi32>
    %110 = tpu.iota {dimensions = array<i32: 1>} : vector<8x16xi32>
    %c2_i32 = arith.constant 2 : i32
    %111 = vector.broadcast %c2_i32 : i32 to vector<8x16xi32>
    %112 = arith.muli %111, %109 : vector<8x16xi32>
    %113 = arith.cmpi eq, %110, %112 : vector<8x16xi32>
    %114 = arith.extui %113 : vector<8x16xi1> to vector<8x16xi32>
    %115 = arith.sitofp %114 : vector<8x16xi32> to vector<8x16xf32>
    %116 = arith.truncf %115 : vector<8x16xf32> to vector<8x16xbf16>
    %cst_41 = arith.constant dense<0.000000e+00> : vector<16x16xf32>
    %117 = tpu.matmul %2, %116, %cst_41 {dimension_numbers = #tpu.dot_dimension_numbers<[1], [0], [0], [1], [0, 0, 1, 1], [], []>} : vector<16x8xbf16>, vector<8x16xbf16>, vector<16x16xf32> -> vector<16x16xf32>
    %118 = arith.addf %117, %108 : vector<16x16xf32>
    %119 = arith.truncf %118 : vector<16x16xf32> to vector<16x16xbf16>
    %c0_42 = arith.constant 0 : index
    %c0_43 = arith.constant 0 : index
    %c0_44 = arith.constant 0 : index
    %120 = vector.load %arg8[%c0_42, %c0_43, %c0_44] : memref<1x16x16xbf16, #tpu.memory_space<vmem>>, vector<1x16x16xbf16>
    %121 = vector.shape_cast %120 : vector<1x16x16xbf16> to vector<16x16xbf16>
    %122 = vector.shape_cast %119 : vector<16x16xbf16> to vector<1x16x16xbf16>
    tpu.vector_store %arg8[%c0_42, %c0_43, %c0_44], %122 {strides = array<i32>} : memref<1x16x16xbf16, #tpu.memory_space<vmem>>, vector<1x16x16xbf16>,
    return
  }
  func.func @transform_0(%arg0: i32) -> (i32, i32, i32) {
    %c0_i32 = arith.constant 0 : i32
    %c0_i32_0 = arith.constant 0 : i32
    %c0_i32_1 = arith.constant 0 : i32
    return %arg0, %c0_i32, %c0_i32_0 : i32, i32, i32
  }
  func.func @transform_1(%arg0: i32) -> (i32, i32) {
    %c0_i32 = arith.constant 0 : i32
    %c0_i32_0 = arith.constant 0 : i32
    %c0_i32_1 = arith.constant 0 : i32
    return %c0_i32, %c0_i32_0 : i32, i32
  }
  func.func @transform_2(%arg0: i32) -> (i32, i32) {
    %c0_i32 = arith.constant 0 : i32
    %c0_i32_0 = arith.constant 0 : i32
    %c0_i32_1 = arith.constant 0 : i32
    return %c0_i32, %c0_i32_0 : i32, i32
  }
  func.func @transform_3(%arg0: i32) -> (i32, i32, i32) {
    %c0_i32 = arith.constant 0 : i32
    %c0_i32_0 = arith.constant 0 : i32
    %c0_i32_1 = arith.constant 0 : i32
    %c0_i32_2 = arith.constant 0 : i32
    return %c0_i32, %c0_i32_0, %c0_i32_1 : i32, i32, i32
  }
  func.func @transform_4(%arg0: i32) -> (i32, i32) {
    %c0_i32 = arith.constant 0 : i32
    %c0_i32_0 = arith.constant 0 : i32
    %c0_i32_1 = arith.constant 0 : i32
    return %c0_i32, %c0_i32_0 : i32, i32
  }
  func.func @transform_5(%arg0: i32) -> (i32, i32) {
    %c0_i32 = arith.constant 0 : i32
    %c0_i32_0 = arith.constant 0 : i32
    %c0_i32_1 = arith.constant 0 : i32
    return %c0_i32, %c0_i32_0 : i32, i32
  }
  func.func @transform_6(%arg0: i32) -> (i32, i32) {
    %c0_i32 = arith.constant 0 : i32
    %c0_i32_0 = arith.constant 0 : i32
    %c0_i32_1 = arith.constant 0 : i32
    return %c0_i32, %c0_i32_0 : i32, i32
  }
  func.func @transform_7(%arg0: i32) -> (i32, i32, i32) {
    %c0_i32 = arith.constant 0 : i32
    %c0_i32_0 = arith.constant 0 : i32
    %c0_i32_1 = arith.constant 0 : i32
    return %arg0, %c0_i32, %c0_i32_0 : i32, i32, i32
  }
}

module attributes {stable_mosaic.version = 11 : i64} {
  func.func @_block_s2_kernel(%arg0: i32, %arg1: memref<1x36x16xbf16, #tpu.memory_space<vmem>>, %arg2: memref<9x1x16xf32, #tpu.memory_space<vmem>>, %arg3: memref<1x16xf32, #tpu.memory_space<vmem>>, %arg4: memref<16x32xbf16, #tpu.memory_space<vmem>>, %arg5: memref<1x32xf32, #tpu.memory_space<vmem>>, %arg6: memref<16x16xbf16, #tpu.memory_space<vmem>>, %arg7: memref<1x16xf32, #tpu.memory_space<vmem>>, %arg8: memref<9x1x16xf32, #tpu.memory_space<vmem>>, %arg9: memref<1x16xf32, #tpu.memory_space<vmem>>, %arg10: memref<16x32xbf16, #tpu.memory_space<vmem>>, %arg11: memref<1x32xf32, #tpu.memory_space<vmem>>, %arg12: memref<1x4x32xbf16, #tpu.memory_space<vmem>>) attributes {dimension_semantics = [#tpu.dimension_semantics<parallel>], iteration_bounds = array<i64: 2>, scalar_prefetch = 0 : i64, scratch_operands = 0 : i64, tpu.core_type = #tpu.core_type<tc>, window_params = [{transform_indices = @transform_0, window_bounds = array<i64: 1, 36, 16>}, {pipeline_mode = #tpu.pipeline_mode<synchronous>, transform_indices = @transform_1, window_bounds = array<i64: 9, 1, 16>}, {pipeline_mode = #tpu.pipeline_mode<synchronous>, transform_indices = @transform_2, window_bounds = array<i64: 1, 16>}, {pipeline_mode = #tpu.pipeline_mode<synchronous>, transform_indices = @transform_3, window_bounds = array<i64: 16, 32>}, {pipeline_mode = #tpu.pipeline_mode<synchronous>, transform_indices = @transform_4, window_bounds = array<i64: 1, 32>}, {pipeline_mode = #tpu.pipeline_mode<synchronous>, transform_indices = @transform_5, window_bounds = array<i64: 16, 16>}, {pipeline_mode = #tpu.pipeline_mode<synchronous>, transform_indices = @transform_6, window_bounds = array<i64: 1, 16>}, {pipeline_mode = #tpu.pipeline_mode<synchronous>, transform_indices = @transform_7, window_bounds = array<i64: 9, 1, 16>}, {pipeline_mode = #tpu.pipeline_mode<synchronous>, transform_indices = @transform_8, window_bounds = array<i64: 1, 16>}, {pipeline_mode = #tpu.pipeline_mode<synchronous>, transform_indices = @transform_9, window_bounds = array<i64: 16, 32>}, {pipeline_mode = #tpu.pipeline_mode<synchronous>, transform_indices = @transform_10, window_bounds = array<i64: 1, 32>}, {transform_indices = @transform_11, window_bounds = array<i64: 1, 4, 32>}]} {
    %c0 = arith.constant 0 : index
    %c0_0 = arith.constant 0 : index
    %c0_1 = arith.constant 0 : index
    %0 = vector.load %arg1[%c0, %c0_0, %c0_1] : memref<1x36x16xbf16, #tpu.memory_space<vmem>>, vector<1x36x16xbf16>
    %1 = vector.shape_cast %0 : vector<1x36x16xbf16> to vector<36x16xbf16>
    %c0_2 = arith.constant 0 : index
    %c0_3 = arith.constant 0 : index
    %2 = vector.load %arg6[%c0_2, %c0_3] : memref<16x16xbf16, #tpu.memory_space<vmem>>, vector<16x16xbf16>
    %cst = arith.constant dense<0.000000e+00> : vector<36x16xf32>
    %3 = tpu.matmul %1, %2, %cst {dimension_numbers = #tpu.dot_dimension_numbers<[1], [0], [0], [1], [0, 0, 1, 1], [], []>} : vector<36x16xbf16>, vector<16x16xbf16>, vector<36x16xf32> -> vector<36x16xf32>
    %c0_4 = arith.constant 0 : index
    %c0_5 = arith.constant 0 : index
    %4 = vector.load %arg7[%c0_4, %c0_5] : memref<1x16xf32, #tpu.memory_space<vmem>>, vector<1x16xf32>
    %5 = vector.broadcast %4 : vector<1x16xf32> to vector<36x16xf32>
    %6 = arith.addf %3, %5 : vector<36x16xf32>
    %cst_6 = arith.constant 0.000000e+00 : f32
    %7 = vector.broadcast %cst_6 : f32 to vector<36x16xf32>
    %8 = arith.maximumf %6, %7 : vector<36x16xf32>
    %9 = tpu.iota {dimensions = array<i32: 0>} : vector<36x1xi32>
    %10 = arith.sitofp %9 : vector<36x1xi32> to vector<36x1xf32>
    %cst_7 = arith.constant 5.000000e-01 : f32
    %11 = vector.broadcast %cst_7 : f32 to vector<36x1xf32>
    %12 = arith.addf %10, %11 : vector<36x1xf32>
    %cst_8 = arith.constant 0.111111112 : f32
    %13 = vector.broadcast %cst_8 : f32 to vector<36x1xf32>
    %14 = arith.mulf %12, %13 : vector<36x1xf32>
    %15 = math.floor %14 : vector<36x1xf32>
    %cst_9 = arith.constant 9.000000e+00 : f32
    %16 = vector.broadcast %cst_9 : f32 to vector<36x1xf32>
    %17 = arith.mulf %15, %16 : vector<36x1xf32>
    %18 = arith.subf %10, %17 : vector<36x1xf32>
    %cst_10 = arith.constant 5.000000e-01 : f32
    %19 = vector.broadcast %cst_10 : f32 to vector<36x1xf32>
    %20 = arith.addf %18, %19 : vector<36x1xf32>
    %cst_11 = arith.constant 0.333333343 : f32
    %21 = vector.broadcast %cst_11 : f32 to vector<36x1xf32>
    %22 = arith.mulf %20, %21 : vector<36x1xf32>
    %23 = math.floor %22 : vector<36x1xf32>
    %cst_12 = arith.constant 3.000000e+00 : f32
    %24 = vector.broadcast %cst_12 : f32 to vector<36x1xf32>
    %25 = arith.mulf %23, %24 : vector<36x1xf32>
    %26 = arith.subf %18, %25 : vector<36x1xf32>
    %cst_13 = arith.constant 1.500000e+00 : f32
    %27 = vector.broadcast %cst_13 : f32 to vector<36x1xf32>
    %28 = arith.cmpf olt, %15, %27 : vector<36x1xf32>
    %cst_14 = arith.constant 5.000000e-01 : f32
    %29 = vector.broadcast %cst_14 : f32 to vector<36x1xf32>
    %30 = arith.cmpf olt, %15, %29 : vector<36x1xf32>
    %cst_15 = arith.constant 1.500000e+00 : f32
    %31 = vector.broadcast %cst_15 : f32 to vector<36x1xf32>
    %32 = arith.cmpf ogt, %15, %31 : vector<36x1xf32>
    %cst_16 = arith.constant 2.500000e+00 : f32
    %33 = vector.broadcast %cst_16 : f32 to vector<36x1xf32>
    %34 = arith.cmpf olt, %15, %33 : vector<36x1xf32>
    %35 = arith.andi %32, %34 : vector<36x1xi1>
    %36 = arith.ori %30, %35 : vector<36x1xi1>
    %cst_17 = arith.constant 5.000000e-01 : f32
    %37 = vector.broadcast %cst_17 : f32 to vector<36x1xf32>
    %38 = arith.cmpf olt, %23, %37 : vector<36x1xf32>
    %39 = arith.andi %28, %38 : vector<36x1xi1>
    %cst_18 = arith.constant dense<true> : vector<36x1xi1>
    %40 = arith.xori %28, %cst_18 : vector<36x1xi1>
    %cst_19 = arith.constant 1.500000e+00 : f32
    %41 = vector.broadcast %cst_19 : f32 to vector<36x1xf32>
    %42 = arith.cmpf ogt, %23, %41 : vector<36x1xf32>
    %43 = arith.andi %40, %42 : vector<36x1xi1>
    %44 = arith.ori %39, %43 : vector<36x1xi1>
    %cst_20 = arith.constant 5.000000e-01 : f32
    %45 = vector.broadcast %cst_20 : f32 to vector<36x1xf32>
    %46 = arith.cmpf olt, %26, %45 : vector<36x1xf32>
    %47 = arith.andi %36, %46 : vector<36x1xi1>
    %48 = arith.ori %44, %47 : vector<36x1xi1>
    %cst_21 = arith.constant dense<true> : vector<36x1xi1>
    %49 = arith.xori %36, %cst_21 : vector<36x1xi1>
    %cst_22 = arith.constant 1.500000e+00 : f32
    %50 = vector.broadcast %cst_22 : f32 to vector<36x1xf32>
    %51 = arith.cmpf ogt, %26, %50 : vector<36x1xf32>
    %52 = arith.andi %49, %51 : vector<36x1xi1>
    %53 = arith.ori %48, %52 : vector<36x1xi1>
    %54 = arith.extui %53 : vector<36x1xi1> to vector<36x1xi32>
    %55 = arith.sitofp %54 : vector<36x1xi32> to vector<36x1xf32>
    %cst_23 = arith.constant 1.000000e+00 : f32
    %56 = vector.broadcast %cst_23 : f32 to vector<36x1xf32>
    %57 = arith.subf %56, %55 : vector<36x1xf32>
    %58 = vector.broadcast %57 : vector<36x1xf32> to vector<36x16xf32>
    %59 = arith.mulf %8, %58 : vector<36x16xf32>
    %60 = arith.extf %1 : vector<36x16xbf16> to vector<36x16xf32>
    %cst_24 = arith.constant 0.000000e+00 : f32
    %61 = vector.broadcast %cst_24 : f32 to vector<5x16xf32>
    %cst_25 = arith.constant 0.000000e+00 : f32
    %62 = vector.broadcast %cst_25 : f32 to vector<5x16xf32>
    %63 = vector.extract_strided_slice %60 {offsets = [0, 0], sizes = [5, 16], strides = [1, 1]} : vector<36x16xf32> to vector<5x16xf32>
    %c0_26 = arith.constant 0 : index
    %c0_27 = arith.constant 0 : index
    %c0_28 = arith.constant 0 : index
    %64 = vector.load %arg2[%c0_26, %c0_27, %c0_28] : memref<9x1x16xf32, #tpu.memory_space<vmem>>, vector<1x1x16xf32>
    %65 = vector.shape_cast %64 : vector<1x1x16xf32> to vector<1x16xf32>
    %66 = vector.broadcast %65 : vector<1x16xf32> to vector<5x16xf32>
    %67 = arith.mulf %63, %66 : vector<5x16xf32>
    %68 = arith.addf %61, %67 : vector<5x16xf32>
    %69 = vector.extract_strided_slice %59 {offsets = [0, 0], sizes = [5, 16], strides = [1, 1]} : vector<36x16xf32> to vector<5x16xf32>
    %c0_29 = arith.constant 0 : index
    %c0_30 = arith.constant 0 : index
    %c0_31 = arith.constant 0 : index
    %70 = vector.load %arg8[%c0_29, %c0_30, %c0_31] : memref<9x1x16xf32, #tpu.memory_space<vmem>>, vector<1x1x16xf32>
    %71 = vector.shape_cast %70 : vector<1x1x16xf32> to vector<1x16xf32>
    %72 = vector.broadcast %71 : vector<1x16xf32> to vector<5x16xf32>
    %73 = arith.mulf %69, %72 : vector<5x16xf32>
    %74 = arith.addf %62, %73 : vector<5x16xf32>
    %75 = vector.extract_strided_slice %60 {offsets = [9, 0], sizes = [5, 16], strides = [1, 1]} : vector<36x16xf32> to vector<5x16xf32>
    %c1 = arith.constant 1 : index
    %c0_32 = arith.constant 0 : index
    %c0_33 = arith.constant 0 : index
    %76 = vector.load %arg2[%c1, %c0_32, %c0_33] : memref<9x1x16xf32, #tpu.memory_space<vmem>>, vector<1x1x16xf32>
    %77 = vector.shape_cast %76 : vector<1x1x16xf32> to vector<1x16xf32>
    %78 = vector.broadcast %77 : vector<1x16xf32> to vector<5x16xf32>
    %79 = arith.mulf %75, %78 : vector<5x16xf32>
    %80 = arith.addf %68, %79 : vector<5x16xf32>
    %81 = vector.extract_strided_slice %59 {offsets = [9, 0], sizes = [5, 16], strides = [1, 1]} : vector<36x16xf32> to vector<5x16xf32>
    %c1_34 = arith.constant 1 : index
    %c0_35 = arith.constant 0 : index
    %c0_36 = arith.constant 0 : index
    %82 = vector.load %arg8[%c1_34, %c0_35, %c0_36] : memref<9x1x16xf32, #tpu.memory_space<vmem>>, vector<1x1x16xf32>
    %83 = vector.shape_cast %82 : vector<1x1x16xf32> to vector<1x16xf32>
    %84 = vector.broadcast %83 : vector<1x16xf32> to vector<5x16xf32>
    %85 = arith.mulf %81, %84 : vector<5x16xf32>
    %86 = arith.addf %74, %85 : vector<5x16xf32>
    %87 = vector.extract_strided_slice %60 {offsets = [1, 0], sizes = [5, 16], strides = [1, 1]} : vector<36x16xf32> to vector<5x16xf32>
    %c2 = arith.constant 2 : index
    %c0_37 = arith.constant 0 : index
    %c0_38 = arith.constant 0 : index
    %88 = vector.load %arg2[%c2, %c0_37, %c0_38] : memref<9x1x16xf32, #tpu.memory_space<vmem>>, vector<1x1x16xf32>
    %89 = vector.shape_cast %88 : vector<1x1x16xf32> to vector<1x16xf32>
    %90 = vector.broadcast %89 : vector<1x16xf32> to vector<5x16xf32>
    %91 = arith.mulf %87, %90 : vector<5x16xf32>
    %92 = arith.addf %80, %91 : vector<5x16xf32>
    %93 = vector.extract_strided_slice %59 {offsets = [1, 0], sizes = [5, 16], strides = [1, 1]} : vector<36x16xf32> to vector<5x16xf32>
    %c2_39 = arith.constant 2 : index
    %c0_40 = arith.constant 0 : index
    %c0_41 = arith.constant 0 : index
    %94 = vector.load %arg8[%c2_39, %c0_40, %c0_41] : memref<9x1x16xf32, #tpu.memory_space<vmem>>, vector<1x1x16xf32>
    %95 = vector.shape_cast %94 : vector<1x1x16xf32> to vector<1x16xf32>
    %96 = vector.broadcast %95 : vector<1x16xf32> to vector<5x16xf32>
    %97 = arith.mulf %93, %96 : vector<5x16xf32>
    %98 = arith.addf %86, %97 : vector<5x16xf32>
    %99 = vector.extract_strided_slice %60 {offsets = [18, 0], sizes = [5, 16], strides = [1, 1]} : vector<36x16xf32> to vector<5x16xf32>
    %c3 = arith.constant 3 : index
    %c0_42 = arith.constant 0 : index
    %c0_43 = arith.constant 0 : index
    %100 = vector.load %arg2[%c3, %c0_42, %c0_43] : memref<9x1x16xf32, #tpu.memory_space<vmem>>, vector<1x1x16xf32>
    %101 = vector.shape_cast %100 : vector<1x1x16xf32> to vector<1x16xf32>
    %102 = vector.broadcast %101 : vector<1x16xf32> to vector<5x16xf32>
    %103 = arith.mulf %99, %102 : vector<5x16xf32>
    %104 = arith.addf %92, %103 : vector<5x16xf32>
    %105 = vector.extract_strided_slice %59 {offsets = [18, 0], sizes = [5, 16], strides = [1, 1]} : vector<36x16xf32> to vector<5x16xf32>
    %c3_44 = arith.constant 3 : index
    %c0_45 = arith.constant 0 : index
    %c0_46 = arith.constant 0 : index
    %106 = vector.load %arg8[%c3_44, %c0_45, %c0_46] : memref<9x1x16xf32, #tpu.memory_space<vmem>>, vector<1x1x16xf32>
    %107 = vector.shape_cast %106 : vector<1x1x16xf32> to vector<1x16xf32>
    %108 = vector.broadcast %107 : vector<1x16xf32> to vector<5x16xf32>
    %109 = arith.mulf %105, %108 : vector<5x16xf32>
    %110 = arith.addf %98, %109 : vector<5x16xf32>
    %111 = vector.extract_strided_slice %60 {offsets = [27, 0], sizes = [5, 16], strides = [1, 1]} : vector<36x16xf32> to vector<5x16xf32>
    %c4 = arith.constant 4 : index
    %c0_47 = arith.constant 0 : index
    %c0_48 = arith.constant 0 : index
    %112 = vector.load %arg2[%c4, %c0_47, %c0_48] : memref<9x1x16xf32, #tpu.memory_space<vmem>>, vector<1x1x16xf32>
    %113 = vector.shape_cast %112 : vector<1x1x16xf32> to vector<1x16xf32>
    %114 = vector.broadcast %113 : vector<1x16xf32> to vector<5x16xf32>
    %115 = arith.mulf %111, %114 : vector<5x16xf32>
    %116 = arith.addf %104, %115 : vector<5x16xf32>
    %117 = vector.extract_strided_slice %59 {offsets = [27, 0], sizes = [5, 16], strides = [1, 1]} : vector<36x16xf32> to vector<5x16xf32>
    %c4_49 = arith.constant 4 : index
    %c0_50 = arith.constant 0 : index
    %c0_51 = arith.constant 0 : index
    %118 = vector.load %arg8[%c4_49, %c0_50, %c0_51] : memref<9x1x16xf32, #tpu.memory_space<vmem>>, vector<1x1x16xf32>
    %119 = vector.shape_cast %118 : vector<1x1x16xf32> to vector<1x16xf32>
    %120 = vector.broadcast %119 : vector<1x16xf32> to vector<5x16xf32>
    %121 = arith.mulf %117, %120 : vector<5x16xf32>
    %122 = arith.addf %110, %121 : vector<5x16xf32>
    %123 = vector.extract_strided_slice %60 {offsets = [19, 0], sizes = [5, 16], strides = [1, 1]} : vector<36x16xf32> to vector<5x16xf32>
    %c5 = arith.constant 5 : index
    %c0_52 = arith.constant 0 : index
    %c0_53 = arith.constant 0 : index
    %124 = vector.load %arg2[%c5, %c0_52, %c0_53] : memref<9x1x16xf32, #tpu.memory_space<vmem>>, vector<1x1x16xf32>
    %125 = vector.shape_cast %124 : vector<1x1x16xf32> to vector<1x16xf32>
    %126 = vector.broadcast %125 : vector<1x16xf32> to vector<5x16xf32>
    %127 = arith.mulf %123, %126 : vector<5x16xf32>
    %128 = arith.addf %116, %127 : vector<5x16xf32>
    %129 = vector.extract_strided_slice %59 {offsets = [19, 0], sizes = [5, 16], strides = [1, 1]} : vector<36x16xf32> to vector<5x16xf32>
    %c5_54 = arith.constant 5 : index
    %c0_55 = arith.constant 0 : index
    %c0_56 = arith.constant 0 : index
    %130 = vector.load %arg8[%c5_54, %c0_55, %c0_56] : memref<9x1x16xf32, #tpu.memory_space<vmem>>, vector<1x1x16xf32>
    %131 = vector.shape_cast %130 : vector<1x1x16xf32> to vector<1x16xf32>
    %132 = vector.broadcast %131 : vector<1x16xf32> to vector<5x16xf32>
    %133 = arith.mulf %129, %132 : vector<5x16xf32>
    %134 = arith.addf %122, %133 : vector<5x16xf32>
    %135 = vector.extract_strided_slice %60 {offsets = [3, 0], sizes = [5, 16], strides = [1, 1]} : vector<36x16xf32> to vector<5x16xf32>
    %c6 = arith.constant 6 : index
    %c0_57 = arith.constant 0 : index
    %c0_58 = arith.constant 0 : index
    %136 = vector.load %arg2[%c6, %c0_57, %c0_58] : memref<9x1x16xf32, #tpu.memory_space<vmem>>, vector<1x1x16xf32>
    %137 = vector.shape_cast %136 : vector<1x1x16xf32> to vector<1x16xf32>
    %138 = vector.broadcast %137 : vector<1x16xf32> to vector<5x16xf32>
    %139 = arith.mulf %135, %138 : vector<5x16xf32>
    %140 = arith.addf %128, %139 : vector<5x16xf32>
    %141 = vector.extract_strided_slice %59 {offsets = [3, 0], sizes = [5, 16], strides = [1, 1]} : vector<36x16xf32> to vector<5x16xf32>
    %c6_59 = arith.constant 6 : index
    %c0_60 = arith.constant 0 : index
    %c0_61 = arith.constant 0 : index
    %142 = vector.load %arg8[%c6_59, %c0_60, %c0_61] : memref<9x1x16xf32, #tpu.memory_space<vmem>>, vector<1x1x16xf32>
    %143 = vector.shape_cast %142 : vector<1x1x16xf32> to vector<1x16xf32>
    %144 = vector.broadcast %143 : vector<1x16xf32> to vector<5x16xf32>
    %145 = arith.mulf %141, %144 : vector<5x16xf32>
    %146 = arith.addf %134, %145 : vector<5x16xf32>
    %147 = vector.extract_strided_slice %60 {offsets = [12, 0], sizes = [5, 16], strides = [1, 1]} : vector<36x16xf32> to vector<5x16xf32>
    %c7 = arith.constant 7 : index
    %c0_62 = arith.constant 0 : index
    %c0_63 = arith.constant 0 : index
    %148 = vector.load %arg2[%c7, %c0_62, %c0_63] : memref<9x1x16xf32, #tpu.memory_space<vmem>>, vector<1x1x16xf32>
    %149 = vector.shape_cast %148 : vector<1x1x16xf32> to vector<1x16xf32>
    %150 = vector.broadcast %149 : vector<1x16xf32> to vector<5x16xf32>
    %151 = arith.mulf %147, %150 : vector<5x16xf32>
    %152 = arith.addf %140, %151 : vector<5x16xf32>
    %153 = vector.extract_strided_slice %59 {offsets = [12, 0], sizes = [5, 16], strides = [1, 1]} : vector<36x16xf32> to vector<5x16xf32>
    %c7_64 = arith.constant 7 : index
    %c0_65 = arith.constant 0 : index
    %c0_66 = arith.constant 0 : index
    %154 = vector.load %arg8[%c7_64, %c0_65, %c0_66] : memref<9x1x16xf32, #tpu.memory_space<vmem>>, vector<1x1x16xf32>
    %155 = vector.shape_cast %154 : vector<1x1x16xf32> to vector<1x16xf32>
    %156 = vector.broadcast %155 : vector<1x16xf32> to vector<5x16xf32>
    %157 = arith.mulf %153, %156 : vector<5x16xf32>
    %158 = arith.addf %146, %157 : vector<5x16xf32>
    %159 = vector.extract_strided_slice %60 {offsets = [4, 0], sizes = [5, 16], strides = [1, 1]} : vector<36x16xf32> to vector<5x16xf32>
    %c8 = arith.constant 8 : index
    %c0_67 = arith.constant 0 : index
    %c0_68 = arith.constant 0 : index
    %160 = vector.load %arg2[%c8, %c0_67, %c0_68] : memref<9x1x16xf32, #tpu.memory_space<vmem>>, vector<1x1x16xf32>
    %161 = vector.shape_cast %160 : vector<1x1x16xf32> to vector<1x16xf32>
    %162 = vector.broadcast %161 : vector<1x16xf32> to vector<5x16xf32>
    %163 = arith.mulf %159, %162 : vector<5x16xf32>
    %164 = arith.addf %152, %163 : vector<5x16xf32>
    %165 = vector.extract_strided_slice %59 {offsets = [4, 0], sizes = [5, 16], strides = [1, 1]} : vector<36x16xf32> to vector<5x16xf32>
    %c8_69 = arith.constant 8 : index
    %c0_70 = arith.constant 0 : index
    %c0_71 = arith.constant 0 : index
    %166 = vector.load %arg8[%c8_69, %c0_70, %c0_71] : memref<9x1x16xf32, #tpu.memory_space<vmem>>, vector<1x1x16xf32>
    %167 = vector.shape_cast %166 : vector<1x1x16xf32> to vector<1x16xf32>
    %168 = vector.broadcast %167 : vector<1x16xf32> to vector<5x16xf32>
    %169 = arith.mulf %165, %168 : vector<5x16xf32>
    %170 = arith.addf %158, %169 : vector<5x16xf32>
    %171 = vector.extract_strided_slice %164 {offsets = [0, 0], sizes = [2, 16], strides = [1, 1]} : vector<5x16xf32> to vector<2x16xf32>
    %172 = vector.extract_strided_slice %164 {offsets = [3, 0], sizes = [2, 16], strides = [1, 1]} : vector<5x16xf32> to vector<2x16xf32>
    %173 = tpu.concatenate %171, %172 in 0 : vector<2x16xf32>, vector<2x16xf32> -> vector<4x16xf32>
    %c0_72 = arith.constant 0 : index
    %c0_73 = arith.constant 0 : index
    %174 = vector.load %arg3[%c0_72, %c0_73] : memref<1x16xf32, #tpu.memory_space<vmem>>, vector<1x16xf32>
    %175 = vector.broadcast %174 : vector<1x16xf32> to vector<4x16xf32>
    %176 = arith.addf %173, %175 : vector<4x16xf32>
    %177 = vector.extract_strided_slice %170 {offsets = [0, 0], sizes = [2, 16], strides = [1, 1]} : vector<5x16xf32> to vector<2x16xf32>
    %178 = vector.extract_strided_slice %170 {offsets = [3, 0], sizes = [2, 16], strides = [1, 1]} : vector<5x16xf32> to vector<2x16xf32>
    %179 = tpu.concatenate %177, %178 in 0 : vector<2x16xf32>, vector<2x16xf32> -> vector<4x16xf32>
    %c0_74 = arith.constant 0 : index
    %c0_75 = arith.constant 0 : index
    %180 = vector.load %arg9[%c0_74, %c0_75] : memref<1x16xf32, #tpu.memory_space<vmem>>, vector<1x16xf32>
    %181 = vector.broadcast %180 : vector<1x16xf32> to vector<4x16xf32>
    %182 = arith.addf %179, %181 : vector<4x16xf32>
    %183 = arith.truncf %176 : vector<4x16xf32> to vector<4x16xbf16>
    %c0_76 = arith.constant 0 : index
    %c0_77 = arith.constant 0 : index
    %184 = vector.load %arg4[%c0_76, %c0_77] : memref<16x32xbf16, #tpu.memory_space<vmem>>, vector<16x32xbf16>
    %cst_78 = arith.constant dense<0.000000e+00> : vector<4x32xf32>
    %185 = tpu.matmul %183, %184, %cst_78 {dimension_numbers = #tpu.dot_dimension_numbers<[1], [0], [0], [1], [0, 0, 1, 1], [], []>} : vector<4x16xbf16>, vector<16x32xbf16>, vector<4x32xf32> -> vector<4x32xf32>
    %c0_79 = arith.constant 0 : index
    %c0_80 = arith.constant 0 : index
    %186 = vector.load %arg5[%c0_79, %c0_80] : memref<1x32xf32, #tpu.memory_space<vmem>>, vector<1x32xf32>
    %187 = vector.broadcast %186 : vector<1x32xf32> to vector<4x32xf32>
    %188 = arith.addf %185, %187 : vector<4x32xf32>
    %cst_81 = arith.constant 0.000000e+00 : f32
    %189 = vector.broadcast %cst_81 : f32 to vector<4x32xf32>
    %190 = arith.maximumf %188, %189 : vector<4x32xf32>
    %191 = arith.truncf %182 : vector<4x16xf32> to vector<4x16xbf16>
    %c0_82 = arith.constant 0 : index
    %c0_83 = arith.constant 0 : index
    %192 = vector.load %arg10[%c0_82, %c0_83] : memref<16x32xbf16, #tpu.memory_space<vmem>>, vector<16x32xbf16>
    %cst_84 = arith.constant dense<0.000000e+00> : vector<4x32xf32>
    %193 = tpu.matmul %191, %192, %cst_84 {dimension_numbers = #tpu.dot_dimension_numbers<[1], [0], [0], [1], [0, 0, 1, 1], [], []>} : vector<4x16xbf16>, vector<16x32xbf16>, vector<4x32xf32> -> vector<4x32xf32>
    %c0_85 = arith.constant 0 : index
    %c0_86 = arith.constant 0 : index
    %194 = vector.load %arg11[%c0_85, %c0_86] : memref<1x32xf32, #tpu.memory_space<vmem>>, vector<1x32xf32>
    %195 = vector.broadcast %194 : vector<1x32xf32> to vector<4x32xf32>
    %196 = arith.addf %193, %195 : vector<4x32xf32>
    %cst_87 = arith.constant 0.000000e+00 : f32
    %197 = vector.broadcast %cst_87 : f32 to vector<4x32xf32>
    %198 = arith.maximumf %196, %197 : vector<4x32xf32>
    %199 = arith.addf %190, %198 : vector<4x32xf32>
    %200 = arith.truncf %199 : vector<4x32xf32> to vector<4x32xbf16>
    %c0_88 = arith.constant 0 : index
    %c0_89 = arith.constant 0 : index
    %c0_90 = arith.constant 0 : index
    %201 = vector.load %arg12[%c0_88, %c0_89, %c0_90] : memref<1x4x32xbf16, #tpu.memory_space<vmem>>, vector<1x4x32xbf16>
    %202 = vector.shape_cast %201 : vector<1x4x32xbf16> to vector<4x32xbf16>
    %203 = vector.shape_cast %200 : vector<4x32xbf16> to vector<1x4x32xbf16>
    tpu.vector_store %arg12[%c0_88, %c0_89, %c0_90], %203 {strides = array<i32>} : memref<1x4x32xbf16, #tpu.memory_space<vmem>>, vector<1x4x32xbf16>,
    return
  }
  func.func @transform_0(%arg0: i32) -> (i32, i32, i32) {
    %c0_i32 = arith.constant 0 : i32
    %c0_i32_0 = arith.constant 0 : i32
    %c0_i32_1 = arith.constant 0 : i32
    return %arg0, %c0_i32, %c0_i32_0 : i32, i32, i32
  }
  func.func @transform_1(%arg0: i32) -> (i32, i32, i32) {
    %c0_i32 = arith.constant 0 : i32
    %c0_i32_0 = arith.constant 0 : i32
    %c0_i32_1 = arith.constant 0 : i32
    %c0_i32_2 = arith.constant 0 : i32
    return %c0_i32, %c0_i32_0, %c0_i32_1 : i32, i32, i32
  }
  func.func @transform_2(%arg0: i32) -> (i32, i32) {
    %c0_i32 = arith.constant 0 : i32
    %c0_i32_0 = arith.constant 0 : i32
    %c0_i32_1 = arith.constant 0 : i32
    return %c0_i32, %c0_i32_0 : i32, i32
  }
  func.func @transform_3(%arg0: i32) -> (i32, i32) {
    %c0_i32 = arith.constant 0 : i32
    %c0_i32_0 = arith.constant 0 : i32
    %c0_i32_1 = arith.constant 0 : i32
    return %c0_i32, %c0_i32_0 : i32, i32
  }
  func.func @transform_4(%arg0: i32) -> (i32, i32) {
    %c0_i32 = arith.constant 0 : i32
    %c0_i32_0 = arith.constant 0 : i32
    %c0_i32_1 = arith.constant 0 : i32
    return %c0_i32, %c0_i32_0 : i32, i32
  }
  func.func @transform_5(%arg0: i32) -> (i32, i32) {
    %c0_i32 = arith.constant 0 : i32
    %c0_i32_0 = arith.constant 0 : i32
    %c0_i32_1 = arith.constant 0 : i32
    return %c0_i32, %c0_i32_0 : i32, i32
  }
  func.func @transform_6(%arg0: i32) -> (i32, i32) {
    %c0_i32 = arith.constant 0 : i32
    %c0_i32_0 = arith.constant 0 : i32
    %c0_i32_1 = arith.constant 0 : i32
    return %c0_i32, %c0_i32_0 : i32, i32
  }
  func.func @transform_7(%arg0: i32) -> (i32, i32, i32) {
    %c0_i32 = arith.constant 0 : i32
    %c0_i32_0 = arith.constant 0 : i32
    %c0_i32_1 = arith.constant 0 : i32
    %c0_i32_2 = arith.constant 0 : i32
    return %c0_i32, %c0_i32_0, %c0_i32_1 : i32, i32, i32
  }
  func.func @transform_8(%arg0: i32) -> (i32, i32) {
    %c0_i32 = arith.constant 0 : i32
    %c0_i32_0 = arith.constant 0 : i32
    %c0_i32_1 = arith.constant 0 : i32
    return %c0_i32, %c0_i32_0 : i32, i32
  }
  func.func @transform_9(%arg0: i32) -> (i32, i32) {
    %c0_i32 = arith.constant 0 : i32
    %c0_i32_0 = arith.constant 0 : i32
    %c0_i32_1 = arith.constant 0 : i32
    return %c0_i32, %c0_i32_0 : i32, i32
  }
  func.func @transform_10(%arg0: i32) -> (i32, i32) {
    %c0_i32 = arith.constant 0 : i32
    %c0_i32_0 = arith.constant 0 : i32
    %c0_i32_1 = arith.constant 0 : i32
    return %c0_i32, %c0_i32_0 : i32, i32
  }
  func.func @transform_11(%arg0: i32) -> (i32, i32, i32) {
    %c0_i32 = arith.constant 0 : i32
    %c0_i32_0 = arith.constant 0 : i32
    %c0_i32_1 = arith.constant 0 : i32
    return %arg0, %c0_i32, %c0_i32_0 : i32, i32, i32
  }
}

module attributes {stable_mosaic.version = 11 : i64} {
  func.func @_block_s1_kernel(%arg0: i32, %arg1: memref<1x4x32xbf16, #tpu.memory_space<vmem>>, %arg2: memref<16x16xbf16, #tpu.memory_space<vmem>>, %arg3: memref<1x16xf32, #tpu.memory_space<vmem>>, %arg4: memref<9x1x16xf32, #tpu.memory_space<vmem>>, %arg5: memref<1x16xf32, #tpu.memory_space<vmem>>, %arg6: memref<16x32xbf16, #tpu.memory_space<vmem>>, %arg7: memref<1x32xf32, #tpu.memory_space<vmem>>, %arg8: memref<1x4x32xbf16, #tpu.memory_space<vmem>>) attributes {dimension_semantics = [#tpu.dimension_semantics<parallel>], iteration_bounds = array<i64: 2>, scalar_prefetch = 0 : i64, scratch_operands = 0 : i64, tpu.core_type = #tpu.core_type<tc>, window_params = [{transform_indices = @transform_0, window_bounds = array<i64: 1, 4, 32>}, {pipeline_mode = #tpu.pipeline_mode<synchronous>, transform_indices = @transform_1, window_bounds = array<i64: 16, 16>}, {pipeline_mode = #tpu.pipeline_mode<synchronous>, transform_indices = @transform_2, window_bounds = array<i64: 1, 16>}, {pipeline_mode = #tpu.pipeline_mode<synchronous>, transform_indices = @transform_3, window_bounds = array<i64: 9, 1, 16>}, {pipeline_mode = #tpu.pipeline_mode<synchronous>, transform_indices = @transform_4, window_bounds = array<i64: 1, 16>}, {pipeline_mode = #tpu.pipeline_mode<synchronous>, transform_indices = @transform_5, window_bounds = array<i64: 16, 32>}, {pipeline_mode = #tpu.pipeline_mode<synchronous>, transform_indices = @transform_6, window_bounds = array<i64: 1, 32>}, {transform_indices = @transform_7, window_bounds = array<i64: 1, 4, 32>}]} {
    %c0 = arith.constant 0 : index
    %c0_0 = arith.constant 0 : index
    %c0_1 = arith.constant 0 : index
    %0 = vector.load %arg1[%c0, %c0_0, %c0_1] : memref<1x4x32xbf16, #tpu.memory_space<vmem>>, vector<1x4x32xbf16>
    %1 = vector.shape_cast %0 : vector<1x4x32xbf16> to vector<4x32xbf16>
    %2 = vector.extract_strided_slice %1 {offsets = [0, 0], sizes = [4, 16], strides = [1, 1]} : vector<4x32xbf16> to vector<4x16xbf16>
    %3 = vector.extract_strided_slice %1 {offsets = [0, 16], sizes = [4, 16], strides = [1, 1]} : vector<4x32xbf16> to vector<4x16xbf16>
    %c0_2 = arith.constant 0 : index
    %c0_3 = arith.constant 0 : index
    %4 = vector.load %arg2[%c0_2, %c0_3] : memref<16x16xbf16, #tpu.memory_space<vmem>>, vector<16x16xbf16>
    %cst = arith.constant dense<0.000000e+00> : vector<4x16xf32>
    %5 = tpu.matmul %3, %4, %cst {dimension_numbers = #tpu.dot_dimension_numbers<[1], [0], [0], [1], [0, 0, 1, 1], [], []>} : vector<4x16xbf16>, vector<16x16xbf16>, vector<4x16xf32> -> vector<4x16xf32>
    %c0_4 = arith.constant 0 : index
    %c0_5 = arith.constant 0 : index
    %6 = vector.load %arg3[%c0_4, %c0_5] : memref<1x16xf32, #tpu.memory_space<vmem>>, vector<1x16xf32>
    %7 = vector.broadcast %6 : vector<1x16xf32> to vector<4x16xf32>
    %8 = arith.addf %5, %7 : vector<4x16xf32>
    %cst_6 = arith.constant 0.000000e+00 : f32
    %9 = vector.broadcast %cst_6 : f32 to vector<4x16xf32>
    %10 = arith.maximumf %8, %9 : vector<4x16xf32>
    %11 = tpu.iota {dimensions = array<i32: 0>} : vector<4x1xi32>
    %12 = arith.sitofp %11 : vector<4x1xi32> to vector<4x1xf32>
    %cst_7 = arith.constant 5.000000e-01 : f32
    %13 = vector.broadcast %cst_7 : f32 to vector<4x1xf32>
    %14 = arith.addf %12, %13 : vector<4x1xf32>
    %cst_8 = arith.constant 5.000000e-01 : f32
    %15 = vector.broadcast %cst_8 : f32 to vector<4x1xf32>
    %16 = arith.mulf %14, %15 : vector<4x1xf32>
    %17 = math.floor %16 : vector<4x1xf32>
    %cst_9 = arith.constant 2.000000e+00 : f32
    %18 = vector.broadcast %cst_9 : f32 to vector<4x1xf32>
    %19 = arith.mulf %17, %18 : vector<4x1xf32>
    %20 = arith.subf %12, %19 : vector<4x1xf32>
    %cst_10 = arith.constant 5.000000e-01 : f32
    %21 = vector.broadcast %cst_10 : f32 to vector<4x1xf32>
    %22 = arith.cmpf oge, %20, %21 : vector<4x1xf32>
    %23 = arith.extui %22 : vector<4x1xi1> to vector<4x1xi32>
    %24 = arith.sitofp %23 : vector<4x1xi32> to vector<4x1xf32>
    %cst_11 = arith.constant 5.000000e-01 : f32
    %25 = vector.broadcast %cst_11 : f32 to vector<4x1xf32>
    %26 = arith.cmpf ole, %20, %25 : vector<4x1xf32>
    %27 = arith.extui %26 : vector<4x1xi1> to vector<4x1xi32>
    %28 = arith.sitofp %27 : vector<4x1xi32> to vector<4x1xf32>
    %cst_12 = arith.constant 0.000000e+00 : f32
    %29 = vector.broadcast %cst_12 : f32 to vector<3x16xf32>
    %30 = tpu.concatenate %29, %10, %29 in 0 : vector<3x16xf32>, vector<4x16xf32>, vector<3x16xf32> -> vector<10x16xf32>
    %cst_13 = arith.constant 0.000000e+00 : f32
    %31 = vector.broadcast %cst_13 : f32 to vector<4x16xf32>
    %32 = vector.extract_strided_slice %30 {offsets = [0, 0], sizes = [4, 16], strides = [1, 1]} : vector<10x16xf32> to vector<4x16xf32>
    %33 = vector.broadcast %24 : vector<4x1xf32> to vector<4x16xf32>
    %34 = arith.mulf %32, %33 : vector<4x16xf32>
    %c0_14 = arith.constant 0 : index
    %c0_15 = arith.constant 0 : index
    %c0_16 = arith.constant 0 : index
    %35 = vector.load %arg4[%c0_14, %c0_15, %c0_16] : memref<9x1x16xf32, #tpu.memory_space<vmem>>, vector<1x1x16xf32>
    %36 = vector.shape_cast %35 : vector<1x1x16xf32> to vector<1x16xf32>
    %37 = vector.broadcast %36 : vector<1x16xf32> to vector<4x16xf32>
    %38 = arith.mulf %34, %37 : vector<4x16xf32>
    %39 = arith.addf %31, %38 : vector<4x16xf32>
    %40 = vector.extract_strided_slice %30 {offsets = [1, 0], sizes = [4, 16], strides = [1, 1]} : vector<10x16xf32> to vector<4x16xf32>
    %c1 = arith.constant 1 : index
    %c0_17 = arith.constant 0 : index
    %c0_18 = arith.constant 0 : index
    %41 = vector.load %arg4[%c1, %c0_17, %c0_18] : memref<9x1x16xf32, #tpu.memory_space<vmem>>, vector<1x1x16xf32>
    %42 = vector.shape_cast %41 : vector<1x1x16xf32> to vector<1x16xf32>
    %43 = vector.broadcast %42 : vector<1x16xf32> to vector<4x16xf32>
    %44 = arith.mulf %40, %43 : vector<4x16xf32>
    %45 = arith.addf %39, %44 : vector<4x16xf32>
    %46 = vector.extract_strided_slice %30 {offsets = [2, 0], sizes = [4, 16], strides = [1, 1]} : vector<10x16xf32> to vector<4x16xf32>
    %47 = vector.broadcast %28 : vector<4x1xf32> to vector<4x16xf32>
    %48 = arith.mulf %46, %47 : vector<4x16xf32>
    %c2 = arith.constant 2 : index
    %c0_19 = arith.constant 0 : index
    %c0_20 = arith.constant 0 : index
    %49 = vector.load %arg4[%c2, %c0_19, %c0_20] : memref<9x1x16xf32, #tpu.memory_space<vmem>>, vector<1x1x16xf32>
    %50 = vector.shape_cast %49 : vector<1x1x16xf32> to vector<1x16xf32>
    %51 = vector.broadcast %50 : vector<1x16xf32> to vector<4x16xf32>
    %52 = arith.mulf %48, %51 : vector<4x16xf32>
    %53 = arith.addf %45, %52 : vector<4x16xf32>
    %54 = vector.extract_strided_slice %30 {offsets = [2, 0], sizes = [4, 16], strides = [1, 1]} : vector<10x16xf32> to vector<4x16xf32>
    %55 = vector.broadcast %24 : vector<4x1xf32> to vector<4x16xf32>
    %56 = arith.mulf %54, %55 : vector<4x16xf32>
    %c3 = arith.constant 3 : index
    %c0_21 = arith.constant 0 : index
    %c0_22 = arith.constant 0 : index
    %57 = vector.load %arg4[%c3, %c0_21, %c0_22] : memref<9x1x16xf32, #tpu.memory_space<vmem>>, vector<1x1x16xf32>
    %58 = vector.shape_cast %57 : vector<1x1x16xf32> to vector<1x16xf32>
    %59 = vector.broadcast %58 : vector<1x16xf32> to vector<4x16xf32>
    %60 = arith.mulf %56, %59 : vector<4x16xf32>
    %61 = arith.addf %53, %60 : vector<4x16xf32>
    %62 = vector.extract_strided_slice %30 {offsets = [3, 0], sizes = [4, 16], strides = [1, 1]} : vector<10x16xf32> to vector<4x16xf32>
    %c4 = arith.constant 4 : index
    %c0_23 = arith.constant 0 : index
    %c0_24 = arith.constant 0 : index
    %63 = vector.load %arg4[%c4, %c0_23, %c0_24] : memref<9x1x16xf32, #tpu.memory_space<vmem>>, vector<1x1x16xf32>
    %64 = vector.shape_cast %63 : vector<1x1x16xf32> to vector<1x16xf32>
    %65 = vector.broadcast %64 : vector<1x16xf32> to vector<4x16xf32>
    %66 = arith.mulf %62, %65 : vector<4x16xf32>
    %67 = arith.addf %61, %66 : vector<4x16xf32>
    %68 = vector.extract_strided_slice %30 {offsets = [4, 0], sizes = [4, 16], strides = [1, 1]} : vector<10x16xf32> to vector<4x16xf32>
    %69 = vector.broadcast %28 : vector<4x1xf32> to vector<4x16xf32>
    %70 = arith.mulf %68, %69 : vector<4x16xf32>
    %c5 = arith.constant 5 : index
    %c0_25 = arith.constant 0 : index
    %c0_26 = arith.constant 0 : index
    %71 = vector.load %arg4[%c5, %c0_25, %c0_26] : memref<9x1x16xf32, #tpu.memory_space<vmem>>, vector<1x1x16xf32>
    %72 = vector.shape_cast %71 : vector<1x1x16xf32> to vector<1x16xf32>
    %73 = vector.broadcast %72 : vector<1x16xf32> to vector<4x16xf32>
    %74 = arith.mulf %70, %73 : vector<4x16xf32>
    %75 = arith.addf %67, %74 : vector<4x16xf32>
    %76 = vector.extract_strided_slice %30 {offsets = [4, 0], sizes = [4, 16], strides = [1, 1]} : vector<10x16xf32> to vector<4x16xf32>
    %77 = vector.broadcast %24 : vector<4x1xf32> to vector<4x16xf32>
    %78 = arith.mulf %76, %77 : vector<4x16xf32>
    %c6 = arith.constant 6 : index
    %c0_27 = arith.constant 0 : index
    %c0_28 = arith.constant 0 : index
    %79 = vector.load %arg4[%c6, %c0_27, %c0_28] : memref<9x1x16xf32, #tpu.memory_space<vmem>>, vector<1x1x16xf32>
    %80 = vector.shape_cast %79 : vector<1x1x16xf32> to vector<1x16xf32>
    %81 = vector.broadcast %80 : vector<1x16xf32> to vector<4x16xf32>
    %82 = arith.mulf %78, %81 : vector<4x16xf32>
    %83 = arith.addf %75, %82 : vector<4x16xf32>
    %84 = vector.extract_strided_slice %30 {offsets = [5, 0], sizes = [4, 16], strides = [1, 1]} : vector<10x16xf32> to vector<4x16xf32>
    %c7 = arith.constant 7 : index
    %c0_29 = arith.constant 0 : index
    %c0_30 = arith.constant 0 : index
    %85 = vector.load %arg4[%c7, %c0_29, %c0_30] : memref<9x1x16xf32, #tpu.memory_space<vmem>>, vector<1x1x16xf32>
    %86 = vector.shape_cast %85 : vector<1x1x16xf32> to vector<1x16xf32>
    %87 = vector.broadcast %86 : vector<1x16xf32> to vector<4x16xf32>
    %88 = arith.mulf %84, %87 : vector<4x16xf32>
    %89 = arith.addf %83, %88 : vector<4x16xf32>
    %90 = vector.extract_strided_slice %30 {offsets = [6, 0], sizes = [4, 16], strides = [1, 1]} : vector<10x16xf32> to vector<4x16xf32>
    %91 = vector.broadcast %28 : vector<4x1xf32> to vector<4x16xf32>
    %92 = arith.mulf %90, %91 : vector<4x16xf32>
    %c8 = arith.constant 8 : index
    %c0_31 = arith.constant 0 : index
    %c0_32 = arith.constant 0 : index
    %93 = vector.load %arg4[%c8, %c0_31, %c0_32] : memref<9x1x16xf32, #tpu.memory_space<vmem>>, vector<1x1x16xf32>
    %94 = vector.shape_cast %93 : vector<1x1x16xf32> to vector<1x16xf32>
    %95 = vector.broadcast %94 : vector<1x16xf32> to vector<4x16xf32>
    %96 = arith.mulf %92, %95 : vector<4x16xf32>
    %97 = arith.addf %89, %96 : vector<4x16xf32>
    %c0_33 = arith.constant 0 : index
    %c0_34 = arith.constant 0 : index
    %98 = vector.load %arg5[%c0_33, %c0_34] : memref<1x16xf32, #tpu.memory_space<vmem>>, vector<1x16xf32>
    %99 = vector.broadcast %98 : vector<1x16xf32> to vector<4x16xf32>
    %100 = arith.addf %97, %99 : vector<4x16xf32>
    %101 = arith.truncf %100 : vector<4x16xf32> to vector<4x16xbf16>
    %c0_35 = arith.constant 0 : index
    %c0_36 = arith.constant 0 : index
    %102 = vector.load %arg6[%c0_35, %c0_36] : memref<16x32xbf16, #tpu.memory_space<vmem>>, vector<16x32xbf16>
    %cst_37 = arith.constant dense<0.000000e+00> : vector<4x32xf32>
    %103 = tpu.matmul %101, %102, %cst_37 {dimension_numbers = #tpu.dot_dimension_numbers<[1], [0], [0], [1], [0, 0, 1, 1], [], []>} : vector<4x16xbf16>, vector<16x32xbf16>, vector<4x32xf32> -> vector<4x32xf32>
    %c0_38 = arith.constant 0 : index
    %c0_39 = arith.constant 0 : index
    %104 = vector.load %arg7[%c0_38, %c0_39] : memref<1x32xf32, #tpu.memory_space<vmem>>, vector<1x32xf32>
    %105 = vector.broadcast %104 : vector<1x32xf32> to vector<4x32xf32>
    %106 = arith.addf %103, %105 : vector<4x32xf32>
    %cst_40 = arith.constant 0.000000e+00 : f32
    %107 = vector.broadcast %cst_40 : f32 to vector<4x32xf32>
    %108 = arith.maximumf %106, %107 : vector<4x32xf32>
    %109 = tpu.iota {dimensions = array<i32: 0>} : vector<16x32xi32>
    %110 = tpu.iota {dimensions = array<i32: 1>} : vector<16x32xi32>
    %c2_i32 = arith.constant 2 : i32
    %111 = vector.broadcast %c2_i32 : i32 to vector<16x32xi32>
    %112 = arith.muli %111, %109 : vector<16x32xi32>
    %113 = arith.cmpi eq, %110, %112 : vector<16x32xi32>
    %114 = arith.extui %113 : vector<16x32xi1> to vector<16x32xi32>
    %115 = arith.sitofp %114 : vector<16x32xi32> to vector<16x32xf32>
    %116 = arith.truncf %115 : vector<16x32xf32> to vector<16x32xbf16>
    %cst_41 = arith.constant dense<0.000000e+00> : vector<4x32xf32>
    %117 = tpu.matmul %2, %116, %cst_41 {dimension_numbers = #tpu.dot_dimension_numbers<[1], [0], [0], [1], [0, 0, 1, 1], [], []>} : vector<4x16xbf16>, vector<16x32xbf16>, vector<4x32xf32> -> vector<4x32xf32>
    %118 = arith.addf %117, %108 : vector<4x32xf32>
    %119 = arith.truncf %118 : vector<4x32xf32> to vector<4x32xbf16>
    %c0_42 = arith.constant 0 : index
    %c0_43 = arith.constant 0 : index
    %c0_44 = arith.constant 0 : index
    %120 = vector.load %arg8[%c0_42, %c0_43, %c0_44] : memref<1x4x32xbf16, #tpu.memory_space<vmem>>, vector<1x4x32xbf16>
    %121 = vector.shape_cast %120 : vector<1x4x32xbf16> to vector<4x32xbf16>
    %122 = vector.shape_cast %119 : vector<4x32xbf16> to vector<1x4x32xbf16>
    tpu.vector_store %arg8[%c0_42, %c0_43, %c0_44], %122 {strides = array<i32>} : memref<1x4x32xbf16, #tpu.memory_space<vmem>>, vector<1x4x32xbf16>,
    return
  }
  func.func @transform_0(%arg0: i32) -> (i32, i32, i32) {
    %c0_i32 = arith.constant 0 : i32
    %c0_i32_0 = arith.constant 0 : i32
    %c0_i32_1 = arith.constant 0 : i32
    return %arg0, %c0_i32, %c0_i32_0 : i32, i32, i32
  }
  func.func @transform_1(%arg0: i32) -> (i32, i32) {
    %c0_i32 = arith.constant 0 : i32
    %c0_i32_0 = arith.constant 0 : i32
    %c0_i32_1 = arith.constant 0 : i32
    return %c0_i32, %c0_i32_0 : i32, i32
  }
  func.func @transform_2(%arg0: i32) -> (i32, i32) {
    %c0_i32 = arith.constant 0 : i32
    %c0_i32_0 = arith.constant 0 : i32
    %c0_i32_1 = arith.constant 0 : i32
    return %c0_i32, %c0_i32_0 : i32, i32
  }
  func.func @transform_3(%arg0: i32) -> (i32, i32, i32) {
    %c0_i32 = arith.constant 0 : i32
    %c0_i32_0 = arith.constant 0 : i32
    %c0_i32_1 = arith.constant 0 : i32
    %c0_i32_2 = arith.constant 0 : i32
    return %c0_i32, %c0_i32_0, %c0_i32_1 : i32, i32, i32
  }
  func.func @transform_4(%arg0: i32) -> (i32, i32) {
    %c0_i32 = arith.constant 0 : i32
    %c0_i32_0 = arith.constant 0 : i32
    %c0_i32_1 = arith.constant 0 : i32
    return %c0_i32, %c0_i32_0 : i32, i32
  }
  func.func @transform_5(%arg0: i32) -> (i32, i32) {
    %c0_i32 = arith.constant 0 : i32
    %c0_i32_0 = arith.constant 0 : i32
    %c0_i32_1 = arith.constant 0 : i32
    return %c0_i32, %c0_i32_0 : i32, i32
  }
  func.func @transform_6(%arg0: i32) -> (i32, i32) {
    %c0_i32 = arith.constant 0 : i32
    %c0_i32_0 = arith.constant 0 : i32
    %c0_i32_1 = arith.constant 0 : i32
    return %c0_i32, %c0_i32_0 : i32, i32
  }
  func.func @transform_7(%arg0: i32) -> (i32, i32, i32) {
    %c0_i32 = arith.constant 0 : i32
    %c0_i32_0 = arith.constant 0 : i32
    %c0_i32_1 = arith.constant 0 : i32
    return %arg0, %c0_i32, %c0_i32_0 : i32, i32, i32
  }
}

module attributes {stable_mosaic.version = 11 : i64} {
  func.func @_block_s2_kernel(%arg0: i32, %arg1: memref<1x16x32xbf16, #tpu.memory_space<vmem>>, %arg2: memref<9x1x32xf32, #tpu.memory_space<vmem>>, %arg3: memref<1x32xf32, #tpu.memory_space<vmem>>, %arg4: memref<32x64xbf16, #tpu.memory_space<vmem>>, %arg5: memref<1x64xf32, #tpu.memory_space<vmem>>, %arg6: memref<32x32xbf16, #tpu.memory_space<vmem>>, %arg7: memref<1x32xf32, #tpu.memory_space<vmem>>, %arg8: memref<9x1x32xf32, #tpu.memory_space<vmem>>, %arg9: memref<1x32xf32, #tpu.memory_space<vmem>>, %arg10: memref<32x64xbf16, #tpu.memory_space<vmem>>, %arg11: memref<1x64xf32, #tpu.memory_space<vmem>>, %arg12: memref<1x1x64xbf16, #tpu.memory_space<vmem>>) attributes {dimension_semantics = [#tpu.dimension_semantics<parallel>], iteration_bounds = array<i64: 2>, scalar_prefetch = 0 : i64, scratch_operands = 0 : i64, tpu.core_type = #tpu.core_type<tc>, window_params = [{transform_indices = @transform_0, window_bounds = array<i64: 1, 16, 32>}, {pipeline_mode = #tpu.pipeline_mode<synchronous>, transform_indices = @transform_1, window_bounds = array<i64: 9, 1, 32>}, {pipeline_mode = #tpu.pipeline_mode<synchronous>, transform_indices = @transform_2, window_bounds = array<i64: 1, 32>}, {pipeline_mode = #tpu.pipeline_mode<synchronous>, transform_indices = @transform_3, window_bounds = array<i64: 32, 64>}, {pipeline_mode = #tpu.pipeline_mode<synchronous>, transform_indices = @transform_4, window_bounds = array<i64: 1, 64>}, {pipeline_mode = #tpu.pipeline_mode<synchronous>, transform_indices = @transform_5, window_bounds = array<i64: 32, 32>}, {pipeline_mode = #tpu.pipeline_mode<synchronous>, transform_indices = @transform_6, window_bounds = array<i64: 1, 32>}, {pipeline_mode = #tpu.pipeline_mode<synchronous>, transform_indices = @transform_7, window_bounds = array<i64: 9, 1, 32>}, {pipeline_mode = #tpu.pipeline_mode<synchronous>, transform_indices = @transform_8, window_bounds = array<i64: 1, 32>}, {pipeline_mode = #tpu.pipeline_mode<synchronous>, transform_indices = @transform_9, window_bounds = array<i64: 32, 64>}, {pipeline_mode = #tpu.pipeline_mode<synchronous>, transform_indices = @transform_10, window_bounds = array<i64: 1, 64>}, {transform_indices = @transform_11, window_bounds = array<i64: 1, 1, 64>}]} {
    %c0 = arith.constant 0 : index
    %c0_0 = arith.constant 0 : index
    %c0_1 = arith.constant 0 : index
    %0 = vector.load %arg1[%c0, %c0_0, %c0_1] : memref<1x16x32xbf16, #tpu.memory_space<vmem>>, vector<1x16x32xbf16>
    %1 = vector.shape_cast %0 : vector<1x16x32xbf16> to vector<16x32xbf16>
    %c0_2 = arith.constant 0 : index
    %c0_3 = arith.constant 0 : index
    %2 = vector.load %arg6[%c0_2, %c0_3] : memref<32x32xbf16, #tpu.memory_space<vmem>>, vector<32x32xbf16>
    %cst = arith.constant dense<0.000000e+00> : vector<16x32xf32>
    %3 = tpu.matmul %1, %2, %cst {dimension_numbers = #tpu.dot_dimension_numbers<[1], [0], [0], [1], [0, 0, 1, 1], [], []>} : vector<16x32xbf16>, vector<32x32xbf16>, vector<16x32xf32> -> vector<16x32xf32>
    %c0_4 = arith.constant 0 : index
    %c0_5 = arith.constant 0 : index
    %4 = vector.load %arg7[%c0_4, %c0_5] : memref<1x32xf32, #tpu.memory_space<vmem>>, vector<1x32xf32>
    %5 = vector.broadcast %4 : vector<1x32xf32> to vector<16x32xf32>
    %6 = arith.addf %3, %5 : vector<16x32xf32>
    %cst_6 = arith.constant 0.000000e+00 : f32
    %7 = vector.broadcast %cst_6 : f32 to vector<16x32xf32>
    %8 = arith.maximumf %6, %7 : vector<16x32xf32>
    %9 = tpu.iota {dimensions = array<i32: 0>} : vector<16x1xi32>
    %10 = arith.sitofp %9 : vector<16x1xi32> to vector<16x1xf32>
    %cst_7 = arith.constant 5.000000e-01 : f32
    %11 = vector.broadcast %cst_7 : f32 to vector<16x1xf32>
    %12 = arith.addf %10, %11 : vector<16x1xf32>
    %cst_8 = arith.constant 2.500000e-01 : f32
    %13 = vector.broadcast %cst_8 : f32 to vector<16x1xf32>
    %14 = arith.mulf %12, %13 : vector<16x1xf32>
    %15 = math.floor %14 : vector<16x1xf32>
    %cst_9 = arith.constant 4.000000e+00 : f32
    %16 = vector.broadcast %cst_9 : f32 to vector<16x1xf32>
    %17 = arith.mulf %15, %16 : vector<16x1xf32>
    %18 = arith.subf %10, %17 : vector<16x1xf32>
    %cst_10 = arith.constant 5.000000e-01 : f32
    %19 = vector.broadcast %cst_10 : f32 to vector<16x1xf32>
    %20 = arith.addf %18, %19 : vector<16x1xf32>
    %cst_11 = arith.constant 5.000000e-01 : f32
    %21 = vector.broadcast %cst_11 : f32 to vector<16x1xf32>
    %22 = arith.mulf %20, %21 : vector<16x1xf32>
    %23 = math.floor %22 : vector<16x1xf32>
    %cst_12 = arith.constant 2.000000e+00 : f32
    %24 = vector.broadcast %cst_12 : f32 to vector<16x1xf32>
    %25 = arith.mulf %23, %24 : vector<16x1xf32>
    %26 = arith.subf %18, %25 : vector<16x1xf32>
    %cst_13 = arith.constant 1.500000e+00 : f32
    %27 = vector.broadcast %cst_13 : f32 to vector<16x1xf32>
    %28 = arith.cmpf olt, %15, %27 : vector<16x1xf32>
    %cst_14 = arith.constant 5.000000e-01 : f32
    %29 = vector.broadcast %cst_14 : f32 to vector<16x1xf32>
    %30 = arith.cmpf olt, %15, %29 : vector<16x1xf32>
    %cst_15 = arith.constant 1.500000e+00 : f32
    %31 = vector.broadcast %cst_15 : f32 to vector<16x1xf32>
    %32 = arith.cmpf ogt, %15, %31 : vector<16x1xf32>
    %cst_16 = arith.constant 2.500000e+00 : f32
    %33 = vector.broadcast %cst_16 : f32 to vector<16x1xf32>
    %34 = arith.cmpf olt, %15, %33 : vector<16x1xf32>
    %35 = arith.andi %32, %34 : vector<16x1xi1>
    %36 = arith.ori %30, %35 : vector<16x1xi1>
    %cst_17 = arith.constant 5.000000e-01 : f32
    %37 = vector.broadcast %cst_17 : f32 to vector<16x1xf32>
    %38 = arith.cmpf olt, %23, %37 : vector<16x1xf32>
    %39 = arith.andi %28, %38 : vector<16x1xi1>
    %cst_18 = arith.constant dense<true> : vector<16x1xi1>
    %40 = arith.xori %28, %cst_18 : vector<16x1xi1>
    %cst_19 = arith.constant 5.000000e-01 : f32
    %41 = vector.broadcast %cst_19 : f32 to vector<16x1xf32>
    %42 = arith.cmpf ogt, %23, %41 : vector<16x1xf32>
    %43 = arith.andi %40, %42 : vector<16x1xi1>
    %44 = arith.ori %39, %43 : vector<16x1xi1>
    %cst_20 = arith.constant 5.000000e-01 : f32
    %45 = vector.broadcast %cst_20 : f32 to vector<16x1xf32>
    %46 = arith.cmpf olt, %26, %45 : vector<16x1xf32>
    %47 = arith.andi %36, %46 : vector<16x1xi1>
    %48 = arith.ori %44, %47 : vector<16x1xi1>
    %cst_21 = arith.constant dense<true> : vector<16x1xi1>
    %49 = arith.xori %36, %cst_21 : vector<16x1xi1>
    %cst_22 = arith.constant 5.000000e-01 : f32
    %50 = vector.broadcast %cst_22 : f32 to vector<16x1xf32>
    %51 = arith.cmpf ogt, %26, %50 : vector<16x1xf32>
    %52 = arith.andi %49, %51 : vector<16x1xi1>
    %53 = arith.ori %48, %52 : vector<16x1xi1>
    %54 = arith.extui %53 : vector<16x1xi1> to vector<16x1xi32>
    %55 = arith.sitofp %54 : vector<16x1xi32> to vector<16x1xf32>
    %cst_23 = arith.constant 1.000000e+00 : f32
    %56 = vector.broadcast %cst_23 : f32 to vector<16x1xf32>
    %57 = arith.subf %56, %55 : vector<16x1xf32>
    %58 = vector.broadcast %57 : vector<16x1xf32> to vector<16x32xf32>
    %59 = arith.mulf %8, %58 : vector<16x32xf32>
    %60 = arith.extf %1 : vector<16x32xbf16> to vector<16x32xf32>
    %cst_24 = arith.constant 0.000000e+00 : f32
    %61 = vector.broadcast %cst_24 : f32 to vector<1x32xf32>
    %cst_25 = arith.constant 0.000000e+00 : f32
    %62 = vector.broadcast %cst_25 : f32 to vector<1x32xf32>
    %63 = vector.extract_strided_slice %60 {offsets = [0, 0], sizes = [1, 32], strides = [1, 1]} : vector<16x32xf32> to vector<1x32xf32>
    %c0_26 = arith.constant 0 : index
    %c0_27 = arith.constant 0 : index
    %c0_28 = arith.constant 0 : index
    %64 = vector.load %arg2[%c0_26, %c0_27, %c0_28] : memref<9x1x32xf32, #tpu.memory_space<vmem>>, vector<1x1x32xf32>
    %65 = vector.shape_cast %64 : vector<1x1x32xf32> to vector<1x32xf32>
    %66 = arith.mulf %63, %65 : vector<1x32xf32>
    %67 = arith.addf %61, %66 : vector<1x32xf32>
    %68 = vector.extract_strided_slice %59 {offsets = [0, 0], sizes = [1, 32], strides = [1, 1]} : vector<16x32xf32> to vector<1x32xf32>
    %c0_29 = arith.constant 0 : index
    %c0_30 = arith.constant 0 : index
    %c0_31 = arith.constant 0 : index
    %69 = vector.load %arg8[%c0_29, %c0_30, %c0_31] : memref<9x1x32xf32, #tpu.memory_space<vmem>>, vector<1x1x32xf32>
    %70 = vector.shape_cast %69 : vector<1x1x32xf32> to vector<1x32xf32>
    %71 = arith.mulf %68, %70 : vector<1x32xf32>
    %72 = arith.addf %62, %71 : vector<1x32xf32>
    %73 = vector.extract_strided_slice %60 {offsets = [4, 0], sizes = [1, 32], strides = [1, 1]} : vector<16x32xf32> to vector<1x32xf32>
    %c1 = arith.constant 1 : index
    %c0_32 = arith.constant 0 : index
    %c0_33 = arith.constant 0 : index
    %74 = vector.load %arg2[%c1, %c0_32, %c0_33] : memref<9x1x32xf32, #tpu.memory_space<vmem>>, vector<1x1x32xf32>
    %75 = vector.shape_cast %74 : vector<1x1x32xf32> to vector<1x32xf32>
    %76 = arith.mulf %73, %75 : vector<1x32xf32>
    %77 = arith.addf %67, %76 : vector<1x32xf32>
    %78 = vector.extract_strided_slice %59 {offsets = [4, 0], sizes = [1, 32], strides = [1, 1]} : vector<16x32xf32> to vector<1x32xf32>
    %c1_34 = arith.constant 1 : index
    %c0_35 = arith.constant 0 : index
    %c0_36 = arith.constant 0 : index
    %79 = vector.load %arg8[%c1_34, %c0_35, %c0_36] : memref<9x1x32xf32, #tpu.memory_space<vmem>>, vector<1x1x32xf32>
    %80 = vector.shape_cast %79 : vector<1x1x32xf32> to vector<1x32xf32>
    %81 = arith.mulf %78, %80 : vector<1x32xf32>
    %82 = arith.addf %72, %81 : vector<1x32xf32>
    %83 = vector.extract_strided_slice %60 {offsets = [1, 0], sizes = [1, 32], strides = [1, 1]} : vector<16x32xf32> to vector<1x32xf32>
    %c2 = arith.constant 2 : index
    %c0_37 = arith.constant 0 : index
    %c0_38 = arith.constant 0 : index
    %84 = vector.load %arg2[%c2, %c0_37, %c0_38] : memref<9x1x32xf32, #tpu.memory_space<vmem>>, vector<1x1x32xf32>
    %85 = vector.shape_cast %84 : vector<1x1x32xf32> to vector<1x32xf32>
    %86 = arith.mulf %83, %85 : vector<1x32xf32>
    %87 = arith.addf %77, %86 : vector<1x32xf32>
    %88 = vector.extract_strided_slice %59 {offsets = [1, 0], sizes = [1, 32], strides = [1, 1]} : vector<16x32xf32> to vector<1x32xf32>
    %c2_39 = arith.constant 2 : index
    %c0_40 = arith.constant 0 : index
    %c0_41 = arith.constant 0 : index
    %89 = vector.load %arg8[%c2_39, %c0_40, %c0_41] : memref<9x1x32xf32, #tpu.memory_space<vmem>>, vector<1x1x32xf32>
    %90 = vector.shape_cast %89 : vector<1x1x32xf32> to vector<1x32xf32>
    %91 = arith.mulf %88, %90 : vector<1x32xf32>
    %92 = arith.addf %82, %91 : vector<1x32xf32>
    %93 = vector.extract_strided_slice %60 {offsets = [8, 0], sizes = [1, 32], strides = [1, 1]} : vector<16x32xf32> to vector<1x32xf32>
    %c3 = arith.constant 3 : index
    %c0_42 = arith.constant 0 : index
    %c0_43 = arith.constant 0 : index
    %94 = vector.load %arg2[%c3, %c0_42, %c0_43] : memref<9x1x32xf32, #tpu.memory_space<vmem>>, vector<1x1x32xf32>
    %95 = vector.shape_cast %94 : vector<1x1x32xf32> to vector<1x32xf32>
    %96 = arith.mulf %93, %95 : vector<1x32xf32>
    %97 = arith.addf %87, %96 : vector<1x32xf32>
    %98 = vector.extract_strided_slice %59 {offsets = [8, 0], sizes = [1, 32], strides = [1, 1]} : vector<16x32xf32> to vector<1x32xf32>
    %c3_44 = arith.constant 3 : index
    %c0_45 = arith.constant 0 : index
    %c0_46 = arith.constant 0 : index
    %99 = vector.load %arg8[%c3_44, %c0_45, %c0_46] : memref<9x1x32xf32, #tpu.memory_space<vmem>>, vector<1x1x32xf32>
    %100 = vector.shape_cast %99 : vector<1x1x32xf32> to vector<1x32xf32>
    %101 = arith.mulf %98, %100 : vector<1x32xf32>
    %102 = arith.addf %92, %101 : vector<1x32xf32>
    %103 = vector.extract_strided_slice %60 {offsets = [12, 0], sizes = [1, 32], strides = [1, 1]} : vector<16x32xf32> to vector<1x32xf32>
    %c4 = arith.constant 4 : index
    %c0_47 = arith.constant 0 : index
    %c0_48 = arith.constant 0 : index
    %104 = vector.load %arg2[%c4, %c0_47, %c0_48] : memref<9x1x32xf32, #tpu.memory_space<vmem>>, vector<1x1x32xf32>
    %105 = vector.shape_cast %104 : vector<1x1x32xf32> to vector<1x32xf32>
    %106 = arith.mulf %103, %105 : vector<1x32xf32>
    %107 = arith.addf %97, %106 : vector<1x32xf32>
    %108 = vector.extract_strided_slice %59 {offsets = [12, 0], sizes = [1, 32], strides = [1, 1]} : vector<16x32xf32> to vector<1x32xf32>
    %c4_49 = arith.constant 4 : index
    %c0_50 = arith.constant 0 : index
    %c0_51 = arith.constant 0 : index
    %109 = vector.load %arg8[%c4_49, %c0_50, %c0_51] : memref<9x1x32xf32, #tpu.memory_space<vmem>>, vector<1x1x32xf32>
    %110 = vector.shape_cast %109 : vector<1x1x32xf32> to vector<1x32xf32>
    %111 = arith.mulf %108, %110 : vector<1x32xf32>
    %112 = arith.addf %102, %111 : vector<1x32xf32>
    %113 = vector.extract_strided_slice %60 {offsets = [9, 0], sizes = [1, 32], strides = [1, 1]} : vector<16x32xf32> to vector<1x32xf32>
    %c5 = arith.constant 5 : index
    %c0_52 = arith.constant 0 : index
    %c0_53 = arith.constant 0 : index
    %114 = vector.load %arg2[%c5, %c0_52, %c0_53] : memref<9x1x32xf32, #tpu.memory_space<vmem>>, vector<1x1x32xf32>
    %115 = vector.shape_cast %114 : vector<1x1x32xf32> to vector<1x32xf32>
    %116 = arith.mulf %113, %115 : vector<1x32xf32>
    %117 = arith.addf %107, %116 : vector<1x32xf32>
    %118 = vector.extract_strided_slice %59 {offsets = [9, 0], sizes = [1, 32], strides = [1, 1]} : vector<16x32xf32> to vector<1x32xf32>
    %c5_54 = arith.constant 5 : index
    %c0_55 = arith.constant 0 : index
    %c0_56 = arith.constant 0 : index
    %119 = vector.load %arg8[%c5_54, %c0_55, %c0_56] : memref<9x1x32xf32, #tpu.memory_space<vmem>>, vector<1x1x32xf32>
    %120 = vector.shape_cast %119 : vector<1x1x32xf32> to vector<1x32xf32>
    %121 = arith.mulf %118, %120 : vector<1x32xf32>
    %122 = arith.addf %112, %121 : vector<1x32xf32>
    %123 = vector.extract_strided_slice %60 {offsets = [2, 0], sizes = [1, 32], strides = [1, 1]} : vector<16x32xf32> to vector<1x32xf32>
    %c6 = arith.constant 6 : index
    %c0_57 = arith.constant 0 : index
    %c0_58 = arith.constant 0 : index
    %124 = vector.load %arg2[%c6, %c0_57, %c0_58] : memref<9x1x32xf32, #tpu.memory_space<vmem>>, vector<1x1x32xf32>
    %125 = vector.shape_cast %124 : vector<1x1x32xf32> to vector<1x32xf32>
    %126 = arith.mulf %123, %125 : vector<1x32xf32>
    %127 = arith.addf %117, %126 : vector<1x32xf32>
    %128 = vector.extract_strided_slice %59 {offsets = [2, 0], sizes = [1, 32], strides = [1, 1]} : vector<16x32xf32> to vector<1x32xf32>
    %c6_59 = arith.constant 6 : index
    %c0_60 = arith.constant 0 : index
    %c0_61 = arith.constant 0 : index
    %129 = vector.load %arg8[%c6_59, %c0_60, %c0_61] : memref<9x1x32xf32, #tpu.memory_space<vmem>>, vector<1x1x32xf32>
    %130 = vector.shape_cast %129 : vector<1x1x32xf32> to vector<1x32xf32>
    %131 = arith.mulf %128, %130 : vector<1x32xf32>
    %132 = arith.addf %122, %131 : vector<1x32xf32>
    %133 = vector.extract_strided_slice %60 {offsets = [6, 0], sizes = [1, 32], strides = [1, 1]} : vector<16x32xf32> to vector<1x32xf32>
    %c7 = arith.constant 7 : index
    %c0_62 = arith.constant 0 : index
    %c0_63 = arith.constant 0 : index
    %134 = vector.load %arg2[%c7, %c0_62, %c0_63] : memref<9x1x32xf32, #tpu.memory_space<vmem>>, vector<1x1x32xf32>
    %135 = vector.shape_cast %134 : vector<1x1x32xf32> to vector<1x32xf32>
    %136 = arith.mulf %133, %135 : vector<1x32xf32>
    %137 = arith.addf %127, %136 : vector<1x32xf32>
    %138 = vector.extract_strided_slice %59 {offsets = [6, 0], sizes = [1, 32], strides = [1, 1]} : vector<16x32xf32> to vector<1x32xf32>
    %c7_64 = arith.constant 7 : index
    %c0_65 = arith.constant 0 : index
    %c0_66 = arith.constant 0 : index
    %139 = vector.load %arg8[%c7_64, %c0_65, %c0_66] : memref<9x1x32xf32, #tpu.memory_space<vmem>>, vector<1x1x32xf32>
    %140 = vector.shape_cast %139 : vector<1x1x32xf32> to vector<1x32xf32>
    %141 = arith.mulf %138, %140 : vector<1x32xf32>
    %142 = arith.addf %132, %141 : vector<1x32xf32>
    %143 = vector.extract_strided_slice %60 {offsets = [3, 0], sizes = [1, 32], strides = [1, 1]} : vector<16x32xf32> to vector<1x32xf32>
    %c8 = arith.constant 8 : index
    %c0_67 = arith.constant 0 : index
    %c0_68 = arith.constant 0 : index
    %144 = vector.load %arg2[%c8, %c0_67, %c0_68] : memref<9x1x32xf32, #tpu.memory_space<vmem>>, vector<1x1x32xf32>
    %145 = vector.shape_cast %144 : vector<1x1x32xf32> to vector<1x32xf32>
    %146 = arith.mulf %143, %145 : vector<1x32xf32>
    %147 = arith.addf %137, %146 : vector<1x32xf32>
    %148 = vector.extract_strided_slice %59 {offsets = [3, 0], sizes = [1, 32], strides = [1, 1]} : vector<16x32xf32> to vector<1x32xf32>
    %c8_69 = arith.constant 8 : index
    %c0_70 = arith.constant 0 : index
    %c0_71 = arith.constant 0 : index
    %149 = vector.load %arg8[%c8_69, %c0_70, %c0_71] : memref<9x1x32xf32, #tpu.memory_space<vmem>>, vector<1x1x32xf32>
    %150 = vector.shape_cast %149 : vector<1x1x32xf32> to vector<1x32xf32>
    %151 = arith.mulf %148, %150 : vector<1x32xf32>
    %152 = arith.addf %142, %151 : vector<1x32xf32>
    %c0_72 = arith.constant 0 : index
    %c0_73 = arith.constant 0 : index
    %153 = vector.load %arg3[%c0_72, %c0_73] : memref<1x32xf32, #tpu.memory_space<vmem>>, vector<1x32xf32>
    %154 = arith.addf %147, %153 : vector<1x32xf32>
    %c0_74 = arith.constant 0 : index
    %c0_75 = arith.constant 0 : index
    %155 = vector.load %arg9[%c0_74, %c0_75] : memref<1x32xf32, #tpu.memory_space<vmem>>, vector<1x32xf32>
    %156 = arith.addf %152, %155 : vector<1x32xf32>
    %157 = arith.truncf %154 : vector<1x32xf32> to vector<1x32xbf16>
    %c0_76 = arith.constant 0 : index
    %c0_77 = arith.constant 0 : index
    %158 = vector.load %arg4[%c0_76, %c0_77] : memref<32x64xbf16, #tpu.memory_space<vmem>>, vector<32x64xbf16>
    %cst_78 = arith.constant dense<0.000000e+00> : vector<1x64xf32>
    %159 = tpu.matmul %157, %158, %cst_78 {dimension_numbers = #tpu.dot_dimension_numbers<[1], [0], [0], [1], [0, 0, 1, 1], [], []>} : vector<1x32xbf16>, vector<32x64xbf16>, vector<1x64xf32> -> vector<1x64xf32>
    %c0_79 = arith.constant 0 : index
    %c0_80 = arith.constant 0 : index
    %160 = vector.load %arg5[%c0_79, %c0_80] : memref<1x64xf32, #tpu.memory_space<vmem>>, vector<1x64xf32>
    %161 = arith.addf %159, %160 : vector<1x64xf32>
    %cst_81 = arith.constant 0.000000e+00 : f32
    %162 = vector.broadcast %cst_81 : f32 to vector<1x64xf32>
    %163 = arith.maximumf %161, %162 : vector<1x64xf32>
    %164 = arith.truncf %156 : vector<1x32xf32> to vector<1x32xbf16>
    %c0_82 = arith.constant 0 : index
    %c0_83 = arith.constant 0 : index
    %165 = vector.load %arg10[%c0_82, %c0_83] : memref<32x64xbf16, #tpu.memory_space<vmem>>, vector<32x64xbf16>
    %cst_84 = arith.constant dense<0.000000e+00> : vector<1x64xf32>
    %166 = tpu.matmul %164, %165, %cst_84 {dimension_numbers = #tpu.dot_dimension_numbers<[1], [0], [0], [1], [0, 0, 1, 1], [], []>} : vector<1x32xbf16>, vector<32x64xbf16>, vector<1x64xf32> -> vector<1x64xf32>
    %c0_85 = arith.constant 0 : index
    %c0_86 = arith.constant 0 : index
    %167 = vector.load %arg11[%c0_85, %c0_86] : memref<1x64xf32, #tpu.memory_space<vmem>>, vector<1x64xf32>
    %168 = arith.addf %166, %167 : vector<1x64xf32>
    %cst_87 = arith.constant 0.000000e+00 : f32
    %169 = vector.broadcast %cst_87 : f32 to vector<1x64xf32>
    %170 = arith.maximumf %168, %169 : vector<1x64xf32>
    %171 = arith.addf %163, %170 : vector<1x64xf32>
    %172 = arith.truncf %171 : vector<1x64xf32> to vector<1x64xbf16>
    %c0_88 = arith.constant 0 : index
    %c0_89 = arith.constant 0 : index
    %c0_90 = arith.constant 0 : index
    %173 = vector.load %arg12[%c0_88, %c0_89, %c0_90] : memref<1x1x64xbf16, #tpu.memory_space<vmem>>, vector<1x1x64xbf16>
    %174 = vector.shape_cast %173 : vector<1x1x64xbf16> to vector<1x64xbf16>
    %175 = vector.shape_cast %172 : vector<1x64xbf16> to vector<1x1x64xbf16>
    tpu.vector_store %arg12[%c0_88, %c0_89, %c0_90], %175 {strides = array<i32>} : memref<1x1x64xbf16, #tpu.memory_space<vmem>>, vector<1x1x64xbf16>,
    return
  }
  func.func @transform_0(%arg0: i32) -> (i32, i32, i32) {
    %c0_i32 = arith.constant 0 : i32
    %c0_i32_0 = arith.constant 0 : i32
    %c0_i32_1 = arith.constant 0 : i32
    return %arg0, %c0_i32, %c0_i32_0 : i32, i32, i32
  }
  func.func @transform_1(%arg0: i32) -> (i32, i32, i32) {
    %c0_i32 = arith.constant 0 : i32
    %c0_i32_0 = arith.constant 0 : i32
    %c0_i32_1 = arith.constant 0 : i32
    %c0_i32_2 = arith.constant 0 : i32
    return %c0_i32, %c0_i32_0, %c0_i32_1 : i32, i32, i32
  }
  func.func @transform_2(%arg0: i32) -> (i32, i32) {
    %c0_i32 = arith.constant 0 : i32
    %c0_i32_0 = arith.constant 0 : i32
    %c0_i32_1 = arith.constant 0 : i32
    return %c0_i32, %c0_i32_0 : i32, i32
  }
  func.func @transform_3(%arg0: i32) -> (i32, i32) {
    %c0_i32 = arith.constant 0 : i32
    %c0_i32_0 = arith.constant 0 : i32
    %c0_i32_1 = arith.constant 0 : i32
    return %c0_i32, %c0_i32_0 : i32, i32
  }
  func.func @transform_4(%arg0: i32) -> (i32, i32) {
    %c0_i32 = arith.constant 0 : i32
    %c0_i32_0 = arith.constant 0 : i32
    %c0_i32_1 = arith.constant 0 : i32
    return %c0_i32, %c0_i32_0 : i32, i32
  }
  func.func @transform_5(%arg0: i32) -> (i32, i32) {
    %c0_i32 = arith.constant 0 : i32
    %c0_i32_0 = arith.constant 0 : i32
    %c0_i32_1 = arith.constant 0 : i32
    return %c0_i32, %c0_i32_0 : i32, i32
  }
  func.func @transform_6(%arg0: i32) -> (i32, i32) {
    %c0_i32 = arith.constant 0 : i32
    %c0_i32_0 = arith.constant 0 : i32
    %c0_i32_1 = arith.constant 0 : i32
    return %c0_i32, %c0_i32_0 : i32, i32
  }
  func.func @transform_7(%arg0: i32) -> (i32, i32, i32) {
    %c0_i32 = arith.constant 0 : i32
    %c0_i32_0 = arith.constant 0 : i32
    %c0_i32_1 = arith.constant 0 : i32
    %c0_i32_2 = arith.constant 0 : i32
    return %c0_i32, %c0_i32_0, %c0_i32_1 : i32, i32, i32
  }
  func.func @transform_8(%arg0: i32) -> (i32, i32) {
    %c0_i32 = arith.constant 0 : i32
    %c0_i32_0 = arith.constant 0 : i32
    %c0_i32_1 = arith.constant 0 : i32
    return %c0_i32, %c0_i32_0 : i32, i32
  }
  func.func @transform_9(%arg0: i32) -> (i32, i32) {
    %c0_i32 = arith.constant 0 : i32
    %c0_i32_0 = arith.constant 0 : i32
    %c0_i32_1 = arith.constant 0 : i32
    return %c0_i32, %c0_i32_0 : i32, i32
  }
  func.func @transform_10(%arg0: i32) -> (i32, i32) {
    %c0_i32 = arith.constant 0 : i32
    %c0_i32_0 = arith.constant 0 : i32
    %c0_i32_1 = arith.constant 0 : i32
    return %c0_i32, %c0_i32_0 : i32, i32
  }
  func.func @transform_11(%arg0: i32) -> (i32, i32, i32) {
    %c0_i32 = arith.constant 0 : i32
    %c0_i32_0 = arith.constant 0 : i32
    %c0_i32_1 = arith.constant 0 : i32
    return %arg0, %c0_i32, %c0_i32_0 : i32, i32, i32
  }
}

module attributes {stable_mosaic.version = 11 : i64} {
  func.func @_head_kernel(%arg0: i32, %arg1: memref<1x1x64xbf16, #tpu.memory_space<vmem>>, %arg2: memref<64x128xbf16, #tpu.memory_space<vmem>>, %arg3: memref<1x128xf32, #tpu.memory_space<vmem>>, %arg4: memref<128x128xbf16, #tpu.memory_space<vmem>>, %arg5: memref<1x128xf32, #tpu.memory_space<vmem>>, %arg6: memref<1x1x128xf32, #tpu.memory_space<vmem>>) attributes {dimension_semantics = [#tpu.dimension_semantics<parallel>], iteration_bounds = array<i64: 2>, scalar_prefetch = 0 : i64, scratch_operands = 0 : i64, tpu.core_type = #tpu.core_type<tc>, window_params = [{transform_indices = @transform_0, window_bounds = array<i64: 1, 1, 64>}, {pipeline_mode = #tpu.pipeline_mode<synchronous>, transform_indices = @transform_1, window_bounds = array<i64: 64, 128>}, {pipeline_mode = #tpu.pipeline_mode<synchronous>, transform_indices = @transform_2, window_bounds = array<i64: 1, 128>}, {pipeline_mode = #tpu.pipeline_mode<synchronous>, transform_indices = @transform_3, window_bounds = array<i64: 128, 128>}, {pipeline_mode = #tpu.pipeline_mode<synchronous>, transform_indices = @transform_4, window_bounds = array<i64: 1, 128>}, {transform_indices = @transform_5, window_bounds = array<i64: 1, 1, 128>}]} {
    %c0 = arith.constant 0 : index
    %c0_0 = arith.constant 0 : index
    %c0_1 = arith.constant 0 : index
    %0 = vector.load %arg1[%c0, %c0_0, %c0_1] : memref<1x1x64xbf16, #tpu.memory_space<vmem>>, vector<1x1x64xbf16>
    %1 = vector.shape_cast %0 : vector<1x1x64xbf16> to vector<1x64xbf16>
    %c0_2 = arith.constant 0 : index
    %c0_3 = arith.constant 0 : index
    %2 = vector.load %arg2[%c0_2, %c0_3] : memref<64x128xbf16, #tpu.memory_space<vmem>>, vector<64x128xbf16>
    %cst = arith.constant dense<0.000000e+00> : vector<1x128xf32>
    %3 = tpu.matmul %1, %2, %cst {dimension_numbers = #tpu.dot_dimension_numbers<[1], [0], [0], [1], [0, 0, 1, 1], [], []>} : vector<1x64xbf16>, vector<64x128xbf16>, vector<1x128xf32> -> vector<1x128xf32>
    %c0_4 = arith.constant 0 : index
    %c0_5 = arith.constant 0 : index
    %4 = vector.load %arg3[%c0_4, %c0_5] : memref<1x128xf32, #tpu.memory_space<vmem>>, vector<1x128xf32>
    %5 = arith.addf %3, %4 : vector<1x128xf32>
    %cst_6 = arith.constant 0.000000e+00 : f32
    %6 = vector.broadcast %cst_6 : f32 to vector<1x128xf32>
    %7 = arith.maximumf %5, %6 : vector<1x128xf32>
    %cst_7 = arith.constant dense<0.000000e+00> : vector<128xf32>
    %8 = vector.multi_reduction <add>, %7, %cst_7 [0] : vector<1x128xf32> to vector<128xf32>
    %9 = vector.shape_cast %8 : vector<128xf32> to vector<1x128xf32>
    %cst_8 = arith.constant 1.000000e+00 : f32
    %10 = vector.broadcast %cst_8 : f32 to vector<1x128xf32>
    %11 = arith.mulf %9, %10 : vector<1x128xf32>
    %12 = arith.truncf %11 : vector<1x128xf32> to vector<1x128xbf16>
    %c0_9 = arith.constant 0 : index
    %c0_10 = arith.constant 0 : index
    %13 = vector.load %arg4[%c0_9, %c0_10] : memref<128x128xbf16, #tpu.memory_space<vmem>>, vector<128x128xbf16>
    %cst_11 = arith.constant dense<0.000000e+00> : vector<1x128xf32>
    %14 = tpu.matmul %12, %13, %cst_11 {dimension_numbers = #tpu.dot_dimension_numbers<[1], [0], [0], [1], [0, 0, 1, 1], [], []>} : vector<1x128xbf16>, vector<128x128xbf16>, vector<1x128xf32> -> vector<1x128xf32>
    %c0_12 = arith.constant 0 : index
    %c0_13 = arith.constant 0 : index
    %15 = vector.load %arg5[%c0_12, %c0_13] : memref<1x128xf32, #tpu.memory_space<vmem>>, vector<1x128xf32>
    %16 = arith.addf %14, %15 : vector<1x128xf32>
    %c0_14 = arith.constant 0 : index
    %c0_15 = arith.constant 0 : index
    %c0_16 = arith.constant 0 : index
    %17 = vector.load %arg6[%c0_14, %c0_15, %c0_16] : memref<1x1x128xf32, #tpu.memory_space<vmem>>, vector<1x1x128xf32>
    %18 = vector.shape_cast %17 : vector<1x1x128xf32> to vector<1x128xf32>
    %19 = vector.shape_cast %16 : vector<1x128xf32> to vector<1x1x128xf32>
    tpu.vector_store %arg6[%c0_14, %c0_15, %c0_16], %19 {strides = array<i32>} : memref<1x1x128xf32, #tpu.memory_space<vmem>>, vector<1x1x128xf32>,
    return
  }
  func.func @transform_0(%arg0: i32) -> (i32, i32, i32) {
    %c0_i32 = arith.constant 0 : i32
    %c0_i32_0 = arith.constant 0 : i32
    %c0_i32_1 = arith.constant 0 : i32
    return %arg0, %c0_i32, %c0_i32_0 : i32, i32, i32
  }
  func.func @transform_1(%arg0: i32) -> (i32, i32) {
    %c0_i32 = arith.constant 0 : i32
    %c0_i32_0 = arith.constant 0 : i32
    %c0_i32_1 = arith.constant 0 : i32
    return %c0_i32, %c0_i32_0 : i32, i32
  }
  func.func @transform_2(%arg0: i32) -> (i32, i32) {
    %c0_i32 = arith.constant 0 : i32
    %c0_i32_0 = arith.constant 0 : i32
    %c0_i32_1 = arith.constant 0 : i32
    return %c0_i32, %c0_i32_0 : i32, i32
  }
  func.func @transform_3(%arg0: i32) -> (i32, i32) {
    %c0_i32 = arith.constant 0 : i32
    %c0_i32_0 = arith.constant 0 : i32
    %c0_i32_1 = arith.constant 0 : i32
    return %c0_i32, %c0_i32_0 : i32, i32
  }
  func.func @transform_4(%arg0: i32) -> (i32, i32) {
    %c0_i32 = arith.constant 0 : i32
    %c0_i32_0 = arith.constant 0 : i32
    %c0_i32_1 = arith.constant 0 : i32
    return %c0_i32, %c0_i32_0 : i32, i32
  }
  func.func @transform_5(%arg0: i32) -> (i32, i32, i32) {
    %c0_i32 = arith.constant 0 : i32
    %c0_i32_0 = arith.constant 0 : i32
    %c0_i32_1 = arith.constant 0 : i32
    return %arg0, %c0_i32, %c0_i32_0 : i32, i32, i32
  }
}

module attributes {stable_mosaic.version = 11 : i64} {
  func.func @_block_s1_kernel(%arg0: i32, %arg1: memref<1x1x64xbf16, #tpu.memory_space<vmem>>, %arg2: memref<32x32xbf16, #tpu.memory_space<vmem>>, %arg3: memref<1x32xf32, #tpu.memory_space<vmem>>, %arg4: memref<9x1x32xf32, #tpu.memory_space<vmem>>, %arg5: memref<1x32xf32, #tpu.memory_space<vmem>>, %arg6: memref<32x64xbf16, #tpu.memory_space<vmem>>, %arg7: memref<1x64xf32, #tpu.memory_space<vmem>>, %arg8: memref<1x1x64xbf16, #tpu.memory_space<vmem>>) attributes {dimension_semantics = [#tpu.dimension_semantics<parallel>], iteration_bounds = array<i64: 2>, scalar_prefetch = 0 : i64, scratch_operands = 0 : i64, tpu.core_type = #tpu.core_type<tc>, window_params = [{transform_indices = @transform_0, window_bounds = array<i64: 1, 1, 64>}, {pipeline_mode = #tpu.pipeline_mode<synchronous>, transform_indices = @transform_1, window_bounds = array<i64: 32, 32>}, {pipeline_mode = #tpu.pipeline_mode<synchronous>, transform_indices = @transform_2, window_bounds = array<i64: 1, 32>}, {pipeline_mode = #tpu.pipeline_mode<synchronous>, transform_indices = @transform_3, window_bounds = array<i64: 9, 1, 32>}, {pipeline_mode = #tpu.pipeline_mode<synchronous>, transform_indices = @transform_4, window_bounds = array<i64: 1, 32>}, {pipeline_mode = #tpu.pipeline_mode<synchronous>, transform_indices = @transform_5, window_bounds = array<i64: 32, 64>}, {pipeline_mode = #tpu.pipeline_mode<synchronous>, transform_indices = @transform_6, window_bounds = array<i64: 1, 64>}, {transform_indices = @transform_7, window_bounds = array<i64: 1, 1, 64>}]} {
    %c0 = arith.constant 0 : index
    %c0_0 = arith.constant 0 : index
    %c0_1 = arith.constant 0 : index
    %0 = vector.load %arg1[%c0, %c0_0, %c0_1] : memref<1x1x64xbf16, #tpu.memory_space<vmem>>, vector<1x1x64xbf16>
    %1 = vector.shape_cast %0 : vector<1x1x64xbf16> to vector<1x64xbf16>
    %2 = vector.extract_strided_slice %1 {offsets = [0, 0], sizes = [1, 32], strides = [1, 1]} : vector<1x64xbf16> to vector<1x32xbf16>
    %3 = vector.extract_strided_slice %1 {offsets = [0, 32], sizes = [1, 32], strides = [1, 1]} : vector<1x64xbf16> to vector<1x32xbf16>
    %c0_2 = arith.constant 0 : index
    %c0_3 = arith.constant 0 : index
    %4 = vector.load %arg2[%c0_2, %c0_3] : memref<32x32xbf16, #tpu.memory_space<vmem>>, vector<32x32xbf16>
    %cst = arith.constant dense<0.000000e+00> : vector<1x32xf32>
    %5 = tpu.matmul %3, %4, %cst {dimension_numbers = #tpu.dot_dimension_numbers<[1], [0], [0], [1], [0, 0, 1, 1], [], []>} : vector<1x32xbf16>, vector<32x32xbf16>, vector<1x32xf32> -> vector<1x32xf32>
    %c0_4 = arith.constant 0 : index
    %c0_5 = arith.constant 0 : index
    %6 = vector.load %arg3[%c0_4, %c0_5] : memref<1x32xf32, #tpu.memory_space<vmem>>, vector<1x32xf32>
    %7 = arith.addf %5, %6 : vector<1x32xf32>
    %cst_6 = arith.constant 0.000000e+00 : f32
    %8 = vector.broadcast %cst_6 : f32 to vector<1x32xf32>
    %9 = arith.maximumf %7, %8 : vector<1x32xf32>
    %10 = tpu.iota {dimensions = array<i32: 0>} : vector<1x1xi32>
    %11 = arith.sitofp %10 : vector<1x1xi32> to vector<1x1xf32>
    %cst_7 = arith.constant 5.000000e-01 : f32
    %12 = vector.broadcast %cst_7 : f32 to vector<1x1xf32>
    %13 = arith.addf %11, %12 : vector<1x1xf32>
    %cst_8 = arith.constant 1.000000e+00 : f32
    %14 = vector.broadcast %cst_8 : f32 to vector<1x1xf32>
    %15 = arith.mulf %13, %14 : vector<1x1xf32>
    %16 = math.floor %15 : vector<1x1xf32>
    %cst_9 = arith.constant 1.000000e+00 : f32
    %17 = vector.broadcast %cst_9 : f32 to vector<1x1xf32>
    %18 = arith.mulf %16, %17 : vector<1x1xf32>
    %19 = arith.subf %11, %18 : vector<1x1xf32>
    %cst_10 = arith.constant 5.000000e-01 : f32
    %20 = vector.broadcast %cst_10 : f32 to vector<1x1xf32>
    %21 = arith.cmpf oge, %19, %20 : vector<1x1xf32>
    %22 = arith.extui %21 : vector<1x1xi1> to vector<1x1xi32>
    %23 = arith.sitofp %22 : vector<1x1xi32> to vector<1x1xf32>
    %cst_11 = arith.constant -5.000000e-01 : f32
    %24 = vector.broadcast %cst_11 : f32 to vector<1x1xf32>
    %25 = arith.cmpf ole, %19, %24 : vector<1x1xf32>
    %26 = arith.extui %25 : vector<1x1xi1> to vector<1x1xi32>
    %27 = arith.sitofp %26 : vector<1x1xi32> to vector<1x1xf32>
    %cst_12 = arith.constant 0.000000e+00 : f32
    %28 = vector.broadcast %cst_12 : f32 to vector<2x32xf32>
    %29 = tpu.concatenate %28, %9, %28 in 0 : vector<2x32xf32>, vector<1x32xf32>, vector<2x32xf32> -> vector<5x32xf32>
    %cst_13 = arith.constant 0.000000e+00 : f32
    %30 = vector.broadcast %cst_13 : f32 to vector<1x32xf32>
    %31 = vector.extract_strided_slice %29 {offsets = [0, 0], sizes = [1, 32], strides = [1, 1]} : vector<5x32xf32> to vector<1x32xf32>
    %32 = vector.broadcast %23 : vector<1x1xf32> to vector<1x32xf32>
    %33 = arith.mulf %31, %32 : vector<1x32xf32>
    %c0_14 = arith.constant 0 : index
    %c0_15 = arith.constant 0 : index
    %c0_16 = arith.constant 0 : index
    %34 = vector.load %arg4[%c0_14, %c0_15, %c0_16] : memref<9x1x32xf32, #tpu.memory_space<vmem>>, vector<1x1x32xf32>
    %35 = vector.shape_cast %34 : vector<1x1x32xf32> to vector<1x32xf32>
    %36 = arith.mulf %33, %35 : vector<1x32xf32>
    %37 = arith.addf %30, %36 : vector<1x32xf32>
    %38 = vector.extract_strided_slice %29 {offsets = [1, 0], sizes = [1, 32], strides = [1, 1]} : vector<5x32xf32> to vector<1x32xf32>
    %c1 = arith.constant 1 : index
    %c0_17 = arith.constant 0 : index
    %c0_18 = arith.constant 0 : index
    %39 = vector.load %arg4[%c1, %c0_17, %c0_18] : memref<9x1x32xf32, #tpu.memory_space<vmem>>, vector<1x1x32xf32>
    %40 = vector.shape_cast %39 : vector<1x1x32xf32> to vector<1x32xf32>
    %41 = arith.mulf %38, %40 : vector<1x32xf32>
    %42 = arith.addf %37, %41 : vector<1x32xf32>
    %43 = vector.extract_strided_slice %29 {offsets = [2, 0], sizes = [1, 32], strides = [1, 1]} : vector<5x32xf32> to vector<1x32xf32>
    %44 = vector.broadcast %27 : vector<1x1xf32> to vector<1x32xf32>
    %45 = arith.mulf %43, %44 : vector<1x32xf32>
    %c2 = arith.constant 2 : index
    %c0_19 = arith.constant 0 : index
    %c0_20 = arith.constant 0 : index
    %46 = vector.load %arg4[%c2, %c0_19, %c0_20] : memref<9x1x32xf32, #tpu.memory_space<vmem>>, vector<1x1x32xf32>
    %47 = vector.shape_cast %46 : vector<1x1x32xf32> to vector<1x32xf32>
    %48 = arith.mulf %45, %47 : vector<1x32xf32>
    %49 = arith.addf %42, %48 : vector<1x32xf32>
    %50 = vector.extract_strided_slice %29 {offsets = [1, 0], sizes = [1, 32], strides = [1, 1]} : vector<5x32xf32> to vector<1x32xf32>
    %51 = vector.broadcast %23 : vector<1x1xf32> to vector<1x32xf32>
    %52 = arith.mulf %50, %51 : vector<1x32xf32>
    %c3 = arith.constant 3 : index
    %c0_21 = arith.constant 0 : index
    %c0_22 = arith.constant 0 : index
    %53 = vector.load %arg4[%c3, %c0_21, %c0_22] : memref<9x1x32xf32, #tpu.memory_space<vmem>>, vector<1x1x32xf32>
    %54 = vector.shape_cast %53 : vector<1x1x32xf32> to vector<1x32xf32>
    %55 = arith.mulf %52, %54 : vector<1x32xf32>
    %56 = arith.addf %49, %55 : vector<1x32xf32>
    %57 = vector.extract_strided_slice %29 {offsets = [2, 0], sizes = [1, 32], strides = [1, 1]} : vector<5x32xf32> to vector<1x32xf32>
    %c4 = arith.constant 4 : index
    %c0_23 = arith.constant 0 : index
    %c0_24 = arith.constant 0 : index
    %58 = vector.load %arg4[%c4, %c0_23, %c0_24] : memref<9x1x32xf32, #tpu.memory_space<vmem>>, vector<1x1x32xf32>
    %59 = vector.shape_cast %58 : vector<1x1x32xf32> to vector<1x32xf32>
    %60 = arith.mulf %57, %59 : vector<1x32xf32>
    %61 = arith.addf %56, %60 : vector<1x32xf32>
    %62 = vector.extract_strided_slice %29 {offsets = [3, 0], sizes = [1, 32], strides = [1, 1]} : vector<5x32xf32> to vector<1x32xf32>
    %63 = vector.broadcast %27 : vector<1x1xf32> to vector<1x32xf32>
    %64 = arith.mulf %62, %63 : vector<1x32xf32>
    %c5 = arith.constant 5 : index
    %c0_25 = arith.constant 0 : index
    %c0_26 = arith.constant 0 : index
    %65 = vector.load %arg4[%c5, %c0_25, %c0_26] : memref<9x1x32xf32, #tpu.memory_space<vmem>>, vector<1x1x32xf32>
    %66 = vector.shape_cast %65 : vector<1x1x32xf32> to vector<1x32xf32>
    %67 = arith.mulf %64, %66 : vector<1x32xf32>
    %68 = arith.addf %61, %67 : vector<1x32xf32>
    %69 = vector.extract_strided_slice %29 {offsets = [2, 0], sizes = [1, 32], strides = [1, 1]} : vector<5x32xf32> to vector<1x32xf32>
    %70 = vector.broadcast %23 : vector<1x1xf32> to vector<1x32xf32>
    %71 = arith.mulf %69, %70 : vector<1x32xf32>
    %c6 = arith.constant 6 : index
    %c0_27 = arith.constant 0 : index
    %c0_28 = arith.constant 0 : index
    %72 = vector.load %arg4[%c6, %c0_27, %c0_28] : memref<9x1x32xf32, #tpu.memory_space<vmem>>, vector<1x1x32xf32>
    %73 = vector.shape_cast %72 : vector<1x1x32xf32> to vector<1x32xf32>
    %74 = arith.mulf %71, %73 : vector<1x32xf32>
    %75 = arith.addf %68, %74 : vector<1x32xf32>
    %76 = vector.extract_strided_slice %29 {offsets = [3, 0], sizes = [1, 32], strides = [1, 1]} : vector<5x32xf32> to vector<1x32xf32>
    %c7 = arith.constant 7 : index
    %c0_29 = arith.constant 0 : index
    %c0_30 = arith.constant 0 : index
    %77 = vector.load %arg4[%c7, %c0_29, %c0_30] : memref<9x1x32xf32, #tpu.memory_space<vmem>>, vector<1x1x32xf32>
    %78 = vector.shape_cast %77 : vector<1x1x32xf32> to vector<1x32xf32>
    %79 = arith.mulf %76, %78 : vector<1x32xf32>
    %80 = arith.addf %75, %79 : vector<1x32xf32>
    %81 = vector.extract_strided_slice %29 {offsets = [4, 0], sizes = [1, 32], strides = [1, 1]} : vector<5x32xf32> to vector<1x32xf32>
    %82 = vector.broadcast %27 : vector<1x1xf32> to vector<1x32xf32>
    %83 = arith.mulf %81, %82 : vector<1x32xf32>
    %c8 = arith.constant 8 : index
    %c0_31 = arith.constant 0 : index
    %c0_32 = arith.constant 0 : index
    %84 = vector.load %arg4[%c8, %c0_31, %c0_32] : memref<9x1x32xf32, #tpu.memory_space<vmem>>, vector<1x1x32xf32>
    %85 = vector.shape_cast %84 : vector<1x1x32xf32> to vector<1x32xf32>
    %86 = arith.mulf %83, %85 : vector<1x32xf32>
    %87 = arith.addf %80, %86 : vector<1x32xf32>
    %c0_33 = arith.constant 0 : index
    %c0_34 = arith.constant 0 : index
    %88 = vector.load %arg5[%c0_33, %c0_34] : memref<1x32xf32, #tpu.memory_space<vmem>>, vector<1x32xf32>
    %89 = arith.addf %87, %88 : vector<1x32xf32>
    %90 = arith.truncf %89 : vector<1x32xf32> to vector<1x32xbf16>
    %c0_35 = arith.constant 0 : index
    %c0_36 = arith.constant 0 : index
    %91 = vector.load %arg6[%c0_35, %c0_36] : memref<32x64xbf16, #tpu.memory_space<vmem>>, vector<32x64xbf16>
    %cst_37 = arith.constant dense<0.000000e+00> : vector<1x64xf32>
    %92 = tpu.matmul %90, %91, %cst_37 {dimension_numbers = #tpu.dot_dimension_numbers<[1], [0], [0], [1], [0, 0, 1, 1], [], []>} : vector<1x32xbf16>, vector<32x64xbf16>, vector<1x64xf32> -> vector<1x64xf32>
    %c0_38 = arith.constant 0 : index
    %c0_39 = arith.constant 0 : index
    %93 = vector.load %arg7[%c0_38, %c0_39] : memref<1x64xf32, #tpu.memory_space<vmem>>, vector<1x64xf32>
    %94 = arith.addf %92, %93 : vector<1x64xf32>
    %cst_40 = arith.constant 0.000000e+00 : f32
    %95 = vector.broadcast %cst_40 : f32 to vector<1x64xf32>
    %96 = arith.maximumf %94, %95 : vector<1x64xf32>
    %97 = tpu.iota {dimensions = array<i32: 0>} : vector<32x64xi32>
    %98 = tpu.iota {dimensions = array<i32: 1>} : vector<32x64xi32>
    %c2_i32 = arith.constant 2 : i32
    %99 = vector.broadcast %c2_i32 : i32 to vector<32x64xi32>
    %100 = arith.muli %99, %97 : vector<32x64xi32>
    %101 = arith.cmpi eq, %98, %100 : vector<32x64xi32>
    %102 = arith.extui %101 : vector<32x64xi1> to vector<32x64xi32>
    %103 = arith.sitofp %102 : vector<32x64xi32> to vector<32x64xf32>
    %104 = arith.truncf %103 : vector<32x64xf32> to vector<32x64xbf16>
    %cst_41 = arith.constant dense<0.000000e+00> : vector<1x64xf32>
    %105 = tpu.matmul %2, %104, %cst_41 {dimension_numbers = #tpu.dot_dimension_numbers<[1], [0], [0], [1], [0, 0, 1, 1], [], []>} : vector<1x32xbf16>, vector<32x64xbf16>, vector<1x64xf32> -> vector<1x64xf32>
    %106 = arith.addf %105, %96 : vector<1x64xf32>
    %107 = arith.truncf %106 : vector<1x64xf32> to vector<1x64xbf16>
    %c0_42 = arith.constant 0 : index
    %c0_43 = arith.constant 0 : index
    %c0_44 = arith.constant 0 : index
    %108 = vector.load %arg8[%c0_42, %c0_43, %c0_44] : memref<1x1x64xbf16, #tpu.memory_space<vmem>>, vector<1x1x64xbf16>
    %109 = vector.shape_cast %108 : vector<1x1x64xbf16> to vector<1x64xbf16>
    %110 = vector.shape_cast %107 : vector<1x64xbf16> to vector<1x1x64xbf16>
    tpu.vector_store %arg8[%c0_42, %c0_43, %c0_44], %110 {strides = array<i32>} : memref<1x1x64xbf16, #tpu.memory_space<vmem>>, vector<1x1x64xbf16>,
    return
  }
  func.func @transform_0(%arg0: i32) -> (i32, i32, i32) {
    %c0_i32 = arith.constant 0 : i32
    %c0_i32_0 = arith.constant 0 : i32
    %c0_i32_1 = arith.constant 0 : i32
    return %arg0, %c0_i32, %c0_i32_0 : i32, i32, i32
  }
  func.func @transform_1(%arg0: i32) -> (i32, i32) {
    %c0_i32 = arith.constant 0 : i32
    %c0_i32_0 = arith.constant 0 : i32
    %c0_i32_1 = arith.constant 0 : i32
    return %c0_i32, %c0_i32_0 : i32, i32
  }
  func.func @transform_2(%arg0: i32) -> (i32, i32) {
    %c0_i32 = arith.constant 0 : i32
    %c0_i32_0 = arith.constant 0 : i32
    %c0_i32_1 = arith.constant 0 : i32
    return %c0_i32, %c0_i32_0 : i32, i32
  }
  func.func @transform_3(%arg0: i32) -> (i32, i32, i32) {
    %c0_i32 = arith.constant 0 : i32
    %c0_i32_0 = arith.constant 0 : i32
    %c0_i32_1 = arith.constant 0 : i32
    %c0_i32_2 = arith.constant 0 : i32
    return %c0_i32, %c0_i32_0, %c0_i32_1 : i32, i32, i32
  }
  func.func @transform_4(%arg0: i32) -> (i32, i32) {
    %c0_i32 = arith.constant 0 : i32
    %c0_i32_0 = arith.constant 0 : i32
    %c0_i32_1 = arith.constant 0 : i32
    return %c0_i32, %c0_i32_0 : i32, i32
  }
  func.func @transform_5(%arg0: i32) -> (i32, i32) {
    %c0_i32 = arith.constant 0 : i32
    %c0_i32_0 = arith.constant 0 : i32
    %c0_i32_1 = arith.constant 0 : i32
    return %c0_i32, %c0_i32_0 : i32, i32
  }
  func.func @transform_6(%arg0: i32) -> (i32, i32) {
    %c0_i32 = arith.constant 0 : i32
    %c0_i32_0 = arith.constant 0 : i32
    %c0_i32_1 = arith.constant 0 : i32
    return %c0_i32, %c0_i32_0 : i32, i32
  }
  func.func @transform_7(%arg0: i32) -> (i32, i32, i32) {
    %c0_i32 = arith.constant 0 : i32
    %c0_i32_0 = arith.constant 0 : i32
    %c0_i32_1 = arith.constant 0 : i32
    return %arg0, %c0_i32, %c0_i32_0 : i32, i32, i32
  }
}

</mosaic_0001>

<llo_original>
// kernel: shufflenet_v2_forward.9
$region0: #{shufflenet_v2_forward.9}
  #allocation0 [shape = 'u32[]', space=smem, size = 0x4, offset = 0x4, fixed_abs, tag = 'smem constant byte address 0x4 - core index']
  #allocation1 [shape = 'u32[144,128]{1,0:T(1,128)}', space=vmem, size = 0x12000, scoped, tag = 'internal scratch']
  %s0 = inlined_call_operand.vmem [shape: bf16[512,32], index: 0, kind: input, shape index: {}]
  %s1 = inlined_call_operand.vmem [shape: bf16[32,128], index: 1, kind: input, shape index: {}]
  %s2 = inlined_call_operand.vmem [shape: f32[1,128], index: 2, kind: input, shape index: {}]
  %s3 = inlined_call_operand.vmem [shape: bf16[512,128], index: 3, kind: output, shape index: {}]
  %s4 = sld [smem:[#allocation0]]
  $region45: #{shufflenet_v2_forward.9} parent=0
    _
  %s6 = ssub.s32 1, %s4
  %s7 = scalar_select 0, %s6, %s4
  loop: start=0, step=1, limit=4
  $region2: #{shufflenet_v2_forward.9} parent=0 // loop_pre_header
    _
  $region3: #{shufflenet_v2_forward.9} parent=0 // loop_header
    %s9 = sphi 0, %s13
    %p10 = scmp.ge.s32.totalorder %s9, 4
    %s19 = sphi 0, %s21
    %s22 = sphi 0, %s19
    %s23 = sphi 0, %s22
    %s39 = sphi 0, %s23
    %s43 = sphi 0, %s43
    %s45 = sphi 0, %s43
    %s46 = sphi 0, %s45
    %s60 = sphi 0, %s46
    %s64 = sphi 0, %s64
    %s66 = sphi 0, %s64
    %s67 = sphi 0, %s66
    %s81 = sphi 0, %s67
    %s87 = sphi 0, %s89
    %s90 = sphi 0, %s87
    %s91 = sphi 0, %s90
    %s107 = sphi 0, %s91
  $region4: #{shufflenet_v2_forward.9} parent=0 // loop_header_branch
    %12 = sbr.rel (%p10) target = $region8
  $region5: #{shufflenet_v2_forward.9} parent=0 // loop_body
    %s14 = ssub.s32 %s9, 1
    %s15 = ssub.s32 %s9, 2
    %s16 = sadd.s32 %s9, 1
    %s17 = ssub.s32 %s9, %s16
    %p18 = scmp.eq.s32.totalorder %s17, 0
    %s20 = sadd.s32 %s19, 1
    %s21 = scalar_select %p18, %s19, %s20
    %p24 = pneg %p18
    %p25 = scmp.eq.s32.totalorder %s9, 1
    %p26 = por %p24, %p25
    %p27 = scmp.ne.s32.totalorder %s19, %s22
    %p28 = scmp.eq.s32.totalorder %s9, 0
    %p29 = por %p27, %p28
    %p30 = scmp.ne.s32.totalorder %s19, %s22
    %p31 = scmp.eq.s32.totalorder %s14, 1
    %p32 = por %p30, %p31
    %p33 = scmp.ne.s32.totalorder %s22, %s23
    %p34 = scmp.eq.s32.totalorder %s14, 0
    %p35 = por %p33, %p34
    %p36 = scmp.ne.s32.totalorder %s22, %s23
    %p37 = scmp.eq.s32.totalorder %s15, 1
    %p38 = por %p36, %p37
    %p40 = scmp.ne.s32.totalorder %s23, %s39
    %p41 = scmp.eq.s32.totalorder %s15, 0
    %p42 = por %p40, %p41
    %s44 = sadd.s32 %s43, 1
    %p47 = scmp.eq.s32.totalorder %s9, 1
    %p48 = scmp.ne.s32.totalorder %s43, %s45
    %p49 = scmp.eq.s32.totalorder %s9, 0
    %p50 = por %p48, %p49
    %p51 = scmp.ne.s32.totalorder %s43, %s45
    %p52 = scmp.eq.s32.totalorder %s14, 1
    %p53 = por %p51, %p52
    %p54 = scmp.ne.s32.totalorder %s45, %s46
    %p55 = scmp.eq.s32.totalorder %s14, 0
    %p56 = por %p54, %p55
    %p57 = scmp.ne.s32.totalorder %s45, %s46
    %p58 = scmp.eq.s32.totalorder %s15, 1
    %p59 = por %p57, %p58
    %p61 = scmp.ne.s32.totalorder %s46, %s60
    %p62 = scmp.eq.s32.totalorder %s15, 0
    %p63 = por %p61, %p62
    %s65 = sadd.s32 %s64, 1
    %p68 = scmp.eq.s32.totalorder %s9, 1
    %p69 = scmp.ne.s32.totalorder %s64, %s66
    %p70 = scmp.eq.s32.totalorder %s9, 0
    %p71 = por %p69, %p70
    %p72 = scmp.ne.s32.totalorder %s64, %s66
    %p73 = scmp.eq.s32.totalorder %s14, 1
    %p74 = por %p72, %p73
    %p75 = scmp.ne.s32.totalorder %s66, %s67
    %p76 = scmp.eq.s32.totalorder %s14, 0
    %p77 = por %p75, %p76
    %p78 = scmp.ne.s32.totalorder %s66, %s67
    %p79 = scmp.eq.s32.totalorder %s15, 1
    %p80 = por %p78, %p79
    %p82 = scmp.ne.s32.totalorder %s67, %s81
    %p83 = scmp.eq.s32.totalorder %s15, 0
    %p84 = por %p82, %p83
    %s85 = ssub.s32 %s9, %s16
    %p86 = scmp.eq.s32.totalorder %s85, 0
    %s88 = sadd.s32 %s87, 1
    %s89 = scalar_select %p86, %s87, %s88
    %p92 = pneg %p86
    %p93 = scmp.eq.s32.totalorder %s9, 1
    %p94 = por %p92, %p93
    %p95 = scmp.ne.s32.totalorder %s87, %s90
    %p96 = scmp.eq.s32.totalorder %s9, 0
    %p97 = por %p95, %p96
    %p98 = scmp.ne.s32.totalorder %s87, %s90
    %p99 = scmp.eq.s32.totalorder %s14, 1
    %p100 = por %p98, %p99
    %p101 = scmp.ne.s32.totalorder %s90, %s91
    %p102 = scmp.eq.s32.totalorder %s14, 0
    %p103 = por %p101, %p102
    %p104 = scmp.ne.s32.totalorder %s90, %s91
    %p105 = scmp.eq.s32.totalorder %s15, 1
    %p106 = por %p104, %p105
    %p108 = scmp.ne.s32.totalorder %s91, %s107
    %p109 = scmp.eq.s32.totalorder %s15, 0
    %p110 = por %p108, %p109
    %p111 = scmp.le.s32.totalorder 1, %s9
    %p112 = scmp.lt.s32.totalorder %s9, 3
    %p113 = pnand %p111, %p112
    %p114 = pneg %p113
    // Predicated region
    $region9: #{shufflenet_v2_forward.9} parent=5 // pred_check
      _
    $region10: #{shufflenet_v2_forward.9} parent=5 // pred_check_branch
      %116 = sbr.rel (%p113) target = $region12
    $region11: #{shufflenet_v2_forward.9} parent=5 // pred_region
      %s117 = ssub.s32 %s9, 1
      // Predicated region
      $region13: #{shufflenet_v2_forward.9} parent=11 // pred_check
        %p118 = pneg %p56
      $region14: #{shufflenet_v2_forward.9} parent=11 // pred_check_branch
        %120 = sbr.rel (%p118) target = $region16
      $region15: #{shufflenet_v2_forward.9} parent=11 // pred_region
        _
      $region16: #{shufflenet_v2_forward.9} parent=11 // pred_fallthru
        _
      // Predicated region
      $region17: #{shufflenet_v2_forward.9} parent=11 // pred_check
        %p121 = pneg %p77
      $region18: #{shufflenet_v2_forward.9} parent=11 // pred_check_branch
        %123 = sbr.rel (%p121) target = $region20
      $region19: #{shufflenet_v2_forward.9} parent=11 // pred_region
        _
      $region20: #{shufflenet_v2_forward.9} parent=11 // pred_fallthru
        _
    $region12: #{shufflenet_v2_forward.9} parent=5 // pred_fallthru
      _
    %p124 = scmp.lt.s32.totalorder %s9, 2
    // Predicated region
    $region21: #{shufflenet_v2_forward.9} parent=5 // pred_check
      %p125 = pneg %p124
    $region22: #{shufflenet_v2_forward.9} parent=5 // pred_check_branch
      %127 = sbr.rel (%p125) target = $region24
    $region23: #{shufflenet_v2_forward.9} parent=5 // pred_region
      // Predicated region
      $region25: #{shufflenet_v2_forward.9} parent=23 // pred_check
        %p128 = pneg %p29
      $region26: #{shufflenet_v2_forward.9} parent=23 // pred_check_branch
        %130 = sbr.rel (%p128) target = $region28
      $region27: #{shufflenet_v2_forward.9} parent=23 // pred_region
        %s131 = smul.u32 32, %s9
        %p132 = scmp.lt.s32.totalorder %s131, 63
        %s133 = scalar_select %p132, %s131, 63
        %s134 = smul.addr %s133, 4
        %s135 = scalar_lea.vmem %s0, %s134
        %s136 = smul.u32 32, %s9
      $region28: #{shufflenet_v2_forward.9} parent=23 // pred_fallthru
        _
    $region24: #{shufflenet_v2_forward.9} parent=5 // pred_fallthru
      _
    %p137 = scmp.le.s32.totalorder 1, %s9
    %p138 = scmp.lt.s32.totalorder %s9, 3
    %p139 = pnand %p137, %p138
    %p140 = pneg %p139
    // Predicated region
    $region29: #{shufflenet_v2_forward.9} parent=5 // pred_check
      _
    $region30: #{shufflenet_v2_forward.9} parent=5 // pred_check_branch
      %142 = sbr.rel (%p139) target = $region32
    $region31: #{shufflenet_v2_forward.9} parent=5 // pred_region
      %s143 = ssub.s32 %s9, 1
      %s144 = smul.u32 32, %s14
      %p145 = scmp.lt.s32.totalorder %s144, 63
      %s146 = scalar_select %p145, %s144, 63
      %s147 = smul.addr %s146, 4
      %s148 = scalar_lea.vmem %s0, %s147
      %p149 = pneg %p35
      %p150 = pneg %p32
      %p151 = pneg %p56
      %p152 = pneg %p53
      %p153 = pneg %p77
      %p154 = pneg %p74
      %p155 = pneg %p103
      %p156 = pneg %p100
      %s157 = smul.u32 32, %s14
      %p158 = scmp.lt.s32.totalorder %s157, 63
      %s159 = scalar_select %p158, %s157, 63
      %s160 = smul.addr %s159, 4
      %s161 = scalar_lea.vmem %s3, %s160
      %s162 = smul.u32 32, %s14
      %p163 = scmp.lt.s32.totalorder %s162, 63
      %s164 = scalar_select %p163, %s162, 63
      %s165 = smul.addr %s164, 4
      %s166 = scalar_lea.vmem %s0, %s165
      %s167 = smul.u32 32, %s14
      %s168 = smul.u32 32, %s14
      %p169 = scmp.lt.s32.totalorder %s168, 63
      %s170 = scalar_select %p169, %s168, 63
      %s171 = smul.addr %s170, 4
      %s172 = scalar_lea.vmem %s3, %s171
      %s173 = smul.u32 32, %s14
      %v175 = vld [vmem:[%s166] sm:$0xf]
      %v176 = vld [vmem:[%s166 + $0x4] sm:$0xf]
      %v177 = vld [vmem:[%s166 + $0x8] sm:$0xf]
      %v178 = vld [vmem:[%s166 + $0xc] sm:$0xf]
      %v179 = vld [vmem:[%s166 + $0x10] sm:$0xf]
      %v180 = vld [vmem:[%s166 + $0x14] sm:$0xf]
      %v181 = vld [vmem:[%s166 + $0x18] sm:$0xf]
      %v182 = vld [vmem:[%s166 + $0x1c] sm:$0xf]
      %v183 = vld [vmem:[%s166 + $0x20] sm:$0xf]
      %v184 = vld [vmem:[%s166 + $0x24] sm:$0xf]
      %v185 = vld [vmem:[%s166 + $0x28] sm:$0xf]
      %v186 = vld [vmem:[%s166 + $0x2c] sm:$0xf]
      %v187 = vld [vmem:[%s166 + $0x30] sm:$0xf]
      %v188 = vld [vmem:[%s166 + $0x34] sm:$0xf]
      %v189 = vld [vmem:[%s166 + $0x38] sm:$0xf]
      %v190 = vld [vmem:[%s166 + $0x3c] sm:$0xf]
      %v191 = vld [vmem:[%s166 + $0x40] sm:$0xf]
      %v192 = vld [vmem:[%s166 + $0x44] sm:$0xf]
      %v193 = vld [vmem:[%s166 + $0x48] sm:$0xf]
      %v194 = vld [vmem:[%s166 + $0x4c] sm:$0xf]
      %v195 = vld [vmem:[%s166 + $0x50] sm:$0xf]
      %v196 = vld [vmem:[%s166 + $0x54] sm:$0xf]
      %v197 = vld [vmem:[%s166 + $0x58] sm:$0xf]
      %v198 = vld [vmem:[%s166 + $0x5c] sm:$0xf]
      %v199 = vld [vmem:[%s166 + $0x60] sm:$0xf]
      %v200 = vld [vmem:[%s166 + $0x64] sm:$0xf]
      %v201 = vld [vmem:[%s166 + $0x68] sm:$0xf]
      %v202 = vld [vmem:[%s166 + $0x6c] sm:$0xf]
      %v203 = vld [vmem:[%s166 + $0x70] sm:$0xf]
      %v204 = vld [vmem:[%s166 + $0x74] sm:$0xf]
      %v205 = vld [vmem:[%s166 + $0x78] sm:$0xf]
      %v206 = vld [vmem:[%s166 + $0x7c] sm:$0xf]
      %v207 = vld [vmem:[%s1] sm:$0xf]
      %v208 = vld [vmem:[%s1 + $0x4] sm:$0xf]
      %v209 = vld [vmem:[%s1 + $0x8] sm:$0xf]
      %v210 = vld [vmem:[%s1 + $0xc] sm:$0xf]
      %v211 = vld [vmem:[%s2] sm:$0x1]
      %v213 = vlaneseq
      %v214 = vshrl.u32 %v213, 7
      %v215 = vsub.s32 0, %v214
      %v216 = vrot.slane %v211, %v215
      %v250 = vunpack.c.l.b16 %v175
      %v251 = vunpack.c.l.b16 %v176
      %v252 = vunpack.c.l.b16 %v177
      %v253 = vunpack.c.l.b16 %v178
      %v254 = vunpack.c.l.b16 %v179
      %v255 = vunpack.c.l.b16 %v180
      %v256 = vunpack.c.l.b16 %v181
      %v257 = vunpack.c.l.b16 %v182
      %v258 = vunpack.c.l.b16 %v183
      %v259 = vunpack.c.l.b16 %v184
      %v260 = vunpack.c.l.b16 %v185
      %v261 = vunpack.c.l.b16 %v186
      %v262 = vunpack.c.l.b16 %v187
      %v263 = vunpack.c.l.b16 %v188
      %v264 = vunpack.c.l.b16 %v189
      %v265 = vunpack.c.l.b16 %v190
      %v266 = vunpack.c.l.b16 %v191
      %v267 = vunpack.c.l.b16 %v192
      %v268 = vunpack.c.l.b16 %v193
      %v269 = vunpack.c.l.b16 %v194
      %v270 = vunpack.c.l.b16 %v195
      %v271 = vunpack.c.l.b16 %v196
      %v272 = vunpack.c.l.b16 %v197
      %v273 = vunpack.c.l.b16 %v198
      %v274 = vunpack.c.l.b16 %v199
      %v275 = vunpack.c.l.b16 %v200
      %v276 = vunpack.c.l.b16 %v201
      %v277 = vunpack.c.l.b16 %v202
      %v278 = vunpack.c.l.b16 %v203
      %v279 = vunpack.c.l.b16 %v204
      %v280 = vunpack.c.l.b16 %v205
      %v281 = vunpack.c.l.b16 %v206
      %v282 = vpack.c.b16 %v251, %v250
      %v283 = vpack.c.b16 %v253, %v252
      %v284 = vpack.c.b16 %v255, %v254
      %v285 = vpack.c.b16 %v257, %v256
      %v286 = vpack.c.b16 %v259, %v258
      %v287 = vpack.c.b16 %v261, %v260
      %v288 = vpack.c.b16 %v263, %v262
      %v289 = vpack.c.b16 %v265, %v264
      %v290 = vpack.c.b16 %v267, %v266
      %v291 = vpack.c.b16 %v269, %v268
      %v292 = vpack.c.b16 %v271, %v270
      %v293 = vpack.c.b16 %v273, %v272
      %v294 = vpack.c.b16 %v275, %v274
      %v295 = vpack.c.b16 %v277, %v276
      %v296 = vpack.c.b16 %v279, %v278
      %v297 = vpack.c.b16 %v281, %v280
      %v302 = vunpack.c.l.b16 %v207
      %v303 = vunpack.c.l.b16 %v208
      %v304 = vunpack.c.l.b16 %v209
      %v305 = vunpack.c.l.b16 %v210
      %v306 = vpack.c.b16 %v303, %v302
      %v307 = vpack.c.b16 %v305, %v304
      %vm310 = vcmask 261120
      %v312 = vsel %vm310, %v282, 0
      %v315 = vsel %vm310, %v283, 0
      %v318 = vsel %vm310, %v284, 0
      %v321 = vsel %vm310, %v285, 0
      %v324 = vsel %vm310, %v286, 0
      %v327 = vsel %vm310, %v287, 0
      %v330 = vsel %vm310, %v288, 0
      %v333 = vsel %vm310, %v289, 0
      %v336 = vsel %vm310, %v290, 0
      %v339 = vsel %vm310, %v291, 0
      %v342 = vsel %vm310, %v292, 0
      %v345 = vsel %vm310, %v293, 0
      %v348 = vsel %vm310, %v294, 0
      %v351 = vsel %vm310, %v295, 0
      %v354 = vsel %vm310, %v296, 0
      %v357 = vsel %vm310, %v297, 0
      %359 = vmatprep.subr.bf16.mxu0 0
      %360 = vmatpush1.bf16.msra.mxu0 %v306
      %361 = vmatprep.subr.bf16.mxu0 0
      %362 = vmatpush1.bf16.msra.mxu0 %v307
      %363 = vmatprep.subr.bf16.mxu0 0
      %364 = vmatpush1.bf16.msra.mxu0 0
      %365 = vmatprep.subr.bf16.mxu0 0
      %366 = vmatpush1.bf16.msra.mxu0 0
      %367 = vmatprep.subr.bf16.mxu0 0
      %368 = vmatpush1.bf16.msra.mxu0 0
      %369 = vmatprep.subr.bf16.mxu0 0
      %370 = vmatpush1.bf16.msra.mxu0 0
      %371 = vmatprep.subr.bf16.mxu0 0
      %372 = vmatpush1.bf16.msra.mxu0 0
      %373 = vmatprep.subr.bf16.mxu0 0
      %374 = vmatpush1.bf16.msra.mxu0 0
      %375 = vmatprep.subr.bf16.mxu0 0
      %376 = vmatpush1.bf16.msra.mxu0 0
      %377 = vmatprep.subr.bf16.mxu0 0
      %378 = vmatpush1.bf16.msra.mxu0 0
      %379 = vmatprep.subr.bf16.mxu0 0
      %380 = vmatpush1.bf16.msra.mxu0 0
      %381 = vmatprep.subr.bf16.mxu0 0
      %382 = vmatpush1.bf16.msra.mxu0 0
      %383 = vmatprep.subr.bf16.mxu0 0
      %384 = vmatpush1.bf16.msra.mxu0 0
      %385 = vmatprep.subr.bf16.mxu0 0
      %386 = vmatpush1.bf16.msra.mxu0 0
      %387 = vmatprep.subr.bf16.mxu0 0
      %388 = vmatpush1.bf16.msra.mxu0 0
      %389 = vmatprep.subr.bf16.mxu0 0
      %390 = vmatpush1.bf16.msra.mxu0 0
      %391 = vmatprep.mubr.bf16.mxu0 0
      %392 = vmatmul.mubr.bf16.gmra.mrb[0].mxu0 %v312
      %v393 = vpop.f32.mrb[0].mxu0
      %v394 = vadd.f32 %v216, %v393
      %v395 = vpop.f32.mrb[0].mxu0
      %v396 = vpop.f32.mrb[0].mxu0
      %v397 = vadd.f32 %v216, %v396
      %v398 = vpop.f32.mrb[0].mxu0
      %399 = vmatprep.mubr.bf16.mxu0 0
      %400 = vmatmul.mubr.bf16.gmra.mrb[0].mxu0 %v315
      %v401 = vpop.f32.mrb[0].mxu0
      %v402 = vadd.f32 %v216, %v401
      %v403 = vpop.f32.mrb[0].mxu0
      %v404 = vpop.f32.mrb[0].mxu0
      %v405 = vadd.f32 %v216, %v404
      %v406 = vpop.f32.mrb[0].mxu0
      %407 = vmatprep.mubr.bf16.mxu0 0
      %408 = vmatmul.mubr.bf16.gmra.mrb[0].mxu0 %v318
      %v409 = vpop.f32.mrb[0].mxu0
      %v410 = vadd.f32 %v216, %v409
      %v411 = vpop.f32.mrb[0].mxu0
      %v412 = vpop.f32.mrb[0].mxu0
      %v413 = vadd.f32 %v216, %v412
      %v414 = vpop.f32.mrb[0].mxu0
      %415 = vmatprep.mubr.bf16.mxu0 0
      %416 = vmatmul.mubr.bf16.gmra.mrb[0].mxu0 %v321
      %v417 = vpop.f32.mrb[0].mxu0
      %v418 = vadd.f32 %v216, %v417
      %v419 = vpop.f32.mrb[0].mxu0
      %v420 = vpop.f32.mrb[0].mxu0
      %v421 = vadd.f32 %v216, %v420
      %v422 = vpop.f32.mrb[0].mxu0
      %423 = vmatprep.mubr.bf16.mxu0 0
      %424 = vmatmul.mubr.bf16.gmra.mrb[0].mxu0 %v324
      %v425 = vpop.f32.mrb[0].mxu0
      %v426 = vadd.f32 %v216, %v425
      %v427 = vpop.f32.mrb[0].mxu0
      %v428 = vpop.f32.mrb[0].mxu0
      %v429 = vadd.f32 %v216, %v428
      %v430 = vpop.f32.mrb[0].mxu0
      %431 = vmatprep.mubr.bf16.mxu0 0
      %432 = vmatmul.mubr.bf16.gmra.mrb[0].mxu0 %v327
      %v433 = vpop.f32.mrb[0].mxu0
      %v434 = vadd.f32 %v216, %v433
      %v435 = vpop.f32.mrb[0].mxu0
      %v436 = vpop.f32.mrb[0].mxu0
      %v437 = vadd.f32 %v216, %v436
      %v438 = vpop.f32.mrb[0].mxu0
      %439 = vmatprep.mubr.bf16.mxu0 0
      %440 = vmatmul.mubr.bf16.gmra.mrb[0].mxu0 %v330
      %v441 = vpop.f32.mrb[0].mxu0
      %v442 = vadd.f32 %v216, %v441
      %v443 = vpop.f32.mrb[0].mxu0
      %v444 = vpop.f32.mrb[0].mxu0
      %v445 = vadd.f32 %v216, %v444
      %v446 = vpop.f32.mrb[0].mxu0
      %447 = vmatprep.mubr.bf16.mxu0 0
      %448 = vmatmul.mubr.bf16.gmra.mrb[0].mxu0 %v333
      %v449 = vpop.f32.mrb[0].mxu0
      %v450 = vadd.f32 %v216, %v449
      %v451 = vpop.f32.mrb[0].mxu0
      %v452 = vpop.f32.mrb[0].mxu0
      %v453 = vadd.f32 %v216, %v452
      %v454 = vpop.f32.mrb[0].mxu0
      %455 = vmatprep.mubr.bf16.mxu0 0
      %456 = vmatmul.mubr.bf16.gmra.mrb[0].mxu0 %v336
      %v457 = vpop.f32.mrb[0].mxu0
      %v458 = vadd.f32 %v216, %v457
      %v459 = vpop.f32.mrb[0].mxu0
      %v460 = vpop.f32.mrb[0].mxu0
      %v461 = vadd.f32 %v216, %v460
      %v462 = vpop.f32.mrb[0].mxu0
      %463 = vmatprep.mubr.bf16.mxu0 0
      %464 = vmatmul.mubr.bf16.gmra.mrb[0].mxu0 %v339
      %v465 = vpop.f32.mrb[0].mxu0
      %v466 = vadd.f32 %v216, %v465
      %v467 = vpop.f32.mrb[0].mxu0
      %v468 = vpop.f32.mrb[0].mxu0
      %v469 = vadd.f32 %v216, %v468
      %v470 = vpop.f32.mrb[0].mxu0
      %471 = vmatprep.mubr.bf16.mxu0 0
      %472 = vmatmul.mubr.bf16.gmra.mrb[0].mxu0 %v342
      %v473 = vpop.f32.mrb[0].mxu0
      %v474 = vadd.f32 %v216, %v473
      %v475 = vpop.f32.mrb[0].mxu0
      %v476 = vpop.f32.mrb[0].mxu0
      %v477 = vadd.f32 %v216, %v476
      %v478 = vpop.f32.mrb[0].mxu0
      %479 = vmatprep.mubr.bf16.mxu0 0
      %480 = vmatmul.mubr.bf16.gmra.mrb[0].mxu0 %v345
      %v481 = vpop.f32.mrb[0].mxu0
      %v482 = vadd.f32 %v216, %v481
      %v483 = vpop.f32.mrb[0].mxu0
      %v484 = vpop.f32.mrb[0].mxu0
      %v485 = vadd.f32 %v216, %v484
      %v486 = vpop.f32.mrb[0].mxu0
      %487 = vmatprep.mubr.bf16.mxu0 0
      %488 = vmatmul.mubr.bf16.gmra.mrb[0].mxu0 %v348
      %v489 = vpop.f32.mrb[0].mxu0
      %v490 = vadd.f32 %v216, %v489
      %v491 = vpop.f32.mrb[0].mxu0
      %v492 = vpop.f32.mrb[0].mxu0
      %v493 = vadd.f32 %v216, %v492
      %v494 = vpop.f32.mrb[0].mxu0
      %495 = vmatprep.mubr.bf16.mxu0 0
      %496 = vmatmul.mubr.bf16.gmra.mrb[0].mxu0 %v351
      %v497 = vpop.f32.mrb[0].mxu0
      %v498 = vadd.f32 %v216, %v497
      %v499 = vpop.f32.mrb[0].mxu0
      %v500 = vpop.f32.mrb[0].mxu0
      %v501 = vadd.f32 %v216, %v500
      %v502 = vpop.f32.mrb[0].mxu0
      %503 = vmatprep.mubr.bf16.mxu0 0
      %504 = vmatmul.mubr.bf16.gmra.mrb[0].mxu0 %v354
      %v505 = vpop.f32.mrb[0].mxu0
      %v506 = vadd.f32 %v216, %v505
      %v507 = vpop.f32.mrb[0].mxu0
      %v508 = vpop.f32.mrb[0].mxu0
      %v509 = vadd.f32 %v216, %v508
      %v510 = vpop.f32.mrb[0].mxu0
      %511 = vmatprep.mubr.bf16.mxu0 0
      %512 = vmatmul.mubr.bf16.gmra.mrb[0].mxu0 %v357
      %v513 = vpop.f32.mrb[0].mxu0
      %v514 = vadd.f32 %v216, %v513
      %v515 = vpop.f32.mrb[0].mxu0
      %v516 = vpop.f32.mrb[0].mxu0
      %v517 = vadd.f32 %v216, %v516
      %v518 = vpop.f32.mrb[0].mxu0
      %519 = vdwg.mxu0
      %v520 = vmax.f32 %v394, 0.0
      %v521 = vmax.f32 %v397, 0.0
      %v522 = vmax.f32 %v402, 0.0
      %v523 = vmax.f32 %v405, 0.0
      %v524 = vmax.f32 %v410, 0.0
      %v525 = vmax.f32 %v413, 0.0
      %v526 = vmax.f32 %v418, 0.0
      %v527 = vmax.f32 %v421, 0.0
      %v528 = vmax.f32 %v426, 0.0
      %v529 = vmax.f32 %v429, 0.0
      %v530 = vmax.f32 %v434, 0.0
      %v531 = vmax.f32 %v437, 0.0
      %v532 = vmax.f32 %v442, 0.0
      %v533 = vmax.f32 %v445, 0.0
      %v534 = vmax.f32 %v450, 0.0
      %v535 = vmax.f32 %v453, 0.0
      %v536 = vmax.f32 %v458, 0.0
      %v537 = vmax.f32 %v461, 0.0
      %v538 = vmax.f32 %v466, 0.0
      %v539 = vmax.f32 %v469, 0.0
      %v540 = vmax.f32 %v474, 0.0
      %v541 = vmax.f32 %v477, 0.0
      %v542 = vmax.f32 %v482, 0.0
      %v543 = vmax.f32 %v485, 0.0
      %v544 = vmax.f32 %v490, 0.0
      %v545 = vmax.f32 %v493, 0.0
      %v546 = vmax.f32 %v498, 0.0
      %v547 = vmax.f32 %v501, 0.0
      %v548 = vmax.f32 %v506, 0.0
      %v549 = vmax.f32 %v509, 0.0
      %v550 = vmax.f32 %v514, 0.0
      %v551 = vmax.f32 %v517, 0.0
      %v552 = vpack.c.bf16 %v521, %v520
      %v553 = vpack.c.bf16 %v523, %v522
      %v554 = vpack.c.bf16 %v525, %v524
      %v555 = vpack.c.bf16 %v527, %v526
      %v556 = vpack.c.bf16 %v529, %v528
      %v557 = vpack.c.bf16 %v531, %v530
      %v558 = vpack.c.bf16 %v533, %v532
      %v559 = vpack.c.bf16 %v535, %v534
      %v560 = vpack.c.bf16 %v537, %v536
      %v561 = vpack.c.bf16 %v539, %v538
      %v562 = vpack.c.bf16 %v541, %v540
      %v563 = vpack.c.bf16 %v543, %v542
      %v564 = vpack.c.bf16 %v545, %v544
      %v565 = vpack.c.bf16 %v547, %v546
      %v566 = vpack.c.bf16 %v549, %v548
      %v567 = vpack.c.bf16 %v551, %v550
      %v584 = vunpack.c.l.b16 %v552
      %v585 = vunpack.c.h.b16 %v552
      %v586 = vunpack.c.l.b16 %v553
      %v587 = vunpack.c.h.b16 %v553
      %v588 = vunpack.c.l.b16 %v554
      %v589 = vunpack.c.h.b16 %v554
      %v590 = vunpack.c.l.b16 %v555
      %v591 = vunpack.c.h.b16 %v555
      %v592 = vunpack.c.l.b16 %v556
      %v593 = vunpack.c.h.b16 %v556
      %v594 = vunpack.c.l.b16 %v557
      %v595 = vunpack.c.h.b16 %v557
      %v596 = vunpack.c.l.b16 %v558
      %v597 = vunpack.c.h.b16 %v558
      %v598 = vunpack.c.l.b16 %v559
      %v599 = vunpack.c.h.b16 %v559
      %v600 = vunpack.c.l.b16 %v560
      %v601 = vunpack.c.h.b16 %v560
      %v602 = vunpack.c.l.b16 %v561
      %v603 = vunpack.c.h.b16 %v561
      %v604 = vunpack.c.l.b16 %v562
      %v605 = vunpack.c.h.b16 %v562
      %v606 = vunpack.c.l.b16 %v563
      %v607 = vunpack.c.h.b16 %v563
      %v608 = vunpack.c.l.b16 %v564
      %v609 = vunpack.c.h.b16 %v564
      %v610 = vunpack.c.l.b16 %v565
      %v611 = vunpack.c.h.b16 %v565
      %v612 = vunpack.c.l.b16 %v566
      %v613 = vunpack.c.h.b16 %v566
      %v614 = vunpack.c.l.b16 %v567
      %v615 = vunpack.c.h.b16 %v567
      %v616 = vpack.c.b16 %v584, %v584
      %v617 = vpack.c.b16 %v585, %v585
      %v618 = vpack.c.b16 %v586, %v586
      %v619 = vpack.c.b16 %v587, %v587
      %v620 = vpack.c.b16 %v588, %v588
      %v621 = vpack.c.b16 %v589, %v589
      %v622 = vpack.c.b16 %v590, %v590
      %v623 = vpack.c.b16 %v591, %v591
      %v624 = vpack.c.b16 %v592, %v592
      %v625 = vpack.c.b16 %v593, %v593
      %v626 = vpack.c.b16 %v594, %v594
      %v627 = vpack.c.b16 %v595, %v595
      %v628 = vpack.c.b16 %v596, %v596
      %v629 = vpack.c.b16 %v597, %v597
      %v630 = vpack.c.b16 %v598, %v598
      %v631 = vpack.c.b16 %v599, %v599
      %v632 = vpack.c.b16 %v600, %v600
      %v633 = vpack.c.b16 %v601, %v601
      %v634 = vpack.c.b16 %v602, %v602
      %v635 = vpack.c.b16 %v603, %v603
      %v636 = vpack.c.b16 %v604, %v604
      %v637 = vpack.c.b16 %v605, %v605
      %v638 = vpack.c.b16 %v606, %v606
      %v639 = vpack.c.b16 %v607, %v607
      %v640 = vpack.c.b16 %v608, %v608
      %v641 = vpack.c.b16 %v609, %v609
      %v642 = vpack.c.b16 %v610, %v610
      %v643 = vpack.c.b16 %v611, %v611
      %v644 = vpack.c.b16 %v612, %v612
      %v645 = vpack.c.b16 %v613, %v613
      %v646 = vpack.c.b16 %v614, %v614
      %v647 = vpack.c.b16 %v615, %v615
      %680 = vst [vmem:[%s172] sm:$0xf] %v616
      %681 = vst [vmem:[%s172 + $0x4] sm:$0xf] %v617
      %682 = vst [vmem:[%s172 + $0x8] sm:$0xf] %v618
      %683 = vst [vmem:[%s172 + $0xc] sm:$0xf] %v619
      %684 = vst [vmem:[%s172 + $0x10] sm:$0xf] %v620
      %685 = vst [vmem:[%s172 + $0x14] sm:$0xf] %v621
      %686 = vst [vmem:[%s172 + $0x18] sm:$0xf] %v622
      %687 = vst [vmem:[%s172 + $0x1c] sm:$0xf] %v623
      %688 = vst [vmem:[%s172 + $0x20] sm:$0xf] %v624
      %689 = vst [vmem:[%s172 + $0x24] sm:$0xf] %v625
      %690 = vst [vmem:[%s172 + $0x28] sm:$0xf] %v626
      %691 = vst [vmem:[%s172 + $0x2c] sm:$0xf] %v627
      %692 = vst [vmem:[%s172 + $0x30] sm:$0xf] %v628
      %693 = vst [vmem:[%s172 + $0x34] sm:$0xf] %v629
      %694 = vst [vmem:[%s172 + $0x38] sm:$0xf] %v630
      %695 = vst [vmem:[%s172 + $0x3c] sm:$0xf] %v631
      %696 = vst [vmem:[%s172 + $0x40] sm:$0xf] %v632
      %697 = vst [vmem:[%s172 + $0x44] sm:$0xf] %v633
      %698 = vst [vmem:[%s172 + $0x48] sm:$0xf] %v634
      %699 = vst [vmem:[%s172 + $0x4c] sm:$0xf] %v635
      %700 = vst [vmem:[%s172 + $0x50] sm:$0xf] %v636
      %701 = vst [vmem:[%s172 + $0x54] sm:$0xf] %v637
      %702 = vst [vmem:[%s172 + $0x58] sm:$0xf] %v638
      %703 = vst [vmem:[%s172 + $0x5c] sm:$0xf] %v639
      %704 = vst [vmem:[%s172 + $0x60] sm:$0xf] %v640
      %705 = vst [vmem:[%s172 + $0x64] sm:$0xf] %v641
      %706 = vst [vmem:[%s172 + $0x68] sm:$0xf] %v642
      %707 = vst [vmem:[%s172 + $0x6c] sm:$0xf] %v643
      %708 = vst [vmem:[%s172 + $0x70] sm:$0xf] %v644
      %709 = vst [vmem:[%s172 + $0x74] sm:$0xf] %v645
      %710 = vst [vmem:[%s172 + $0x78] sm:$0xf] %v646
      %711 = vst [vmem:[%s172 + $0x7c] sm:$0xf] %v647
      %s712 = smul.u32 32, %s14
      %p713 = scmp.lt.s32.totalorder %s712, 63
      %s714 = scalar_select %p713, %s712, 63
      %s715 = smul.addr %s714, 4
      %s716 = scalar_lea.vmem %s3, %s715
      // Predicated region
      $region33: #{shufflenet_v2_forward.9} parent=31 // pred_check
        %p717 = pneg %p100
      $region34: #{shufflenet_v2_forward.9} parent=31 // pred_check_branch
        %719 = sbr.rel (%p717) target = $region36
      $region35: #{shufflenet_v2_forward.9} parent=31 // pred_region
        %s720 = smul.u32 32, %s14
      $region36: #{shufflenet_v2_forward.9} parent=31 // pred_fallthru
        _
    $region32: #{shufflenet_v2_forward.9} parent=5 // pred_fallthru
      _
    %p721 = scmp.le.s32.totalorder 2, %s9
    // Predicated region
    $region37: #{shufflenet_v2_forward.9} parent=5 // pred_check
      %p722 = pneg %p721
    $region38: #{shufflenet_v2_forward.9} parent=5 // pred_check_branch
      %724 = sbr.rel (%p722) target = $region40
    $region39: #{shufflenet_v2_forward.9} parent=5 // pred_region
      %s725 = ssub.s32 %s9, 2
      // Predicated region
      $region41: #{shufflenet_v2_forward.9} parent=39 // pred_check
        %p726 = pneg %p106
      $region42: #{shufflenet_v2_forward.9} parent=39 // pred_check_branch
        %728 = sbr.rel (%p726) target = $region44
      $region43: #{shufflenet_v2_forward.9} parent=39 // pred_region
        %s729 = smul.u32 32, %s15
        %p730 = scmp.lt.s32.totalorder %s729, 63
        %s731 = scalar_select %p730, %s729, 63
        %s732 = smul.addr %s731, 4
        %s733 = scalar_lea.vmem %s3, %s732
      $region44: #{shufflenet_v2_forward.9} parent=39 // pred_fallthru
        _
    $region40: #{shufflenet_v2_forward.9} parent=5 // pred_fallthru
      _
  $region6: #{shufflenet_v2_forward.9} parent=0 // loop_footer
    %s13 = sadd.s32 1, %s9
  $region7: #{shufflenet_v2_forward.9} parent=0 // loop_footer_branch
    %8 = sbr.rel target = $region3
  $region8: #{shufflenet_v2_forward.9} parent=0 // loop_exit
    _

// kernel: shufflenet_v2_forward.10
$region0: #{shufflenet_v2_forward.10}
  #allocation0 [shape = 'u32[]', space=smem, size = 0x4, offset = 0x4, fixed_abs, tag = 'smem constant byte address 0x4 - core index']
  #allocation1 [shape = 'u32[144,128]{1,0:T(1,128)}', space=vmem, size = 0x12000, scoped, tag = 'internal scratch']
  %s0 = inlined_call_operand.vmem [shape: bf16[2,324,8], index: 0, kind: input, shape index: {}]
  %s1 = inlined_call_operand.vmem [shape: bf16[2,64,8], index: 1, kind: output, shape index: {}]
  %s2 = sld [smem:[#allocation0]]
  $region37: #{shufflenet_v2_forward.10} parent=0
    _
  %s4 = ssub.s32 1, %s2
  %s5 = scalar_select 0, %s4, %s2
  loop: start=0, step=1, limit=4
  $region2: #{shufflenet_v2_forward.10} parent=0 // loop_pre_header
    _
  $region3: #{shufflenet_v2_forward.10} parent=0 // loop_header
    %s7 = sphi 0, %s11
    %p8 = scmp.ge.s32.totalorder %s7, 4
    %s17 = sphi 0, %s19
    %s20 = sphi 0, %s17
    %s21 = sphi 0, %s20
    %s37 = sphi 0, %s21
    %s43 = sphi 0, %s45
    %s46 = sphi 0, %s43
    %s47 = sphi 0, %s46
    %s63 = sphi 0, %s47
  $region4: #{shufflenet_v2_forward.10} parent=0 // loop_header_branch
    %10 = sbr.rel (%p8) target = $region8
  $region5: #{shufflenet_v2_forward.10} parent=0 // loop_body
    %s12 = ssub.s32 %s7, 1
    %s13 = ssub.s32 %s7, 2
    %s14 = sadd.s32 %s7, 1
    %s15 = ssub.s32 %s7, %s14
    %p16 = scmp.eq.s32.totalorder %s15, 0
    %s18 = sadd.s32 %s17, 1
    %s19 = scalar_select %p16, %s17, %s18
    %p22 = pneg %p16
    %p23 = scmp.eq.s32.totalorder %s7, 1
    %p24 = por %p22, %p23
    %p25 = scmp.ne.s32.totalorder %s17, %s20
    %p26 = scmp.eq.s32.totalorder %s7, 0
    %p27 = por %p25, %p26
    %p28 = scmp.ne.s32.totalorder %s17, %s20
    %p29 = scmp.eq.s32.totalorder %s12, 1
    %p30 = por %p28, %p29
    %p31 = scmp.ne.s32.totalorder %s20, %s21
    %p32 = scmp.eq.s32.totalorder %s12, 0
    %p33 = por %p31, %p32
    %p34 = scmp.ne.s32.totalorder %s20, %s21
    %p35 = scmp.eq.s32.totalorder %s13, 1
    %p36 = por %p34, %p35
    %p38 = scmp.ne.s32.totalorder %s21, %s37
    %p39 = scmp.eq.s32.totalorder %s13, 0
    %p40 = por %p38, %p39
    %s41 = ssub.s32 %s7, %s14
    %p42 = scmp.eq.s32.totalorder %s41, 0
    %s44 = sadd.s32 %s43, 1
    %s45 = scalar_select %p42, %s43, %s44
    %p48 = pneg %p42
    %p49 = scmp.eq.s32.totalorder %s7, 1
    %p50 = por %p48, %p49
    %p51 = scmp.ne.s32.totalorder %s43, %s46
    %p52 = scmp.eq.s32.totalorder %s7, 0
    %p53 = por %p51, %p52
    %p54 = scmp.ne.s32.totalorder %s43, %s46
    %p55 = scmp.eq.s32.totalorder %s12, 1
    %p56 = por %p54, %p55
    %p57 = scmp.ne.s32.totalorder %s46, %s47
    %p58 = scmp.eq.s32.totalorder %s12, 0
    %p59 = por %p57, %p58
    %p60 = scmp.ne.s32.totalorder %s46, %s47
    %p61 = scmp.eq.s32.totalorder %s13, 1
    %p62 = por %p60, %p61
    %p64 = scmp.ne.s32.totalorder %s47, %s63
    %p65 = scmp.eq.s32.totalorder %s13, 0
    %p66 = por %p64, %p65
    %p67 = scmp.le.s32.totalorder 1, %s7
    %p68 = scmp.lt.s32.totalorder %s7, 3
    %p69 = pnand %p67, %p68
    %p70 = pneg %p69
    // Predicated region
    $region9: #{shufflenet_v2_forward.10} parent=5 // pred_check
      _
    $region10: #{shufflenet_v2_forward.10} parent=5 // pred_check_branch
      %72 = sbr.rel (%p69) target = $region12
    $region11: #{shufflenet_v2_forward.10} parent=5 // pred_region
      %s73 = ssub.s32 %s7, 1
    $region12: #{shufflenet_v2_forward.10} parent=5 // pred_fallthru
      _
    %p74 = scmp.lt.s32.totalorder %s7, 2
    // Predicated region
    $region13: #{shufflenet_v2_forward.10} parent=5 // pred_check
      %p75 = pneg %p74
    $region14: #{shufflenet_v2_forward.10} parent=5 // pred_check_branch
      %77 = sbr.rel (%p75) target = $region16
    $region15: #{shufflenet_v2_forward.10} parent=5 // pred_region
      // Predicated region
      $region17: #{shufflenet_v2_forward.10} parent=15 // pred_check
        %p78 = pneg %p27
      $region18: #{shufflenet_v2_forward.10} parent=15 // pred_check_branch
        %80 = sbr.rel (%p78) target = $region20
      $region19: #{shufflenet_v2_forward.10} parent=15 // pred_region
        %p81 = scmp.lt.s32.totalorder %s7, 1
        %s82 = scalar_select %p81, %s7, 1
        %s83 = smul.addr %s82, 41
        %s84 = smul.addr %s83, 4
        %s85 = scalar_lea.vmem %s0, %s84
      $region20: #{shufflenet_v2_forward.10} parent=15 // pred_fallthru
        _
    $region16: #{shufflenet_v2_forward.10} parent=5 // pred_fallthru
      _
    %p86 = scmp.le.s32.totalorder 1, %s7
    %p87 = scmp.lt.s32.totalorder %s7, 3
    %p88 = pnand %p86, %p87
    %p89 = pneg %p88
    // Predicated region
    $region21: #{shufflenet_v2_forward.10} parent=5 // pred_check
      _
    $region22: #{shufflenet_v2_forward.10} parent=5 // pred_check_branch
      %91 = sbr.rel (%p88) target = $region24
    $region23: #{shufflenet_v2_forward.10} parent=5 // pred_region
      %s92 = ssub.s32 %s7, 1
      %p93 = scmp.lt.s32.totalorder %s12, 1
      %s94 = scalar_select %p93, %s12, 1
      %s95 = smul.addr %s94, 41
      %s96 = smul.addr %s95, 4
      %s97 = scalar_lea.vmem %s0, %s96
      %p98 = pneg %p33
      %p99 = pneg %p30
      %p100 = pneg %p59
      %p101 = pneg %p56
      %p102 = scmp.lt.s32.totalorder %s12, 1
      %s103 = scalar_select %p102, %s12, 1
      %s104 = smul.addr %s103, 8
      %s105 = smul.addr %s104, 4
      %s106 = scalar_lea.vmem %s1, %s105
      %p107 = scmp.lt.s32.totalorder %s12, 1
      %s108 = scalar_select %p107, %s12, 1
      %s109 = smul.addr %s108, 41
      %s110 = smul.addr %s109, 4
      %s111 = scalar_lea.vmem %s0, %s110
      %p112 = scmp.lt.s32.totalorder %s12, 1
      %s113 = scalar_select %p112, %s12, 1
      %s114 = smul.addr %s113, 8
      %s115 = smul.addr %s114, 4
      %s116 = scalar_lea.vmem %s1, %s115
      %v117 = vld [vmem:[%s111] sm:$0xf]
      %v118 = vld [vmem:[%s111 + $0x4] sm:$0xf]
      %v119 = vld [vmem:[%s111 + $0x8] sm:$0xf]
      %v120 = vld [vmem:[%s111 + $0xc] sm:$0xf]
      %v121 = vld [vmem:[%s111 + $0x10] sm:$0xf]
      %v122 = vld [vmem:[%s111 + $0x14] sm:$0xf]
      %v123 = vld [vmem:[%s111 + $0x18] sm:$0xf]
      %v124 = vld [vmem:[%s111 + $0x1c] sm:$0xf]
      %v125 = vld [vmem:[%s111 + $0x20] sm:$0xf]
      %v126 = vld [vmem:[%s111 + $0x24] sm:$0xf]
      %v127 = vld [vmem:[%s111 + $0x28] sm:$0xf]
      %v128 = vld [vmem:[%s111 + $0x2c] sm:$0xf]
      %v129 = vld [vmem:[%s111 + $0x30] sm:$0xf]
      %v130 = vld [vmem:[%s111 + $0x34] sm:$0xf]
      %v131 = vld [vmem:[%s111 + $0x38] sm:$0xf]
      %v132 = vld [vmem:[%s111 + $0x3c] sm:$0xf]
      %v133 = vld [vmem:[%s111 + $0x40] sm:$0xf]
      %v134 = vld [vmem:[%s111 + $0x44] sm:$0xf]
      %v135 = vld [vmem:[%s111 + $0x48] sm:$0xf]
      %v136 = vld [vmem:[%s111 + $0x4c] sm:$0xf]
      %v137 = vld [vmem:[%s111 + $0x50] sm:$0xf]
      %v138 = vld [vmem:[%s111 + $0x54] sm:$0xf]
      %v139 = vld [vmem:[%s111 + $0x58] sm:$0xf]
      %v140 = vld [vmem:[%s111 + $0x5c] sm:$0xf]
      %v141 = vld [vmem:[%s111 + $0x60] sm:$0xf]
      %v142 = vld [vmem:[%s111 + $0x64] sm:$0xf]
      %v143 = vld [vmem:[%s111 + $0x68] sm:$0xf]
      %v144 = vld [vmem:[%s111 + $0x6c] sm:$0xf]
      %v145 = vld [vmem:[%s111 + $0x70] sm:$0xf]
      %v146 = vld [vmem:[%s111 + $0x74] sm:$0xf]
      %v147 = vld [vmem:[%s111 + $0x78] sm:$0xf]
      %v148 = vld [vmem:[%s111 + $0x7c] sm:$0xf]
      %v149 = vld [vmem:[%s111 + $0x80] sm:$0xf]
      %v150 = vld [vmem:[%s111 + $0x84] sm:$0xf]
      %v151 = vld [vmem:[%s111 + $0x88] sm:$0xf]
      %v152 = vld [vmem:[%s111 + $0x8c] sm:$0xf]
      %v153 = vld [vmem:[%s111 + $0x90] sm:$0xf]
      %v154 = vld [vmem:[%s111 + $0x94] sm:$0xf]
      %v155 = vld [vmem:[%s111 + $0x98] sm:$0xf]
      %v156 = vld [vmem:[%s111 + $0x9c] sm:$0xf]
      %v157 = vunpack.c.l.bf16 %v117
      %v158 = vunpack.c.l.bf16 %v118
      %v159 = vunpack.c.l.bf16 %v119
      %v160 = vunpack.c.l.bf16 %v120
      %v161 = vunpack.c.l.bf16 %v121
      %v162 = vunpack.c.l.bf16 %v122
      %v163 = vunpack.c.l.bf16 %v123
      %v164 = vunpack.c.l.bf16 %v124
      %v165 = vunpack.c.l.bf16 %v125
      %v166 = vunpack.c.l.bf16 %v126
      %v167 = vunpack.c.l.bf16 %v127
      %v168 = vunpack.c.l.bf16 %v128
      %v169 = vunpack.c.l.bf16 %v129
      %v170 = vunpack.c.l.bf16 %v130
      %v171 = vunpack.c.l.bf16 %v131
      %v172 = vunpack.c.l.bf16 %v132
      %v173 = vunpack.c.l.bf16 %v133
      %v174 = vunpack.c.l.bf16 %v134
      %v175 = vunpack.c.l.bf16 %v135
      %v176 = vunpack.c.l.bf16 %v136
      %v177 = vunpack.c.l.bf16 %v137
      %v178 = vunpack.c.l.bf16 %v138
      %v179 = vunpack.c.l.bf16 %v139
      %v180 = vunpack.c.l.bf16 %v140
      %v181 = vunpack.c.l.bf16 %v141
      %v182 = vunpack.c.l.bf16 %v142
      %v183 = vunpack.c.l.bf16 %v143
      %v184 = vunpack.c.l.bf16 %v144
      %v185 = vunpack.c.l.bf16 %v145
      %v186 = vunpack.c.l.bf16 %v146
      %v187 = vunpack.c.l.bf16 %v147
      %v188 = vunpack.c.l.bf16 %v148
      %v189 = vunpack.c.l.bf16 %v149
      %v190 = vunpack.c.l.bf16 %v150
      %v191 = vunpack.c.l.bf16 %v151
      %v192 = vunpack.c.l.bf16 %v152
      %v193 = vunpack.c.l.bf16 %v153
      %v194 = vunpack.c.l.bf16 %v154
      %v195 = vunpack.c.l.bf16 %v155
      %v196 = vunpack.c.l.bf16 %v156
      %vm206 = vcmask 1046528
      %v207 = vrot.slane %v167, 1
      %v208 = vrot.slane %v168, 1
      %v209 = vsel %vm206, %v207, %v208
      %v210 = vrot.slane %v169, 1
      %v211 = vsel %vm206, %v208, %v210
      %v212 = vrot.slane %v170, 1
      %v213 = vsel %vm206, %v210, %v212
      %v214 = vrot.slane %v171, 1
      %v215 = vsel %vm206, %v212, %v214
      %v216 = vrot.slane %v172, 1
      %v217 = vsel %vm206, %v214, %v216
      %v218 = vrot.slane %v173, 1
      %v219 = vsel %vm206, %v216, %v218
      %v220 = vrot.slane %v174, 1
      %v221 = vsel %vm206, %v218, %v220
      %v222 = vrot.slane %v175, 1
      %v223 = vsel %vm206, %v220, %v222
      %v233 = vmax.f32 %v157, %v209
      %v234 = vmax.f32 %v158, %v211
      %v235 = vmax.f32 %v159, %v213
      %v236 = vmax.f32 %v160, %v215
      %v237 = vmax.f32 %v161, %v217
      %v238 = vmax.f32 %v162, %v219
      %v239 = vmax.f32 %v163, %v221
      %v240 = vmax.f32 %v164, %v223
      %v241 = vmax.f32 %v165, %v222
      %v251 = vrot.slane %v157, 1
      %v252 = vrot.slane %v158, 1
      %v253 = vsel %vm206, %v251, %v252
      %v254 = vrot.slane %v159, 1
      %v255 = vsel %vm206, %v252, %v254
      %v256 = vrot.slane %v160, 1
      %v257 = vsel %vm206, %v254, %v256
      %v258 = vrot.slane %v161, 1
      %v259 = vsel %vm206, %v256, %v258
      %v260 = vrot.slane %v162, 1
      %v261 = vsel %vm206, %v258, %v260
      %v262 = vrot.slane %v163, 1
      %v263 = vsel %vm206, %v260, %v262
      %v264 = vrot.slane %v164, 1
      %v265 = vsel %vm206, %v262, %v264
      %v266 = vrot.slane %v165, 1
      %v267 = vsel %vm206, %v264, %v266
      %v277 = vmax.f32 %v233, %v253
      %v278 = vmax.f32 %v234, %v255
      %v279 = vmax.f32 %v235, %v257
      %v280 = vmax.f32 %v236, %v259
      %v281 = vmax.f32 %v237, %v261
      %v282 = vmax.f32 %v238, %v263
      %v283 = vmax.f32 %v239, %v265
      %v284 = vmax.f32 %v240, %v267
      %v285 = vmax.f32 %v241, %v266
      %vm296 = vcmask 1045504
      %v297 = vrot.slane %v177, 2
      %v298 = vrot.slane %v178, 2
      %v299 = vsel %vm296, %v297, %v298
      %v300 = vrot.slane %v179, 2
      %v301 = vsel %vm296, %v298, %v300
      %v302 = vrot.slane %v180, 2
      %v303 = vsel %vm296, %v300, %v302
      %v304 = vrot.slane %v181, 2
      %v305 = vsel %vm296, %v302, %v304
      %v306 = vrot.slane %v182, 2
      %v307 = vsel %vm296, %v304, %v306
      %v308 = vrot.slane %v183, 2
      %v309 = vsel %vm296, %v306, %v308
      %v310 = vrot.slane %v184, 2
      %v311 = vsel %vm296, %v308, %v310
      %v312 = vrot.slane %v185, 2
      %v313 = vsel %vm296, %v310, %v312
      %v314 = vrot.slane %v186, 2
      %v315 = vsel %vm296, %v312, %v314
      %v325 = vmax.f32 %v277, %v299
      %v326 = vmax.f32 %v278, %v301
      %v327 = vmax.f32 %v279, %v303
      %v328 = vmax.f32 %v280, %v305
      %v329 = vmax.f32 %v281, %v307
      %v330 = vmax.f32 %v282, %v309
      %v331 = vmax.f32 %v283, %v311
      %v332 = vmax.f32 %v284, %v313
      %v333 = vmax.f32 %v285, %v315
      %vm344 = vcmask 1044480
      %v345 = vrot.slane %v187, 3
      %v346 = vrot.slane %v188, 3
      %v347 = vsel %vm344, %v345, %v346
      %v348 = vrot.slane %v189, 3
      %v349 = vsel %vm344, %v346, %v348
      %v350 = vrot.slane %v190, 3
      %v351 = vsel %vm344, %v348, %v350
      %v352 = vrot.slane %v191, 3
      %v353 = vsel %vm344, %v350, %v352
      %v354 = vrot.slane %v192, 3
      %v355 = vsel %vm344, %v352, %v354
      %v356 = vrot.slane %v193, 3
      %v357 = vsel %vm344, %v354, %v356
      %v358 = vrot.slane %v194, 3
      %v359 = vsel %vm344, %v356, %v358
      %v360 = vrot.slane %v195, 3
      %v361 = vsel %vm344, %v358, %v360
      %v362 = vrot.slane %v196, 3
      %v363 = vsel %vm344, %v360, %v362
      %v373 = vmax.f32 %v325, %v347
      %v374 = vmax.f32 %v326, %v349
      %v375 = vmax.f32 %v327, %v351
      %v376 = vmax.f32 %v328, %v353
      %v377 = vmax.f32 %v329, %v355
      %v378 = vmax.f32 %v330, %v357
      %v379 = vmax.f32 %v331, %v359
      %v380 = vmax.f32 %v332, %v361
      %v381 = vmax.f32 %v333, %v363
      %v382 = vrot.slane %v177, 3
      %v383 = vrot.slane %v178, 3
      %v384 = vsel %vm344, %v382, %v383
      %v385 = vrot.slane %v179, 3
      %v386 = vsel %vm344, %v383, %v385
      %v387 = vrot.slane %v180, 3
      %v388 = vsel %vm344, %v385, %v387
      %v389 = vrot.slane %v181, 3
      %v390 = vsel %vm344, %v387, %v389
      %v391 = vrot.slane %v182, 3
      %v392 = vsel %vm344, %v389, %v391
      %v393 = vrot.slane %v183, 3
      %v394 = vsel %vm344, %v391, %v393
      %v395 = vrot.slane %v184, 3
      %v396 = vsel %vm344, %v393, %v395
      %v397 = vrot.slane %v185, 3
      %v398 = vsel %vm344, %v395, %v397
      %v399 = vrot.slane %v186, 3
      %v400 = vsel %vm344, %v397, %v399
      %v410 = vmax.f32 %v373, %v384
      %v411 = vmax.f32 %v374, %v386
      %v412 = vmax.f32 %v375, %v388
      %v413 = vmax.f32 %v376, %v390
      %v414 = vmax.f32 %v377, %v392
      %v415 = vmax.f32 %v378, %v394
      %v416 = vmax.f32 %v379, %v396
      %v417 = vmax.f32 %v380, %v398
      %v418 = vmax.f32 %v381, %v400
      %v420 = vrot.slane %v166, 1
      %v421 = vsel %vm206, %v266, %v420
      %v424 = vmax.f32 %v410, %v255
      %v425 = vmax.f32 %v411, %v257
      %v426 = vmax.f32 %v412, %v259
      %v427 = vmax.f32 %v413, %v261
      %v428 = vmax.f32 %v414, %v263
      %v429 = vmax.f32 %v415, %v265
      %v430 = vmax.f32 %v416, %v267
      %v431 = vmax.f32 %v417, %v421
      %v432 = vmax.f32 %v418, %v420
      %v434 = vrot.slane %v168, 2
      %v435 = vrot.slane %v169, 2
      %v436 = vsel %vm296, %v434, %v435
      %v437 = vrot.slane %v170, 2
      %v438 = vsel %vm296, %v435, %v437
      %v439 = vrot.slane %v171, 2
      %v440 = vsel %vm296, %v437, %v439
      %v441 = vrot.slane %v172, 2
      %v442 = vsel %vm296, %v439, %v441
      %v443 = vrot.slane %v173, 2
      %v444 = vsel %vm296, %v441, %v443
      %v445 = vrot.slane %v174, 2
      %v446 = vsel %vm296, %v443, %v445
      %v447 = vrot.slane %v175, 2
      %v448 = vsel %vm296, %v445, %v447
      %v449 = vrot.slane %v176, 2
      %v450 = vsel %vm296, %v447, %v449
      %v451 = vsel %vm296, %v449, %v297
      %v461 = vmax.f32 %v424, %v436
      %v462 = vmax.f32 %v425, %v438
      %v463 = vmax.f32 %v426, %v440
      %v464 = vmax.f32 %v427, %v442
      %v465 = vmax.f32 %v428, %v444
      %v466 = vmax.f32 %v429, %v446
      %v467 = vmax.f32 %v430, %v448
      %v468 = vmax.f32 %v431, %v450
      %v469 = vmax.f32 %v432, %v451
      %v470 = vrot.slane %v158, 2
      %v471 = vrot.slane %v159, 2
      %v472 = vsel %vm296, %v470, %v471
      %v473 = vrot.slane %v160, 2
      %v474 = vsel %vm296, %v471, %v473
      %v475 = vrot.slane %v161, 2
      %v476 = vsel %vm296, %v473, %v475
      %v477 = vrot.slane %v162, 2
      %v478 = vsel %vm296, %v475, %v477
      %v479 = vrot.slane %v163, 2
      %v480 = vsel %vm296, %v477, %v479
      %v481 = vrot.slane %v164, 2
      %v482 = vsel %vm296, %v479, %v481
      %v483 = vrot.slane %v165, 2
      %v484 = vsel %vm296, %v481, %v483
      %v485 = vrot.slane %v166, 2
      %v486 = vsel %vm296, %v483, %v485
      %v487 = vrot.slane %v167, 2
      %v488 = vsel %vm296, %v485, %v487
      %v498 = vmax.f32 %v461, %v472
      %v499 = vmax.f32 %v462, %v474
      %v500 = vmax.f32 %v463, %v476
      %v501 = vmax.f32 %v464, %v478
      %v502 = vmax.f32 %v465, %v480
      %v503 = vmax.f32 %v466, %v482
      %v504 = vmax.f32 %v467, %v484
      %v505 = vmax.f32 %v468, %v486
      %v506 = vmax.f32 %v469, %v488
      %v509 = vrot.slane %v499, 1
      %v510 = vrot.slane %v500, 1
      %v511 = vsel %vm206, %v509, %v510
      %v514 = vrot.slane %v500, 2
      %v515 = vrot.slane %v501, 2
      %v516 = vsel %vm296, %v514, %v515
      %v519 = vrot.slane %v501, 3
      %v520 = vrot.slane %v502, 3
      %v521 = vsel %vm344, %v519, %v520
      %vm524 = vcmask 1043456
      %v525 = vrot.slane %v502, 4
      %v526 = vrot.slane %v503, 4
      %v527 = vsel %vm524, %v525, %v526
      %vm530 = vcmask 1042432
      %v531 = vrot.slane %v503, 5
      %v532 = vrot.slane %v504, 5
      %v533 = vsel %vm530, %v531, %v532
      %vm536 = vcmask 1041408
      %v537 = vrot.slane %v504, 6
      %v538 = vrot.slane %v505, 6
      %v539 = vsel %vm536, %v537, %v538
      %vm542 = vcmask 1040384
      %v543 = vrot.slane %v505, 7
      %v544 = vrot.slane %v506, 7
      %v545 = vsel %vm542, %v543, %v544
      %v547 = vpack.c.bf16 %v511, %v498
      %v548 = vpack.c.bf16 %v521, %v516
      %v549 = vpack.c.bf16 %v533, %v527
      %v550 = vpack.c.bf16 %v545, %v539
      %v555 = vunpack.c.l.b16 %v547
      %v556 = vunpack.c.h.b16 %v547
      %v557 = vunpack.c.l.b16 %v548
      %v558 = vunpack.c.h.b16 %v548
      %v559 = vunpack.c.l.b16 %v549
      %v560 = vunpack.c.h.b16 %v549
      %v561 = vunpack.c.l.b16 %v550
      %v562 = vunpack.c.h.b16 %v550
      %v563 = vpack.c.b16 %v555, %v555
      %v564 = vpack.c.b16 %v556, %v556
      %v565 = vpack.c.b16 %v557, %v557
      %v566 = vpack.c.b16 %v558, %v558
      %v567 = vpack.c.b16 %v559, %v559
      %v568 = vpack.c.b16 %v560, %v560
      %v569 = vpack.c.b16 %v561, %v561
      %v570 = vpack.c.b16 %v562, %v562
      %vm579 = vcmask 60416
      %580 = vst.msk [vmem:[%s116] sm:$0xf] %vm579, %v563
      %581 = vst.msk [vmem:[%s116 + $0x4] sm:$0xf] %vm579, %v564
      %582 = vst.msk [vmem:[%s116 + $0x8] sm:$0xf] %vm579, %v565
      %583 = vst.msk [vmem:[%s116 + $0xc] sm:$0xf] %vm579, %v566
      %584 = vst.msk [vmem:[%s116 + $0x10] sm:$0xf] %vm579, %v567
      %585 = vst.msk [vmem:[%s116 + $0x14] sm:$0xf] %vm579, %v568
      %586 = vst.msk [vmem:[%s116 + $0x18] sm:$0xf] %vm579, %v569
      %587 = vst.msk [vmem:[%s116 + $0x1c] sm:$0xf] %vm579, %v570
      %p588 = scmp.lt.s32.totalorder %s12, 1
      %s589 = scalar_select %p588, %s12, 1
      %s590 = smul.addr %s589, 8
      %s591 = smul.addr %s590, 4
      %s592 = scalar_lea.vmem %s1, %s591
      // Predicated region
      $region25: #{shufflenet_v2_forward.10} parent=23 // pred_check
        %p593 = pneg %p56
      $region26: #{shufflenet_v2_forward.10} parent=23 // pred_check_branch
        %595 = sbr.rel (%p593) target = $region28
      $region27: #{shufflenet_v2_forward.10} parent=23 // pred_region
        _
      $region28: #{shufflenet_v2_forward.10} parent=23 // pred_fallthru
        _
    $region24: #{shufflenet_v2_forward.10} parent=5 // pred_fallthru
      _
    %p596 = scmp.le.s32.totalorder 2, %s7
    // Predicated region
    $region29: #{shufflenet_v2_forward.10} parent=5 // pred_check
      %p597 = pneg %p596
    $region30: #{shufflenet_v2_forward.10} parent=5 // pred_check_branch
      %599 = sbr.rel (%p597) target = $region32
    $region31: #{shufflenet_v2_forward.10} parent=5 // pred_region
      %s600 = ssub.s32 %s7, 2
      // Predicated region
      $region33: #{shufflenet_v2_forward.10} parent=31 // pred_check
        %p601 = pneg %p62
      $region34: #{shufflenet_v2_forward.10} parent=31 // pred_check_branch
        %603 = sbr.rel (%p601) target = $region36
      $region35: #{shufflenet_v2_forward.10} parent=31 // pred_region
        %p604 = scmp.lt.s32.totalorder %s13, 1
        %s605 = scalar_select %p604, %s13, 1
        %s606 = smul.addr %s605, 8
        %s607 = smul.addr %s606, 4
        %s608 = scalar_lea.vmem %s1, %s607
      $region36: #{shufflenet_v2_forward.10} parent=31 // pred_fallthru
        _
    $region32: #{shufflenet_v2_forward.10} parent=5 // pred_fallthru
      _
  $region6: #{shufflenet_v2_forward.10} parent=0 // loop_footer
    %s11 = sadd.s32 1, %s7
  $region7: #{shufflenet_v2_forward.10} parent=0 // loop_footer_branch
    %6 = sbr.rel target = $region3
  $region8: #{shufflenet_v2_forward.10} parent=0 // loop_exit
    _

// kernel: shufflenet_v2_forward.12
$region0: #{shufflenet_v2_forward.12}
  #allocation0 [shape = 'u32[]', space=smem, size = 0x4, offset = 0x4, fixed_abs, tag = 'smem constant byte address 0x4 - core index']
  #allocation1 [shape = 'u32[144,128]{1,0:T(1,128)}', space=vmem, size = 0x12000, scoped, tag = 'internal scratch']
  %s0 = inlined_call_operand.vmem [shape: bf16[2,16,16], index: 0, kind: input, shape index: {}]
  %s1 = inlined_call_operand.vmem [shape: bf16[8,8], index: 1, kind: input, shape index: {}]
  %s2 = inlined_call_operand.vmem [shape: f32[1,8], index: 2, kind: input, shape index: {}]
  %s3 = inlined_call_operand.vmem [shape: f32[9,1,8], index: 3, kind: input, shape index: {}]
  %s4 = inlined_call_operand.vmem [shape: f32[1,8], index: 4, kind: input, shape index: {}]
  %s5 = inlined_call_operand.vmem [shape: bf16[8,16], index: 5, kind: input, shape index: {}]
  %s6 = inlined_call_operand.vmem [shape: f32[1,16], index: 6, kind: input, shape index: {}]
  %s7 = inlined_call_operand.vmem [shape: bf16[2,16,16], index: 7, kind: output, shape index: {}]
  %s8 = sld [smem:[#allocation0]]
  $region61: #{shufflenet_v2_forward.12} parent=0
    _
  %s10 = ssub.s32 1, %s8
  %s11 = scalar_select 0, %s10, %s8
  loop: start=0, step=1, limit=4
  $region2: #{shufflenet_v2_forward.12} parent=0 // loop_pre_header
    _
  $region3: #{shufflenet_v2_forward.12} parent=0 // loop_header
    %s13 = sphi 0, %s17
    %p14 = scmp.ge.s32.totalorder %s13, 4
    %s23 = sphi 0, %s25
    %s26 = sphi 0, %s23
    %s27 = sphi 0, %s26
    %s43 = sphi 0, %s27
    %s47 = sphi 0, %s47
    %s49 = sphi 0, %s47
    %s50 = sphi 0, %s49
    %s64 = sphi 0, %s50
    %s68 = sphi 0, %s68
    %s70 = sphi 0, %s68
    %s71 = sphi 0, %s70
    %s85 = sphi 0, %s71
    %s89 = sphi 0, %s89
    %s91 = sphi 0, %s89
    %s92 = sphi 0, %s91
    %s106 = sphi 0, %s92
    %s110 = sphi 0, %s110
    %s112 = sphi 0, %s110
    %s113 = sphi 0, %s112
    %s127 = sphi 0, %s113
    %s131 = sphi 0, %s131
    %s133 = sphi 0, %s131
    %s134 = sphi 0, %s133
    %s148 = sphi 0, %s134
    %s152 = sphi 0, %s152
    %s154 = sphi 0, %s152
    %s155 = sphi 0, %s154
    %s169 = sphi 0, %s155
    %s175 = sphi 0, %s177
    %s178 = sphi 0, %s175
    %s179 = sphi 0, %s178
    %s195 = sphi 0, %s179
  $region4: #{shufflenet_v2_forward.12} parent=0 // loop_header_branch
    %16 = sbr.rel (%p14) target = $region8
  $region5: #{shufflenet_v2_forward.12} parent=0 // loop_body
    %s18 = ssub.s32 %s13, 1
    %s19 = ssub.s32 %s13, 2
    %s20 = sadd.s32 %s13, 1
    %s21 = ssub.s32 %s13, %s20
    %p22 = scmp.eq.s32.totalorder %s21, 0
    %s24 = sadd.s32 %s23, 1
    %s25 = scalar_select %p22, %s23, %s24
    %p28 = pneg %p22
    %p29 = scmp.eq.s32.totalorder %s13, 1
    %p30 = por %p28, %p29
    %p31 = scmp.ne.s32.totalorder %s23, %s26
    %p32 = scmp.eq.s32.totalorder %s13, 0
    %p33 = por %p31, %p32
    %p34 = scmp.ne.s32.totalorder %s23, %s26
    %p35 = scmp.eq.s32.totalorder %s18, 1
    %p36 = por %p34, %p35
    %p37 = scmp.ne.s32.totalorder %s26, %s27
    %p38 = scmp.eq.s32.totalorder %s18, 0
    %p39 = por %p37, %p38
    %p40 = scmp.ne.s32.totalorder %s26, %s27
    %p41 = scmp.eq.s32.totalorder %s19, 1
    %p42 = por %p40, %p41
    %p44 = scmp.ne.s32.totalorder %s27, %s43
    %p45 = scmp.eq.s32.totalorder %s19, 0
    %p46 = por %p44, %p45
    %s48 = sadd.s32 %s47, 1
    %p51 = scmp.eq.s32.totalorder %s13, 1
    %p52 = scmp.ne.s32.totalorder %s47, %s49
    %p53 = scmp.eq.s32.totalorder %s13, 0
    %p54 = por %p52, %p53
    %p55 = scmp.ne.s32.totalorder %s47, %s49
    %p56 = scmp.eq.s32.totalorder %s18, 1
    %p57 = por %p55, %p56
    %p58 = scmp.ne.s32.totalorder %s49, %s50
    %p59 = scmp.eq.s32.totalorder %s18, 0
    %p60 = por %p58, %p59
    %p61 = scmp.ne.s32.totalorder %s49, %s50
    %p62 = scmp.eq.s32.totalorder %s19, 1
    %p63 = por %p61, %p62
    %p65 = scmp.ne.s32.totalorder %s50, %s64
    %p66 = scmp.eq.s32.totalorder %s19, 0
    %p67 = por %p65, %p66
    %s69 = sadd.s32 %s68, 1
    %p72 = scmp.eq.s32.totalorder %s13, 1
    %p73 = scmp.ne.s32.totalorder %s68, %s70
    %p74 = scmp.eq.s32.totalorder %s13, 0
    %p75 = por %p73, %p74
    %p76 = scmp.ne.s32.totalorder %s68, %s70
    %p77 = scmp.eq.s32.totalorder %s18, 1
    %p78 = por %p76, %p77
    %p79 = scmp.ne.s32.totalorder %s70, %s71
    %p80 = scmp.eq.s32.totalorder %s18, 0
    %p81 = por %p79, %p80
    %p82 = scmp.ne.s32.totalorder %s70, %s71
    %p83 = scmp.eq.s32.totalorder %s19, 1
    %p84 = por %p82, %p83
    %p86 = scmp.ne.s32.totalorder %s71, %s85
    %p87 = scmp.eq.s32.totalorder %s19, 0
    %p88 = por %p86, %p87
    %s90 = sadd.s32 %s89, 1
    %p93 = scmp.eq.s32.totalorder %s13, 1
    %p94 = scmp.ne.s32.totalorder %s89, %s91
    %p95 = scmp.eq.s32.totalorder %s13, 0
    %p96 = por %p94, %p95
    %p97 = scmp.ne.s32.totalorder %s89, %s91
    %p98 = scmp.eq.s32.totalorder %s18, 1
    %p99 = por %p97, %p98
    %p100 = scmp.ne.s32.totalorder %s91, %s92
    %p101 = scmp.eq.s32.totalorder %s18, 0
    %p102 = por %p100, %p101
    %p103 = scmp.ne.s32.totalorder %s91, %s92
    %p104 = scmp.eq.s32.totalorder %s19, 1
    %p105 = por %p103, %p104
    %p107 = scmp.ne.s32.totalorder %s92, %s106
    %p108 = scmp.eq.s32.totalorder %s19, 0
    %p109 = por %p107, %p108
    %s111 = sadd.s32 %s110, 1
    %p114 = scmp.eq.s32.totalorder %s13, 1
    %p115 = scmp.ne.s32.totalorder %s110, %s112
    %p116 = scmp.eq.s32.totalorder %s13, 0
    %p117 = por %p115, %p116
    %p118 = scmp.ne.s32.totalorder %s110, %s112
    %p119 = scmp.eq.s32.totalorder %s18, 1
    %p120 = por %p118, %p119
    %p121 = scmp.ne.s32.totalorder %s112, %s113
    %p122 = scmp.eq.s32.totalorder %s18, 0
    %p123 = por %p121, %p122
    %p124 = scmp.ne.s32.totalorder %s112, %s113
    %p125 = scmp.eq.s32.totalorder %s19, 1
    %p126 = por %p124, %p125
    %p128 = scmp.ne.s32.totalorder %s113, %s127
    %p129 = scmp.eq.s32.totalorder %s19, 0
    %p130 = por %p128, %p129
    %s132 = sadd.s32 %s131, 1
    %p135 = scmp.eq.s32.totalorder %s13, 1
    %p136 = scmp.ne.s32.totalorder %s131, %s133
    %p137 = scmp.eq.s32.totalorder %s13, 0
    %p138 = por %p136, %p137
    %p139 = scmp.ne.s32.totalorder %s131, %s133
    %p140 = scmp.eq.s32.totalorder %s18, 1
    %p141 = por %p139, %p140
    %p142 = scmp.ne.s32.totalorder %s133, %s134
    %p143 = scmp.eq.s32.totalorder %s18, 0
    %p144 = por %p142, %p143
    %p145 = scmp.ne.s32.totalorder %s133, %s134
    %p146 = scmp.eq.s32.totalorder %s19, 1
    %p147 = por %p145, %p146
    %p149 = scmp.ne.s32.totalorder %s134, %s148
    %p150 = scmp.eq.s32.totalorder %s19, 0
    %p151 = por %p149, %p150
    %s153 = sadd.s32 %s152, 1
    %p156 = scmp.eq.s32.totalorder %s13, 1
    %p157 = scmp.ne.s32.totalorder %s152, %s154
    %p158 = scmp.eq.s32.totalorder %s13, 0
    %p159 = por %p157, %p158
    %p160 = scmp.ne.s32.totalorder %s152, %s154
    %p161 = scmp.eq.s32.totalorder %s18, 1
    %p162 = por %p160, %p161
    %p163 = scmp.ne.s32.totalorder %s154, %s155
    %p164 = scmp.eq.s32.totalorder %s18, 0
    %p165 = por %p163, %p164
    %p166 = scmp.ne.s32.totalorder %s154, %s155
    %p167 = scmp.eq.s32.totalorder %s19, 1
    %p168 = por %p166, %p167
    %p170 = scmp.ne.s32.totalorder %s155, %s169
    %p171 = scmp.eq.s32.totalorder %s19, 0
    %p172 = por %p170, %p171
    %s173 = ssub.s32 %s13, %s20
    %p174 = scmp.eq.s32.totalorder %s173, 0
    %s176 = sadd.s32 %s175, 1
    %s177 = scalar_select %p174, %s175, %s176
    %p180 = pneg %p174
    %p181 = scmp.eq.s32.totalorder %s13, 1
    %p182 = por %p180, %p181
    %p183 = scmp.ne.s32.totalorder %s175, %s178
    %p184 = scmp.eq.s32.totalorder %s13, 0
    %p185 = por %p183, %p184
    %p186 = scmp.ne.s32.totalorder %s175, %s178
    %p187 = scmp.eq.s32.totalorder %s18, 1
    %p188 = por %p186, %p187
    %p189 = scmp.ne.s32.totalorder %s178, %s179
    %p190 = scmp.eq.s32.totalorder %s18, 0
    %p191 = por %p189, %p190
    %p192 = scmp.ne.s32.totalorder %s178, %s179
    %p193 = scmp.eq.s32.totalorder %s19, 1
    %p194 = por %p192, %p193
    %p196 = scmp.ne.s32.totalorder %s179, %s195
    %p197 = scmp.eq.s32.totalorder %s19, 0
    %p198 = por %p196, %p197
    %p199 = scmp.le.s32.totalorder 1, %s13
    %p200 = scmp.lt.s32.totalorder %s13, 3
    %p201 = pnand %p199, %p200
    %p202 = pneg %p201
    // Predicated region
    $region9: #{shufflenet_v2_forward.12} parent=5 // pred_check
      _
    $region10: #{shufflenet_v2_forward.12} parent=5 // pred_check_branch
      %204 = sbr.rel (%p201) target = $region12
    $region11: #{shufflenet_v2_forward.12} parent=5 // pred_region
      %s205 = ssub.s32 %s13, 1
      // Predicated region
      $region13: #{shufflenet_v2_forward.12} parent=11 // pred_check
        %p206 = pneg %p60
      $region14: #{shufflenet_v2_forward.12} parent=11 // pred_check_branch
        %208 = sbr.rel (%p206) target = $region16
      $region15: #{shufflenet_v2_forward.12} parent=11 // pred_region
        _
      $region16: #{shufflenet_v2_forward.12} parent=11 // pred_fallthru
        _
      // Predicated region
      $region17: #{shufflenet_v2_forward.12} parent=11 // pred_check
        %p209 = pneg %p81
      $region18: #{shufflenet_v2_forward.12} parent=11 // pred_check_branch
        %211 = sbr.rel (%p209) target = $region20
      $region19: #{shufflenet_v2_forward.12} parent=11 // pred_region
        _
      $region20: #{shufflenet_v2_forward.12} parent=11 // pred_fallthru
        _
      // Predicated region
      $region21: #{shufflenet_v2_forward.12} parent=11 // pred_check
        %p212 = pneg %p102
      $region22: #{shufflenet_v2_forward.12} parent=11 // pred_check_branch
        %214 = sbr.rel (%p212) target = $region24
      $region23: #{shufflenet_v2_forward.12} parent=11 // pred_region
        _
      $region24: #{shufflenet_v2_forward.12} parent=11 // pred_fallthru
        _
      // Predicated region
      $region25: #{shufflenet_v2_forward.12} parent=11 // pred_check
        %p215 = pneg %p123
      $region26: #{shufflenet_v2_forward.12} parent=11 // pred_check_branch
        %217 = sbr.rel (%p215) target = $region28
      $region27: #{shufflenet_v2_forward.12} parent=11 // pred_region
        _
      $region28: #{shufflenet_v2_forward.12} parent=11 // pred_fallthru
        _
      // Predicated region
      $region29: #{shufflenet_v2_forward.12} parent=11 // pred_check
        %p218 = pneg %p144
      $region30: #{shufflenet_v2_forward.12} parent=11 // pred_check_branch
        %220 = sbr.rel (%p218) target = $region32
      $region31: #{shufflenet_v2_forward.12} parent=11 // pred_region
        _
      $region32: #{shufflenet_v2_forward.12} parent=11 // pred_fallthru
        _
      // Predicated region
      $region33: #{shufflenet_v2_forward.12} parent=11 // pred_check
        %p221 = pneg %p165
      $region34: #{shufflenet_v2_forward.12} parent=11 // pred_check_branch
        %223 = sbr.rel (%p221) target = $region36
      $region35: #{shufflenet_v2_forward.12} parent=11 // pred_region
        _
      $region36: #{shufflenet_v2_forward.12} parent=11 // pred_fallthru
        _
    $region12: #{shufflenet_v2_forward.12} parent=5 // pred_fallthru
      _
    %p224 = scmp.lt.s32.totalorder %s13, 2
    // Predicated region
    $region37: #{shufflenet_v2_forward.12} parent=5 // pred_check
      %p225 = pneg %p224
    $region38: #{shufflenet_v2_forward.12} parent=5 // pred_check_branch
      %227 = sbr.rel (%p225) target = $region40
    $region39: #{shufflenet_v2_forward.12} parent=5 // pred_region
      // Predicated region
      $region41: #{shufflenet_v2_forward.12} parent=39 // pred_check
        %p228 = pneg %p33
      $region42: #{shufflenet_v2_forward.12} parent=39 // pred_check_branch
        %230 = sbr.rel (%p228) target = $region44
      $region43: #{shufflenet_v2_forward.12} parent=39 // pred_region
        %p231 = scmp.lt.s32.totalorder %s13, 1
        %s232 = scalar_select %p231, %s13, 1
        %s233 = smul.addr %s232, 2
        %s234 = smul.addr %s233, 4
        %s235 = scalar_lea.vmem %s0, %s234
      $region44: #{shufflenet_v2_forward.12} parent=39 // pred_fallthru
        _
    $region40: #{shufflenet_v2_forward.12} parent=5 // pred_fallthru
      _
    %p236 = scmp.le.s32.totalorder 1, %s13
    %p237 = scmp.lt.s32.totalorder %s13, 3
    %p238 = pnand %p236, %p237
    %p239 = pneg %p238
    // Predicated region
    $region45: #{shufflenet_v2_forward.12} parent=5 // pred_check
      _
    $region46: #{shufflenet_v2_forward.12} parent=5 // pred_check_branch
      %241 = sbr.rel (%p238) target = $region48
    $region47: #{shufflenet_v2_forward.12} parent=5 // pred_region
      %s242 = ssub.s32 %s13, 1
      %p243 = scmp.lt.s32.totalorder %s18, 1
      %s244 = scalar_select %p243, %s18, 1
      %s245 = smul.addr %s244, 2
      %s246 = smul.addr %s245, 4
      %s247 = scalar_lea.vmem %s0, %s246
      %p248 = pneg %p39
      %p249 = pneg %p36
      %p250 = pneg %p60
      %p251 = pneg %p57
      %p252 = pneg %p81
      %p253 = pneg %p78
      %p254 = pneg %p102
      %p255 = pneg %p99
      %p256 = pneg %p123
      %p257 = pneg %p120
      %p258 = pneg %p144
      %p259 = pneg %p141
      %p260 = pneg %p165
      %p261 = pneg %p162
      %p262 = pneg %p191
      %p263 = pneg %p188
      %p264 = scmp.lt.s32.totalorder %s18, 1
      %s265 = scalar_select %p264, %s18, 1
      %s266 = smul.addr %s265, 2
      %s267 = smul.addr %s266, 4
      %s268 = scalar_lea.vmem %s7, %s267
      %p269 = scmp.lt.s32.totalorder %s18, 1
      %s270 = scalar_select %p269, %s18, 1
      %s271 = smul.addr %s270, 2
      %s272 = smul.addr %s271, 4
      %s273 = scalar_lea.vmem %s0, %s272
      %p274 = scmp.lt.s32.totalorder %s18, 1
      %s275 = scalar_select %p274, %s18, 1
      %s276 = smul.addr %s275, 2
      %s277 = smul.addr %s276, 4
      %s278 = scalar_lea.vmem %s7, %s277
      %v280 = vld [vmem:[%s273] sm:$0xf]
      %v281 = vld [vmem:[%s273 + $0x4] sm:$0xf]
      %v282 = vld [vmem:[%s1] sm:$0xf]
      %v283 = vld [vmem:[%s2] sm:$0x1]
      %v285 = vlaneseq
      %v286 = vshrl.u32 %v285, 7
      %v287 = vsub.s32 0, %v286
      %v288 = vrot.slane %v283, %v287
      %v292 = vunpack.c.l.b16 %v280
      %v293 = vunpack.c.l.b16 %v281
      %v294 = vpack.c.b16 %v293, %v292
      %295 = vrot.lane.b32.xlu0 %v294, 120
      %v296 = vpop.permute.xlu0 %295
      %vm297 = vcmask 64512
      %v299 = vsel %vm297, %v296, 0
      %vm301 = vcmask 1043456
      %v303 = vsel %vm301, %v282, 0
      %305 = vmatprep.subr.bf16.mxu0 0
      %306 = vmatpush1.bf16.msra.mxu0 %v303
      %307 = vmatprep.subr.bf16.mxu0 0
      %308 = vmatpush1.bf16.msra.mxu0 0
      %309 = vmatprep.subr.bf16.mxu0 0
      %310 = vmatpush1.bf16.msra.mxu0 0
      %311 = vmatprep.subr.bf16.mxu0 0
      %312 = vmatpush1.bf16.msra.mxu0 0
      %313 = vmatprep.subr.bf16.mxu0 0
      %314 = vmatpush1.bf16.msra.mxu0 0
      %315 = vmatprep.subr.bf16.mxu0 0
      %316 = vmatpush1.bf16.msra.mxu0 0
      %317 = vmatprep.subr.bf16.mxu0 0
      %318 = vmatpush1.bf16.msra.mxu0 0
      %319 = vmatprep.subr.bf16.mxu0 0
      %320 = vmatpush1.bf16.msra.mxu0 0
      %321 = vmatprep.subr.bf16.mxu0 0
      %322 = vmatpush1.bf16.msra.mxu0 0
      %323 = vmatprep.subr.bf16.mxu0 0
      %324 = vmatpush1.bf16.msra.mxu0 0
      %325 = vmatprep.subr.bf16.mxu0 0
      %326 = vmatpush1.bf16.msra.mxu0 0
      %327 = vmatprep.subr.bf16.mxu0 0
      %328 = vmatpush1.bf16.msra.mxu0 0
      %329 = vmatprep.subr.bf16.mxu0 0
      %330 = vmatpush1.bf16.msra.mxu0 0
      %331 = vmatprep.subr.bf16.mxu0 0
      %332 = vmatpush1.bf16.msra.mxu0 0
      %333 = vmatprep.subr.bf16.mxu0 0
      %334 = vmatpush1.bf16.msra.mxu0 0
      %335 = vmatprep.subr.bf16.mxu0 0
      %336 = vmatpush1.bf16.msra.mxu0 0
      %337 = vmatprep.mubr.bf16.mxu0 0
      %338 = vmatmul.mubr.bf16.gmra.mrb[0].mxu0 %v299
      %v339 = vpop.f32.mrb[0].mxu0
      %v340 = vadd.f32 %v288, %v339
      %v341 = vpop.f32.mrb[0].mxu0
      %v342 = vpop.f32.mrb[0].mxu0
      %v343 = vadd.f32 %v288, %v342
      %v344 = vpop.f32.mrb[0].mxu0
      %345 = vdwg.mxu0
      %v346 = vmax.f32 %v340, 0.0
      %v347 = vmax.f32 %v343, 0.0
      %v348 = vlaneseq
      %v349 = vshrl.u32 %v348, 7
      %v350 = vadd.s32 %v349, 8
      %v351 = vcvt.s32.f32 %v349
      %v352 = vcvt.s32.f32 %v350
      %v353 = vadd.f32 %v351, 0.5
      %v354 = vadd.f32 %v352, 0.5
      %v355 = vmul.f32 %v353, 0.25
      %v356 = vmul.f32 %v354, 0.25
      %v357 = vfloor.f32 %v355
      %v358 = vfloor.f32 %v356
      %v359 = vmul.f32 %v357, 4.0
      %v360 = vmul.f32 %v358, 4.0
      %v361 = vsub.f32 %v351, %v359
      %v362 = vsub.f32 %v352, %v360
      %vm363 = vcmp.ge.f32.partialorder %v361, 0.5
      %vm364 = vcmp.ge.f32.partialorder %v362, 0.5
      %v365 = vsel %vm363, 1, 0
      %v366 = vsel %vm364, 1, 0
      %v367 = vcvt.s32.f32 %v365
      %v368 = vcvt.s32.f32 %v366
      %vm369 = vcmp.le.f32.partialorder %v361, 2.5
      %vm370 = vcmp.le.f32.partialorder %v362, 2.5
      %v371 = vsel %vm369, 1, 0
      %v372 = vsel %vm370, 1, 0
      %v373 = vcvt.s32.f32 %v371
      %v374 = vcvt.s32.f32 %v372
      %vm377 = vcmask 1044480
      %v378 = vrot.slane %v346, 3
      %v379 = vrot.slane %v347, 3
      %v380 = vsel %vm377, %v378, %v379
      %v384 = vsel %vm377, 0.0, %v378
      %v385 = vsel %vm377, %v379, 0.0
      %v386 = vmul.f32 %v384, %v367
      %v387 = vmul.f32 %v380, %v368
      %v388 = vld [vmem:[%s3] sm:$0x1]
      %v390 = vlaneseq
      %v391 = vshrl.u32 %v390, 7
      %v392 = vsub.s32 0, %v391
      %v393 = vrot.slane %v388, %v392
      %v395 = vmul.f32 %v386, %v393
      %v396 = vmul.f32 %v387, %v393
      %v397 = vadd.f32 %v395, 0.0
      %v398 = vadd.f32 %v396, 0.0
      %s399 = scalar_lea.vmem %s3, 1
      %v400 = vld [vmem:[%s399] sm:$0x1]
      %v402 = vlaneseq
      %v403 = vshrl.u32 %v402, 7
      %v404 = vsub.s32 0, %v403
      %v405 = vrot.slane %v400, %v404
      %v407 = vmul.f32 %v384, %v405
      %v408 = vmul.f32 %v380, %v405
      %v409 = vmul.f32 %v385, %v405
      %vm413 = vcmask 1046528
      %v414 = vrot.slane %v407, 1
      %v415 = vrot.slane %v408, 1
      %v416 = vsel %vm413, %v414, %v415
      %v417 = vrot.slane %v409, 1
      %v418 = vsel %vm413, %v415, %v417
      %v421 = vadd.f32 %v397, %v416
      %v422 = vadd.f32 %v398, %v418
      %vm425 = vcmask 1041408
      %v426 = vrot.slane %v373, 6
      %v427 = vrot.slane %v374, 6
      %v428 = vsel %vm425, %v426, %v427
      %v432 = vmul.f32 %v384, %v426
      %v433 = vmul.f32 %v380, %v428
      %v434 = vmul.f32 %v385, %v427
      %s435 = scalar_lea.vmem %s3, 2
      %v436 = vld [vmem:[%s435] sm:$0x1]
      %v438 = vlaneseq
      %v439 = vshrl.u32 %v438, 7
      %v440 = vsub.s32 0, %v439
      %v441 = vrot.slane %v436, %v440
      %v443 = vmul.f32 %v432, %v441
      %v444 = vmul.f32 %v433, %v441
      %v445 = vmul.f32 %v434, %v441
      %vm449 = vcmask 1045504
      %v450 = vrot.slane %v443, 2
      %v451 = vrot.slane %v444, 2
      %v452 = vsel %vm449, %v450, %v451
      %v453 = vrot.slane %v445, 2
      %v454 = vsel %vm449, %v451, %v453
      %v457 = vadd.f32 %v421, %v452
      %v458 = vadd.f32 %v422, %v454
      %v461 = vrot.slane %v367, 4
      %v462 = vrot.slane %v368, 4
      %v463 = vsel %vm301, %v461, %v462
      %v467 = vmul.f32 %v384, %v461
      %v468 = vmul.f32 %v380, %v463
      %v469 = vmul.f32 %v385, %v462
      %s470 = scalar_lea.vmem %s3, 3
      %v471 = vld [vmem:[%s470] sm:$0x1]
      %v473 = vlaneseq
      %v474 = vshrl.u32 %v473, 7
      %v475 = vsub.s32 0, %v474
      %v476 = vrot.slane %v471, %v475
      %v478 = vmul.f32 %v467, %v476
      %v479 = vmul.f32 %v468, %v476
      %v480 = vmul.f32 %v469, %v476
      %v484 = vrot.slane %v478, 4
      %v485 = vrot.slane %v479, 4
      %v486 = vsel %vm301, %v484, %v485
      %v487 = vrot.slane %v480, 4
      %v488 = vsel %vm301, %v485, %v487
      %v491 = vadd.f32 %v457, %v486
      %v492 = vadd.f32 %v458, %v488
      %s493 = scalar_lea.vmem %s3, 4
      %v494 = vld [vmem:[%s493] sm:$0x1]
      %v496 = vlaneseq
      %v497 = vshrl.u32 %v496, 7
      %v498 = vsub.s32 0, %v497
      %v499 = vrot.slane %v494, %v498
      %v501 = vmul.f32 %v384, %v499
      %v502 = vmul.f32 %v380, %v499
      %v503 = vmul.f32 %v385, %v499
      %vm507 = vcmask 1042432
      %v508 = vrot.slane %v501, 5
      %v509 = vrot.slane %v502, 5
      %v510 = vsel %vm507, %v508, %v509
      %v511 = vrot.slane %v503, 5
      %v512 = vsel %vm507, %v509, %v511
      %v515 = vadd.f32 %v491, %v510
      %v516 = vadd.f32 %v492, %v512
      %v517 = vrot.slane %v373, 2
      %v518 = vrot.slane %v374, 2
      %v519 = vsel %vm449, %v517, %v518
      %v523 = vmul.f32 %v384, %v517
      %v524 = vmul.f32 %v380, %v519
      %v525 = vmul.f32 %v385, %v518
      %s526 = scalar_lea.vmem %s3, 5
      %v527 = vld [vmem:[%s526] sm:$0x1]
      %v529 = vlaneseq
      %v530 = vshrl.u32 %v529, 7
      %v531 = vsub.s32 0, %v530
      %v532 = vrot.slane %v527, %v531
      %v534 = vmul.f32 %v523, %v532
      %v535 = vmul.f32 %v524, %v532
      %v536 = vmul.f32 %v525, %v532
      %v540 = vrot.slane %v534, 6
      %v541 = vrot.slane %v535, 6
      %v542 = vsel %vm425, %v540, %v541
      %v543 = vrot.slane %v536, 6
      %v544 = vsel %vm425, %v541, %v543
      %v547 = vadd.f32 %v515, %v542
      %v548 = vadd.f32 %v516, %v544
      %v549 = vmul.f32 %v380, %v367
      %v550 = vmul.f32 %v385, %v368
      %s551 = scalar_lea.vmem %s3, 6
      %v552 = vld [vmem:[%s551] sm:$0x1]
      %v554 = vlaneseq
      %v555 = vshrl.u32 %v554, 7
      %v556 = vsub.s32 0, %v555
      %v557 = vrot.slane %v552, %v556
      %v559 = vmul.f32 %v549, %v557
      %v560 = vmul.f32 %v550, %v557
      %v561 = vadd.f32 %v547, %v559
      %v562 = vadd.f32 %v548, %v560
      %s563 = scalar_lea.vmem %s3, 7
      %v564 = vld [vmem:[%s563] sm:$0x1]
      %v566 = vlaneseq
      %v567 = vshrl.u32 %v566, 7
      %v568 = vsub.s32 0, %v567
      %v569 = vrot.slane %v564, %v568
      %v571 = vmul.f32 %v380, %v569
      %v572 = vmul.f32 %v385, %v569
      %v573 = vmul.f32 %v569, 0.0
      %v577 = vrot.slane %v571, 1
      %v578 = vrot.slane %v572, 1
      %v579 = vsel %vm413, %v577, %v578
      %v580 = vrot.slane %v573, 1
      %v581 = vsel %vm413, %v578, %v580
      %v584 = vadd.f32 %v561, %v579
      %v585 = vadd.f32 %v562, %v581
      %v586 = vmul.f32 %v380, %v426
      %v587 = vmul.f32 %v385, %v428
      %v588 = vmul.f32 %v427, 0.0
      %s589 = scalar_lea.vmem %s3, 8
      %v590 = vld [vmem:[%s589] sm:$0x1]
      %v592 = vlaneseq
      %v593 = vshrl.u32 %v592, 7
      %v594 = vsub.s32 0, %v593
      %v595 = vrot.slane %v590, %v594
      %v597 = vmul.f32 %v586, %v595
      %v598 = vmul.f32 %v587, %v595
      %v599 = vmul.f32 %v588, %v595
      %v603 = vrot.slane %v597, 2
      %v604 = vrot.slane %v598, 2
      %v605 = vsel %vm449, %v603, %v604
      %v606 = vrot.slane %v599, 2
      %v607 = vsel %vm449, %v604, %v606
      %v610 = vadd.f32 %v584, %v605
      %v611 = vadd.f32 %v585, %v607
      %v612 = vld [vmem:[%s4] sm:$0x1]
      %v614 = vlaneseq
      %v615 = vshrl.u32 %v614, 7
      %v616 = vsub.s32 0, %v615
      %v617 = vrot.slane %v612, %v616
      %v619 = vadd.f32 %v610, %v617
      %v620 = vadd.f32 %v611, %v617
      %v621 = vpack.c.bf16 %v620, %v619
      %v622 = vld [vmem:[%s5] sm:$0xf]
      %v623 = vld [vmem:[%s6] sm:$0x1]
      %v625 = vlaneseq
      %v626 = vshrl.u32 %v625, 7
      %v627 = vsub.s32 0, %v626
      %v628 = vrot.slane %v623, %v627
      %v631 = vsel %vm297, %v621, 0
      %v634 = vsel %vm301, %v622, 0
      %636 = vmatprep.subr.bf16.mxu0 0
      %637 = vmatpush1.bf16.msra.mxu0 %v634
      %638 = vmatprep.subr.bf16.mxu0 0
      %639 = vmatpush1.bf16.msra.mxu0 0
      %640 = vmatprep.subr.bf16.mxu0 0
      %641 = vmatpush1.bf16.msra.mxu0 0
      %642 = vmatprep.subr.bf16.mxu0 0
      %643 = vmatpush1.bf16.msra.mxu0 0
      %644 = vmatprep.subr.bf16.mxu0 0
      %645 = vmatpush1.bf16.msra.mxu0 0
      %646 = vmatprep.subr.bf16.mxu0 0
      %647 = vmatpush1.bf16.msra.mxu0 0
      %648 = vmatprep.subr.bf16.mxu0 0
      %649 = vmatpush1.bf16.msra.mxu0 0
      %650 = vmatprep.subr.bf16.mxu0 0
      %651 = vmatpush1.bf16.msra.mxu0 0
      %652 = vmatprep.subr.bf16.mxu0 0
      %653 = vmatpush1.bf16.msra.mxu0 0
      %654 = vmatprep.subr.bf16.mxu0 0
      %655 = vmatpush1.bf16.msra.mxu0 0
      %656 = vmatprep.subr.bf16.mxu0 0
      %657 = vmatpush1.bf16.msra.mxu0 0
      %658 = vmatprep.subr.bf16.mxu0 0
      %659 = vmatpush1.bf16.msra.mxu0 0
      %660 = vmatprep.subr.bf16.mxu0 0
      %661 = vmatpush1.bf16.msra.mxu0 0
      %662 = vmatprep.subr.bf16.mxu0 0
      %663 = vmatpush1.bf16.msra.mxu0 0
      %664 = vmatprep.subr.bf16.mxu0 0
      %665 = vmatpush1.bf16.msra.mxu0 0
      %666 = vmatprep.subr.bf16.mxu0 0
      %667 = vmatpush1.bf16.msra.mxu0 0
      %668 = vmatprep.mubr.bf16.mxu0 0
      %669 = vmatmul.mubr.bf16.gmra.mrb[0].mxu0 %v631
      %v670 = vpop.f32.mrb[0].mxu0
      %v671 = vadd.f32 %v628, %v670
      %v672 = vpop.f32.mrb[0].mxu0
      %v673 = vpop.f32.mrb[0].mxu0
      %v674 = vadd.f32 %v628, %v673
      %v675 = vpop.f32.mrb[0].mxu0
      %676 = vdwg.mxu0
      %v677 = vmax.f32 %v671, 0.0
      %v678 = vmax.f32 %v674, 0.0
      %v679 = vlaneseq
      %v680 = vand.u32 %v679, 127
      %v681 = vmul.u32 %v349, 2
      %vm682 = vcmp.eq.s32.totalorder %v680, %v681
      %v683 = vsel %vm682, 1, 0
      %v684 = vcvt.s32.f32 %v683
      %v685 = vpack.c.bf16 %v684, %v684
      %v687 = vsel %vm297, %v294, 0
      %v690 = vsel %vm301, %v685, 0
      %692 = vmatprep.subr.bf16.mxu0 0
      %693 = vmatpush1.bf16.msra.mxu0 %v690
      %694 = vmatprep.subr.bf16.mxu0 0
      %695 = vmatpush1.bf16.msra.mxu0 0
      %696 = vmatprep.subr.bf16.mxu0 0
      %697 = vmatpush1.bf16.msra.mxu0 0
      %698 = vmatprep.subr.bf16.mxu0 0
      %699 = vmatpush1.bf16.msra.mxu0 0
      %700 = vmatprep.subr.bf16.mxu0 0
      %701 = vmatpush1.bf16.msra.mxu0 0
      %702 = vmatprep.subr.bf16.mxu0 0
      %703 = vmatpush1.bf16.msra.mxu0 0
      %704 = vmatprep.subr.bf16.mxu0 0
      %705 = vmatpush1.bf16.msra.mxu0 0
      %706 = vmatprep.subr.bf16.mxu0 0
      %707 = vmatpush1.bf16.msra.mxu0 0
      %708 = vmatprep.subr.bf16.mxu0 0
      %709 = vmatpush1.bf16.msra.mxu0 0
      %710 = vmatprep.subr.bf16.mxu0 0
      %711 = vmatpush1.bf16.msra.mxu0 0
      %712 = vmatprep.subr.bf16.mxu0 0
      %713 = vmatpush1.bf16.msra.mxu0 0
      %714 = vmatprep.subr.bf16.mxu0 0
      %715 = vmatpush1.bf16.msra.mxu0 0
      %716 = vmatprep.subr.bf16.mxu0 0
      %717 = vmatpush1.bf16.msra.mxu0 0
      %718 = vmatprep.subr.bf16.mxu0 0
      %719 = vmatpush1.bf16.msra.mxu0 0
      %720 = vmatprep.subr.bf16.mxu0 0
      %721 = vmatpush1.bf16.msra.mxu0 0
      %722 = vmatprep.subr.bf16.mxu0 0
      %723 = vmatpush1.bf16.msra.mxu0 0
      %724 = vmatprep.mubr.bf16.mxu0 0
      %725 = vmatmul.mubr.bf16.gmra.mrb[0].mxu0 %v687
      %v726 = vpop.f32.mrb[0].mxu0
      %v727 = vadd.f32 %v677, %v726
      %v728 = vpop.f32.mrb[0].mxu0
      %v729 = vpop.f32.mrb[0].mxu0
      %v730 = vadd.f32 %v678, %v729
      %v731 = vpop.f32.mrb[0].mxu0
      %732 = vdwg.mxu0
      %v733 = vpack.c.bf16 %v730, %v727
      %v735 = vunpack.c.l.b16 %v733
      %v736 = vunpack.c.h.b16 %v733
      %v737 = vpack.c.b16 %v735, %v735
      %v738 = vpack.c.b16 %v736, %v736
      %vm741 = vcmask 125952
      %742 = vst.msk [vmem:[%s278] sm:$0xf] %vm741, %v737
      %743 = vst.msk [vmem:[%s278 + $0x4] sm:$0xf] %vm741, %v738
      %p744 = scmp.lt.s32.totalorder %s18, 1
      %s745 = scalar_select %p744, %s18, 1
      %s746 = smul.addr %s745, 2
      %s747 = smul.addr %s746, 4
      %s748 = scalar_lea.vmem %s7, %s747
      // Predicated region
      $region49: #{shufflenet_v2_forward.12} parent=47 // pred_check
        %p749 = pneg %p188
      $region50: #{shufflenet_v2_forward.12} parent=47 // pred_check_branch
        %751 = sbr.rel (%p749) target = $region52
      $region51: #{shufflenet_v2_forward.12} parent=47 // pred_region
        _
      $region52: #{shufflenet_v2_forward.12} parent=47 // pred_fallthru
        _
    $region48: #{shufflenet_v2_forward.12} parent=5 // pred_fallthru
      _
    %p752 = scmp.le.s32.totalorder 2, %s13
    // Predicated region
    $region53: #{shufflenet_v2_forward.12} parent=5 // pred_check
      %p753 = pneg %p752
    $region54: #{shufflenet_v2_forward.12} parent=5 // pred_check_branch
      %755 = sbr.rel (%p753) target = $region56
    $region55: #{shufflenet_v2_forward.12} parent=5 // pred_region
      %s756 = ssub.s32 %s13, 2
      // Predicated region
      $region57: #{shufflenet_v2_forward.12} parent=55 // pred_check
        %p757 = pneg %p194
      $region58: #{shufflenet_v2_forward.12} parent=55 // pred_check_branch
        %759 = sbr.rel (%p757) target = $region60
      $region59: #{shufflenet_v2_forward.12} parent=55 // pred_region
        %p760 = scmp.lt.s32.totalorder %s19, 1
        %s761 = scalar_select %p760, %s19, 1
        %s762 = smul.addr %s761, 2
        %s763 = smul.addr %s762, 4
        %s764 = scalar_lea.vmem %s7, %s763
      $region60: #{shufflenet_v2_forward.12} parent=55 // pred_fallthru
        _
    $region56: #{shufflenet_v2_forward.12} parent=5 // pred_fallthru
      _
  $region6: #{shufflenet_v2_forward.12} parent=0 // loop_footer
    %s17 = sadd.s32 1, %s13
  $region7: #{shufflenet_v2_forward.12} parent=0 // loop_footer_branch
    %12 = sbr.rel target = $region3
  $region8: #{shufflenet_v2_forward.12} parent=0 // loop_exit
    _

// kernel: shufflenet_v2_forward.11
$region0: #{shufflenet_v2_forward.11}
  #allocation0 [shape = 'u32[]', space=smem, size = 0x4, offset = 0x4, fixed_abs, tag = 'smem constant byte address 0x4 - core index']
  #allocation1 [shape = 'u32[144,128]{1,0:T(1,128)}', space=vmem, size = 0x12000, scoped, tag = 'internal scratch']
  %s0 = inlined_call_operand.vmem [shape: bf16[2,100,8], index: 0, kind: input, shape index: {}]
  %s1 = inlined_call_operand.vmem [shape: f32[9,1,8], index: 1, kind: input, shape index: {}]
  %s2 = inlined_call_operand.vmem [shape: f32[1,8], index: 2, kind: input, shape index: {}]
  %s3 = inlined_call_operand.vmem [shape: bf16[8,16], index: 3, kind: input, shape index: {}]
  %s4 = inlined_call_operand.vmem [shape: f32[1,16], index: 4, kind: input, shape index: {}]
  %s5 = inlined_call_operand.vmem [shape: bf16[8,8], index: 5, kind: input, shape index: {}]
  %s6 = inlined_call_operand.vmem [shape: f32[1,8], index: 6, kind: input, shape index: {}]
  %s7 = inlined_call_operand.vmem [shape: f32[9,1,8], index: 7, kind: input, shape index: {}]
  %s8 = inlined_call_operand.vmem [shape: f32[1,8], index: 8, kind: input, shape index: {}]
  %s9 = inlined_call_operand.vmem [shape: bf16[8,16], index: 9, kind: input, shape index: {}]
  %s10 = inlined_call_operand.vmem [shape: f32[1,16], index: 10, kind: input, shape index: {}]
  %s11 = inlined_call_operand.vmem [shape: bf16[2,16,16], index: 11, kind: output, shape index: {}]
  %s12 = sld [smem:[#allocation0]]
  $region77: #{shufflenet_v2_forward.11} parent=0
    _
  %s14 = ssub.s32 1, %s12
  %s15 = scalar_select 0, %s14, %s12
  loop: start=0, step=1, limit=4
  $region2: #{shufflenet_v2_forward.11} parent=0 // loop_pre_header
    _
  $region3: #{shufflenet_v2_forward.11} parent=0 // loop_header
    %s17 = sphi 0, %s21
    %p18 = scmp.ge.s32.totalorder %s17, 4
    %s27 = sphi 0, %s29
    %s30 = sphi 0, %s27
    %s31 = sphi 0, %s30
    %s47 = sphi 0, %s31
    %s51 = sphi 0, %s51
    %s53 = sphi 0, %s51
    %s54 = sphi 0, %s53
    %s68 = sphi 0, %s54
    %s72 = sphi 0, %s72
    %s74 = sphi 0, %s72
    %s75 = sphi 0, %s74
    %s89 = sphi 0, %s75
    %s93 = sphi 0, %s93
    %s95 = sphi 0, %s93
    %s96 = sphi 0, %s95
    %s110 = sphi 0, %s96
    %s114 = sphi 0, %s114
    %s116 = sphi 0, %s114
    %s117 = sphi 0, %s116
    %s131 = sphi 0, %s117
    %s135 = sphi 0, %s135
    %s137 = sphi 0, %s135
    %s138 = sphi 0, %s137
    %s152 = sphi 0, %s138
    %s156 = sphi 0, %s156
    %s158 = sphi 0, %s156
    %s159 = sphi 0, %s158
    %s173 = sphi 0, %s159
    %s177 = sphi 0, %s177
    %s179 = sphi 0, %s177
    %s180 = sphi 0, %s179
    %s194 = sphi 0, %s180
    %s198 = sphi 0, %s198
    %s200 = sphi 0, %s198
    %s201 = sphi 0, %s200
    %s215 = sphi 0, %s201
    %s219 = sphi 0, %s219
    %s221 = sphi 0, %s219
    %s222 = sphi 0, %s221
    %s236 = sphi 0, %s222
    %s240 = sphi 0, %s240
    %s242 = sphi 0, %s240
    %s243 = sphi 0, %s242
    %s257 = sphi 0, %s243
    %s263 = sphi 0, %s265
    %s266 = sphi 0, %s263
    %s267 = sphi 0, %s266
    %s283 = sphi 0, %s267
  $region4: #{shufflenet_v2_forward.11} parent=0 // loop_header_branch
    %20 = sbr.rel (%p18) target = $region8
  $region5: #{shufflenet_v2_forward.11} parent=0 // loop_body
    %s22 = ssub.s32 %s17, 1
    %s23 = ssub.s32 %s17, 2
    %s24 = sadd.s32 %s17, 1
    %s25 = ssub.s32 %s17, %s24
    %p26 = scmp.eq.s32.totalorder %s25, 0
    %s28 = sadd.s32 %s27, 1
    %s29 = scalar_select %p26, %s27, %s28
    %p32 = pneg %p26
    %p33 = scmp.eq.s32.totalorder %s17, 1
    %p34 = por %p32, %p33
    %p35 = scmp.ne.s32.totalorder %s27, %s30
    %p36 = scmp.eq.s32.totalorder %s17, 0
    %p37 = por %p35, %p36
    %p38 = scmp.ne.s32.totalorder %s27, %s30
    %p39 = scmp.eq.s32.totalorder %s22, 1
    %p40 = por %p38, %p39
    %p41 = scmp.ne.s32.totalorder %s30, %s31
    %p42 = scmp.eq.s32.totalorder %s22, 0
    %p43 = por %p41, %p42
    %p44 = scmp.ne.s32.totalorder %s30, %s31
    %p45 = scmp.eq.s32.totalorder %s23, 1
    %p46 = por %p44, %p45
    %p48 = scmp.ne.s32.totalorder %s31, %s47
    %p49 = scmp.eq.s32.totalorder %s23, 0
    %p50 = por %p48, %p49
    %s52 = sadd.s32 %s51, 1
    %p55 = scmp.eq.s32.totalorder %s17, 1
    %p56 = scmp.ne.s32.totalorder %s51, %s53
    %p57 = scmp.eq.s32.totalorder %s17, 0
    %p58 = por %p56, %p57
    %p59 = scmp.ne.s32.totalorder %s51, %s53
    %p60 = scmp.eq.s32.totalorder %s22, 1
    %p61 = por %p59, %p60
    %p62 = scmp.ne.s32.totalorder %s53, %s54
    %p63 = scmp.eq.s32.totalorder %s22, 0
    %p64 = por %p62, %p63
    %p65 = scmp.ne.s32.totalorder %s53, %s54
    %p66 = scmp.eq.s32.totalorder %s23, 1
    %p67 = por %p65, %p66
    %p69 = scmp.ne.s32.totalorder %s54, %s68
    %p70 = scmp.eq.s32.totalorder %s23, 0
    %p71 = por %p69, %p70
    %s73 = sadd.s32 %s72, 1
    %p76 = scmp.eq.s32.totalorder %s17, 1
    %p77 = scmp.ne.s32.totalorder %s72, %s74
    %p78 = scmp.eq.s32.totalorder %s17, 0
    %p79 = por %p77, %p78
    %p80 = scmp.ne.s32.totalorder %s72, %s74
    %p81 = scmp.eq.s32.totalorder %s22, 1
    %p82 = por %p80, %p81
    %p83 = scmp.ne.s32.totalorder %s74, %s75
    %p84 = scmp.eq.s32.totalorder %s22, 0
    %p85 = por %p83, %p84
    %p86 = scmp.ne.s32.totalorder %s74, %s75
    %p87 = scmp.eq.s32.totalorder %s23, 1
    %p88 = por %p86, %p87
    %p90 = scmp.ne.s32.totalorder %s75, %s89
    %p91 = scmp.eq.s32.totalorder %s23, 0
    %p92 = por %p90, %p91
    %s94 = sadd.s32 %s93, 1
    %p97 = scmp.eq.s32.totalorder %s17, 1
    %p98 = scmp.ne.s32.totalorder %s93, %s95
    %p99 = scmp.eq.s32.totalorder %s17, 0
    %p100 = por %p98, %p99
    %p101 = scmp.ne.s32.totalorder %s93, %s95
    %p102 = scmp.eq.s32.totalorder %s22, 1
    %p103 = por %p101, %p102
    %p104 = scmp.ne.s32.totalorder %s95, %s96
    %p105 = scmp.eq.s32.totalorder %s22, 0
    %p106 = por %p104, %p105
    %p107 = scmp.ne.s32.totalorder %s95, %s96
    %p108 = scmp.eq.s32.totalorder %s23, 1
    %p109 = por %p107, %p108
    %p111 = scmp.ne.s32.totalorder %s96, %s110
    %p112 = scmp.eq.s32.totalorder %s23, 0
    %p113 = por %p111, %p112
    %s115 = sadd.s32 %s114, 1
    %p118 = scmp.eq.s32.totalorder %s17, 1
    %p119 = scmp.ne.s32.totalorder %s114, %s116
    %p120 = scmp.eq.s32.totalorder %s17, 0
    %p121 = por %p119, %p120
    %p122 = scmp.ne.s32.totalorder %s114, %s116
    %p123 = scmp.eq.s32.totalorder %s22, 1
    %p124 = por %p122, %p123
    %p125 = scmp.ne.s32.totalorder %s116, %s117
    %p126 = scmp.eq.s32.totalorder %s22, 0
    %p127 = por %p125, %p126
    %p128 = scmp.ne.s32.totalorder %s116, %s117
    %p129 = scmp.eq.s32.totalorder %s23, 1
    %p130 = por %p128, %p129
    %p132 = scmp.ne.s32.totalorder %s117, %s131
    %p133 = scmp.eq.s32.totalorder %s23, 0
    %p134 = por %p132, %p133
    %s136 = sadd.s32 %s135, 1
    %p139 = scmp.eq.s32.totalorder %s17, 1
    %p140 = scmp.ne.s32.totalorder %s135, %s137
    %p141 = scmp.eq.s32.totalorder %s17, 0
    %p142 = por %p140, %p141
    %p143 = scmp.ne.s32.totalorder %s135, %s137
    %p144 = scmp.eq.s32.totalorder %s22, 1
    %p145 = por %p143, %p144
    %p146 = scmp.ne.s32.totalorder %s137, %s138
    %p147 = scmp.eq.s32.totalorder %s22, 0
    %p148 = por %p146, %p147
    %p149 = scmp.ne.s32.totalorder %s137, %s138
    %p150 = scmp.eq.s32.totalorder %s23, 1
    %p151 = por %p149, %p150
    %p153 = scmp.ne.s32.totalorder %s138, %s152
    %p154 = scmp.eq.s32.totalorder %s23, 0
    %p155 = por %p153, %p154
    %s157 = sadd.s32 %s156, 1
    %p160 = scmp.eq.s32.totalorder %s17, 1
    %p161 = scmp.ne.s32.totalorder %s156, %s158
    %p162 = scmp.eq.s32.totalorder %s17, 0
    %p163 = por %p161, %p162
    %p164 = scmp.ne.s32.totalorder %s156, %s158
    %p165 = scmp.eq.s32.totalorder %s22, 1
    %p166 = por %p164, %p165
    %p167 = scmp.ne.s32.totalorder %s158, %s159
    %p168 = scmp.eq.s32.totalorder %s22, 0
    %p169 = por %p167, %p168
    %p170 = scmp.ne.s32.totalorder %s158, %s159
    %p171 = scmp.eq.s32.totalorder %s23, 1
    %p172 = por %p170, %p171
    %p174 = scmp.ne.s32.totalorder %s159, %s173
    %p175 = scmp.eq.s32.totalorder %s23, 0
    %p176 = por %p174, %p175
    %s178 = sadd.s32 %s177, 1
    %p181 = scmp.eq.s32.totalorder %s17, 1
    %p182 = scmp.ne.s32.totalorder %s177, %s179
    %p183 = scmp.eq.s32.totalorder %s17, 0
    %p184 = por %p182, %p183
    %p185 = scmp.ne.s32.totalorder %s177, %s179
    %p186 = scmp.eq.s32.totalorder %s22, 1
    %p187 = por %p185, %p186
    %p188 = scmp.ne.s32.totalorder %s179, %s180
    %p189 = scmp.eq.s32.totalorder %s22, 0
    %p190 = por %p188, %p189
    %p191 = scmp.ne.s32.totalorder %s179, %s180
    %p192 = scmp.eq.s32.totalorder %s23, 1
    %p193 = por %p191, %p192
    %p195 = scmp.ne.s32.totalorder %s180, %s194
    %p196 = scmp.eq.s32.totalorder %s23, 0
    %p197 = por %p195, %p196
    %s199 = sadd.s32 %s198, 1
    %p202 = scmp.eq.s32.totalorder %s17, 1
    %p203 = scmp.ne.s32.totalorder %s198, %s200
    %p204 = scmp.eq.s32.totalorder %s17, 0
    %p205 = por %p203, %p204
    %p206 = scmp.ne.s32.totalorder %s198, %s200
    %p207 = scmp.eq.s32.totalorder %s22, 1
    %p208 = por %p206, %p207
    %p209 = scmp.ne.s32.totalorder %s200, %s201
    %p210 = scmp.eq.s32.totalorder %s22, 0
    %p211 = por %p209, %p210
    %p212 = scmp.ne.s32.totalorder %s200, %s201
    %p213 = scmp.eq.s32.totalorder %s23, 1
    %p214 = por %p212, %p213
    %p216 = scmp.ne.s32.totalorder %s201, %s215
    %p217 = scmp.eq.s32.totalorder %s23, 0
    %p218 = por %p216, %p217
    %s220 = sadd.s32 %s219, 1
    %p223 = scmp.eq.s32.totalorder %s17, 1
    %p224 = scmp.ne.s32.totalorder %s219, %s221
    %p225 = scmp.eq.s32.totalorder %s17, 0
    %p226 = por %p224, %p225
    %p227 = scmp.ne.s32.totalorder %s219, %s221
    %p228 = scmp.eq.s32.totalorder %s22, 1
    %p229 = por %p227, %p228
    %p230 = scmp.ne.s32.totalorder %s221, %s222
    %p231 = scmp.eq.s32.totalorder %s22, 0
    %p232 = por %p230, %p231
    %p233 = scmp.ne.s32.totalorder %s221, %s222
    %p234 = scmp.eq.s32.totalorder %s23, 1
    %p235 = por %p233, %p234
    %p237 = scmp.ne.s32.totalorder %s222, %s236
    %p238 = scmp.eq.s32.totalorder %s23, 0
    %p239 = por %p237, %p238
    %s241 = sadd.s32 %s240, 1
    %p244 = scmp.eq.s32.totalorder %s17, 1
    %p245 = scmp.ne.s32.totalorder %s240, %s242
    %p246 = scmp.eq.s32.totalorder %s17, 0
    %p247 = por %p245, %p246
    %p248 = scmp.ne.s32.totalorder %s240, %s242
    %p249 = scmp.eq.s32.totalorder %s22, 1
    %p250 = por %p248, %p249
    %p251 = scmp.ne.s32.totalorder %s242, %s243
    %p252 = scmp.eq.s32.totalorder %s22, 0
    %p253 = por %p251, %p252
    %p254 = scmp.ne.s32.totalorder %s242, %s243
    %p255 = scmp.eq.s32.totalorder %s23, 1
    %p256 = por %p254, %p255
    %p258 = scmp.ne.s32.totalorder %s243, %s257
    %p259 = scmp.eq.s32.totalorder %s23, 0
    %p260 = por %p258, %p259
    %s261 = ssub.s32 %s17, %s24
    %p262 = scmp.eq.s32.totalorder %s261, 0
    %s264 = sadd.s32 %s263, 1
    %s265 = scalar_select %p262, %s263, %s264
    %p268 = pneg %p262
    %p269 = scmp.eq.s32.totalorder %s17, 1
    %p270 = por %p268, %p269
    %p271 = scmp.ne.s32.totalorder %s263, %s266
    %p272 = scmp.eq.s32.totalorder %s17, 0
    %p273 = por %p271, %p272
    %p274 = scmp.ne.s32.totalorder %s263, %s266
    %p275 = scmp.eq.s32.totalorder %s22, 1
    %p276 = por %p274, %p275
    %p277 = scmp.ne.s32.totalorder %s266, %s267
    %p278 = scmp.eq.s32.totalorder %s22, 0
    %p279 = por %p277, %p278
    %p280 = scmp.ne.s32.totalorder %s266, %s267
    %p281 = scmp.eq.s32.totalorder %s23, 1
    %p282 = por %p280, %p281
    %p284 = scmp.ne.s32.totalorder %s267, %s283
    %p285 = scmp.eq.s32.totalorder %s23, 0
    %p286 = por %p284, %p285
    %p287 = scmp.le.s32.totalorder 1, %s17
    %p288 = scmp.lt.s32.totalorder %s17, 3
    %p289 = pnand %p287, %p288
    %p290 = pneg %p289
    // Predicated region
    $region9: #{shufflenet_v2_forward.11} parent=5 // pred_check
      _
    $region10: #{shufflenet_v2_forward.11} parent=5 // pred_check_branch
      %292 = sbr.rel (%p289) target = $region12
    $region11: #{shufflenet_v2_forward.11} parent=5 // pred_region
      %s293 = ssub.s32 %s17, 1
      // Predicated region
      $region13: #{shufflenet_v2_forward.11} parent=11 // pred_check
        %p294 = pneg %p64
      $region14: #{shufflenet_v2_forward.11} parent=11 // pred_check_branch
        %296 = sbr.rel (%p294) target = $region16
      $region15: #{shufflenet_v2_forward.11} parent=11 // pred_region
        _
      $region16: #{shufflenet_v2_forward.11} parent=11 // pred_fallthru
        _
      // Predicated region
      $region17: #{shufflenet_v2_forward.11} parent=11 // pred_check
        %p297 = pneg %p85
      $region18: #{shufflenet_v2_forward.11} parent=11 // pred_check_branch
        %299 = sbr.rel (%p297) target = $region20
      $region19: #{shufflenet_v2_forward.11} parent=11 // pred_region
        _
      $region20: #{shufflenet_v2_forward.11} parent=11 // pred_fallthru
        _
      // Predicated region
      $region21: #{shufflenet_v2_forward.11} parent=11 // pred_check
        %p300 = pneg %p106
      $region22: #{shufflenet_v2_forward.11} parent=11 // pred_check_branch
        %302 = sbr.rel (%p300) target = $region24
      $region23: #{shufflenet_v2_forward.11} parent=11 // pred_region
        _
      $region24: #{shufflenet_v2_forward.11} parent=11 // pred_fallthru
        _
      // Predicated region
      $region25: #{shufflenet_v2_forward.11} parent=11 // pred_check
        %p303 = pneg %p127
      $region26: #{shufflenet_v2_forward.11} parent=11 // pred_check_branch
        %305 = sbr.rel (%p303) target = $region28
      $region27: #{shufflenet_v2_forward.11} parent=11 // pred_region
        _
      $region28: #{shufflenet_v2_forward.11} parent=11 // pred_fallthru
        _
      // Predicated region
      $region29: #{shufflenet_v2_forward.11} parent=11 // pred_check
        %p306 = pneg %p148
      $region30: #{shufflenet_v2_forward.11} parent=11 // pred_check_branch
        %308 = sbr.rel (%p306) target = $region32
      $region31: #{shufflenet_v2_forward.11} parent=11 // pred_region
        _
      $region32: #{shufflenet_v2_forward.11} parent=11 // pred_fallthru
        _
      // Predicated region
      $region33: #{shufflenet_v2_forward.11} parent=11 // pred_check
        %p309 = pneg %p169
      $region34: #{shufflenet_v2_forward.11} parent=11 // pred_check_branch
        %311 = sbr.rel (%p309) target = $region36
      $region35: #{shufflenet_v2_forward.11} parent=11 // pred_region
        _
      $region36: #{shufflenet_v2_forward.11} parent=11 // pred_fallthru
        _
      // Predicated region
      $region37: #{shufflenet_v2_forward.11} parent=11 // pred_check
        %p312 = pneg %p190
      $region38: #{shufflenet_v2_forward.11} parent=11 // pred_check_branch
        %314 = sbr.rel (%p312) target = $region40
      $region39: #{shufflenet_v2_forward.11} parent=11 // pred_region
        _
      $region40: #{shufflenet_v2_forward.11} parent=11 // pred_fallthru
        _
      // Predicated region
      $region41: #{shufflenet_v2_forward.11} parent=11 // pred_check
        %p315 = pneg %p211
      $region42: #{shufflenet_v2_forward.11} parent=11 // pred_check_branch
        %317 = sbr.rel (%p315) target = $region44
      $region43: #{shufflenet_v2_forward.11} parent=11 // pred_region
        _
      $region44: #{shufflenet_v2_forward.11} parent=11 // pred_fallthru
        _
      // Predicated region
      $region45: #{shufflenet_v2_forward.11} parent=11 // pred_check
        %p318 = pneg %p232
      $region46: #{shufflenet_v2_forward.11} parent=11 // pred_check_branch
        %320 = sbr.rel (%p318) target = $region48
      $region47: #{shufflenet_v2_forward.11} parent=11 // pred_region
        _
      $region48: #{shufflenet_v2_forward.11} parent=11 // pred_fallthru
        _
      // Predicated region
      $region49: #{shufflenet_v2_forward.11} parent=11 // pred_check
        %p321 = pneg %p253
      $region50: #{shufflenet_v2_forward.11} parent=11 // pred_check_branch
        %323 = sbr.rel (%p321) target = $region52
      $region51: #{shufflenet_v2_forward.11} parent=11 // pred_region
        _
      $region52: #{shufflenet_v2_forward.11} parent=11 // pred_fallthru
        _
    $region12: #{shufflenet_v2_forward.11} parent=5 // pred_fallthru
      _
    %p324 = scmp.lt.s32.totalorder %s17, 2
    // Predicated region
    $region53: #{shufflenet_v2_forward.11} parent=5 // pred_check
      %p325 = pneg %p324
    $region54: #{shufflenet_v2_forward.11} parent=5 // pred_check_branch
      %327 = sbr.rel (%p325) target = $region56
    $region55: #{shufflenet_v2_forward.11} parent=5 // pred_region
      // Predicated region
      $region57: #{shufflenet_v2_forward.11} parent=55 // pred_check
        %p328 = pneg %p37
      $region58: #{shufflenet_v2_forward.11} parent=55 // pred_check_branch
        %330 = sbr.rel (%p328) target = $region60
      $region59: #{shufflenet_v2_forward.11} parent=55 // pred_region
        %p331 = scmp.lt.s32.totalorder %s17, 1
        %s332 = scalar_select %p331, %s17, 1
        %s333 = smul.addr %s332, 13
        %s334 = smul.addr %s333, 4
        %s335 = scalar_lea.vmem %s0, %s334
      $region60: #{shufflenet_v2_forward.11} parent=55 // pred_fallthru
        _
    $region56: #{shufflenet_v2_forward.11} parent=5 // pred_fallthru
      _
    %p336 = scmp.le.s32.totalorder 1, %s17
    %p337 = scmp.lt.s32.totalorder %s17, 3
    %p338 = pnand %p336, %p337
    %p339 = pneg %p338
    // Predicated region
    $region61: #{shufflenet_v2_forward.11} parent=5 // pred_check
      _
    $region62: #{shufflenet_v2_forward.11} parent=5 // pred_check_branch
      %341 = sbr.rel (%p338) target = $region64
    $region63: #{shufflenet_v2_forward.11} parent=5 // pred_region
      %s342 = ssub.s32 %s17, 1
      %p343 = scmp.lt.s32.totalorder %s22, 1
      %s344 = scalar_select %p343, %s22, 1
      %s345 = smul.addr %s344, 13
      %s346 = smul.addr %s345, 4
      %s347 = scalar_lea.vmem %s0, %s346
      %p348 = pneg %p43
      %p349 = pneg %p40
      %p350 = pneg %p64
      %p351 = pneg %p61
      %p352 = pneg %p85
      %p353 = pneg %p82
      %p354 = pneg %p106
      %p355 = pneg %p103
      %p356 = pneg %p127
      %p357 = pneg %p124
      %p358 = pneg %p148
      %p359 = pneg %p145
      %p360 = pneg %p169
      %p361 = pneg %p166
      %p362 = pneg %p190
      %p363 = pneg %p187
      %p364 = pneg %p211
      %p365 = pneg %p208
      %p366 = pneg %p232
      %p367 = pneg %p229
      %p368 = pneg %p253
      %p369 = pneg %p250
      %p370 = pneg %p279
      %p371 = pneg %p276
      %p372 = scmp.lt.s32.totalorder %s22, 1
      %s373 = scalar_select %p372, %s22, 1
      %s374 = smul.addr %s373, 2
      %s375 = smul.addr %s374, 4
      %s376 = scalar_lea.vmem %s11, %s375
      %p377 = scmp.lt.s32.totalorder %s22, 1
      %s378 = scalar_select %p377, %s22, 1
      %s379 = smul.addr %s378, 13
      %s380 = smul.addr %s379, 4
      %s381 = scalar_lea.vmem %s0, %s380
      %p382 = scmp.lt.s32.totalorder %s22, 1
      %s383 = scalar_select %p382, %s22, 1
      %s384 = smul.addr %s383, 2
      %s385 = smul.addr %s384, 4
      %s386 = scalar_lea.vmem %s11, %s385
      %v388 = vld [vmem:[%s381] sm:$0xf]
      %v389 = vld [vmem:[%s381 + $0x4] sm:$0xf]
      %v390 = vld [vmem:[%s381 + $0x8] sm:$0xf]
      %v391 = vld [vmem:[%s381 + $0xc] sm:$0xf]
      %v392 = vld [vmem:[%s381 + $0x10] sm:$0xf]
      %v393 = vld [vmem:[%s381 + $0x14] sm:$0xf]
      %v394 = vld [vmem:[%s381 + $0x18] sm:$0xf]
      %v395 = vld [vmem:[%s381 + $0x1c] sm:$0xf]
      %v396 = vld [vmem:[%s381 + $0x20] sm:$0xf]
      %v397 = vld [vmem:[%s381 + $0x24] sm:$0xf]
      %v398 = vld [vmem:[%s381 + $0x28] sm:$0xf]
      %v399 = vld [vmem:[%s381 + $0x2c] sm:$0xf]
      %v400 = vld [vmem:[%s381 + $0x30] sm:$0x3]
      %v401 = vld [vmem:[%s5] sm:$0xf]
      %v402 = vld [vmem:[%s6] sm:$0x1]
      %v404 = vlaneseq
      %v405 = vshrl.u32 %v404, 7
      %v406 = vsub.s32 0, %v405
      %v407 = vrot.slane %v402, %v406
      %v422 = vunpack.c.l.b16 %v388
      %v423 = vunpack.c.l.b16 %v389
      %v424 = vunpack.c.l.b16 %v390
      %v425 = vunpack.c.l.b16 %v391
      %v426 = vunpack.c.l.b16 %v392
      %v427 = vunpack.c.l.b16 %v393
      %v428 = vunpack.c.l.b16 %v394
      %v429 = vunpack.c.l.b16 %v395
      %v430 = vunpack.c.l.b16 %v396
      %v431 = vunpack.c.l.b16 %v397
      %v432 = vunpack.c.l.b16 %v398
      %v433 = vunpack.c.l.b16 %v399
      %v434 = vunpack.c.l.b16 %v400
      %v435 = vpack.c.b16 %v423, %v422
      %v436 = vpack.c.b16 %v425, %v424
      %v437 = vpack.c.b16 %v427, %v426
      %v438 = vpack.c.b16 %v429, %v428
      %v439 = vpack.c.b16 %v431, %v430
      %v440 = vpack.c.b16 %v433, %v432
      %v441 = vpack.c.b16 %v434, %v434
      %vm442 = vcmask 64512
      %v444 = vsel %vm442, %v435, 0
      %v447 = vsel %vm442, %v436, 0
      %v450 = vsel %vm442, %v437, 0
      %v453 = vsel %vm442, %v438, 0
      %v456 = vsel %vm442, %v439, 0
      %v459 = vsel %vm442, %v440, 0
      %v462 = vsel %vm442, %v441, 0
      %vm464 = vcmask 1043456
      %v466 = vsel %vm464, %v401, 0
      %468 = vmatprep.subr.bf16.mxu0 0
      %469 = vmatpush1.bf16.msra.mxu0 %v466
      %470 = vmatprep.subr.bf16.mxu0 0
      %471 = vmatpush1.bf16.msra.mxu0 0
      %472 = vmatprep.subr.bf16.mxu0 0
      %473 = vmatpush1.bf16.msra.mxu0 0
      %474 = vmatprep.subr.bf16.mxu0 0
      %475 = vmatpush1.bf16.msra.mxu0 0
      %476 = vmatprep.subr.bf16.mxu0 0
      %477 = vmatpush1.bf16.msra.mxu0 0
      %478 = vmatprep.subr.bf16.mxu0 0
      %479 = vmatpush1.bf16.msra.mxu0 0
      %480 = vmatprep.subr.bf16.mxu0 0
      %481 = vmatpush1.bf16.msra.mxu0 0
      %482 = vmatprep.subr.bf16.mxu0 0
      %483 = vmatpush1.bf16.msra.mxu0 0
      %484 = vmatprep.subr.bf16.mxu0 0
      %485 = vmatpush1.bf16.msra.mxu0 0
      %486 = vmatprep.subr.bf16.mxu0 0
      %487 = vmatpush1.bf16.msra.mxu0 0
      %488 = vmatprep.subr.bf16.mxu0 0
      %489 = vmatpush1.bf16.msra.mxu0 0
      %490 = vmatprep.subr.bf16.mxu0 0
      %491 = vmatpush1.bf16.msra.mxu0 0
      %492 = vmatprep.subr.bf16.mxu0 0
      %493 = vmatpush1.bf16.msra.mxu0 0
      %494 = vmatprep.subr.bf16.mxu0 0
      %495 = vmatpush1.bf16.msra.mxu0 0
      %496 = vmatprep.subr.bf16.mxu0 0
      %497 = vmatpush1.bf16.msra.mxu0 0
      %498 = vmatprep.subr.bf16.mxu0 0
      %499 = vmatpush1.bf16.msra.mxu0 0
      %500 = vmatprep.mubr.bf16.mxu0 0
      %501 = vmatmul.mubr.bf16.gmra.mrb[0].mxu0 %v444
      %v502 = vpop.f32.mrb[0].mxu0
      %v503 = vadd.f32 %v407, %v502
      %v504 = vpop.f32.mrb[0].mxu0
      %v505 = vpop.f32.mrb[0].mxu0
      %v506 = vadd.f32 %v407, %v505
      %v507 = vpop.f32.mrb[0].mxu0
      %508 = vmatprep.mubr.bf16.mxu0 0
      %509 = vmatmul.mubr.bf16.gmra.mrb[0].mxu0 %v447
      %v510 = vpop.f32.mrb[0].mxu0
      %v511 = vadd.f32 %v407, %v510
      %v512 = vpop.f32.mrb[0].mxu0
      %v513 = vpop.f32.mrb[0].mxu0
      %v514 = vadd.f32 %v407, %v513
      %v515 = vpop.f32.mrb[0].mxu0
      %516 = vmatprep.mubr.bf16.mxu0 0
      %517 = vmatmul.mubr.bf16.gmra.mrb[0].mxu0 %v450
      %v518 = vpop.f32.mrb[0].mxu0
      %v519 = vadd.f32 %v407, %v518
      %v520 = vpop.f32.mrb[0].mxu0
      %v521 = vpop.f32.mrb[0].mxu0
      %v522 = vadd.f32 %v407, %v521
      %v523 = vpop.f32.mrb[0].mxu0
      %524 = vmatprep.mubr.bf16.mxu0 0
      %525 = vmatmul.mubr.bf16.gmra.mrb[0].mxu0 %v453
      %v526 = vpop.f32.mrb[0].mxu0
      %v527 = vadd.f32 %v407, %v526
      %v528 = vpop.f32.mrb[0].mxu0
      %v529 = vpop.f32.mrb[0].mxu0
      %v530 = vadd.f32 %v407, %v529
      %v531 = vpop.f32.mrb[0].mxu0
      %532 = vmatprep.mubr.bf16.mxu0 0
      %533 = vmatmul.mubr.bf16.gmra.mrb[0].mxu0 %v456
      %v534 = vpop.f32.mrb[0].mxu0
      %v535 = vadd.f32 %v407, %v534
      %v536 = vpop.f32.mrb[0].mxu0
      %v537 = vpop.f32.mrb[0].mxu0
      %v538 = vadd.f32 %v407, %v537
      %v539 = vpop.f32.mrb[0].mxu0
      %540 = vmatprep.mubr.bf16.mxu0 0
      %541 = vmatmul.mubr.bf16.gmra.mrb[0].mxu0 %v459
      %v542 = vpop.f32.mrb[0].mxu0
      %v543 = vadd.f32 %v407, %v542
      %v544 = vpop.f32.mrb[0].mxu0
      %v545 = vpop.f32.mrb[0].mxu0
      %v546 = vadd.f32 %v407, %v545
      %v547 = vpop.f32.mrb[0].mxu0
      %548 = vmatprep.mubr.bf16.mxu0 0
      %549 = vmatmul.mubr.bf16.gmra.mrb[0].mxu0 %v462
      %v550 = vpop.f32.mrb[0].mxu0
      %v551 = vpop.f32.mrb[0].mxu0
      %v552 = vpop.f32.mrb[0].mxu0
      %v553 = vpop.f32.mrb[0].mxu0
      %554 = vdwg.mxu0
      %v555 = vmax.f32 %v503, 0.0
      %v556 = vmax.f32 %v506, 0.0
      %v557 = vmax.f32 %v511, 0.0
      %v558 = vmax.f32 %v514, 0.0
      %v559 = vmax.f32 %v519, 0.0
      %v560 = vmax.f32 %v522, 0.0
      %v561 = vmax.f32 %v527, 0.0
      %v562 = vmax.f32 %v530, 0.0
      %v563 = vmax.f32 %v535, 0.0
      %v564 = vmax.f32 %v538, 0.0
      %v565 = vmax.f32 %v543, 0.0
      %v566 = vmax.f32 %v546, 0.0
      %v567 = vlaneseq
      %v568 = vshrl.u32 %v567, 7
      %v569 = vadd.s32 %v568, 8
      %v570 = vadd.s32 %v568, 16
      %v571 = vadd.s32 %v568, 24
      %v572 = vadd.s32 %v568, 32
      %v573 = vadd.s32 %v568, 40
      %v574 = vadd.s32 %v568, 48
      %v575 = vadd.s32 %v568, 56
      %v576 = vadd.s32 %v568, 64
      %v577 = vadd.s32 %v568, 72
      %v578 = vadd.s32 %v568, 80
      %v579 = vadd.s32 %v568, 88
      %v580 = vcvt.s32.f32 %v568
      %v581 = vcvt.s32.f32 %v569
      %v582 = vcvt.s32.f32 %v570
      %v583 = vcvt.s32.f32 %v571
      %v584 = vcvt.s32.f32 %v572
      %v585 = vcvt.s32.f32 %v573
      %v586 = vcvt.s32.f32 %v574
      %v587 = vcvt.s32.f32 %v575
      %v588 = vcvt.s32.f32 %v576
      %v589 = vcvt.s32.f32 %v577
      %v590 = vcvt.s32.f32 %v578
      %v591 = vcvt.s32.f32 %v579
      %v592 = vadd.f32 %v580, 0.5
      %v593 = vadd.f32 %v581, 0.5
      %v594 = vadd.f32 %v582, 0.5
      %v595 = vadd.f32 %v583, 0.5
      %v596 = vadd.f32 %v584, 0.5
      %v597 = vadd.f32 %v585, 0.5
      %v598 = vadd.f32 %v586, 0.5
      %v599 = vadd.f32 %v587, 0.5
      %v600 = vadd.f32 %v588, 0.5
      %v601 = vadd.f32 %v589, 0.5
      %v602 = vadd.f32 %v590, 0.5
      %v603 = vadd.f32 %v591, 0.5
      %v604 = vmul.f32 %v592, 0.04
      %v605 = vmul.f32 %v593, 0.04
      %v606 = vmul.f32 %v594, 0.04
      %v607 = vmul.f32 %v595, 0.04
      %v608 = vmul.f32 %v596, 0.04
      %v609 = vmul.f32 %v597, 0.04
      %v610 = vmul.f32 %v598, 0.04
      %v611 = vmul.f32 %v599, 0.04
      %v612 = vmul.f32 %v600, 0.04
      %v613 = vmul.f32 %v601, 0.04
      %v614 = vmul.f32 %v602, 0.04
      %v615 = vmul.f32 %v603, 0.04
      %v616 = vfloor.f32 %v604
      %v617 = vfloor.f32 %v605
      %v618 = vfloor.f32 %v606
      %v619 = vfloor.f32 %v607
      %v620 = vfloor.f32 %v608
      %v621 = vfloor.f32 %v609
      %v622 = vfloor.f32 %v610
      %v623 = vfloor.f32 %v611
      %v624 = vfloor.f32 %v612
      %v625 = vfloor.f32 %v613
      %v626 = vfloor.f32 %v614
      %v627 = vfloor.f32 %v615
      %v628 = vmul.f32 %v616, 25.0
      %v629 = vmul.f32 %v617, 25.0
      %v630 = vmul.f32 %v618, 25.0
      %v631 = vmul.f32 %v619, 25.0
      %v632 = vmul.f32 %v620, 25.0
      %v633 = vmul.f32 %v621, 25.0
      %v634 = vmul.f32 %v622, 25.0
      %v635 = vmul.f32 %v623, 25.0
      %v636 = vmul.f32 %v624, 25.0
      %v637 = vmul.f32 %v625, 25.0
      %v638 = vmul.f32 %v626, 25.0
      %v639 = vmul.f32 %v627, 25.0
      %v640 = vsub.f32 %v580, %v628
      %v641 = vsub.f32 %v581, %v629
      %v642 = vsub.f32 %v582, %v630
      %v643 = vsub.f32 %v583, %v631
      %v644 = vsub.f32 %v584, %v632
      %v645 = vsub.f32 %v585, %v633
      %v646 = vsub.f32 %v586, %v634
      %v647 = vsub.f32 %v587, %v635
      %v648 = vsub.f32 %v588, %v636
      %v649 = vsub.f32 %v589, %v637
      %v650 = vsub.f32 %v590, %v638
      %v651 = vsub.f32 %v591, %v639
      %v652 = vadd.f32 %v640, 0.5
      %v653 = vadd.f32 %v641, 0.5
      %v654 = vadd.f32 %v642, 0.5
      %v655 = vadd.f32 %v643, 0.5
      %v656 = vadd.f32 %v644, 0.5
      %v657 = vadd.f32 %v645, 0.5
      %v658 = vadd.f32 %v646, 0.5
      %v659 = vadd.f32 %v647, 0.5
      %v660 = vadd.f32 %v648, 0.5
      %v661 = vadd.f32 %v649, 0.5
      %v662 = vadd.f32 %v650, 0.5
      %v663 = vadd.f32 %v651, 0.5
      %v664 = vmul.f32 %v652, 0.2
      %v665 = vmul.f32 %v653, 0.2
      %v666 = vmul.f32 %v654, 0.2
      %v667 = vmul.f32 %v655, 0.2
      %v668 = vmul.f32 %v656, 0.2
      %v669 = vmul.f32 %v657, 0.2
      %v670 = vmul.f32 %v658, 0.2
      %v671 = vmul.f32 %v659, 0.2
      %v672 = vmul.f32 %v660, 0.2
      %v673 = vmul.f32 %v661, 0.2
      %v674 = vmul.f32 %v662, 0.2
      %v675 = vmul.f32 %v663, 0.2
      %v676 = vfloor.f32 %v664
      %v677 = vfloor.f32 %v665
      %v678 = vfloor.f32 %v666
      %v679 = vfloor.f32 %v667
      %v680 = vfloor.f32 %v668
      %v681 = vfloor.f32 %v669
      %v682 = vfloor.f32 %v670
      %v683 = vfloor.f32 %v671
      %v684 = vfloor.f32 %v672
      %v685 = vfloor.f32 %v673
      %v686 = vfloor.f32 %v674
      %v687 = vfloor.f32 %v675
      %v688 = vmul.f32 %v676, 5.0
      %v689 = vmul.f32 %v677, 5.0
      %v690 = vmul.f32 %v678, 5.0
      %v691 = vmul.f32 %v679, 5.0
      %v692 = vmul.f32 %v680, 5.0
      %v693 = vmul.f32 %v681, 5.0
      %v694 = vmul.f32 %v682, 5.0
      %v695 = vmul.f32 %v683, 5.0
      %v696 = vmul.f32 %v684, 5.0
      %v697 = vmul.f32 %v685, 5.0
      %v698 = vmul.f32 %v686, 5.0
      %v699 = vmul.f32 %v687, 5.0
      %v700 = vsub.f32 %v640, %v688
      %v701 = vsub.f32 %v641, %v689
      %v702 = vsub.f32 %v642, %v690
      %v703 = vsub.f32 %v643, %v691
      %v704 = vsub.f32 %v644, %v692
      %v705 = vsub.f32 %v645, %v693
      %v706 = vsub.f32 %v646, %v694
      %v707 = vsub.f32 %v647, %v695
      %v708 = vsub.f32 %v648, %v696
      %v709 = vsub.f32 %v649, %v697
      %v710 = vsub.f32 %v650, %v698
      %v711 = vsub.f32 %v651, %v699
      %vm712 = vcmp.lt.f32.partialorder %v616, 1.5
      %vm713 = vcmp.lt.f32.partialorder %v617, 1.5
      %vm714 = vcmp.lt.f32.partialorder %v618, 1.5
      %vm715 = vcmp.lt.f32.partialorder %v619, 1.5
      %vm716 = vcmp.lt.f32.partialorder %v620, 1.5
      %vm717 = vcmp.lt.f32.partialorder %v621, 1.5
      %vm718 = vcmp.lt.f32.partialorder %v622, 1.5
      %vm719 = vcmp.lt.f32.partialorder %v623, 1.5
      %vm720 = vcmp.lt.f32.partialorder %v624, 1.5
      %vm721 = vcmp.lt.f32.partialorder %v625, 1.5
      %vm722 = vcmp.lt.f32.partialorder %v626, 1.5
      %vm723 = vcmp.lt.f32.partialorder %v627, 1.5
      %vm724 = vcmp.lt.f32.partialorder %v616, 0.5
      %vm725 = vcmp.lt.f32.partialorder %v617, 0.5
      %vm726 = vcmp.lt.f32.partialorder %v618, 0.5
      %vm727 = vcmp.lt.f32.partialorder %v619, 0.5
      %vm728 = vcmp.lt.f32.partialorder %v620, 0.5
      %vm729 = vcmp.lt.f32.partialorder %v621, 0.5
      %vm730 = vcmp.lt.f32.partialorder %v622, 0.5
      %vm731 = vcmp.lt.f32.partialorder %v623, 0.5
      %vm732 = vcmp.lt.f32.partialorder %v624, 0.5
      %vm733 = vcmp.lt.f32.partialorder %v625, 0.5
      %vm734 = vcmp.lt.f32.partialorder %v626, 0.5
      %vm735 = vcmp.lt.f32.partialorder %v627, 0.5
      %vm736 = vcmp.gt.f32.partialorder %v616, 1.5
      %vm737 = vcmp.gt.f32.partialorder %v617, 1.5
      %vm738 = vcmp.gt.f32.partialorder %v618, 1.5
      %vm739 = vcmp.gt.f32.partialorder %v619, 1.5
      %vm740 = vcmp.gt.f32.partialorder %v620, 1.5
      %vm741 = vcmp.gt.f32.partialorder %v621, 1.5
      %vm742 = vcmp.gt.f32.partialorder %v622, 1.5
      %vm743 = vcmp.gt.f32.partialorder %v623, 1.5
      %vm744 = vcmp.gt.f32.partialorder %v624, 1.5
      %vm745 = vcmp.gt.f32.partialorder %v625, 1.5
      %vm746 = vcmp.gt.f32.partialorder %v626, 1.5
      %vm747 = vcmp.gt.f32.partialorder %v627, 1.5
      %vm748 = vcmp.lt.f32.partialorder %v616, 2.5
      %vm749 = vcmp.lt.f32.partialorder %v617, 2.5
      %vm750 = vcmp.lt.f32.partialorder %v618, 2.5
      %vm751 = vcmp.lt.f32.partialorder %v619, 2.5
      %vm752 = vcmp.lt.f32.partialorder %v620, 2.5
      %vm753 = vcmp.lt.f32.partialorder %v621, 2.5
      %vm754 = vcmp.lt.f32.partialorder %v622, 2.5
      %vm755 = vcmp.lt.f32.partialorder %v623, 2.5
      %vm756 = vcmp.lt.f32.partialorder %v624, 2.5
      %vm757 = vcmp.lt.f32.partialorder %v625, 2.5
      %vm758 = vcmp.lt.f32.partialorder %v626, 2.5
      %vm759 = vcmp.lt.f32.partialorder %v627, 2.5
      %vm760 = vmand %vm736, %vm748
      %vm761 = vmand %vm737, %vm749
      %vm762 = vmand %vm738, %vm750
      %vm763 = vmand %vm739, %vm751
      %vm764 = vmand %vm740, %vm752
      %vm765 = vmand %vm741, %vm753
      %vm766 = vmand %vm742, %vm754
      %vm767 = vmand %vm743, %vm755
      %vm768 = vmand %vm744, %vm756
      %vm769 = vmand %vm745, %vm757
      %vm770 = vmand %vm746, %vm758
      %vm771 = vmand %vm747, %vm759
      %vm772 = vmor %vm724, %vm760
      %vm773 = vmor %vm725, %vm761
      %vm774 = vmor %vm726, %vm762
      %vm775 = vmor %vm727, %vm763
      %vm776 = vmor %vm728, %vm764
      %vm777 = vmor %vm729, %vm765
      %vm778 = vmor %vm730, %vm766
      %vm779 = vmor %vm731, %vm767
      %vm780 = vmor %vm732, %vm768
      %vm781 = vmor %vm733, %vm769
      %vm782 = vmor %vm734, %vm770
      %vm783 = vmor %vm735, %vm771
      %vm784 = vcmp.lt.f32.partialorder %v676, 0.5
      %vm785 = vcmp.lt.f32.partialorder %v677, 0.5
      %vm786 = vcmp.lt.f32.partialorder %v678, 0.5
      %vm787 = vcmp.lt.f32.partialorder %v679, 0.5
      %vm788 = vcmp.lt.f32.partialorder %v680, 0.5
      %vm789 = vcmp.lt.f32.partialorder %v681, 0.5
      %vm790 = vcmp.lt.f32.partialorder %v682, 0.5
      %vm791 = vcmp.lt.f32.partialorder %v683, 0.5
      %vm792 = vcmp.lt.f32.partialorder %v684, 0.5
      %vm793 = vcmp.lt.f32.partialorder %v685, 0.5
      %vm794 = vcmp.lt.f32.partialorder %v686, 0.5
      %vm795 = vcmp.lt.f32.partialorder %v687, 0.5
      %vm796 = vmand %vm712, %vm784
      %vm797 = vmand %vm713, %vm785
      %vm798 = vmand %vm714, %vm786
      %vm799 = vmand %vm715, %vm787
      %vm800 = vmand %vm716, %vm788
      %vm801 = vmand %vm717, %vm789
      %vm802 = vmand %vm718, %vm790
      %vm803 = vmand %vm719, %vm791
      %vm804 = vmand %vm720, %vm792
      %vm805 = vmand %vm721, %vm793
      %vm806 = vmand %vm722, %vm794
      %vm807 = vmand %vm723, %vm795
      %vm808 = vmxor %vm712, 1
      %vm809 = vmxor %vm713, 1
      %vm810 = vmxor %vm714, 1
      %vm811 = vmxor %vm715, 1
      %vm812 = vmxor %vm716, 1
      %vm813 = vmxor %vm717, 1
      %vm814 = vmxor %vm718, 1
      %vm815 = vmxor %vm719, 1
      %vm816 = vmxor %vm720, 1
      %vm817 = vmxor %vm721, 1
      %vm818 = vmxor %vm722, 1
      %vm819 = vmxor %vm723, 1
      %vm820 = vcmp.gt.f32.partialorder %v676, 3.5
      %vm821 = vcmp.gt.f32.partialorder %v677, 3.5
      %vm822 = vcmp.gt.f32.partialorder %v678, 3.5
      %vm823 = vcmp.gt.f32.partialorder %v679, 3.5
      %vm824 = vcmp.gt.f32.partialorder %v680, 3.5
      %vm825 = vcmp.gt.f32.partialorder %v681, 3.5
      %vm826 = vcmp.gt.f32.partialorder %v682, 3.5
      %vm827 = vcmp.gt.f32.partialorder %v683, 3.5
      %vm828 = vcmp.gt.f32.partialorder %v684, 3.5
      %vm829 = vcmp.gt.f32.partialorder %v685, 3.5
      %vm830 = vcmp.gt.f32.partialorder %v686, 3.5
      %vm831 = vcmp.gt.f32.partialorder %v687, 3.5
      %vm832 = vmand %vm808, %vm820
      %vm833 = vmand %vm809, %vm821
      %vm834 = vmand %vm810, %vm822
      %vm835 = vmand %vm811, %vm823
      %vm836 = vmand %vm812, %vm824
      %vm837 = vmand %vm813, %vm825
      %vm838 = vmand %vm814, %vm826
      %vm839 = vmand %vm815, %vm827
      %vm840 = vmand %vm816, %vm828
      %vm841 = vmand %vm817, %vm829
      %vm842 = vmand %vm818, %vm830
      %vm843 = vmand %vm819, %vm831
      %vm844 = vmor %vm796, %vm832
      %vm845 = vmor %vm797, %vm833
      %vm846 = vmor %vm798, %vm834
      %vm847 = vmor %vm799, %vm835
      %vm848 = vmor %vm800, %vm836
      %vm849 = vmor %vm801, %vm837
      %vm850 = vmor %vm802, %vm838
      %vm851 = vmor %vm803, %vm839
      %vm852 = vmor %vm804, %vm840
      %vm853 = vmor %vm805, %vm841
      %vm854 = vmor %vm806, %vm842
      %vm855 = vmor %vm807, %vm843
      %vm856 = vcmp.lt.f32.partialorder %v700, 0.5
      %vm857 = vcmp.lt.f32.partialorder %v701, 0.5
      %vm858 = vcmp.lt.f32.partialorder %v702, 0.5
      %vm859 = vcmp.lt.f32.partialorder %v703, 0.5
      %vm860 = vcmp.lt.f32.partialorder %v704, 0.5
      %vm861 = vcmp.lt.f32.partialorder %v705, 0.5
      %vm862 = vcmp.lt.f32.partialorder %v706, 0.5
      %vm863 = vcmp.lt.f32.partialorder %v707, 0.5
      %vm864 = vcmp.lt.f32.partialorder %v708, 0.5
      %vm865 = vcmp.lt.f32.partialorder %v709, 0.5
      %vm866 = vcmp.lt.f32.partialorder %v710, 0.5
      %vm867 = vcmp.lt.f32.partialorder %v711, 0.5
      %vm868 = vmand %vm772, %vm856
      %vm869 = vmand %vm773, %vm857
      %vm870 = vmand %vm774, %vm858
      %vm871 = vmand %vm775, %vm859
      %vm872 = vmand %vm776, %vm860
      %vm873 = vmand %vm777, %vm861
      %vm874 = vmand %vm778, %vm862
      %vm875 = vmand %vm779, %vm863
      %vm876 = vmand %vm780, %vm864
      %vm877 = vmand %vm781, %vm865
      %vm878 = vmand %vm782, %vm866
      %vm879 = vmand %vm783, %vm867
      %vm880 = vmor %vm844, %vm868
      %vm881 = vmor %vm845, %vm869
      %vm882 = vmor %vm846, %vm870
      %vm883 = vmor %vm847, %vm871
      %vm884 = vmor %vm848, %vm872
      %vm885 = vmor %vm849, %vm873
      %vm886 = vmor %vm850, %vm874
      %vm887 = vmor %vm851, %vm875
      %vm888 = vmor %vm852, %vm876
      %vm889 = vmor %vm853, %vm877
      %vm890 = vmor %vm854, %vm878
      %vm891 = vmor %vm855, %vm879
      %vm892 = vmxor %vm772, 1
      %vm893 = vmxor %vm773, 1
      %vm894 = vmxor %vm774, 1
      %vm895 = vmxor %vm775, 1
      %vm896 = vmxor %vm776, 1
      %vm897 = vmxor %vm777, 1
      %vm898 = vmxor %vm778, 1
      %vm899 = vmxor %vm779, 1
      %vm900 = vmxor %vm780, 1
      %vm901 = vmxor %vm781, 1
      %vm902 = vmxor %vm782, 1
      %vm903 = vmxor %vm783, 1
      %vm904 = vcmp.gt.f32.partialorder %v700, 3.5
      %vm905 = vcmp.gt.f32.partialorder %v701, 3.5
      %vm906 = vcmp.gt.f32.partialorder %v702, 3.5
      %vm907 = vcmp.gt.f32.partialorder %v703, 3.5
      %vm908 = vcmp.gt.f32.partialorder %v704, 3.5
      %vm909 = vcmp.gt.f32.partialorder %v705, 3.5
      %vm910 = vcmp.gt.f32.partialorder %v706, 3.5
      %vm911 = vcmp.gt.f32.partialorder %v707, 3.5
      %vm912 = vcmp.gt.f32.partialorder %v708, 3.5
      %vm913 = vcmp.gt.f32.partialorder %v709, 3.5
      %vm914 = vcmp.gt.f32.partialorder %v710, 3.5
      %vm915 = vcmp.gt.f32.partialorder %v711, 3.5
      %vm916 = vmand %vm892, %vm904
      %vm917 = vmand %vm893, %vm905
      %vm918 = vmand %vm894, %vm906
      %vm919 = vmand %vm895, %vm907
      %vm920 = vmand %vm896, %vm908
      %vm921 = vmand %vm897, %vm909
      %vm922 = vmand %vm898, %vm910
      %vm923 = vmand %vm899, %vm911
      %vm924 = vmand %vm900, %vm912
      %vm925 = vmand %vm901, %vm913
      %vm926 = vmand %vm902, %vm914
      %vm927 = vmand %vm903, %vm915
      %vm928 = vmor %vm880, %vm916
      %vm929 = vmor %vm881, %vm917
      %vm930 = vmor %vm882, %vm918
      %vm931 = vmor %vm883, %vm919
      %vm932 = vmor %vm884, %vm920
      %vm933 = vmor %vm885, %vm921
      %vm934 = vmor %vm886, %vm922
      %vm935 = vmor %vm887, %vm923
      %vm936 = vmor %vm888, %vm924
      %vm937 = vmor %vm889, %vm925
      %vm938 = vmor %vm890, %vm926
      %vm939 = vmor %vm891, %vm927
      %v940 = vsel %vm928, 1, 0
      %v941 = vsel %vm929, 1, 0
      %v942 = vsel %vm930, 1, 0
      %v943 = vsel %vm931, 1, 0
      %v944 = vsel %vm932, 1, 0
      %v945 = vsel %vm933, 1, 0
      %v946 = vsel %vm934, 1, 0
      %v947 = vsel %vm935, 1, 0
      %v948 = vsel %vm936, 1, 0
      %v949 = vsel %vm937, 1, 0
      %v950 = vsel %vm938, 1, 0
      %v951 = vsel %vm939, 1, 0
      %v952 = vcvt.s32.f32 %v940
      %v953 = vcvt.s32.f32 %v941
      %v954 = vcvt.s32.f32 %v942
      %v955 = vcvt.s32.f32 %v943
      %v956 = vcvt.s32.f32 %v944
      %v957 = vcvt.s32.f32 %v945
      %v958 = vcvt.s32.f32 %v946
      %v959 = vcvt.s32.f32 %v947
      %v960 = vcvt.s32.f32 %v948
      %v961 = vcvt.s32.f32 %v949
      %v962 = vcvt.s32.f32 %v950
      %v963 = vcvt.s32.f32 %v951
      %v964 = vsub.f32 1.0, %v952
      %v965 = vsub.f32 1.0, %v953
      %v966 = vsub.f32 1.0, %v954
      %v967 = vsub.f32 1.0, %v955
      %v968 = vsub.f32 1.0, %v956
      %v969 = vsub.f32 1.0, %v957
      %v970 = vsub.f32 1.0, %v958
      %v971 = vsub.f32 1.0, %v959
      %v972 = vsub.f32 1.0, %v960
      %v973 = vsub.f32 1.0, %v961
      %v974 = vsub.f32 1.0, %v962
      %v975 = vsub.f32 1.0, %v963
      %v976 = vmul.f32 %v555, %v964
      %v977 = vmul.f32 %v556, %v965
      %v978 = vmul.f32 %v557, %v966
      %v979 = vmul.f32 %v558, %v967
      %v980 = vmul.f32 %v559, %v968
      %v981 = vmul.f32 %v560, %v969
      %v982 = vmul.f32 %v561, %v970
      %v983 = vmul.f32 %v562, %v971
      %v984 = vmul.f32 %v563, %v972
      %v985 = vmul.f32 %v564, %v973
      %v986 = vmul.f32 %v565, %v974
      %v987 = vmul.f32 %v566, %v975
      %v988 = vunpack.c.l.bf16 %v388
      %v989 = vunpack.c.l.bf16 %v389
      %v990 = vunpack.c.l.bf16 %v390
      %v991 = vunpack.c.l.bf16 %v391
      %v992 = vunpack.c.l.bf16 %v392
      %v993 = vunpack.c.l.bf16 %v393
      %v994 = vunpack.c.l.bf16 %v394
      %v995 = vunpack.c.l.bf16 %v395
      %v996 = vunpack.c.l.bf16 %v396
      %v997 = vunpack.c.l.bf16 %v397
      %v998 = vunpack.c.l.bf16 %v398
      %v999 = vunpack.c.l.bf16 %v399
      %v1000 = vld [vmem:[%s1] sm:$0x1]
      %v1002 = vlaneseq
      %v1003 = vshrl.u32 %v1002, 7
      %v1004 = vsub.s32 0, %v1003
      %v1005 = vrot.slane %v1000, %v1004
      %v1007 = vmul.f32 %v988, %v1005
      %v1008 = vmul.f32 %v989, %v1005
      %v1009 = vmul.f32 %v990, %v1005
      %v1010 = vadd.f32 %v1007, 0.0
      %v1011 = vadd.f32 %v1008, 0.0
      %v1012 = vadd.f32 %v1009, 0.0
      %v1013 = vld [vmem:[%s7] sm:$0x1]
      %v1015 = vlaneseq
      %v1016 = vshrl.u32 %v1015, 7
      %v1017 = vsub.s32 0, %v1016
      %v1018 = vrot.slane %v1013, %v1017
      %v1020 = vmul.f32 %v976, %v1018
      %v1021 = vmul.f32 %v977, %v1018
      %v1022 = vmul.f32 %v978, %v1018
      %v1023 = vadd.f32 %v1020, 0.0
      %v1024 = vadd.f32 %v1021, 0.0
      %v1025 = vadd.f32 %v1022, 0.0
      %s1026 = scalar_lea.vmem %s1, 1
      %v1027 = vld [vmem:[%s1026] sm:$0x1]
      %v1029 = vlaneseq
      %v1030 = vshrl.u32 %v1029, 7
      %v1031 = vsub.s32 0, %v1030
      %v1032 = vrot.slane %v1027, %v1031
      %v1034 = vmul.f32 %v991, %v1032
      %v1035 = vmul.f32 %v992, %v1032
      %v1036 = vmul.f32 %v993, %v1032
      %vm1040 = vcmask 1046528
      %v1041 = vrot.slane %v1034, 1
      %v1042 = vrot.slane %v1035, 1
      %v1043 = vsel %vm1040, %v1041, %v1042
      %v1044 = vrot.slane %v1036, 1
      %v1045 = vsel %vm1040, %v1042, %v1044
      %v1049 = vadd.f32 %v1010, %v1043
      %v1050 = vadd.f32 %v1011, %v1045
      %v1051 = vadd.f32 %v1012, %v1044
      %s1052 = scalar_lea.vmem %s7, 1
      %v1053 = vld [vmem:[%s1052] sm:$0x1]
      %v1055 = vlaneseq
      %v1056 = vshrl.u32 %v1055, 7
      %v1057 = vsub.s32 0, %v1056
      %v1058 = vrot.slane %v1053, %v1057
      %v1060 = vmul.f32 %v979, %v1058
      %v1061 = vmul.f32 %v980, %v1058
      %v1062 = vmul.f32 %v981, %v1058
      %v1066 = vrot.slane %v1060, 1
      %v1067 = vrot.slane %v1061, 1
      %v1068 = vsel %vm1040, %v1066, %v1067
      %v1069 = vrot.slane %v1062, 1
      %v1070 = vsel %vm1040, %v1067, %v1069
      %v1074 = vadd.f32 %v1023, %v1068
      %v1075 = vadd.f32 %v1024, %v1070
      %v1076 = vadd.f32 %v1025, %v1069
      %s1077 = scalar_lea.vmem %s1, 2
      %v1078 = vld [vmem:[%s1077] sm:$0x1]
      %v1080 = vlaneseq
      %v1081 = vshrl.u32 %v1080, 7
      %v1082 = vsub.s32 0, %v1081
      %v1083 = vrot.slane %v1078, %v1082
      %v1085 = vmul.f32 %v988, %v1083
      %v1086 = vmul.f32 %v989, %v1083
      %v1087 = vmul.f32 %v990, %v1083
      %v1091 = vrot.slane %v1085, 1
      %v1092 = vrot.slane %v1086, 1
      %v1093 = vsel %vm1040, %v1091, %v1092
      %v1094 = vrot.slane %v1087, 1
      %v1095 = vsel %vm1040, %v1092, %v1094
      %v1099 = vadd.f32 %v1049, %v1093
      %v1100 = vadd.f32 %v1050, %v1095
      %v1101 = vadd.f32 %v1051, %v1094
      %s1102 = scalar_lea.vmem %s7, 2
      %v1103 = vld [vmem:[%s1102] sm:$0x1]
      %v1105 = vlaneseq
      %v1106 = vshrl.u32 %v1105, 7
      %v1107 = vsub.s32 0, %v1106
      %v1108 = vrot.slane %v1103, %v1107
      %v1110 = vmul.f32 %v976, %v1108
      %v1111 = vmul.f32 %v977, %v1108
      %v1112 = vmul.f32 %v978, %v1108
      %v1116 = vrot.slane %v1110, 1
      %v1117 = vrot.slane %v1111, 1
      %v1118 = vsel %vm1040, %v1116, %v1117
      %v1119 = vrot.slane %v1112, 1
      %v1120 = vsel %vm1040, %v1117, %v1119
      %v1124 = vadd.f32 %v1074, %v1118
      %v1125 = vadd.f32 %v1075, %v1120
      %v1126 = vadd.f32 %v1076, %v1119
      %s1127 = scalar_lea.vmem %s1, 3
      %v1128 = vld [vmem:[%s1127] sm:$0x1]
      %v1130 = vlaneseq
      %v1131 = vshrl.u32 %v1130, 7
      %v1132 = vsub.s32 0, %v1131
      %v1133 = vrot.slane %v1128, %v1132
      %v1135 = vmul.f32 %v994, %v1133
      %v1136 = vmul.f32 %v995, %v1133
      %v1137 = vmul.f32 %v996, %v1133
      %vm1141 = vcmask 1045504
      %v1142 = vrot.slane %v1135, 2
      %v1143 = vrot.slane %v1136, 2
      %v1144 = vsel %vm1141, %v1142, %v1143
      %v1145 = vrot.slane %v1137, 2
      %v1146 = vsel %vm1141, %v1143, %v1145
      %v1150 = vadd.f32 %v1099, %v1144
      %v1151 = vadd.f32 %v1100, %v1146
      %v1152 = vadd.f32 %v1101, %v1145
      %s1153 = scalar_lea.vmem %s7, 3
      %v1154 = vld [vmem:[%s1153] sm:$0x1]
      %v1156 = vlaneseq
      %v1157 = vshrl.u32 %v1156, 7
      %v1158 = vsub.s32 0, %v1157
      %v1159 = vrot.slane %v1154, %v1158
      %v1161 = vmul.f32 %v982, %v1159
      %v1162 = vmul.f32 %v983, %v1159
      %v1163 = vmul.f32 %v984, %v1159
      %v1167 = vrot.slane %v1161, 2
      %v1168 = vrot.slane %v1162, 2
      %v1169 = vsel %vm1141, %v1167, %v1168
      %v1170 = vrot.slane %v1163, 2
      %v1171 = vsel %vm1141, %v1168, %v1170
      %v1175 = vadd.f32 %v1124, %v1169
      %v1176 = vadd.f32 %v1125, %v1171
      %v1177 = vadd.f32 %v1126, %v1170
      %s1178 = scalar_lea.vmem %s1, 4
      %v1179 = vld [vmem:[%s1178] sm:$0x1]
      %v1181 = vlaneseq
      %v1182 = vshrl.u32 %v1181, 7
      %v1183 = vsub.s32 0, %v1182
      %v1184 = vrot.slane %v1179, %v1183
      %v1186 = vmul.f32 %v997, %v1184
      %v1187 = vmul.f32 %v998, %v1184
      %v1188 = vmul.f32 %v999, %v1184
      %vm1192 = vcmask 1044480
      %v1193 = vrot.slane %v1186, 3
      %v1194 = vrot.slane %v1187, 3
      %v1195 = vsel %vm1192, %v1193, %v1194
      %v1196 = vrot.slane %v1188, 3
      %v1197 = vsel %vm1192, %v1194, %v1196
      %v1201 = vadd.f32 %v1150, %v1195
      %v1202 = vadd.f32 %v1151, %v1197
      %v1203 = vadd.f32 %v1152, %v1196
      %s1204 = scalar_lea.vmem %s7, 4
      %v1205 = vld [vmem:[%s1204] sm:$0x1]
      %v1207 = vlaneseq
      %v1208 = vshrl.u32 %v1207, 7
      %v1209 = vsub.s32 0, %v1208
      %v1210 = vrot.slane %v1205, %v1209
      %v1212 = vmul.f32 %v985, %v1210
      %v1213 = vmul.f32 %v986, %v1210
      %v1214 = vmul.f32 %v987, %v1210
      %v1218 = vrot.slane %v1212, 3
      %v1219 = vrot.slane %v1213, 3
      %v1220 = vsel %vm1192, %v1218, %v1219
      %v1221 = vrot.slane %v1214, 3
      %v1222 = vsel %vm1192, %v1219, %v1221
      %v1226 = vadd.f32 %v1175, %v1220
      %v1227 = vadd.f32 %v1176, %v1222
      %v1228 = vadd.f32 %v1177, %v1221
      %s1229 = scalar_lea.vmem %s1, 5
      %v1230 = vld [vmem:[%s1229] sm:$0x1]
      %v1232 = vlaneseq
      %v1233 = vshrl.u32 %v1232, 7
      %v1234 = vsub.s32 0, %v1233
      %v1235 = vrot.slane %v1230, %v1234
      %v1237 = vmul.f32 %v994, %v1235
      %v1238 = vmul.f32 %v995, %v1235
      %v1239 = vmul.f32 %v996, %v1235
      %v1243 = vrot.slane %v1237, 3
      %v1244 = vrot.slane %v1238, 3
      %v1245 = vsel %vm1192, %v1243, %v1244
      %v1246 = vrot.slane %v1239, 3
      %v1247 = vsel %vm1192, %v1244, %v1246
      %v1251 = vadd.f32 %v1201, %v1245
      %v1252 = vadd.f32 %v1202, %v1247
      %v1253 = vadd.f32 %v1203, %v1246
      %s1254 = scalar_lea.vmem %s7, 5
      %v1255 = vld [vmem:[%s1254] sm:$0x1]
      %v1257 = vlaneseq
      %v1258 = vshrl.u32 %v1257, 7
      %v1259 = vsub.s32 0, %v1258
      %v1260 = vrot.slane %v1255, %v1259
      %v1262 = vmul.f32 %v982, %v1260
      %v1263 = vmul.f32 %v983, %v1260
      %v1264 = vmul.f32 %v984, %v1260
      %v1268 = vrot.slane %v1262, 3
      %v1269 = vrot.slane %v1263, 3
      %v1270 = vsel %vm1192, %v1268, %v1269
      %v1271 = vrot.slane %v1264, 3
      %v1272 = vsel %vm1192, %v1269, %v1271
      %v1276 = vadd.f32 %v1226, %v1270
      %v1277 = vadd.f32 %v1227, %v1272
      %v1278 = vadd.f32 %v1228, %v1271
      %s1279 = scalar_lea.vmem %s1, 6
      %v1280 = vld [vmem:[%s1279] sm:$0x1]
      %v1282 = vlaneseq
      %v1283 = vshrl.u32 %v1282, 7
      %v1284 = vsub.s32 0, %v1283
      %v1285 = vrot.slane %v1280, %v1284
      %v1287 = vmul.f32 %v988, %v1285
      %v1288 = vmul.f32 %v989, %v1285
      %v1289 = vmul.f32 %v990, %v1285
      %vm1293 = vcmask 1042432
      %v1294 = vrot.slane %v1287, 5
      %v1295 = vrot.slane %v1288, 5
      %v1296 = vsel %vm1293, %v1294, %v1295
      %v1297 = vrot.slane %v1289, 5
      %v1298 = vsel %vm1293, %v1295, %v1297
      %v1302 = vadd.f32 %v1251, %v1296
      %v1303 = vadd.f32 %v1252, %v1298
      %v1304 = vadd.f32 %v1253, %v1297
      %s1305 = scalar_lea.vmem %s7, 6
      %v1306 = vld [vmem:[%s1305] sm:$0x1]
      %v1308 = vlaneseq
      %v1309 = vshrl.u32 %v1308, 7
      %v1310 = vsub.s32 0, %v1309
      %v1311 = vrot.slane %v1306, %v1310
      %v1313 = vmul.f32 %v976, %v1311
      %v1314 = vmul.f32 %v977, %v1311
      %v1315 = vmul.f32 %v978, %v1311
      %v1319 = vrot.slane %v1313, 5
      %v1320 = vrot.slane %v1314, 5
      %v1321 = vsel %vm1293, %v1319, %v1320
      %v1322 = vrot.slane %v1315, 5
      %v1323 = vsel %vm1293, %v1320, %v1322
      %v1327 = vadd.f32 %v1276, %v1321
      %v1328 = vadd.f32 %v1277, %v1323
      %v1329 = vadd.f32 %v1278, %v1322
      %s1330 = scalar_lea.vmem %s1, 7
      %v1331 = vld [vmem:[%s1330] sm:$0x1]
      %v1333 = vlaneseq
      %v1334 = vshrl.u32 %v1333, 7
      %v1335 = vsub.s32 0, %v1334
      %v1336 = vrot.slane %v1331, %v1335
      %v1338 = vmul.f32 %v991, %v1336
      %v1339 = vmul.f32 %v992, %v1336
      %v1340 = vmul.f32 %v993, %v1336
      %v1341 = vmul.f32 %v994, %v1336
      %vm1346 = vcmask 1041408
      %v1347 = vrot.slane %v1338, 6
      %v1348 = vrot.slane %v1339, 6
      %v1349 = vsel %vm1346, %v1347, %v1348
      %v1350 = vrot.slane %v1340, 6
      %v1351 = vsel %vm1346, %v1348, %v1350
      %v1352 = vrot.slane %v1341, 6
      %v1353 = vsel %vm1346, %v1350, %v1352
      %v1357 = vadd.f32 %v1302, %v1349
      %v1358 = vadd.f32 %v1303, %v1351
      %v1359 = vadd.f32 %v1304, %v1353
      %s1360 = scalar_lea.vmem %s7, 7
      %v1361 = vld [vmem:[%s1360] sm:$0x1]
      %v1363 = vlaneseq
      %v1364 = vshrl.u32 %v1363, 7
      %v1365 = vsub.s32 0, %v1364
      %v1366 = vrot.slane %v1361, %v1365
      %v1368 = vmul.f32 %v979, %v1366
      %v1369 = vmul.f32 %v980, %v1366
      %v1370 = vmul.f32 %v981, %v1366
      %v1371 = vmul.f32 %v982, %v1366
      %v1376 = vrot.slane %v1368, 6
      %v1377 = vrot.slane %v1369, 6
      %v1378 = vsel %vm1346, %v1376, %v1377
      %v1379 = vrot.slane %v1370, 6
      %v1380 = vsel %vm1346, %v1377, %v1379
      %v1381 = vrot.slane %v1371, 6
      %v1382 = vsel %vm1346, %v1379, %v1381
      %v1386 = vadd.f32 %v1327, %v1378
      %v1387 = vadd.f32 %v1328, %v1380
      %v1388 = vadd.f32 %v1329, %v1382
      %s1389 = scalar_lea.vmem %s1, 8
      %v1390 = vld [vmem:[%s1389] sm:$0x1]
      %v1392 = vlaneseq
      %v1393 = vshrl.u32 %v1392, 7
      %v1394 = vsub.s32 0, %v1393
      %v1395 = vrot.slane %v1390, %v1394
      %v1397 = vmul.f32 %v988, %v1395
      %v1398 = vmul.f32 %v989, %v1395
      %v1399 = vmul.f32 %v990, %v1395
      %v1400 = vmul.f32 %v991, %v1395
      %v1405 = vrot.slane %v1397, 6
      %v1406 = vrot.slane %v1398, 6
      %v1407 = vsel %vm1346, %v1405, %v1406
      %v1408 = vrot.slane %v1399, 6
      %v1409 = vsel %vm1346, %v1406, %v1408
      %v1410 = vrot.slane %v1400, 6
      %v1411 = vsel %vm1346, %v1408, %v1410
      %v1415 = vadd.f32 %v1357, %v1407
      %v1416 = vadd.f32 %v1358, %v1409
      %v1417 = vadd.f32 %v1359, %v1411
      %s1418 = scalar_lea.vmem %s7, 8
      %v1419 = vld [vmem:[%s1418] sm:$0x1]
      %v1421 = vlaneseq
      %v1422 = vshrl.u32 %v1421, 7
      %v1423 = vsub.s32 0, %v1422
      %v1424 = vrot.slane %v1419, %v1423
      %v1426 = vmul.f32 %v976, %v1424
      %v1427 = vmul.f32 %v977, %v1424
      %v1428 = vmul.f32 %v978, %v1424
      %v1429 = vmul.f32 %v979, %v1424
      %v1434 = vrot.slane %v1426, 6
      %v1435 = vrot.slane %v1427, 6
      %v1436 = vsel %vm1346, %v1434, %v1435
      %v1437 = vrot.slane %v1428, 6
      %v1438 = vsel %vm1346, %v1435, %v1437
      %v1439 = vrot.slane %v1429, 6
      %v1440 = vsel %vm1346, %v1437, %v1439
      %v1444 = vadd.f32 %v1386, %v1436
      %v1445 = vadd.f32 %v1387, %v1438
      %v1446 = vadd.f32 %v1388, %v1440
      %v1449 = vrot.slane %v1415, 1
      %v1450 = vrot.slane %v1416, 1
      %v1451 = vsel %vm1040, %v1449, %v1450
      %v1453 = vrot.slane %v1416, 2
      %v1456 = vrot.slane %v1416, 3
      %v1457 = vrot.slane %v1417, 3
      %v1458 = vsel %vm1192, %v1456, %v1457
      %v1460 = vsel %vm464, %v1415, %v1451
      %v1461 = vsel %vm464, %v1453, %v1458
      %v1462 = vld [vmem:[%s2] sm:$0x1]
      %v1464 = vlaneseq
      %v1465 = vshrl.u32 %v1464, 7
      %v1466 = vsub.s32 0, %v1465
      %v1467 = vrot.slane %v1462, %v1466
      %v1469 = vadd.f32 %v1460, %v1467
      %v1470 = vadd.f32 %v1461, %v1467
      %v1473 = vrot.slane %v1444, 1
      %v1474 = vrot.slane %v1445, 1
      %v1475 = vsel %vm1040, %v1473, %v1474
      %v1477 = vrot.slane %v1445, 2
      %v1480 = vrot.slane %v1445, 3
      %v1481 = vrot.slane %v1446, 3
      %v1482 = vsel %vm1192, %v1480, %v1481
      %v1484 = vsel %vm464, %v1444, %v1475
      %v1485 = vsel %vm464, %v1477, %v1482
      %v1486 = vld [vmem:[%s8] sm:$0x1]
      %v1488 = vlaneseq
      %v1489 = vshrl.u32 %v1488, 7
      %v1490 = vsub.s32 0, %v1489
      %v1491 = vrot.slane %v1486, %v1490
      %v1493 = vadd.f32 %v1484, %v1491
      %v1494 = vadd.f32 %v1485, %v1491
      %v1495 = vpack.c.bf16 %v1470, %v1469
      %v1496 = vld [vmem:[%s3] sm:$0xf]
      %v1497 = vld [vmem:[%s4] sm:$0x1]
      %v1499 = vlaneseq
      %v1500 = vshrl.u32 %v1499, 7
      %v1501 = vsub.s32 0, %v1500
      %v1502 = vrot.slane %v1497, %v1501
      %v1505 = vsel %vm442, %v1495, 0
      %v1508 = vsel %vm464, %v1496, 0
      %1510 = vmatprep.subr.bf16.mxu0 0
      %1511 = vmatpush1.bf16.msra.mxu0 %v1508
      %1512 = vmatprep.subr.bf16.mxu0 0
      %1513 = vmatpush1.bf16.msra.mxu0 0
      %1514 = vmatprep.subr.bf16.mxu0 0
      %1515 = vmatpush1.bf16.msra.mxu0 0
      %1516 = vmatprep.subr.bf16.mxu0 0
      %1517 = vmatpush1.bf16.msra.mxu0 0
      %1518 = vmatprep.subr.bf16.mxu0 0
      %1519 = vmatpush1.bf16.msra.mxu0 0
      %1520 = vmatprep.subr.bf16.mxu0 0
      %1521 = vmatpush1.bf16.msra.mxu0 0
      %1522 = vmatprep.subr.bf16.mxu0 0
      %1523 = vmatpush1.bf16.msra.mxu0 0
      %1524 = vmatprep.subr.bf16.mxu0 0
      %1525 = vmatpush1.bf16.msra.mxu0 0
      %1526 = vmatprep.subr.bf16.mxu0 0
      %1527 = vmatpush1.bf16.msra.mxu0 0
      %1528 = vmatprep.subr.bf16.mxu0 0
      %1529 = vmatpush1.bf16.msra.mxu0 0
      %1530 = vmatprep.subr.bf16.mxu0 0
      %1531 = vmatpush1.bf16.msra.mxu0 0
      %1532 = vmatprep.subr.bf16.mxu0 0
      %1533 = vmatpush1.bf16.msra.mxu0 0
      %1534 = vmatprep.subr.bf16.mxu0 0
      %1535 = vmatpush1.bf16.msra.mxu0 0
      %1536 = vmatprep.subr.bf16.mxu0 0
      %1537 = vmatpush1.bf16.msra.mxu0 0
      %1538 = vmatprep.subr.bf16.mxu0 0
      %1539 = vmatpush1.bf16.msra.mxu0 0
      %1540 = vmatprep.subr.bf16.mxu0 0
      %1541 = vmatpush1.bf16.msra.mxu0 0
      %1542 = vmatprep.mubr.bf16.mxu0 0
      %1543 = vmatmul.mubr.bf16.gmra.mrb[0].mxu0 %v1505
      %v1544 = vpop.f32.mrb[0].mxu0
      %v1545 = vadd.f32 %v1502, %v1544
      %v1546 = vpop.f32.mrb[0].mxu0
      %v1547 = vpop.f32.mrb[0].mxu0
      %v1548 = vadd.f32 %v1502, %v1547
      %v1549 = vpop.f32.mrb[0].mxu0
      %1550 = vdwg.mxu0
      %v1551 = vmax.f32 %v1545, 0.0
      %v1552 = vmax.f32 %v1548, 0.0
      %v1553 = vpack.c.bf16 %v1494, %v1493
      %v1554 = vld [vmem:[%s9] sm:$0xf]
      %v1555 = vld [vmem:[%s10] sm:$0x1]
      %v1557 = vlaneseq
      %v1558 = vshrl.u32 %v1557, 7
      %v1559 = vsub.s32 0, %v1558
      %v1560 = vrot.slane %v1555, %v1559
      %v1563 = vsel %vm442, %v1553, 0
      %v1566 = vsel %vm464, %v1554, 0
      %1568 = vmatprep.subr.bf16.mxu0 0
      %1569 = vmatpush1.bf16.msra.mxu0 %v1566
      %1570 = vmatprep.subr.bf16.mxu0 0
      %1571 = vmatpush1.bf16.msra.mxu0 0
      %1572 = vmatprep.subr.bf16.mxu0 0
      %1573 = vmatpush1.bf16.msra.mxu0 0
      %1574 = vmatprep.subr.bf16.mxu0 0
      %1575 = vmatpush1.bf16.msra.mxu0 0
      %1576 = vmatprep.subr.bf16.mxu0 0
      %1577 = vmatpush1.bf16.msra.mxu0 0
      %1578 = vmatprep.subr.bf16.mxu0 0
      %1579 = vmatpush1.bf16.msra.mxu0 0
      %1580 = vmatprep.subr.bf16.mxu0 0
      %1581 = vmatpush1.bf16.msra.mxu0 0
      %1582 = vmatprep.subr.bf16.mxu0 0
      %1583 = vmatpush1.bf16.msra.mxu0 0
      %1584 = vmatprep.subr.bf16.mxu0 0
      %1585 = vmatpush1.bf16.msra.mxu0 0
      %1586 = vmatprep.subr.bf16.mxu0 0
      %1587 = vmatpush1.bf16.msra.mxu0 0
      %1588 = vmatprep.subr.bf16.mxu0 0
      %1589 = vmatpush1.bf16.msra.mxu0 0
      %1590 = vmatprep.subr.bf16.mxu0 0
      %1591 = vmatpush1.bf16.msra.mxu0 0
      %1592 = vmatprep.subr.bf16.mxu0 0
      %1593 = vmatpush1.bf16.msra.mxu0 0
      %1594 = vmatprep.subr.bf16.mxu0 0
      %1595 = vmatpush1.bf16.msra.mxu0 0
      %1596 = vmatprep.subr.bf16.mxu0 0
      %1597 = vmatpush1.bf16.msra.mxu0 0
      %1598 = vmatprep.subr.bf16.mxu0 0
      %1599 = vmatpush1.bf16.msra.mxu0 0
      %1600 = vmatprep.mubr.bf16.mxu0 0
      %1601 = vmatmul.mubr.bf16.gmra.mrb[0].mxu0 %v1563
      %v1602 = vpop.f32.mrb[0].mxu0
      %v1603 = vadd.f32 %v1560, %v1602
      %v1604 = vpop.f32.mrb[0].mxu0
      %v1605 = vpop.f32.mrb[0].mxu0
      %v1606 = vadd.f32 %v1560, %v1605
      %v1607 = vpop.f32.mrb[0].mxu0
      %1608 = vdwg.mxu0
      %v1609 = vmax.f32 %v1603, 0.0
      %v1610 = vmax.f32 %v1606, 0.0
      %v1611 = vadd.f32 %v1551, %v1609
      %v1612 = vadd.f32 %v1552, %v1610
      %v1613 = vpack.c.bf16 %v1612, %v1611
      %v1615 = vunpack.c.l.b16 %v1613
      %v1616 = vunpack.c.h.b16 %v1613
      %v1617 = vpack.c.b16 %v1615, %v1615
      %v1618 = vpack.c.b16 %v1616, %v1616
      %vm1621 = vcmask 125952
      %1622 = vst.msk [vmem:[%s386] sm:$0xf] %vm1621, %v1617
      %1623 = vst.msk [vmem:[%s386 + $0x4] sm:$0xf] %vm1621, %v1618
      %p1624 = scmp.lt.s32.totalorder %s22, 1
      %s1625 = scalar_select %p1624, %s22, 1
      %s1626 = smul.addr %s1625, 2
      %s1627 = smul.addr %s1626, 4
      %s1628 = scalar_lea.vmem %s11, %s1627
      // Predicated region
      $region65: #{shufflenet_v2_forward.11} parent=63 // pred_check
        %p1629 = pneg %p276
      $region66: #{shufflenet_v2_forward.11} parent=63 // pred_check_branch
        %1631 = sbr.rel (%p1629) target = $region68
      $region67: #{shufflenet_v2_forward.11} parent=63 // pred_region
        _
      $region68: #{shufflenet_v2_forward.11} parent=63 // pred_fallthru
        _
    $region64: #{shufflenet_v2_forward.11} parent=5 // pred_fallthru
      _
    %p1632 = scmp.le.s32.totalorder 2, %s17
    // Predicated region
    $region69: #{shufflenet_v2_forward.11} parent=5 // pred_check
      %p1633 = pneg %p1632
    $region70: #{shufflenet_v2_forward.11} parent=5 // pred_check_branch
      %1635 = sbr.rel (%p1633) target = $region72
    $region71: #{shufflenet_v2_forward.11} parent=5 // pred_region
      %s1636 = ssub.s32 %s17, 2
      // Predicated region
      $region73: #{shufflenet_v2_forward.11} parent=71 // pred_check
        %p1637 = pneg %p282
      $region74: #{shufflenet_v2_forward.11} parent=71 // pred_check_branch
        %1639 = sbr.rel (%p1637) target = $region76
      $region75: #{shufflenet_v2_forward.11} parent=71 // pred_region
        %p1640 = scmp.lt.s32.totalorder %s23, 1
        %s1641 = scalar_select %p1640, %s23, 1
        %s1642 = smul.addr %s1641, 2
        %s1643 = smul.addr %s1642, 4
        %s1644 = scalar_lea.vmem %s11, %s1643
      $region76: #{shufflenet_v2_forward.11} parent=71 // pred_fallthru
        _
    $region72: #{shufflenet_v2_forward.11} parent=5 // pred_fallthru
      _
  $region6: #{shufflenet_v2_forward.11} parent=0 // loop_footer
    %s21 = sadd.s32 1, %s17
  $region7: #{shufflenet_v2_forward.11} parent=0 // loop_footer_branch
    %16 = sbr.rel target = $region3
  $region8: #{shufflenet_v2_forward.11} parent=0 // loop_exit
    _

// kernel: shufflenet_v2_forward.13
$region0: #{shufflenet_v2_forward.13}
  #allocation0 [shape = 'u32[]', space=smem, size = 0x4, offset = 0x4, fixed_abs, tag = 'smem constant byte address 0x4 - core index']
  #allocation1 [shape = 'u32[144,128]{1,0:T(1,128)}', space=vmem, size = 0x12000, scoped, tag = 'internal scratch']
  %s0 = inlined_call_operand.vmem [shape: bf16[2,36,16], index: 0, kind: input, shape index: {}]
  %s1 = inlined_call_operand.vmem [shape: f32[9,1,16], index: 1, kind: input, shape index: {}]
  %s2 = inlined_call_operand.vmem [shape: f32[1,16], index: 2, kind: input, shape index: {}]
  %s3 = inlined_call_operand.vmem [shape: bf16[16,32], index: 3, kind: input, shape index: {}]
  %s4 = inlined_call_operand.vmem [shape: f32[1,32], index: 4, kind: input, shape index: {}]
  %s5 = inlined_call_operand.vmem [shape: bf16[16,16], index: 5, kind: input, shape index: {}]
  %s6 = inlined_call_operand.vmem [shape: f32[1,16], index: 6, kind: input, shape index: {}]
  %s7 = inlined_call_operand.vmem [shape: f32[9,1,16], index: 7, kind: input, shape index: {}]
  %s8 = inlined_call_operand.vmem [shape: f32[1,16], index: 8, kind: input, shape index: {}]
  %s9 = inlined_call_operand.vmem [shape: bf16[16,32], index: 9, kind: input, shape index: {}]
  %s10 = inlined_call_operand.vmem [shape: f32[1,32], index: 10, kind: input, shape index: {}]
  %s11 = inlined_call_operand.vmem [shape: bf16[2,4,32], index: 11, kind: output, shape index: {}]
  %s12 = sld [smem:[#allocation0]]
  $region77: #{shufflenet_v2_forward.13} parent=0
    _
  %s14 = ssub.s32 1, %s12
  %s15 = scalar_select 0, %s14, %s12
  loop: start=0, step=1, limit=4
  $region2: #{shufflenet_v2_forward.13} parent=0 // loop_pre_header
    _
  $region3: #{shufflenet_v2_forward.13} parent=0 // loop_header
    %s17 = sphi 0, %s21
    %p18 = scmp.ge.s32.totalorder %s17, 4
    %s27 = sphi 0, %s29
    %s30 = sphi 0, %s27
    %s31 = sphi 0, %s30
    %s47 = sphi 0, %s31
    %s51 = sphi 0, %s51
    %s53 = sphi 0, %s51
    %s54 = sphi 0, %s53
    %s68 = sphi 0, %s54
    %s72 = sphi 0, %s72
    %s74 = sphi 0, %s72
    %s75 = sphi 0, %s74
    %s89 = sphi 0, %s75
    %s93 = sphi 0, %s93
    %s95 = sphi 0, %s93
    %s96 = sphi 0, %s95
    %s110 = sphi 0, %s96
    %s114 = sphi 0, %s114
    %s116 = sphi 0, %s114
    %s117 = sphi 0, %s116
    %s131 = sphi 0, %s117
    %s135 = sphi 0, %s135
    %s137 = sphi 0, %s135
    %s138 = sphi 0, %s137
    %s152 = sphi 0, %s138
    %s156 = sphi 0, %s156
    %s158 = sphi 0, %s156
    %s159 = sphi 0, %s158
    %s173 = sphi 0, %s159
    %s177 = sphi 0, %s177
    %s179 = sphi 0, %s177
    %s180 = sphi 0, %s179
    %s194 = sphi 0, %s180
    %s198 = sphi 0, %s198
    %s200 = sphi 0, %s198
    %s201 = sphi 0, %s200
    %s215 = sphi 0, %s201
    %s219 = sphi 0, %s219
    %s221 = sphi 0, %s219
    %s222 = sphi 0, %s221
    %s236 = sphi 0, %s222
    %s240 = sphi 0, %s240
    %s242 = sphi 0, %s240
    %s243 = sphi 0, %s242
    %s257 = sphi 0, %s243
    %s263 = sphi 0, %s265
    %s266 = sphi 0, %s263
    %s267 = sphi 0, %s266
    %s283 = sphi 0, %s267
  $region4: #{shufflenet_v2_forward.13} parent=0 // loop_header_branch
    %20 = sbr.rel (%p18) target = $region8
  $region5: #{shufflenet_v2_forward.13} parent=0 // loop_body
    %s22 = ssub.s32 %s17, 1
    %s23 = ssub.s32 %s17, 2
    %s24 = sadd.s32 %s17, 1
    %s25 = ssub.s32 %s17, %s24
    %p26 = scmp.eq.s32.totalorder %s25, 0
    %s28 = sadd.s32 %s27, 1
    %s29 = scalar_select %p26, %s27, %s28
    %p32 = pneg %p26
    %p33 = scmp.eq.s32.totalorder %s17, 1
    %p34 = por %p32, %p33
    %p35 = scmp.ne.s32.totalorder %s27, %s30
    %p36 = scmp.eq.s32.totalorder %s17, 0
    %p37 = por %p35, %p36
    %p38 = scmp.ne.s32.totalorder %s27, %s30
    %p39 = scmp.eq.s32.totalorder %s22, 1
    %p40 = por %p38, %p39
    %p41 = scmp.ne.s32.totalorder %s30, %s31
    %p42 = scmp.eq.s32.totalorder %s22, 0
    %p43 = por %p41, %p42
    %p44 = scmp.ne.s32.totalorder %s30, %s31
    %p45 = scmp.eq.s32.totalorder %s23, 1
    %p46 = por %p44, %p45
    %p48 = scmp.ne.s32.totalorder %s31, %s47
    %p49 = scmp.eq.s32.totalorder %s23, 0
    %p50 = por %p48, %p49
    %s52 = sadd.s32 %s51, 1
    %p55 = scmp.eq.s32.totalorder %s17, 1
    %p56 = scmp.ne.s32.totalorder %s51, %s53
    %p57 = scmp.eq.s32.totalorder %s17, 0
    %p58 = por %p56, %p57
    %p59 = scmp.ne.s32.totalorder %s51, %s53
    %p60 = scmp.eq.s32.totalorder %s22, 1
    %p61 = por %p59, %p60
    %p62 = scmp.ne.s32.totalorder %s53, %s54
    %p63 = scmp.eq.s32.totalorder %s22, 0
    %p64 = por %p62, %p63
    %p65 = scmp.ne.s32.totalorder %s53, %s54
    %p66 = scmp.eq.s32.totalorder %s23, 1
    %p67 = por %p65, %p66
    %p69 = scmp.ne.s32.totalorder %s54, %s68
    %p70 = scmp.eq.s32.totalorder %s23, 0
    %p71 = por %p69, %p70
    %s73 = sadd.s32 %s72, 1
    %p76 = scmp.eq.s32.totalorder %s17, 1
    %p77 = scmp.ne.s32.totalorder %s72, %s74
    %p78 = scmp.eq.s32.totalorder %s17, 0
    %p79 = por %p77, %p78
    %p80 = scmp.ne.s32.totalorder %s72, %s74
    %p81 = scmp.eq.s32.totalorder %s22, 1
    %p82 = por %p80, %p81
    %p83 = scmp.ne.s32.totalorder %s74, %s75
    %p84 = scmp.eq.s32.totalorder %s22, 0
    %p85 = por %p83, %p84
    %p86 = scmp.ne.s32.totalorder %s74, %s75
    %p87 = scmp.eq.s32.totalorder %s23, 1
    %p88 = por %p86, %p87
    %p90 = scmp.ne.s32.totalorder %s75, %s89
    %p91 = scmp.eq.s32.totalorder %s23, 0
    %p92 = por %p90, %p91
    %s94 = sadd.s32 %s93, 1
    %p97 = scmp.eq.s32.totalorder %s17, 1
    %p98 = scmp.ne.s32.totalorder %s93, %s95
    %p99 = scmp.eq.s32.totalorder %s17, 0
    %p100 = por %p98, %p99
    %p101 = scmp.ne.s32.totalorder %s93, %s95
    %p102 = scmp.eq.s32.totalorder %s22, 1
    %p103 = por %p101, %p102
    %p104 = scmp.ne.s32.totalorder %s95, %s96
    %p105 = scmp.eq.s32.totalorder %s22, 0
    %p106 = por %p104, %p105
    %p107 = scmp.ne.s32.totalorder %s95, %s96
    %p108 = scmp.eq.s32.totalorder %s23, 1
    %p109 = por %p107, %p108
    %p111 = scmp.ne.s32.totalorder %s96, %s110
    %p112 = scmp.eq.s32.totalorder %s23, 0
    %p113 = por %p111, %p112
    %s115 = sadd.s32 %s114, 1
    %p118 = scmp.eq.s32.totalorder %s17, 1
    %p119 = scmp.ne.s32.totalorder %s114, %s116
    %p120 = scmp.eq.s32.totalorder %s17, 0
    %p121 = por %p119, %p120
    %p122 = scmp.ne.s32.totalorder %s114, %s116
    %p123 = scmp.eq.s32.totalorder %s22, 1
    %p124 = por %p122, %p123
    %p125 = scmp.ne.s32.totalorder %s116, %s117
    %p126 = scmp.eq.s32.totalorder %s22, 0
    %p127 = por %p125, %p126
    %p128 = scmp.ne.s32.totalorder %s116, %s117
    %p129 = scmp.eq.s32.totalorder %s23, 1
    %p130 = por %p128, %p129
    %p132 = scmp.ne.s32.totalorder %s117, %s131
    %p133 = scmp.eq.s32.totalorder %s23, 0
    %p134 = por %p132, %p133
    %s136 = sadd.s32 %s135, 1
    %p139 = scmp.eq.s32.totalorder %s17, 1
    %p140 = scmp.ne.s32.totalorder %s135, %s137
    %p141 = scmp.eq.s32.totalorder %s17, 0
    %p142 = por %p140, %p141
    %p143 = scmp.ne.s32.totalorder %s135, %s137
    %p144 = scmp.eq.s32.totalorder %s22, 1
    %p145 = por %p143, %p144
    %p146 = scmp.ne.s32.totalorder %s137, %s138
    %p147 = scmp.eq.s32.totalorder %s22, 0
    %p148 = por %p146, %p147
    %p149 = scmp.ne.s32.totalorder %s137, %s138
    %p150 = scmp.eq.s32.totalorder %s23, 1
    %p151 = por %p149, %p150
    %p153 = scmp.ne.s32.totalorder %s138, %s152
    %p154 = scmp.eq.s32.totalorder %s23, 0
    %p155 = por %p153, %p154
    %s157 = sadd.s32 %s156, 1
    %p160 = scmp.eq.s32.totalorder %s17, 1
    %p161 = scmp.ne.s32.totalorder %s156, %s158
    %p162 = scmp.eq.s32.totalorder %s17, 0
    %p163 = por %p161, %p162
    %p164 = scmp.ne.s32.totalorder %s156, %s158
    %p165 = scmp.eq.s32.totalorder %s22, 1
    %p166 = por %p164, %p165
    %p167 = scmp.ne.s32.totalorder %s158, %s159
    %p168 = scmp.eq.s32.totalorder %s22, 0
    %p169 = por %p167, %p168
    %p170 = scmp.ne.s32.totalorder %s158, %s159
    %p171 = scmp.eq.s32.totalorder %s23, 1
    %p172 = por %p170, %p171
    %p174 = scmp.ne.s32.totalorder %s159, %s173
    %p175 = scmp.eq.s32.totalorder %s23, 0
    %p176 = por %p174, %p175
    %s178 = sadd.s32 %s177, 1
    %p181 = scmp.eq.s32.totalorder %s17, 1
    %p182 = scmp.ne.s32.totalorder %s177, %s179
    %p183 = scmp.eq.s32.totalorder %s17, 0
    %p184 = por %p182, %p183
    %p185 = scmp.ne.s32.totalorder %s177, %s179
    %p186 = scmp.eq.s32.totalorder %s22, 1
    %p187 = por %p185, %p186
    %p188 = scmp.ne.s32.totalorder %s179, %s180
    %p189 = scmp.eq.s32.totalorder %s22, 0
    %p190 = por %p188, %p189
    %p191 = scmp.ne.s32.totalorder %s179, %s180
    %p192 = scmp.eq.s32.totalorder %s23, 1
    %p193 = por %p191, %p192
    %p195 = scmp.ne.s32.totalorder %s180, %s194
    %p196 = scmp.eq.s32.totalorder %s23, 0
    %p197 = por %p195, %p196
    %s199 = sadd.s32 %s198, 1
    %p202 = scmp.eq.s32.totalorder %s17, 1
    %p203 = scmp.ne.s32.totalorder %s198, %s200
    %p204 = scmp.eq.s32.totalorder %s17, 0
    %p205 = por %p203, %p204
    %p206 = scmp.ne.s32.totalorder %s198, %s200
    %p207 = scmp.eq.s32.totalorder %s22, 1
    %p208 = por %p206, %p207
    %p209 = scmp.ne.s32.totalorder %s200, %s201
    %p210 = scmp.eq.s32.totalorder %s22, 0
    %p211 = por %p209, %p210
    %p212 = scmp.ne.s32.totalorder %s200, %s201
    %p213 = scmp.eq.s32.totalorder %s23, 1
    %p214 = por %p212, %p213
    %p216 = scmp.ne.s32.totalorder %s201, %s215
    %p217 = scmp.eq.s32.totalorder %s23, 0
    %p218 = por %p216, %p217
    %s220 = sadd.s32 %s219, 1
    %p223 = scmp.eq.s32.totalorder %s17, 1
    %p224 = scmp.ne.s32.totalorder %s219, %s221
    %p225 = scmp.eq.s32.totalorder %s17, 0
    %p226 = por %p224, %p225
    %p227 = scmp.ne.s32.totalorder %s219, %s221
    %p228 = scmp.eq.s32.totalorder %s22, 1
    %p229 = por %p227, %p228
    %p230 = scmp.ne.s32.totalorder %s221, %s222
    %p231 = scmp.eq.s32.totalorder %s22, 0
    %p232 = por %p230, %p231
    %p233 = scmp.ne.s32.totalorder %s221, %s222
    %p234 = scmp.eq.s32.totalorder %s23, 1
    %p235 = por %p233, %p234
    %p237 = scmp.ne.s32.totalorder %s222, %s236
    %p238 = scmp.eq.s32.totalorder %s23, 0
    %p239 = por %p237, %p238
    %s241 = sadd.s32 %s240, 1
    %p244 = scmp.eq.s32.totalorder %s17, 1
    %p245 = scmp.ne.s32.totalorder %s240, %s242
    %p246 = scmp.eq.s32.totalorder %s17, 0
    %p247 = por %p245, %p246
    %p248 = scmp.ne.s32.totalorder %s240, %s242
    %p249 = scmp.eq.s32.totalorder %s22, 1
    %p250 = por %p248, %p249
    %p251 = scmp.ne.s32.totalorder %s242, %s243
    %p252 = scmp.eq.s32.totalorder %s22, 0
    %p253 = por %p251, %p252
    %p254 = scmp.ne.s32.totalorder %s242, %s243
    %p255 = scmp.eq.s32.totalorder %s23, 1
    %p256 = por %p254, %p255
    %p258 = scmp.ne.s32.totalorder %s243, %s257
    %p259 = scmp.eq.s32.totalorder %s23, 0
    %p260 = por %p258, %p259
    %s261 = ssub.s32 %s17, %s24
    %p262 = scmp.eq.s32.totalorder %s261, 0
    %s264 = sadd.s32 %s263, 1
    %s265 = scalar_select %p262, %s263, %s264
    %p268 = pneg %p262
    %p269 = scmp.eq.s32.totalorder %s17, 1
    %p270 = por %p268, %p269
    %p271 = scmp.ne.s32.totalorder %s263, %s266
    %p272 = scmp.eq.s32.totalorder %s17, 0
    %p273 = por %p271, %p272
    %p274 = scmp.ne.s32.totalorder %s263, %s266
    %p275 = scmp.eq.s32.totalorder %s22, 1
    %p276 = por %p274, %p275
    %p277 = scmp.ne.s32.totalorder %s266, %s267
    %p278 = scmp.eq.s32.totalorder %s22, 0
    %p279 = por %p277, %p278
    %p280 = scmp.ne.s32.totalorder %s266, %s267
    %p281 = scmp.eq.s32.totalorder %s23, 1
    %p282 = por %p280, %p281
    %p284 = scmp.ne.s32.totalorder %s267, %s283
    %p285 = scmp.eq.s32.totalorder %s23, 0
    %p286 = por %p284, %p285
    %p287 = scmp.le.s32.totalorder 1, %s17
    %p288 = scmp.lt.s32.totalorder %s17, 3
    %p289 = pnand %p287, %p288
    %p290 = pneg %p289
    // Predicated region
    $region9: #{shufflenet_v2_forward.13} parent=5 // pred_check
      _
    $region10: #{shufflenet_v2_forward.13} parent=5 // pred_check_branch
      %292 = sbr.rel (%p289) target = $region12
    $region11: #{shufflenet_v2_forward.13} parent=5 // pred_region
      %s293 = ssub.s32 %s17, 1
      // Predicated region
      $region13: #{shufflenet_v2_forward.13} parent=11 // pred_check
        %p294 = pneg %p64
      $region14: #{shufflenet_v2_forward.13} parent=11 // pred_check_branch
        %296 = sbr.rel (%p294) target = $region16
      $region15: #{shufflenet_v2_forward.13} parent=11 // pred_region
        _
      $region16: #{shufflenet_v2_forward.13} parent=11 // pred_fallthru
        _
      // Predicated region
      $region17: #{shufflenet_v2_forward.13} parent=11 // pred_check
        %p297 = pneg %p85
      $region18: #{shufflenet_v2_forward.13} parent=11 // pred_check_branch
        %299 = sbr.rel (%p297) target = $region20
      $region19: #{shufflenet_v2_forward.13} parent=11 // pred_region
        _
      $region20: #{shufflenet_v2_forward.13} parent=11 // pred_fallthru
        _
      // Predicated region
      $region21: #{shufflenet_v2_forward.13} parent=11 // pred_check
        %p300 = pneg %p106
      $region22: #{shufflenet_v2_forward.13} parent=11 // pred_check_branch
        %302 = sbr.rel (%p300) target = $region24
      $region23: #{shufflenet_v2_forward.13} parent=11 // pred_region
        _
      $region24: #{shufflenet_v2_forward.13} parent=11 // pred_fallthru
        _
      // Predicated region
      $region25: #{shufflenet_v2_forward.13} parent=11 // pred_check
        %p303 = pneg %p127
      $region26: #{shufflenet_v2_forward.13} parent=11 // pred_check_branch
        %305 = sbr.rel (%p303) target = $region28
      $region27: #{shufflenet_v2_forward.13} parent=11 // pred_region
        _
      $region28: #{shufflenet_v2_forward.13} parent=11 // pred_fallthru
        _
      // Predicated region
      $region29: #{shufflenet_v2_forward.13} parent=11 // pred_check
        %p306 = pneg %p148
      $region30: #{shufflenet_v2_forward.13} parent=11 // pred_check_branch
        %308 = sbr.rel (%p306) target = $region32
      $region31: #{shufflenet_v2_forward.13} parent=11 // pred_region
        _
      $region32: #{shufflenet_v2_forward.13} parent=11 // pred_fallthru
        _
      // Predicated region
      $region33: #{shufflenet_v2_forward.13} parent=11 // pred_check
        %p309 = pneg %p169
      $region34: #{shufflenet_v2_forward.13} parent=11 // pred_check_branch
        %311 = sbr.rel (%p309) target = $region36
      $region35: #{shufflenet_v2_forward.13} parent=11 // pred_region
        _
      $region36: #{shufflenet_v2_forward.13} parent=11 // pred_fallthru
        _
      // Predicated region
      $region37: #{shufflenet_v2_forward.13} parent=11 // pred_check
        %p312 = pneg %p190
      $region38: #{shufflenet_v2_forward.13} parent=11 // pred_check_branch
        %314 = sbr.rel (%p312) target = $region40
      $region39: #{shufflenet_v2_forward.13} parent=11 // pred_region
        _
      $region40: #{shufflenet_v2_forward.13} parent=11 // pred_fallthru
        _
      // Predicated region
      $region41: #{shufflenet_v2_forward.13} parent=11 // pred_check
        %p315 = pneg %p211
      $region42: #{shufflenet_v2_forward.13} parent=11 // pred_check_branch
        %317 = sbr.rel (%p315) target = $region44
      $region43: #{shufflenet_v2_forward.13} parent=11 // pred_region
        _
      $region44: #{shufflenet_v2_forward.13} parent=11 // pred_fallthru
        _
      // Predicated region
      $region45: #{shufflenet_v2_forward.13} parent=11 // pred_check
        %p318 = pneg %p232
      $region46: #{shufflenet_v2_forward.13} parent=11 // pred_check_branch
        %320 = sbr.rel (%p318) target = $region48
      $region47: #{shufflenet_v2_forward.13} parent=11 // pred_region
        _
      $region48: #{shufflenet_v2_forward.13} parent=11 // pred_fallthru
        _
      // Predicated region
      $region49: #{shufflenet_v2_forward.13} parent=11 // pred_check
        %p321 = pneg %p253
      $region50: #{shufflenet_v2_forward.13} parent=11 // pred_check_branch
        %323 = sbr.rel (%p321) target = $region52
      $region51: #{shufflenet_v2_forward.13} parent=11 // pred_region
        _
      $region52: #{shufflenet_v2_forward.13} parent=11 // pred_fallthru
        _
    $region12: #{shufflenet_v2_forward.13} parent=5 // pred_fallthru
      _
    %p324 = scmp.lt.s32.totalorder %s17, 2
    // Predicated region
    $region53: #{shufflenet_v2_forward.13} parent=5 // pred_check
      %p325 = pneg %p324
    $region54: #{shufflenet_v2_forward.13} parent=5 // pred_check_branch
      %327 = sbr.rel (%p325) target = $region56
    $region55: #{shufflenet_v2_forward.13} parent=5 // pred_region
      // Predicated region
      $region57: #{shufflenet_v2_forward.13} parent=55 // pred_check
        %p328 = pneg %p37
      $region58: #{shufflenet_v2_forward.13} parent=55 // pred_check_branch
        %330 = sbr.rel (%p328) target = $region60
      $region59: #{shufflenet_v2_forward.13} parent=55 // pred_region
        %p331 = scmp.lt.s32.totalorder %s17, 1
        %s332 = scalar_select %p331, %s17, 1
        %s333 = smul.addr %s332, 5
        %s334 = smul.addr %s333, 4
        %s335 = scalar_lea.vmem %s0, %s334
      $region60: #{shufflenet_v2_forward.13} parent=55 // pred_fallthru
        _
    $region56: #{shufflenet_v2_forward.13} parent=5 // pred_fallthru
      _
    %p336 = scmp.le.s32.totalorder 1, %s17
    %p337 = scmp.lt.s32.totalorder %s17, 3
    %p338 = pnand %p336, %p337
    %p339 = pneg %p338
    // Predicated region
    $region61: #{shufflenet_v2_forward.13} parent=5 // pred_check
      _
    $region62: #{shufflenet_v2_forward.13} parent=5 // pred_check_branch
      %341 = sbr.rel (%p338) target = $region64
    $region63: #{shufflenet_v2_forward.13} parent=5 // pred_region
      %s342 = ssub.s32 %s17, 1
      %p343 = scmp.lt.s32.totalorder %s22, 1
      %s344 = scalar_select %p343, %s22, 1
      %s345 = smul.addr %s344, 5
      %s346 = smul.addr %s345, 4
      %s347 = scalar_lea.vmem %s0, %s346
      %p348 = pneg %p43
      %p349 = pneg %p40
      %p350 = pneg %p64
      %p351 = pneg %p61
      %p352 = pneg %p85
      %p353 = pneg %p82
      %p354 = pneg %p106
      %p355 = pneg %p103
      %p356 = pneg %p127
      %p357 = pneg %p124
      %p358 = pneg %p148
      %p359 = pneg %p145
      %p360 = pneg %p169
      %p361 = pneg %p166
      %p362 = pneg %p190
      %p363 = pneg %p187
      %p364 = pneg %p211
      %p365 = pneg %p208
      %p366 = pneg %p232
      %p367 = pneg %p229
      %p368 = pneg %p253
      %p369 = pneg %p250
      %p370 = pneg %p279
      %p371 = pneg %p276
      %p372 = scmp.lt.s32.totalorder %s22, 1
      %s373 = scalar_select %p372, %s22, 1
      %s374 = smul.addr %s373, 2
      %s375 = scalar_lea.vmem %s11, %s374
      %p376 = scmp.lt.s32.totalorder %s22, 1
      %s377 = scalar_select %p376, %s22, 1
      %s378 = smul.addr %s377, 5
      %s379 = smul.addr %s378, 4
      %s380 = scalar_lea.vmem %s0, %s379
      %p381 = scmp.lt.s32.totalorder %s22, 1
      %s382 = scalar_select %p381, %s22, 1
      %s383 = smul.addr %s382, 2
      %s384 = scalar_lea.vmem %s11, %s383
      %v386 = vld [vmem:[%s380] sm:$0xf]
      %v387 = vld [vmem:[%s380 + $0x4] sm:$0xf]
      %v388 = vld [vmem:[%s380 + $0x8] sm:$0xf]
      %v389 = vld [vmem:[%s380 + $0xc] sm:$0xf]
      %v390 = vld [vmem:[%s380 + $0x10] sm:$0x3]
      %v391 = vld [vmem:[%s5] sm:$0xf]
      %v392 = vld [vmem:[%s5 + $0x4] sm:$0xf]
      %v393 = vld [vmem:[%s6] sm:$0x1]
      %v395 = vlaneseq
      %v396 = vshrl.u32 %v395, 7
      %v397 = vsub.s32 0, %v396
      %v398 = vrot.slane %v393, %v397
      %v405 = vunpack.c.l.b16 %v386
      %v406 = vunpack.c.l.b16 %v387
      %v407 = vunpack.c.l.b16 %v388
      %v408 = vunpack.c.l.b16 %v389
      %v409 = vunpack.c.l.b16 %v390
      %v410 = vpack.c.b16 %v406, %v405
      %v411 = vpack.c.b16 %v408, %v407
      %v412 = vpack.c.b16 %v409, %v409
      %v415 = vunpack.c.l.b16 %v391
      %v416 = vunpack.c.l.b16 %v392
      %v417 = vpack.c.b16 %v416, %v415
      %vm419 = vcmask 130048
      %v421 = vsel %vm419, %v410, 0
      %v424 = vsel %vm419, %v411, 0
      %v427 = vsel %vm419, %v412, 0
      %429 = vmatprep.subr.bf16.mxu0 0
      %430 = vmatpush1.bf16.msra.mxu0 %v417
      %431 = vmatprep.subr.bf16.mxu0 0
      %432 = vmatpush1.bf16.msra.mxu0 0
      %433 = vmatprep.subr.bf16.mxu0 0
      %434 = vmatpush1.bf16.msra.mxu0 0
      %435 = vmatprep.subr.bf16.mxu0 0
      %436 = vmatpush1.bf16.msra.mxu0 0
      %437 = vmatprep.subr.bf16.mxu0 0
      %438 = vmatpush1.bf16.msra.mxu0 0
      %439 = vmatprep.subr.bf16.mxu0 0
      %440 = vmatpush1.bf16.msra.mxu0 0
      %441 = vmatprep.subr.bf16.mxu0 0
      %442 = vmatpush1.bf16.msra.mxu0 0
      %443 = vmatprep.subr.bf16.mxu0 0
      %444 = vmatpush1.bf16.msra.mxu0 0
      %445 = vmatprep.subr.bf16.mxu0 0
      %446 = vmatpush1.bf16.msra.mxu0 0
      %447 = vmatprep.subr.bf16.mxu0 0
      %448 = vmatpush1.bf16.msra.mxu0 0
      %449 = vmatprep.subr.bf16.mxu0 0
      %450 = vmatpush1.bf16.msra.mxu0 0
      %451 = vmatprep.subr.bf16.mxu0 0
      %452 = vmatpush1.bf16.msra.mxu0 0
      %453 = vmatprep.subr.bf16.mxu0 0
      %454 = vmatpush1.bf16.msra.mxu0 0
      %455 = vmatprep.subr.bf16.mxu0 0
      %456 = vmatpush1.bf16.msra.mxu0 0
      %457 = vmatprep.subr.bf16.mxu0 0
      %458 = vmatpush1.bf16.msra.mxu0 0
      %459 = vmatprep.subr.bf16.mxu0 0
      %460 = vmatpush1.bf16.msra.mxu0 0
      %461 = vmatprep.mubr.bf16.mxu0 0
      %462 = vmatmul.mubr.bf16.gmra.mrb[0].mxu0 %v421
      %v463 = vpop.f32.mrb[0].mxu0
      %v464 = vadd.f32 %v398, %v463
      %v465 = vpop.f32.mrb[0].mxu0
      %v466 = vpop.f32.mrb[0].mxu0
      %v467 = vadd.f32 %v398, %v466
      %v468 = vpop.f32.mrb[0].mxu0
      %469 = vmatprep.mubr.bf16.mxu0 0
      %470 = vmatmul.mubr.bf16.gmra.mrb[0].mxu0 %v424
      %v471 = vpop.f32.mrb[0].mxu0
      %v472 = vadd.f32 %v398, %v471
      %v473 = vpop.f32.mrb[0].mxu0
      %v474 = vpop.f32.mrb[0].mxu0
      %v475 = vadd.f32 %v398, %v474
      %v476 = vpop.f32.mrb[0].mxu0
      %477 = vmatprep.mubr.bf16.mxu0 0
      %478 = vmatmul.mubr.bf16.gmra.mrb[0].mxu0 %v427
      %v479 = vpop.f32.mrb[0].mxu0
      %v480 = vpop.f32.mrb[0].mxu0
      %v481 = vpop.f32.mrb[0].mxu0
      %v482 = vpop.f32.mrb[0].mxu0
      %483 = vdwg.mxu0
      %v484 = vmax.f32 %v464, 0.0
      %v485 = vmax.f32 %v467, 0.0
      %v486 = vmax.f32 %v472, 0.0
      %v487 = vmax.f32 %v475, 0.0
      %v488 = vlaneseq
      %v489 = vshrl.u32 %v488, 7
      %v490 = vadd.s32 %v489, 8
      %v491 = vadd.s32 %v489, 16
      %v492 = vadd.s32 %v489, 24
      %v493 = vcvt.s32.f32 %v489
      %v494 = vcvt.s32.f32 %v490
      %v495 = vcvt.s32.f32 %v491
      %v496 = vcvt.s32.f32 %v492
      %v497 = vadd.f32 %v493, 0.5
      %v498 = vadd.f32 %v494, 0.5
      %v499 = vadd.f32 %v495, 0.5
      %v500 = vadd.f32 %v496, 0.5
      %v501 = vmul.f32 %v497, 0.11111111
      %v502 = vmul.f32 %v498, 0.11111111
      %v503 = vmul.f32 %v499, 0.11111111
      %v504 = vmul.f32 %v500, 0.11111111
      %v505 = vfloor.f32 %v501
      %v506 = vfloor.f32 %v502
      %v507 = vfloor.f32 %v503
      %v508 = vfloor.f32 %v504
      %v509 = vmul.f32 %v505, 9.0
      %v510 = vmul.f32 %v506, 9.0
      %v511 = vmul.f32 %v507, 9.0
      %v512 = vmul.f32 %v508, 9.0
      %v513 = vsub.f32 %v493, %v509
      %v514 = vsub.f32 %v494, %v510
      %v515 = vsub.f32 %v495, %v511
      %v516 = vsub.f32 %v496, %v512
      %v517 = vadd.f32 %v513, 0.5
      %v518 = vadd.f32 %v514, 0.5
      %v519 = vadd.f32 %v515, 0.5
      %v520 = vadd.f32 %v516, 0.5
      %v521 = vmul.f32 %v517, 0.33333334
      %v522 = vmul.f32 %v518, 0.33333334
      %v523 = vmul.f32 %v519, 0.33333334
      %v524 = vmul.f32 %v520, 0.33333334
      %v525 = vfloor.f32 %v521
      %v526 = vfloor.f32 %v522
      %v527 = vfloor.f32 %v523
      %v528 = vfloor.f32 %v524
      %v529 = vmul.f32 %v525, 3.0
      %v530 = vmul.f32 %v526, 3.0
      %v531 = vmul.f32 %v527, 3.0
      %v532 = vmul.f32 %v528, 3.0
      %v533 = vsub.f32 %v513, %v529
      %v534 = vsub.f32 %v514, %v530
      %v535 = vsub.f32 %v515, %v531
      %v536 = vsub.f32 %v516, %v532
      %vm537 = vcmp.lt.f32.partialorder %v505, 1.5
      %vm538 = vcmp.lt.f32.partialorder %v506, 1.5
      %vm539 = vcmp.lt.f32.partialorder %v507, 1.5
      %vm540 = vcmp.lt.f32.partialorder %v508, 1.5
      %vm541 = vcmp.lt.f32.partialorder %v505, 0.5
      %vm542 = vcmp.lt.f32.partialorder %v506, 0.5
      %vm543 = vcmp.lt.f32.partialorder %v507, 0.5
      %vm544 = vcmp.lt.f32.partialorder %v508, 0.5
      %vm545 = vcmp.gt.f32.partialorder %v505, 1.5
      %vm546 = vcmp.gt.f32.partialorder %v506, 1.5
      %vm547 = vcmp.gt.f32.partialorder %v507, 1.5
      %vm548 = vcmp.gt.f32.partialorder %v508, 1.5
      %vm549 = vcmp.lt.f32.partialorder %v505, 2.5
      %vm550 = vcmp.lt.f32.partialorder %v506, 2.5
      %vm551 = vcmp.lt.f32.partialorder %v507, 2.5
      %vm552 = vcmp.lt.f32.partialorder %v508, 2.5
      %vm553 = vmand %vm545, %vm549
      %vm554 = vmand %vm546, %vm550
      %vm555 = vmand %vm547, %vm551
      %vm556 = vmand %vm548, %vm552
      %vm557 = vmor %vm541, %vm553
      %vm558 = vmor %vm542, %vm554
      %vm559 = vmor %vm543, %vm555
      %vm560 = vmor %vm544, %vm556
      %vm561 = vcmp.lt.f32.partialorder %v525, 0.5
      %vm562 = vcmp.lt.f32.partialorder %v526, 0.5
      %vm563 = vcmp.lt.f32.partialorder %v527, 0.5
      %vm564 = vcmp.lt.f32.partialorder %v528, 0.5
      %vm565 = vmand %vm537, %vm561
      %vm566 = vmand %vm538, %vm562
      %vm567 = vmand %vm539, %vm563
      %vm568 = vmand %vm540, %vm564
      %vm569 = vmxor %vm537, 1
      %vm570 = vmxor %vm538, 1
      %vm571 = vmxor %vm539, 1
      %vm572 = vmxor %vm540, 1
      %vm573 = vcmp.gt.f32.partialorder %v525, 1.5
      %vm574 = vcmp.gt.f32.partialorder %v526, 1.5
      %vm575 = vcmp.gt.f32.partialorder %v527, 1.5
      %vm576 = vcmp.gt.f32.partialorder %v528, 1.5
      %vm577 = vmand %vm569, %vm573
      %vm578 = vmand %vm570, %vm574
      %vm579 = vmand %vm571, %vm575
      %vm580 = vmand %vm572, %vm576
      %vm581 = vmor %vm565, %vm577
      %vm582 = vmor %vm566, %vm578
      %vm583 = vmor %vm567, %vm579
      %vm584 = vmor %vm568, %vm580
      %vm585 = vcmp.lt.f32.partialorder %v533, 0.5
      %vm586 = vcmp.lt.f32.partialorder %v534, 0.5
      %vm587 = vcmp.lt.f32.partialorder %v535, 0.5
      %vm588 = vcmp.lt.f32.partialorder %v536, 0.5
      %vm589 = vmand %vm557, %vm585
      %vm590 = vmand %vm558, %vm586
      %vm591 = vmand %vm559, %vm587
      %vm592 = vmand %vm560, %vm588
      %vm593 = vmor %vm581, %vm589
      %vm594 = vmor %vm582, %vm590
      %vm595 = vmor %vm583, %vm591
      %vm596 = vmor %vm584, %vm592
      %vm597 = vmxor %vm557, 1
      %vm598 = vmxor %vm558, 1
      %vm599 = vmxor %vm559, 1
      %vm600 = vmxor %vm560, 1
      %vm601 = vcmp.gt.f32.partialorder %v533, 1.5
      %vm602 = vcmp.gt.f32.partialorder %v534, 1.5
      %vm603 = vcmp.gt.f32.partialorder %v535, 1.5
      %vm604 = vcmp.gt.f32.partialorder %v536, 1.5
      %vm605 = vmand %vm597, %vm601
      %vm606 = vmand %vm598, %vm602
      %vm607 = vmand %vm599, %vm603
      %vm608 = vmand %vm600, %vm604
      %vm609 = vmor %vm593, %vm605
      %vm610 = vmor %vm594, %vm606
      %vm611 = vmor %vm595, %vm607
      %vm612 = vmor %vm596, %vm608
      %v613 = vsel %vm609, 1, 0
      %v614 = vsel %vm610, 1, 0
      %v615 = vsel %vm611, 1, 0
      %v616 = vsel %vm612, 1, 0
      %v617 = vcvt.s32.f32 %v613
      %v618 = vcvt.s32.f32 %v614
      %v619 = vcvt.s32.f32 %v615
      %v620 = vcvt.s32.f32 %v616
      %v621 = vsub.f32 1.0, %v617
      %v622 = vsub.f32 1.0, %v618
      %v623 = vsub.f32 1.0, %v619
      %v624 = vsub.f32 1.0, %v620
      %v625 = vmul.f32 %v484, %v621
      %v626 = vmul.f32 %v485, %v622
      %v627 = vmul.f32 %v486, %v623
      %v628 = vmul.f32 %v487, %v624
      %v629 = vunpack.c.l.bf16 %v386
      %v630 = vunpack.c.l.bf16 %v387
      %v631 = vunpack.c.l.bf16 %v388
      %v632 = vunpack.c.l.bf16 %v389
      %v633 = vld [vmem:[%s1] sm:$0x1]
      %v635 = vlaneseq
      %v636 = vshrl.u32 %v635, 7
      %v637 = vsub.s32 0, %v636
      %v638 = vrot.slane %v633, %v637
      %v640 = vmul.f32 %v629, %v638
      %v641 = vadd.f32 %v640, 0.0
      %v642 = vld [vmem:[%s7] sm:$0x1]
      %v644 = vlaneseq
      %v645 = vshrl.u32 %v644, 7
      %v646 = vsub.s32 0, %v645
      %v647 = vrot.slane %v642, %v646
      %v649 = vmul.f32 %v625, %v647
      %v650 = vadd.f32 %v649, 0.0
      %s651 = scalar_lea.vmem %s1, 1
      %v652 = vld [vmem:[%s651] sm:$0x1]
      %v654 = vlaneseq
      %v655 = vshrl.u32 %v654, 7
      %v656 = vsub.s32 0, %v655
      %v657 = vrot.slane %v652, %v656
      %v659 = vmul.f32 %v630, %v657
      %v661 = vrot.slane %v659, 1
      %v663 = vadd.f32 %v641, %v661
      %s664 = scalar_lea.vmem %s7, 1
      %v665 = vld [vmem:[%s664] sm:$0x1]
      %v667 = vlaneseq
      %v668 = vshrl.u32 %v667, 7
      %v669 = vsub.s32 0, %v668
      %v670 = vrot.slane %v665, %v669
      %v672 = vmul.f32 %v626, %v670
      %v674 = vrot.slane %v672, 1
      %v676 = vadd.f32 %v650, %v674
      %s677 = scalar_lea.vmem %s1, 2
      %v678 = vld [vmem:[%s677] sm:$0x1]
      %v680 = vlaneseq
      %v681 = vshrl.u32 %v680, 7
      %v682 = vsub.s32 0, %v681
      %v683 = vrot.slane %v678, %v682
      %v685 = vmul.f32 %v629, %v683
      %v687 = vrot.slane %v685, 1
      %v689 = vadd.f32 %v663, %v687
      %s690 = scalar_lea.vmem %s7, 2
      %v691 = vld [vmem:[%s690] sm:$0x1]
      %v693 = vlaneseq
      %v694 = vshrl.u32 %v693, 7
      %v695 = vsub.s32 0, %v694
      %v696 = vrot.slane %v691, %v695
      %v698 = vmul.f32 %v625, %v696
      %v700 = vrot.slane %v698, 1
      %v702 = vadd.f32 %v676, %v700
      %s703 = scalar_lea.vmem %s1, 3
      %v704 = vld [vmem:[%s703] sm:$0x1]
      %v706 = vlaneseq
      %v707 = vshrl.u32 %v706, 7
      %v708 = vsub.s32 0, %v707
      %v709 = vrot.slane %v704, %v708
      %v711 = vmul.f32 %v631, %v709
      %v713 = vrot.slane %v711, 2
      %v715 = vadd.f32 %v689, %v713
      %s716 = scalar_lea.vmem %s7, 3
      %v717 = vld [vmem:[%s716] sm:$0x1]
      %v719 = vlaneseq
      %v720 = vshrl.u32 %v719, 7
      %v721 = vsub.s32 0, %v720
      %v722 = vrot.slane %v717, %v721
      %v724 = vmul.f32 %v627, %v722
      %v726 = vrot.slane %v724, 2
      %v728 = vadd.f32 %v702, %v726
      %s729 = scalar_lea.vmem %s1, 4
      %v730 = vld [vmem:[%s729] sm:$0x1]
      %v732 = vlaneseq
      %v733 = vshrl.u32 %v732, 7
      %v734 = vsub.s32 0, %v733
      %v735 = vrot.slane %v730, %v734
      %v737 = vmul.f32 %v632, %v735
      %v739 = vrot.slane %v737, 3
      %v741 = vadd.f32 %v715, %v739
      %s742 = scalar_lea.vmem %s7, 4
      %v743 = vld [vmem:[%s742] sm:$0x1]
      %v745 = vlaneseq
      %v746 = vshrl.u32 %v745, 7
      %v747 = vsub.s32 0, %v746
      %v748 = vrot.slane %v743, %v747
      %v750 = vmul.f32 %v628, %v748
      %v752 = vrot.slane %v750, 3
      %v754 = vadd.f32 %v728, %v752
      %s755 = scalar_lea.vmem %s1, 5
      %v756 = vld [vmem:[%s755] sm:$0x1]
      %v758 = vlaneseq
      %v759 = vshrl.u32 %v758, 7
      %v760 = vsub.s32 0, %v759
      %v761 = vrot.slane %v756, %v760
      %v763 = vmul.f32 %v631, %v761
      %v765 = vrot.slane %v763, 3
      %v767 = vadd.f32 %v741, %v765
      %s768 = scalar_lea.vmem %s7, 5
      %v769 = vld [vmem:[%s768] sm:$0x1]
      %v771 = vlaneseq
      %v772 = vshrl.u32 %v771, 7
      %v773 = vsub.s32 0, %v772
      %v774 = vrot.slane %v769, %v773
      %v776 = vmul.f32 %v627, %v774
      %v778 = vrot.slane %v776, 3
      %v780 = vadd.f32 %v754, %v778
      %s781 = scalar_lea.vmem %s1, 6
      %v782 = vld [vmem:[%s781] sm:$0x1]
      %v784 = vlaneseq
      %v785 = vshrl.u32 %v784, 7
      %v786 = vsub.s32 0, %v785
      %v787 = vrot.slane %v782, %v786
      %v789 = vmul.f32 %v629, %v787
      %v791 = vrot.slane %v789, 3
      %v793 = vadd.f32 %v767, %v791
      %s794 = scalar_lea.vmem %s7, 6
      %v795 = vld [vmem:[%s794] sm:$0x1]
      %v797 = vlaneseq
      %v798 = vshrl.u32 %v797, 7
      %v799 = vsub.s32 0, %v798
      %v800 = vrot.slane %v795, %v799
      %v802 = vmul.f32 %v625, %v800
      %v804 = vrot.slane %v802, 3
      %v806 = vadd.f32 %v780, %v804
      %s807 = scalar_lea.vmem %s1, 7
      %v808 = vld [vmem:[%s807] sm:$0x1]
      %v810 = vlaneseq
      %v811 = vshrl.u32 %v810, 7
      %v812 = vsub.s32 0, %v811
      %v813 = vrot.slane %v808, %v812
      %v815 = vmul.f32 %v630, %v813
      %v816 = vmul.f32 %v631, %v813
      %vm819 = vcmask 1043456
      %v820 = vrot.slane %v815, 4
      %v821 = vrot.slane %v816, 4
      %v822 = vsel %vm819, %v820, %v821
      %v824 = vadd.f32 %v793, %v822
      %s825 = scalar_lea.vmem %s7, 7
      %v826 = vld [vmem:[%s825] sm:$0x1]
      %v828 = vlaneseq
      %v829 = vshrl.u32 %v828, 7
      %v830 = vsub.s32 0, %v829
      %v831 = vrot.slane %v826, %v830
      %v833 = vmul.f32 %v626, %v831
      %v834 = vmul.f32 %v627, %v831
      %v837 = vrot.slane %v833, 4
      %v838 = vrot.slane %v834, 4
      %v839 = vsel %vm819, %v837, %v838
      %v841 = vadd.f32 %v806, %v839
      %s842 = scalar_lea.vmem %s1, 8
      %v843 = vld [vmem:[%s842] sm:$0x1]
      %v845 = vlaneseq
      %v846 = vshrl.u32 %v845, 7
      %v847 = vsub.s32 0, %v846
      %v848 = vrot.slane %v843, %v847
      %v850 = vmul.f32 %v629, %v848
      %v851 = vmul.f32 %v630, %v848
      %v854 = vrot.slane %v850, 4
      %v855 = vrot.slane %v851, 4
      %v856 = vsel %vm819, %v854, %v855
      %v858 = vadd.f32 %v824, %v856
      %s859 = scalar_lea.vmem %s7, 8
      %v860 = vld [vmem:[%s859] sm:$0x1]
      %v862 = vlaneseq
      %v863 = vshrl.u32 %v862, 7
      %v864 = vsub.s32 0, %v863
      %v865 = vrot.slane %v860, %v864
      %v867 = vmul.f32 %v625, %v865
      %v868 = vmul.f32 %v626, %v865
      %v871 = vrot.slane %v867, 4
      %v872 = vrot.slane %v868, 4
      %v873 = vsel %vm819, %v871, %v872
      %v875 = vadd.f32 %v841, %v873
      %v877 = vrot.slane %v858, 1
      %vm879 = vcmask 1041408
      %v880 = vsel %vm879, %v858, %v877
      %v881 = vld [vmem:[%s2] sm:$0x1]
      %v883 = vlaneseq
      %v884 = vshrl.u32 %v883, 7
      %v885 = vsub.s32 0, %v884
      %v886 = vrot.slane %v881, %v885
      %v888 = vadd.f32 %v880, %v886
      %v890 = vrot.slane %v875, 1
      %v892 = vsel %vm879, %v875, %v890
      %v893 = vld [vmem:[%s8] sm:$0x1]
      %v895 = vlaneseq
      %v896 = vshrl.u32 %v895, 7
      %v897 = vsub.s32 0, %v896
      %v898 = vrot.slane %v893, %v897
      %v900 = vadd.f32 %v892, %v898
      %v901 = vpack.c.bf16 %v888, %v888
      %v902 = vld [vmem:[%s3] sm:$0xf]
      %v903 = vld [vmem:[%s3 + $0x4] sm:$0xf]
      %v904 = vld [vmem:[%s4] sm:$0x1]
      %v906 = vlaneseq
      %v907 = vshrl.u32 %v906, 7
      %v908 = vsub.s32 0, %v907
      %v909 = vrot.slane %v904, %v908
      %v913 = vunpack.c.l.b16 %v902
      %v914 = vunpack.c.l.b16 %v903
      %v915 = vpack.c.b16 %v914, %v913
      %v918 = vsel %vm419, %v901, 0
      %920 = vmatprep.subr.bf16.mxu0 0
      %921 = vmatpush1.bf16.msra.mxu0 %v915
      %922 = vmatprep.subr.bf16.mxu0 0
      %923 = vmatpush1.bf16.msra.mxu0 0
      %924 = vmatprep.subr.bf16.mxu0 0
      %925 = vmatpush1.bf16.msra.mxu0 0
      %926 = vmatprep.subr.bf16.mxu0 0
      %927 = vmatpush1.bf16.msra.mxu0 0
      %928 = vmatprep.subr.bf16.mxu0 0
      %929 = vmatpush1.bf16.msra.mxu0 0
      %930 = vmatprep.subr.bf16.mxu0 0
      %931 = vmatpush1.bf16.msra.mxu0 0
      %932 = vmatprep.subr.bf16.mxu0 0
      %933 = vmatpush1.bf16.msra.mxu0 0
      %934 = vmatprep.subr.bf16.mxu0 0
      %935 = vmatpush1.bf16.msra.mxu0 0
      %936 = vmatprep.subr.bf16.mxu0 0
      %937 = vmatpush1.bf16.msra.mxu0 0
      %938 = vmatprep.subr.bf16.mxu0 0
      %939 = vmatpush1.bf16.msra.mxu0 0
      %940 = vmatprep.subr.bf16.mxu0 0
      %941 = vmatpush1.bf16.msra.mxu0 0
      %942 = vmatprep.subr.bf16.mxu0 0
      %943 = vmatpush1.bf16.msra.mxu0 0
      %944 = vmatprep.subr.bf16.mxu0 0
      %945 = vmatpush1.bf16.msra.mxu0 0
      %946 = vmatprep.subr.bf16.mxu0 0
      %947 = vmatpush1.bf16.msra.mxu0 0
      %948 = vmatprep.subr.bf16.mxu0 0
      %949 = vmatpush1.bf16.msra.mxu0 0
      %950 = vmatprep.subr.bf16.mxu0 0
      %951 = vmatpush1.bf16.msra.mxu0 0
      %952 = vmatprep.mubr.bf16.mxu0 0
      %953 = vmatmul.mubr.bf16.gmra.mrb[0].mxu0 %v918
      %v954 = vpop.f32.mrb[0].mxu0
      %v955 = vadd.f32 %v909, %v954
      %v956 = vpop.f32.mrb[0].mxu0
      %v957 = vpop.f32.mrb[0].mxu0
      %v958 = vpop.f32.mrb[0].mxu0
      %959 = vdwg.mxu0
      %v960 = vmax.f32 %v955, 0.0
      %v961 = vpack.c.bf16 %v900, %v900
      %v962 = vld [vmem:[%s9] sm:$0xf]
      %v963 = vld [vmem:[%s9 + $0x4] sm:$0xf]
      %v964 = vld [vmem:[%s10] sm:$0x1]
      %v966 = vlaneseq
      %v967 = vshrl.u32 %v966, 7
      %v968 = vsub.s32 0, %v967
      %v969 = vrot.slane %v964, %v968
      %v973 = vunpack.c.l.b16 %v962
      %v974 = vunpack.c.l.b16 %v963
      %v975 = vpack.c.b16 %v974, %v973
      %v978 = vsel %vm419, %v961, 0
      %980 = vmatprep.subr.bf16.mxu0 0
      %981 = vmatpush1.bf16.msra.mxu0 %v975
      %982 = vmatprep.subr.bf16.mxu0 0
      %983 = vmatpush1.bf16.msra.mxu0 0
      %984 = vmatprep.subr.bf16.mxu0 0
      %985 = vmatpush1.bf16.msra.mxu0 0
      %986 = vmatprep.subr.bf16.mxu0 0
      %987 = vmatpush1.bf16.msra.mxu0 0
      %988 = vmatprep.subr.bf16.mxu0 0
      %989 = vmatpush1.bf16.msra.mxu0 0
      %990 = vmatprep.subr.bf16.mxu0 0
      %991 = vmatpush1.bf16.msra.mxu0 0
      %992 = vmatprep.subr.bf16.mxu0 0
      %993 = vmatpush1.bf16.msra.mxu0 0
      %994 = vmatprep.subr.bf16.mxu0 0
      %995 = vmatpush1.bf16.msra.mxu0 0
      %996 = vmatprep.subr.bf16.mxu0 0
      %997 = vmatpush1.bf16.msra.mxu0 0
      %998 = vmatprep.subr.bf16.mxu0 0
      %999 = vmatpush1.bf16.msra.mxu0 0
      %1000 = vmatprep.subr.bf16.mxu0 0
      %1001 = vmatpush1.bf16.msra.mxu0 0
      %1002 = vmatprep.subr.bf16.mxu0 0
      %1003 = vmatpush1.bf16.msra.mxu0 0
      %1004 = vmatprep.subr.bf16.mxu0 0
      %1005 = vmatpush1.bf16.msra.mxu0 0
      %1006 = vmatprep.subr.bf16.mxu0 0
      %1007 = vmatpush1.bf16.msra.mxu0 0
      %1008 = vmatprep.subr.bf16.mxu0 0
      %1009 = vmatpush1.bf16.msra.mxu0 0
      %1010 = vmatprep.subr.bf16.mxu0 0
      %1011 = vmatpush1.bf16.msra.mxu0 0
      %1012 = vmatprep.mubr.bf16.mxu0 0
      %1013 = vmatmul.mubr.bf16.gmra.mrb[0].mxu0 %v978
      %v1014 = vpop.f32.mrb[0].mxu0
      %v1015 = vadd.f32 %v969, %v1014
      %v1016 = vpop.f32.mrb[0].mxu0
      %v1017 = vpop.f32.mrb[0].mxu0
      %v1018 = vpop.f32.mrb[0].mxu0
      %1019 = vdwg.mxu0
      %v1020 = vmax.f32 %v1015, 0.0
      %v1021 = vadd.f32 %v960, %v1020
      %v1022 = vpack.c.bf16 %v1021, %v1021
      %vm1023 = vcmask 254976
      %1024 = vst.msk [vmem:[%s384] sm:$0x3] %vm1023, %v1022
      %p1025 = scmp.lt.s32.totalorder %s22, 1
      %s1026 = scalar_select %p1025, %s22, 1
      %s1027 = smul.addr %s1026, 2
      %s1028 = scalar_lea.vmem %s11, %s1027
      // Predicated region
      $region65: #{shufflenet_v2_forward.13} parent=63 // pred_check
        %p1029 = pneg %p276
      $region66: #{shufflenet_v2_forward.13} parent=63 // pred_check_branch
        %1031 = sbr.rel (%p1029) target = $region68
      $region67: #{shufflenet_v2_forward.13} parent=63 // pred_region
        _
      $region68: #{shufflenet_v2_forward.13} parent=63 // pred_fallthru
        _
    $region64: #{shufflenet_v2_forward.13} parent=5 // pred_fallthru
      _
    %p1032 = scmp.le.s32.totalorder 2, %s17
    // Predicated region
    $region69: #{shufflenet_v2_forward.13} parent=5 // pred_check
      %p1033 = pneg %p1032
    $region70: #{shufflenet_v2_forward.13} parent=5 // pred_check_branch
      %1035 = sbr.rel (%p1033) target = $region72
    $region71: #{shufflenet_v2_forward.13} parent=5 // pred_region
      %s1036 = ssub.s32 %s17, 2
      // Predicated region
      $region73: #{shufflenet_v2_forward.13} parent=71 // pred_check
        %p1037 = pneg %p282
      $region74: #{shufflenet_v2_forward.13} parent=71 // pred_check_branch
        %1039 = sbr.rel (%p1037) target = $region76
      $region75: #{shufflenet_v2_forward.13} parent=71 // pred_region
        %p1040 = scmp.lt.s32.totalorder %s23, 1
        %s1041 = scalar_select %p1040, %s23, 1
        %s1042 = smul.addr %s1041, 2
        %s1043 = scalar_lea.vmem %s11, %s1042
      $region76: #{shufflenet_v2_forward.13} parent=71 // pred_fallthru
        _
    $region72: #{shufflenet_v2_forward.13} parent=5 // pred_fallthru
      _
  $region6: #{shufflenet_v2_forward.13} parent=0 // loop_footer
    %s21 = sadd.s32 1, %s17
  $region7: #{shufflenet_v2_forward.13} parent=0 // loop_footer_branch
    %16 = sbr.rel target = $region3
  $region8: #{shufflenet_v2_forward.13} parent=0 // loop_exit
    _

// kernel: shufflenet_v2_forward.14
$region0: #{shufflenet_v2_forward.14}
  #allocation0 [shape = 'u32[]', space=smem, size = 0x4, offset = 0x4, fixed_abs, tag = 'smem constant byte address 0x4 - core index']
  #allocation1 [shape = 'u32[144,128]{1,0:T(1,128)}', space=vmem, size = 0x12000, scoped, tag = 'internal scratch']
  %s0 = inlined_call_operand.vmem [shape: bf16[2,4,32], index: 0, kind: input, shape index: {}]
  %s1 = inlined_call_operand.vmem [shape: bf16[16,16], index: 1, kind: input, shape index: {}]
  %s2 = inlined_call_operand.vmem [shape: f32[1,16], index: 2, kind: input, shape index: {}]
  %s3 = inlined_call_operand.vmem [shape: f32[9,1,16], index: 3, kind: input, shape index: {}]
  %s4 = inlined_call_operand.vmem [shape: f32[1,16], index: 4, kind: input, shape index: {}]
  %s5 = inlined_call_operand.vmem [shape: bf16[16,32], index: 5, kind: input, shape index: {}]
  %s6 = inlined_call_operand.vmem [shape: f32[1,32], index: 6, kind: input, shape index: {}]
  %s7 = inlined_call_operand.vmem [shape: bf16[2,4,32], index: 7, kind: output, shape index: {}]
  %s8 = sld [smem:[#allocation0]]
  $region61: #{shufflenet_v2_forward.14} parent=0
    _
  %s10 = ssub.s32 1, %s8
  %s11 = scalar_select 0, %s10, %s8
  loop: start=0, step=1, limit=4
  $region2: #{shufflenet_v2_forward.14} parent=0 // loop_pre_header
    _
  $region3: #{shufflenet_v2_forward.14} parent=0 // loop_header
    %s13 = sphi 0, %s17
    %p14 = scmp.ge.s32.totalorder %s13, 4
    %s23 = sphi 0, %s25
    %s26 = sphi 0, %s23
    %s27 = sphi 0, %s26
    %s43 = sphi 0, %s27
    %s47 = sphi 0, %s47
    %s49 = sphi 0, %s47
    %s50 = sphi 0, %s49
    %s64 = sphi 0, %s50
    %s68 = sphi 0, %s68
    %s70 = sphi 0, %s68
    %s71 = sphi 0, %s70
    %s85 = sphi 0, %s71
    %s89 = sphi 0, %s89
    %s91 = sphi 0, %s89
    %s92 = sphi 0, %s91
    %s106 = sphi 0, %s92
    %s110 = sphi 0, %s110
    %s112 = sphi 0, %s110
    %s113 = sphi 0, %s112
    %s127 = sphi 0, %s113
    %s131 = sphi 0, %s131
    %s133 = sphi 0, %s131
    %s134 = sphi 0, %s133
    %s148 = sphi 0, %s134
    %s152 = sphi 0, %s152
    %s154 = sphi 0, %s152
    %s155 = sphi 0, %s154
    %s169 = sphi 0, %s155
    %s175 = sphi 0, %s177
    %s178 = sphi 0, %s175
    %s179 = sphi 0, %s178
    %s195 = sphi 0, %s179
  $region4: #{shufflenet_v2_forward.14} parent=0 // loop_header_branch
    %16 = sbr.rel (%p14) target = $region8
  $region5: #{shufflenet_v2_forward.14} parent=0 // loop_body
    %s18 = ssub.s32 %s13, 1
    %s19 = ssub.s32 %s13, 2
    %s20 = sadd.s32 %s13, 1
    %s21 = ssub.s32 %s13, %s20
    %p22 = scmp.eq.s32.totalorder %s21, 0
    %s24 = sadd.s32 %s23, 1
    %s25 = scalar_select %p22, %s23, %s24
    %p28 = pneg %p22
    %p29 = scmp.eq.s32.totalorder %s13, 1
    %p30 = por %p28, %p29
    %p31 = scmp.ne.s32.totalorder %s23, %s26
    %p32 = scmp.eq.s32.totalorder %s13, 0
    %p33 = por %p31, %p32
    %p34 = scmp.ne.s32.totalorder %s23, %s26
    %p35 = scmp.eq.s32.totalorder %s18, 1
    %p36 = por %p34, %p35
    %p37 = scmp.ne.s32.totalorder %s26, %s27
    %p38 = scmp.eq.s32.totalorder %s18, 0
    %p39 = por %p37, %p38
    %p40 = scmp.ne.s32.totalorder %s26, %s27
    %p41 = scmp.eq.s32.totalorder %s19, 1
    %p42 = por %p40, %p41
    %p44 = scmp.ne.s32.totalorder %s27, %s43
    %p45 = scmp.eq.s32.totalorder %s19, 0
    %p46 = por %p44, %p45
    %s48 = sadd.s32 %s47, 1
    %p51 = scmp.eq.s32.totalorder %s13, 1
    %p52 = scmp.ne.s32.totalorder %s47, %s49
    %p53 = scmp.eq.s32.totalorder %s13, 0
    %p54 = por %p52, %p53
    %p55 = scmp.ne.s32.totalorder %s47, %s49
    %p56 = scmp.eq.s32.totalorder %s18, 1
    %p57 = por %p55, %p56
    %p58 = scmp.ne.s32.totalorder %s49, %s50
    %p59 = scmp.eq.s32.totalorder %s18, 0
    %p60 = por %p58, %p59
    %p61 = scmp.ne.s32.totalorder %s49, %s50
    %p62 = scmp.eq.s32.totalorder %s19, 1
    %p63 = por %p61, %p62
    %p65 = scmp.ne.s32.totalorder %s50, %s64
    %p66 = scmp.eq.s32.totalorder %s19, 0
    %p67 = por %p65, %p66
    %s69 = sadd.s32 %s68, 1
    %p72 = scmp.eq.s32.totalorder %s13, 1
    %p73 = scmp.ne.s32.totalorder %s68, %s70
    %p74 = scmp.eq.s32.totalorder %s13, 0
    %p75 = por %p73, %p74
    %p76 = scmp.ne.s32.totalorder %s68, %s70
    %p77 = scmp.eq.s32.totalorder %s18, 1
    %p78 = por %p76, %p77
    %p79 = scmp.ne.s32.totalorder %s70, %s71
    %p80 = scmp.eq.s32.totalorder %s18, 0
    %p81 = por %p79, %p80
    %p82 = scmp.ne.s32.totalorder %s70, %s71
    %p83 = scmp.eq.s32.totalorder %s19, 1
    %p84 = por %p82, %p83
    %p86 = scmp.ne.s32.totalorder %s71, %s85
    %p87 = scmp.eq.s32.totalorder %s19, 0
    %p88 = por %p86, %p87
    %s90 = sadd.s32 %s89, 1
    %p93 = scmp.eq.s32.totalorder %s13, 1
    %p94 = scmp.ne.s32.totalorder %s89, %s91
    %p95 = scmp.eq.s32.totalorder %s13, 0
    %p96 = por %p94, %p95
    %p97 = scmp.ne.s32.totalorder %s89, %s91
    %p98 = scmp.eq.s32.totalorder %s18, 1
    %p99 = por %p97, %p98
    %p100 = scmp.ne.s32.totalorder %s91, %s92
    %p101 = scmp.eq.s32.totalorder %s18, 0
    %p102 = por %p100, %p101
    %p103 = scmp.ne.s32.totalorder %s91, %s92
    %p104 = scmp.eq.s32.totalorder %s19, 1
    %p105 = por %p103, %p104
    %p107 = scmp.ne.s32.totalorder %s92, %s106
    %p108 = scmp.eq.s32.totalorder %s19, 0
    %p109 = por %p107, %p108
    %s111 = sadd.s32 %s110, 1
    %p114 = scmp.eq.s32.totalorder %s13, 1
    %p115 = scmp.ne.s32.totalorder %s110, %s112
    %p116 = scmp.eq.s32.totalorder %s13, 0
    %p117 = por %p115, %p116
    %p118 = scmp.ne.s32.totalorder %s110, %s112
    %p119 = scmp.eq.s32.totalorder %s18, 1
    %p120 = por %p118, %p119
    %p121 = scmp.ne.s32.totalorder %s112, %s113
    %p122 = scmp.eq.s32.totalorder %s18, 0
    %p123 = por %p121, %p122
    %p124 = scmp.ne.s32.totalorder %s112, %s113
    %p125 = scmp.eq.s32.totalorder %s19, 1
    %p126 = por %p124, %p125
    %p128 = scmp.ne.s32.totalorder %s113, %s127
    %p129 = scmp.eq.s32.totalorder %s19, 0
    %p130 = por %p128, %p129
    %s132 = sadd.s32 %s131, 1
    %p135 = scmp.eq.s32.totalorder %s13, 1
    %p136 = scmp.ne.s32.totalorder %s131, %s133
    %p137 = scmp.eq.s32.totalorder %s13, 0
    %p138 = por %p136, %p137
    %p139 = scmp.ne.s32.totalorder %s131, %s133
    %p140 = scmp.eq.s32.totalorder %s18, 1
    %p141 = por %p139, %p140
    %p142 = scmp.ne.s32.totalorder %s133, %s134
    %p143 = scmp.eq.s32.totalorder %s18, 0
    %p144 = por %p142, %p143
    %p145 = scmp.ne.s32.totalorder %s133, %s134
    %p146 = scmp.eq.s32.totalorder %s19, 1
    %p147 = por %p145, %p146
    %p149 = scmp.ne.s32.totalorder %s134, %s148
    %p150 = scmp.eq.s32.totalorder %s19, 0
    %p151 = por %p149, %p150
    %s153 = sadd.s32 %s152, 1
    %p156 = scmp.eq.s32.totalorder %s13, 1
    %p157 = scmp.ne.s32.totalorder %s152, %s154
    %p158 = scmp.eq.s32.totalorder %s13, 0
    %p159 = por %p157, %p158
    %p160 = scmp.ne.s32.totalorder %s152, %s154
    %p161 = scmp.eq.s32.totalorder %s18, 1
    %p162 = por %p160, %p161
    %p163 = scmp.ne.s32.totalorder %s154, %s155
    %p164 = scmp.eq.s32.totalorder %s18, 0
    %p165 = por %p163, %p164
    %p166 = scmp.ne.s32.totalorder %s154, %s155
    %p167 = scmp.eq.s32.totalorder %s19, 1
    %p168 = por %p166, %p167
    %p170 = scmp.ne.s32.totalorder %s155, %s169
    %p171 = scmp.eq.s32.totalorder %s19, 0
    %p172 = por %p170, %p171
    %s173 = ssub.s32 %s13, %s20
    %p174 = scmp.eq.s32.totalorder %s173, 0
    %s176 = sadd.s32 %s175, 1
    %s177 = scalar_select %p174, %s175, %s176
    %p180 = pneg %p174
    %p181 = scmp.eq.s32.totalorder %s13, 1
    %p182 = por %p180, %p181
    %p183 = scmp.ne.s32.totalorder %s175, %s178
    %p184 = scmp.eq.s32.totalorder %s13, 0
    %p185 = por %p183, %p184
    %p186 = scmp.ne.s32.totalorder %s175, %s178
    %p187 = scmp.eq.s32.totalorder %s18, 1
    %p188 = por %p186, %p187
    %p189 = scmp.ne.s32.totalorder %s178, %s179
    %p190 = scmp.eq.s32.totalorder %s18, 0
    %p191 = por %p189, %p190
    %p192 = scmp.ne.s32.totalorder %s178, %s179
    %p193 = scmp.eq.s32.totalorder %s19, 1
    %p194 = por %p192, %p193
    %p196 = scmp.ne.s32.totalorder %s179, %s195
    %p197 = scmp.eq.s32.totalorder %s19, 0
    %p198 = por %p196, %p197
    %p199 = scmp.le.s32.totalorder 1, %s13
    %p200 = scmp.lt.s32.totalorder %s13, 3
    %p201 = pnand %p199, %p200
    %p202 = pneg %p201
    // Predicated region
    $region9: #{shufflenet_v2_forward.14} parent=5 // pred_check
      _
    $region10: #{shufflenet_v2_forward.14} parent=5 // pred_check_branch
      %204 = sbr.rel (%p201) target = $region12
    $region11: #{shufflenet_v2_forward.14} parent=5 // pred_region
      %s205 = ssub.s32 %s13, 1
      // Predicated region
      $region13: #{shufflenet_v2_forward.14} parent=11 // pred_check
        %p206 = pneg %p60
      $region14: #{shufflenet_v2_forward.14} parent=11 // pred_check_branch
        %208 = sbr.rel (%p206) target = $region16
      $region15: #{shufflenet_v2_forward.14} parent=11 // pred_region
        _
      $region16: #{shufflenet_v2_forward.14} parent=11 // pred_fallthru
        _
      // Predicated region
      $region17: #{shufflenet_v2_forward.14} parent=11 // pred_check
        %p209 = pneg %p81
      $region18: #{shufflenet_v2_forward.14} parent=11 // pred_check_branch
        %211 = sbr.rel (%p209) target = $region20
      $region19: #{shufflenet_v2_forward.14} parent=11 // pred_region
        _
      $region20: #{shufflenet_v2_forward.14} parent=11 // pred_fallthru
        _
      // Predicated region
      $region21: #{shufflenet_v2_forward.14} parent=11 // pred_check
        %p212 = pneg %p102
      $region22: #{shufflenet_v2_forward.14} parent=11 // pred_check_branch
        %214 = sbr.rel (%p212) target = $region24
      $region23: #{shufflenet_v2_forward.14} parent=11 // pred_region
        _
      $region24: #{shufflenet_v2_forward.14} parent=11 // pred_fallthru
        _
      // Predicated region
      $region25: #{shufflenet_v2_forward.14} parent=11 // pred_check
        %p215 = pneg %p123
      $region26: #{shufflenet_v2_forward.14} parent=11 // pred_check_branch
        %217 = sbr.rel (%p215) target = $region28
      $region27: #{shufflenet_v2_forward.14} parent=11 // pred_region
        _
      $region28: #{shufflenet_v2_forward.14} parent=11 // pred_fallthru
        _
      // Predicated region
      $region29: #{shufflenet_v2_forward.14} parent=11 // pred_check
        %p218 = pneg %p144
      $region30: #{shufflenet_v2_forward.14} parent=11 // pred_check_branch
        %220 = sbr.rel (%p218) target = $region32
      $region31: #{shufflenet_v2_forward.14} parent=11 // pred_region
        _
      $region32: #{shufflenet_v2_forward.14} parent=11 // pred_fallthru
        _
      // Predicated region
      $region33: #{shufflenet_v2_forward.14} parent=11 // pred_check
        %p221 = pneg %p165
      $region34: #{shufflenet_v2_forward.14} parent=11 // pred_check_branch
        %223 = sbr.rel (%p221) target = $region36
      $region35: #{shufflenet_v2_forward.14} parent=11 // pred_region
        _
      $region36: #{shufflenet_v2_forward.14} parent=11 // pred_fallthru
        _
    $region12: #{shufflenet_v2_forward.14} parent=5 // pred_fallthru
      _
    %p224 = scmp.lt.s32.totalorder %s13, 2
    // Predicated region
    $region37: #{shufflenet_v2_forward.14} parent=5 // pred_check
      %p225 = pneg %p224
    $region38: #{shufflenet_v2_forward.14} parent=5 // pred_check_branch
      %227 = sbr.rel (%p225) target = $region40
    $region39: #{shufflenet_v2_forward.14} parent=5 // pred_region
      // Predicated region
      $region41: #{shufflenet_v2_forward.14} parent=39 // pred_check
        %p228 = pneg %p33
      $region42: #{shufflenet_v2_forward.14} parent=39 // pred_check_branch
        %230 = sbr.rel (%p228) target = $region44
      $region43: #{shufflenet_v2_forward.14} parent=39 // pred_region
        %p231 = scmp.lt.s32.totalorder %s13, 1
        %s232 = scalar_select %p231, %s13, 1
        %s233 = smul.addr %s232, 2
        %s234 = scalar_lea.vmem %s0, %s233
      $region44: #{shufflenet_v2_forward.14} parent=39 // pred_fallthru
        _
    $region40: #{shufflenet_v2_forward.14} parent=5 // pred_fallthru
      _
    %p235 = scmp.le.s32.totalorder 1, %s13
    %p236 = scmp.lt.s32.totalorder %s13, 3
    %p237 = pnand %p235, %p236
    %p238 = pneg %p237
    // Predicated region
    $region45: #{shufflenet_v2_forward.14} parent=5 // pred_check
      _
    $region46: #{shufflenet_v2_forward.14} parent=5 // pred_check_branch
      %240 = sbr.rel (%p237) target = $region48
    $region47: #{shufflenet_v2_forward.14} parent=5 // pred_region
      %s241 = ssub.s32 %s13, 1
      %p242 = scmp.lt.s32.totalorder %s18, 1
      %s243 = scalar_select %p242, %s18, 1
      %s244 = smul.addr %s243, 2
      %s245 = scalar_lea.vmem %s0, %s244
      %p246 = pneg %p39
      %p247 = pneg %p36
      %p248 = pneg %p60
      %p249 = pneg %p57
      %p250 = pneg %p81
      %p251 = pneg %p78
      %p252 = pneg %p102
      %p253 = pneg %p99
      %p254 = pneg %p123
      %p255 = pneg %p120
      %p256 = pneg %p144
      %p257 = pneg %p141
      %p258 = pneg %p165
      %p259 = pneg %p162
      %p260 = pneg %p191
      %p261 = pneg %p188
      %p262 = scmp.lt.s32.totalorder %s18, 1
      %s263 = scalar_select %p262, %s18, 1
      %s264 = smul.addr %s263, 2
      %s265 = scalar_lea.vmem %s7, %s264
      %p266 = scmp.lt.s32.totalorder %s18, 1
      %s267 = scalar_select %p266, %s18, 1
      %s268 = smul.addr %s267, 2
      %s269 = scalar_lea.vmem %s0, %s268
      %p270 = scmp.lt.s32.totalorder %s18, 1
      %s271 = scalar_select %p270, %s18, 1
      %s272 = smul.addr %s271, 2
      %s273 = scalar_lea.vmem %s7, %s272
      %v275 = vld [vmem:[%s269] sm:$0x3]
      %v276 = vld [vmem:[%s1] sm:$0xf]
      %v277 = vld [vmem:[%s1 + $0x4] sm:$0xf]
      %v278 = vld [vmem:[%s2] sm:$0x1]
      %v280 = vlaneseq
      %v281 = vshrl.u32 %v280, 7
      %v282 = vsub.s32 0, %v281
      %v283 = vrot.slane %v278, %v282
      %v287 = vunpack.c.l.s4 1983009808
      %v288 = vunpack.c.0.s8 %v287
      %v289 = vlaneseq
      %v290 = vshrl.u32 %v289, 7
      %v291 = vsub.s32 %v288, %v290
      %v292 = vrot.slane %v275, %v291
      %293 = vrot.lane.b32.xlu0 %v292, 112
      %v294 = vpop.permute.xlu0 %293
      %v297 = vunpack.c.l.b16 %v276
      %v298 = vunpack.c.l.b16 %v277
      %v299 = vpack.c.b16 %v298, %v297
      %vm301 = vcmask 130048
      %v303 = vsel %vm301, %v294, 0
      %305 = vmatprep.subr.bf16.mxu0 0
      %306 = vmatpush1.bf16.msra.mxu0 %v299
      %307 = vmatprep.subr.bf16.mxu0 0
      %308 = vmatpush1.bf16.msra.mxu0 0
      %309 = vmatprep.subr.bf16.mxu0 0
      %310 = vmatpush1.bf16.msra.mxu0 0
      %311 = vmatprep.subr.bf16.mxu0 0
      %312 = vmatpush1.bf16.msra.mxu0 0
      %313 = vmatprep.subr.bf16.mxu0 0
      %314 = vmatpush1.bf16.msra.mxu0 0
      %315 = vmatprep.subr.bf16.mxu0 0
      %316 = vmatpush1.bf16.msra.mxu0 0
      %317 = vmatprep.subr.bf16.mxu0 0
      %318 = vmatpush1.bf16.msra.mxu0 0
      %319 = vmatprep.subr.bf16.mxu0 0
      %320 = vmatpush1.bf16.msra.mxu0 0
      %321 = vmatprep.subr.bf16.mxu0 0
      %322 = vmatpush1.bf16.msra.mxu0 0
      %323 = vmatprep.subr.bf16.mxu0 0
      %324 = vmatpush1.bf16.msra.mxu0 0
      %325 = vmatprep.subr.bf16.mxu0 0
      %326 = vmatpush1.bf16.msra.mxu0 0
      %327 = vmatprep.subr.bf16.mxu0 0
      %328 = vmatpush1.bf16.msra.mxu0 0
      %329 = vmatprep.subr.bf16.mxu0 0
      %330 = vmatpush1.bf16.msra.mxu0 0
      %331 = vmatprep.subr.bf16.mxu0 0
      %332 = vmatpush1.bf16.msra.mxu0 0
      %333 = vmatprep.subr.bf16.mxu0 0
      %334 = vmatpush1.bf16.msra.mxu0 0
      %335 = vmatprep.subr.bf16.mxu0 0
      %336 = vmatpush1.bf16.msra.mxu0 0
      %337 = vmatprep.mubr.bf16.mxu0 0
      %338 = vmatmul.mubr.bf16.gmra.mrb[0].mxu0 %v303
      %v339 = vpop.f32.mrb[0].mxu0
      %v340 = vadd.f32 %v283, %v339
      %v341 = vpop.f32.mrb[0].mxu0
      %v342 = vpop.f32.mrb[0].mxu0
      %v343 = vpop.f32.mrb[0].mxu0
      %344 = vdwg.mxu0
      %v345 = vmax.f32 %v340, 0.0
      %v346 = vlaneseq
      %v347 = vshrl.u32 %v346, 7
      %v348 = vcvt.s32.f32 %v347
      %v349 = vadd.f32 %v348, 0.5
      %v350 = vmul.f32 %v349, 0.5
      %v351 = vfloor.f32 %v350
      %v352 = vmul.f32 %v351, 2.0
      %v353 = vsub.f32 %v348, %v352
      %vm354 = vcmp.ge.f32.partialorder %v353, 0.5
      %v355 = vsel %vm354, 1, 0
      %v356 = vcvt.s32.f32 %v355
      %vm357 = vcmp.le.f32.partialorder %v353, 0.5
      %v358 = vsel %vm357, 1, 0
      %v359 = vcvt.s32.f32 %v358
      %v361 = vrot.slane %v345, 5
      %vm363 = vcmask 1042432
      %v364 = vsel %vm363, 0.0, %v361
      %vm365 = vcmask 1046528
      %v366 = vsel %vm365, %v364, 0.0
      %v367 = vmul.f32 %v366, %v356
      %v368 = vld [vmem:[%s3] sm:$0x1]
      %v370 = vlaneseq
      %v371 = vshrl.u32 %v370, 7
      %v372 = vsub.s32 0, %v371
      %v373 = vrot.slane %v368, %v372
      %v375 = vmul.f32 %v367, %v373
      %v376 = vadd.f32 %v375, 0.0
      %s377 = scalar_lea.vmem %s3, 1
      %v378 = vld [vmem:[%s377] sm:$0x1]
      %v380 = vlaneseq
      %v381 = vshrl.u32 %v380, 7
      %v382 = vsub.s32 0, %v381
      %v383 = vrot.slane %v378, %v382
      %v385 = vmul.f32 %v366, %v383
      %v387 = vrot.slane %v385, 1
      %v389 = vadd.f32 %v376, %v387
      %v391 = vrot.slane %v359, 6
      %v393 = vmul.f32 %v366, %v391
      %s394 = scalar_lea.vmem %s3, 2
      %v395 = vld [vmem:[%s394] sm:$0x1]
      %v397 = vlaneseq
      %v398 = vshrl.u32 %v397, 7
      %v399 = vsub.s32 0, %v398
      %v400 = vrot.slane %v395, %v399
      %v402 = vmul.f32 %v393, %v400
      %v404 = vrot.slane %v402, 2
      %v406 = vadd.f32 %v389, %v404
      %v408 = vrot.slane %v356, 6
      %v410 = vmul.f32 %v366, %v408
      %s411 = scalar_lea.vmem %s3, 3
      %v412 = vld [vmem:[%s411] sm:$0x1]
      %v414 = vlaneseq
      %v415 = vshrl.u32 %v414, 7
      %v416 = vsub.s32 0, %v415
      %v417 = vrot.slane %v412, %v416
      %v419 = vmul.f32 %v410, %v417
      %v421 = vrot.slane %v419, 2
      %v423 = vadd.f32 %v406, %v421
      %s424 = scalar_lea.vmem %s3, 4
      %v425 = vld [vmem:[%s424] sm:$0x1]
      %v427 = vlaneseq
      %v428 = vshrl.u32 %v427, 7
      %v429 = vsub.s32 0, %v428
      %v430 = vrot.slane %v425, %v429
      %v432 = vmul.f32 %v366, %v430
      %v434 = vrot.slane %v432, 3
      %v436 = vadd.f32 %v423, %v434
      %v437 = vrot.slane %v359, 4
      %v439 = vmul.f32 %v366, %v437
      %s440 = scalar_lea.vmem %s3, 5
      %v441 = vld [vmem:[%s440] sm:$0x1]
      %v443 = vlaneseq
      %v444 = vshrl.u32 %v443, 7
      %v445 = vsub.s32 0, %v444
      %v446 = vrot.slane %v441, %v445
      %v448 = vmul.f32 %v439, %v446
      %v450 = vrot.slane %v448, 4
      %v452 = vadd.f32 %v436, %v450
      %v453 = vrot.slane %v356, 4
      %v455 = vmul.f32 %v366, %v453
      %s456 = scalar_lea.vmem %s3, 6
      %v457 = vld [vmem:[%s456] sm:$0x1]
      %v459 = vlaneseq
      %v460 = vshrl.u32 %v459, 7
      %v461 = vsub.s32 0, %v460
      %v462 = vrot.slane %v457, %v461
      %v464 = vmul.f32 %v455, %v462
      %v466 = vrot.slane %v464, 4
      %v468 = vadd.f32 %v452, %v466
      %s469 = scalar_lea.vmem %s3, 7
      %v470 = vld [vmem:[%s469] sm:$0x1]
      %v472 = vlaneseq
      %v473 = vshrl.u32 %v472, 7
      %v474 = vsub.s32 0, %v473
      %v475 = vrot.slane %v470, %v474
      %v477 = vmul.f32 %v366, %v475
      %v478 = vmul.f32 %v475, 0.0
      %v481 = vrot.slane %v477, 5
      %v482 = vrot.slane %v478, 5
      %v483 = vsel %vm363, %v481, %v482
      %v485 = vadd.f32 %v468, %v483
      %v486 = vrot.slane %v359, 2
      %v488 = vmul.f32 %v366, %v486
      %v489 = vmul.f32 %v486, 0.0
      %s490 = scalar_lea.vmem %s3, 8
      %v491 = vld [vmem:[%s490] sm:$0x1]
      %v493 = vlaneseq
      %v494 = vshrl.u32 %v493, 7
      %v495 = vsub.s32 0, %v494
      %v496 = vrot.slane %v491, %v495
      %v498 = vmul.f32 %v488, %v496
      %v499 = vmul.f32 %v489, %v496
      %vm502 = vcmask 1041408
      %v503 = vrot.slane %v498, 6
      %v504 = vrot.slane %v499, 6
      %v505 = vsel %vm502, %v503, %v504
      %v507 = vadd.f32 %v485, %v505
      %v508 = vld [vmem:[%s4] sm:$0x1]
      %v510 = vlaneseq
      %v511 = vshrl.u32 %v510, 7
      %v512 = vsub.s32 0, %v511
      %v513 = vrot.slane %v508, %v512
      %v515 = vadd.f32 %v507, %v513
      %v516 = vpack.c.bf16 %v515, %v515
      %v517 = vld [vmem:[%s5] sm:$0xf]
      %v518 = vld [vmem:[%s5 + $0x4] sm:$0xf]
      %v519 = vld [vmem:[%s6] sm:$0x1]
      %v521 = vlaneseq
      %v522 = vshrl.u32 %v521, 7
      %v523 = vsub.s32 0, %v522
      %v524 = vrot.slane %v519, %v523
      %v528 = vunpack.c.l.b16 %v517
      %v529 = vunpack.c.l.b16 %v518
      %v530 = vpack.c.b16 %v529, %v528
      %v533 = vsel %vm301, %v516, 0
      %535 = vmatprep.subr.bf16.mxu0 0
      %536 = vmatpush1.bf16.msra.mxu0 %v530
      %537 = vmatprep.subr.bf16.mxu0 0
      %538 = vmatpush1.bf16.msra.mxu0 0
      %539 = vmatprep.subr.bf16.mxu0 0
      %540 = vmatpush1.bf16.msra.mxu0 0
      %541 = vmatprep.subr.bf16.mxu0 0
      %542 = vmatpush1.bf16.msra.mxu0 0
      %543 = vmatprep.subr.bf16.mxu0 0
      %544 = vmatpush1.bf16.msra.mxu0 0
      %545 = vmatprep.subr.bf16.mxu0 0
      %546 = vmatpush1.bf16.msra.mxu0 0
      %547 = vmatprep.subr.bf16.mxu0 0
      %548 = vmatpush1.bf16.msra.mxu0 0
      %549 = vmatprep.subr.bf16.mxu0 0
      %550 = vmatpush1.bf16.msra.mxu0 0
      %551 = vmatprep.subr.bf16.mxu0 0
      %552 = vmatpush1.bf16.msra.mxu0 0
      %553 = vmatprep.subr.bf16.mxu0 0
      %554 = vmatpush1.bf16.msra.mxu0 0
      %555 = vmatprep.subr.bf16.mxu0 0
      %556 = vmatpush1.bf16.msra.mxu0 0
      %557 = vmatprep.subr.bf16.mxu0 0
      %558 = vmatpush1.bf16.msra.mxu0 0
      %559 = vmatprep.subr.bf16.mxu0 0
      %560 = vmatpush1.bf16.msra.mxu0 0
      %561 = vmatprep.subr.bf16.mxu0 0
      %562 = vmatpush1.bf16.msra.mxu0 0
      %563 = vmatprep.subr.bf16.mxu0 0
      %564 = vmatpush1.bf16.msra.mxu0 0
      %565 = vmatprep.subr.bf16.mxu0 0
      %566 = vmatpush1.bf16.msra.mxu0 0
      %567 = vmatprep.mubr.bf16.mxu0 0
      %568 = vmatmul.mubr.bf16.gmra.mrb[0].mxu0 %v533
      %v569 = vpop.f32.mrb[0].mxu0
      %v570 = vadd.f32 %v524, %v569
      %v571 = vpop.f32.mrb[0].mxu0
      %v572 = vpop.f32.mrb[0].mxu0
      %v573 = vpop.f32.mrb[0].mxu0
      %574 = vdwg.mxu0
      %v575 = vmax.f32 %v570, 0.0
      %v576 = vadd.s32 %v347, 8
      %v577 = vlaneseq
      %v578 = vand.u32 %v577, 127
      %v579 = vmul.u32 %v347, 2
      %v580 = vmul.u32 %v576, 2
      %vm581 = vcmp.eq.s32.totalorder %v578, %v579
      %vm582 = vcmp.eq.s32.totalorder %v578, %v580
      %v583 = vsel %vm581, 1, 0
      %v584 = vsel %vm582, 1, 0
      %v585 = vcvt.s32.f32 %v583
      %v586 = vcvt.s32.f32 %v584
      %v587 = vpack.c.bf16 %v586, %v585
      %v589 = vsel %vm301, %v275, 0
      %591 = vmatprep.subr.bf16.mxu0 0
      %592 = vmatpush1.bf16.msra.mxu0 %v587
      %593 = vmatprep.subr.bf16.mxu0 0
      %594 = vmatpush1.bf16.msra.mxu0 0
      %595 = vmatprep.subr.bf16.mxu0 0
      %596 = vmatpush1.bf16.msra.mxu0 0
      %597 = vmatprep.subr.bf16.mxu0 0
      %598 = vmatpush1.bf16.msra.mxu0 0
      %599 = vmatprep.subr.bf16.mxu0 0
      %600 = vmatpush1.bf16.msra.mxu0 0
      %601 = vmatprep.subr.bf16.mxu0 0
      %602 = vmatpush1.bf16.msra.mxu0 0
      %603 = vmatprep.subr.bf16.mxu0 0
      %604 = vmatpush1.bf16.msra.mxu0 0
      %605 = vmatprep.subr.bf16.mxu0 0
      %606 = vmatpush1.bf16.msra.mxu0 0
      %607 = vmatprep.subr.bf16.mxu0 0
      %608 = vmatpush1.bf16.msra.mxu0 0
      %609 = vmatprep.subr.bf16.mxu0 0
      %610 = vmatpush1.bf16.msra.mxu0 0
      %611 = vmatprep.subr.bf16.mxu0 0
      %612 = vmatpush1.bf16.msra.mxu0 0
      %613 = vmatprep.subr.bf16.mxu0 0
      %614 = vmatpush1.bf16.msra.mxu0 0
      %615 = vmatprep.subr.bf16.mxu0 0
      %616 = vmatpush1.bf16.msra.mxu0 0
      %617 = vmatprep.subr.bf16.mxu0 0
      %618 = vmatpush1.bf16.msra.mxu0 0
      %619 = vmatprep.subr.bf16.mxu0 0
      %620 = vmatpush1.bf16.msra.mxu0 0
      %621 = vmatprep.subr.bf16.mxu0 0
      %622 = vmatpush1.bf16.msra.mxu0 0
      %623 = vmatprep.mubr.bf16.mxu0 0
      %624 = vmatmul.mubr.bf16.gmra.mrb[0].mxu0 %v589
      %v625 = vpop.f32.mrb[0].mxu0
      %v626 = vadd.f32 %v575, %v625
      %v627 = vpop.f32.mrb[0].mxu0
      %v628 = vpop.f32.mrb[0].mxu0
      %v629 = vpop.f32.mrb[0].mxu0
      %630 = vdwg.mxu0
      %v631 = vpack.c.bf16 %v626, %v626
      %vm632 = vcmask 254976
      %633 = vst.msk [vmem:[%s273] sm:$0x3] %vm632, %v631
      %p634 = scmp.lt.s32.totalorder %s18, 1
      %s635 = scalar_select %p634, %s18, 1
      %s636 = smul.addr %s635, 2
      %s637 = scalar_lea.vmem %s7, %s636
      // Predicated region
      $region49: #{shufflenet_v2_forward.14} parent=47 // pred_check
        %p638 = pneg %p188
      $region50: #{shufflenet_v2_forward.14} parent=47 // pred_check_branch
        %640 = sbr.rel (%p638) target = $region52
      $region51: #{shufflenet_v2_forward.14} parent=47 // pred_region
        _
      $region52: #{shufflenet_v2_forward.14} parent=47 // pred_fallthru
        _
    $region48: #{shufflenet_v2_forward.14} parent=5 // pred_fallthru
      _
    %p641 = scmp.le.s32.totalorder 2, %s13
    // Predicated region
    $region53: #{shufflenet_v2_forward.14} parent=5 // pred_check
      %p642 = pneg %p641
    $region54: #{shufflenet_v2_forward.14} parent=5 // pred_check_branch
      %644 = sbr.rel (%p642) target = $region56
    $region55: #{shufflenet_v2_forward.14} parent=5 // pred_region
      %s645 = ssub.s32 %s13, 2
      // Predicated region
      $region57: #{shufflenet_v2_forward.14} parent=55 // pred_check
        %p646 = pneg %p194
      $region58: #{shufflenet_v2_forward.14} parent=55 // pred_check_branch
        %648 = sbr.rel (%p646) target = $region60
      $region59: #{shufflenet_v2_forward.14} parent=55 // pred_region
        %p649 = scmp.lt.s32.totalorder %s19, 1
        %s650 = scalar_select %p649, %s19, 1
        %s651 = smul.addr %s650, 2
        %s652 = scalar_lea.vmem %s7, %s651
      $region60: #{shufflenet_v2_forward.14} parent=55 // pred_fallthru
        _
    $region56: #{shufflenet_v2_forward.14} parent=5 // pred_fallthru
      _
  $region6: #{shufflenet_v2_forward.14} parent=0 // loop_footer
    %s17 = sadd.s32 1, %s13
  $region7: #{shufflenet_v2_forward.14} parent=0 // loop_footer_branch
    %12 = sbr.rel target = $region3
  $region8: #{shufflenet_v2_forward.14} parent=0 // loop_exit
    _

// kernel: shufflenet_v2_forward.15
$region0: #{shufflenet_v2_forward.15}
  #allocation0 [shape = 'u32[]', space=smem, size = 0x4, offset = 0x4, fixed_abs, tag = 'smem constant byte address 0x4 - core index']
  #allocation1 [shape = 'u32[144,128]{1,0:T(1,128)}', space=vmem, size = 0x12000, scoped, tag = 'internal scratch']
  %s0 = inlined_call_operand.vmem [shape: bf16[2,16,32], index: 0, kind: input, shape index: {}]
  %s1 = inlined_call_operand.vmem [shape: f32[9,1,32], index: 1, kind: input, shape index: {}]
  %s2 = inlined_call_operand.vmem [shape: f32[1,32], index: 2, kind: input, shape index: {}]
  %s3 = inlined_call_operand.vmem [shape: bf16[32,64], index: 3, kind: input, shape index: {}]
  %s4 = inlined_call_operand.vmem [shape: f32[1,64], index: 4, kind: input, shape index: {}]
  %s5 = inlined_call_operand.vmem [shape: bf16[32,32], index: 5, kind: input, shape index: {}]
  %s6 = inlined_call_operand.vmem [shape: f32[1,32], index: 6, kind: input, shape index: {}]
  %s7 = inlined_call_operand.vmem [shape: f32[9,1,32], index: 7, kind: input, shape index: {}]
  %s8 = inlined_call_operand.vmem [shape: f32[1,32], index: 8, kind: input, shape index: {}]
  %s9 = inlined_call_operand.vmem [shape: bf16[32,64], index: 9, kind: input, shape index: {}]
  %s10 = inlined_call_operand.vmem [shape: f32[1,64], index: 10, kind: input, shape index: {}]
  %s11 = inlined_call_operand.vmem [shape: bf16[2,1,64], index: 11, kind: output, shape index: {}]
  %s12 = sld [smem:[#allocation0]]
  $region77: #{shufflenet_v2_forward.15} parent=0
    _
  %s14 = ssub.s32 1, %s12
  %s15 = scalar_select 0, %s14, %s12
  loop: start=0, step=1, limit=4
  $region2: #{shufflenet_v2_forward.15} parent=0 // loop_pre_header
    _
  $region3: #{shufflenet_v2_forward.15} parent=0 // loop_header
    %s17 = sphi 0, %s21
    %p18 = scmp.ge.s32.totalorder %s17, 4
    %s27 = sphi 0, %s29
    %s30 = sphi 0, %s27
    %s31 = sphi 0, %s30
    %s47 = sphi 0, %s31
    %s51 = sphi 0, %s51
    %s53 = sphi 0, %s51
    %s54 = sphi 0, %s53
    %s68 = sphi 0, %s54
    %s72 = sphi 0, %s72
    %s74 = sphi 0, %s72
    %s75 = sphi 0, %s74
    %s89 = sphi 0, %s75
    %s93 = sphi 0, %s93
    %s95 = sphi 0, %s93
    %s96 = sphi 0, %s95
    %s110 = sphi 0, %s96
    %s114 = sphi 0, %s114
    %s116 = sphi 0, %s114
    %s117 = sphi 0, %s116
    %s131 = sphi 0, %s117
    %s135 = sphi 0, %s135
    %s137 = sphi 0, %s135
    %s138 = sphi 0, %s137
    %s152 = sphi 0, %s138
    %s156 = sphi 0, %s156
    %s158 = sphi 0, %s156
    %s159 = sphi 0, %s158
    %s173 = sphi 0, %s159
    %s177 = sphi 0, %s177
    %s179 = sphi 0, %s177
    %s180 = sphi 0, %s179
    %s194 = sphi 0, %s180
    %s198 = sphi 0, %s198
    %s200 = sphi 0, %s198
    %s201 = sphi 0, %s200
    %s215 = sphi 0, %s201
    %s219 = sphi 0, %s219
    %s221 = sphi 0, %s219
    %s222 = sphi 0, %s221
    %s236 = sphi 0, %s222
    %s240 = sphi 0, %s240
    %s242 = sphi 0, %s240
    %s243 = sphi 0, %s242
    %s257 = sphi 0, %s243
    %s263 = sphi 0, %s265
    %s266 = sphi 0, %s263
    %s267 = sphi 0, %s266
    %s283 = sphi 0, %s267
  $region4: #{shufflenet_v2_forward.15} parent=0 // loop_header_branch
    %20 = sbr.rel (%p18) target = $region8
  $region5: #{shufflenet_v2_forward.15} parent=0 // loop_body
    %s22 = ssub.s32 %s17, 1
    %s23 = ssub.s32 %s17, 2
    %s24 = sadd.s32 %s17, 1
    %s25 = ssub.s32 %s17, %s24
    %p26 = scmp.eq.s32.totalorder %s25, 0
    %s28 = sadd.s32 %s27, 1
    %s29 = scalar_select %p26, %s27, %s28
    %p32 = pneg %p26
    %p33 = scmp.eq.s32.totalorder %s17, 1
    %p34 = por %p32, %p33
    %p35 = scmp.ne.s32.totalorder %s27, %s30
    %p36 = scmp.eq.s32.totalorder %s17, 0
    %p37 = por %p35, %p36
    %p38 = scmp.ne.s32.totalorder %s27, %s30
    %p39 = scmp.eq.s32.totalorder %s22, 1
    %p40 = por %p38, %p39
    %p41 = scmp.ne.s32.totalorder %s30, %s31
    %p42 = scmp.eq.s32.totalorder %s22, 0
    %p43 = por %p41, %p42
    %p44 = scmp.ne.s32.totalorder %s30, %s31
    %p45 = scmp.eq.s32.totalorder %s23, 1
    %p46 = por %p44, %p45
    %p48 = scmp.ne.s32.totalorder %s31, %s47
    %p49 = scmp.eq.s32.totalorder %s23, 0
    %p50 = por %p48, %p49
    %s52 = sadd.s32 %s51, 1
    %p55 = scmp.eq.s32.totalorder %s17, 1
    %p56 = scmp.ne.s32.totalorder %s51, %s53
    %p57 = scmp.eq.s32.totalorder %s17, 0
    %p58 = por %p56, %p57
    %p59 = scmp.ne.s32.totalorder %s51, %s53
    %p60 = scmp.eq.s32.totalorder %s22, 1
    %p61 = por %p59, %p60
    %p62 = scmp.ne.s32.totalorder %s53, %s54
    %p63 = scmp.eq.s32.totalorder %s22, 0
    %p64 = por %p62, %p63
    %p65 = scmp.ne.s32.totalorder %s53, %s54
    %p66 = scmp.eq.s32.totalorder %s23, 1
    %p67 = por %p65, %p66
    %p69 = scmp.ne.s32.totalorder %s54, %s68
    %p70 = scmp.eq.s32.totalorder %s23, 0
    %p71 = por %p69, %p70
    %s73 = sadd.s32 %s72, 1
    %p76 = scmp.eq.s32.totalorder %s17, 1
    %p77 = scmp.ne.s32.totalorder %s72, %s74
    %p78 = scmp.eq.s32.totalorder %s17, 0
    %p79 = por %p77, %p78
    %p80 = scmp.ne.s32.totalorder %s72, %s74
    %p81 = scmp.eq.s32.totalorder %s22, 1
    %p82 = por %p80, %p81
    %p83 = scmp.ne.s32.totalorder %s74, %s75
    %p84 = scmp.eq.s32.totalorder %s22, 0
    %p85 = por %p83, %p84
    %p86 = scmp.ne.s32.totalorder %s74, %s75
    %p87 = scmp.eq.s32.totalorder %s23, 1
    %p88 = por %p86, %p87
    %p90 = scmp.ne.s32.totalorder %s75, %s89
    %p91 = scmp.eq.s32.totalorder %s23, 0
    %p92 = por %p90, %p91
    %s94 = sadd.s32 %s93, 1
    %p97 = scmp.eq.s32.totalorder %s17, 1
    %p98 = scmp.ne.s32.totalorder %s93, %s95
    %p99 = scmp.eq.s32.totalorder %s17, 0
    %p100 = por %p98, %p99
    %p101 = scmp.ne.s32.totalorder %s93, %s95
    %p102 = scmp.eq.s32.totalorder %s22, 1
    %p103 = por %p101, %p102
    %p104 = scmp.ne.s32.totalorder %s95, %s96
    %p105 = scmp.eq.s32.totalorder %s22, 0
    %p106 = por %p104, %p105
    %p107 = scmp.ne.s32.totalorder %s95, %s96
    %p108 = scmp.eq.s32.totalorder %s23, 1
    %p109 = por %p107, %p108
    %p111 = scmp.ne.s32.totalorder %s96, %s110
    %p112 = scmp.eq.s32.totalorder %s23, 0
    %p113 = por %p111, %p112
    %s115 = sadd.s32 %s114, 1
    %p118 = scmp.eq.s32.totalorder %s17, 1
    %p119 = scmp.ne.s32.totalorder %s114, %s116
    %p120 = scmp.eq.s32.totalorder %s17, 0
    %p121 = por %p119, %p120
    %p122 = scmp.ne.s32.totalorder %s114, %s116
    %p123 = scmp.eq.s32.totalorder %s22, 1
    %p124 = por %p122, %p123
    %p125 = scmp.ne.s32.totalorder %s116, %s117
    %p126 = scmp.eq.s32.totalorder %s22, 0
    %p127 = por %p125, %p126
    %p128 = scmp.ne.s32.totalorder %s116, %s117
    %p129 = scmp.eq.s32.totalorder %s23, 1
    %p130 = por %p128, %p129
    %p132 = scmp.ne.s32.totalorder %s117, %s131
    %p133 = scmp.eq.s32.totalorder %s23, 0
    %p134 = por %p132, %p133
    %s136 = sadd.s32 %s135, 1
    %p139 = scmp.eq.s32.totalorder %s17, 1
    %p140 = scmp.ne.s32.totalorder %s135, %s137
    %p141 = scmp.eq.s32.totalorder %s17, 0
    %p142 = por %p140, %p141
    %p143 = scmp.ne.s32.totalorder %s135, %s137
    %p144 = scmp.eq.s32.totalorder %s22, 1
    %p145 = por %p143, %p144
    %p146 = scmp.ne.s32.totalorder %s137, %s138
    %p147 = scmp.eq.s32.totalorder %s22, 0
    %p148 = por %p146, %p147
    %p149 = scmp.ne.s32.totalorder %s137, %s138
    %p150 = scmp.eq.s32.totalorder %s23, 1
    %p151 = por %p149, %p150
    %p153 = scmp.ne.s32.totalorder %s138, %s152
    %p154 = scmp.eq.s32.totalorder %s23, 0
    %p155 = por %p153, %p154
    %s157 = sadd.s32 %s156, 1
    %p160 = scmp.eq.s32.totalorder %s17, 1
    %p161 = scmp.ne.s32.totalorder %s156, %s158
    %p162 = scmp.eq.s32.totalorder %s17, 0
    %p163 = por %p161, %p162
    %p164 = scmp.ne.s32.totalorder %s156, %s158
    %p165 = scmp.eq.s32.totalorder %s22, 1
    %p166 = por %p164, %p165
    %p167 = scmp.ne.s32.totalorder %s158, %s159
    %p168 = scmp.eq.s32.totalorder %s22, 0
    %p169 = por %p167, %p168
    %p170 = scmp.ne.s32.totalorder %s158, %s159
    %p171 = scmp.eq.s32.totalorder %s23, 1
    %p172 = por %p170, %p171
    %p174 = scmp.ne.s32.totalorder %s159, %s173
    %p175 = scmp.eq.s32.totalorder %s23, 0
    %p176 = por %p174, %p175
    %s178 = sadd.s32 %s177, 1
    %p181 = scmp.eq.s32.totalorder %s17, 1
    %p182 = scmp.ne.s32.totalorder %s177, %s179
    %p183 = scmp.eq.s32.totalorder %s17, 0
    %p184 = por %p182, %p183
    %p185 = scmp.ne.s32.totalorder %s177, %s179
    %p186 = scmp.eq.s32.totalorder %s22, 1
    %p187 = por %p185, %p186
    %p188 = scmp.ne.s32.totalorder %s179, %s180
    %p189 = scmp.eq.s32.totalorder %s22, 0
    %p190 = por %p188, %p189
    %p191 = scmp.ne.s32.totalorder %s179, %s180
    %p192 = scmp.eq.s32.totalorder %s23, 1
    %p193 = por %p191, %p192
    %p195 = scmp.ne.s32.totalorder %s180, %s194
    %p196 = scmp.eq.s32.totalorder %s23, 0
    %p197 = por %p195, %p196
    %s199 = sadd.s32 %s198, 1
    %p202 = scmp.eq.s32.totalorder %s17, 1
    %p203 = scmp.ne.s32.totalorder %s198, %s200
    %p204 = scmp.eq.s32.totalorder %s17, 0
    %p205 = por %p203, %p204
    %p206 = scmp.ne.s32.totalorder %s198, %s200
    %p207 = scmp.eq.s32.totalorder %s22, 1
    %p208 = por %p206, %p207
    %p209 = scmp.ne.s32.totalorder %s200, %s201
    %p210 = scmp.eq.s32.totalorder %s22, 0
    %p211 = por %p209, %p210
    %p212 = scmp.ne.s32.totalorder %s200, %s201
    %p213 = scmp.eq.s32.totalorder %s23, 1
    %p214 = por %p212, %p213
    %p216 = scmp.ne.s32.totalorder %s201, %s215
    %p217 = scmp.eq.s32.totalorder %s23, 0
    %p218 = por %p216, %p217
    %s220 = sadd.s32 %s219, 1
    %p223 = scmp.eq.s32.totalorder %s17, 1
    %p224 = scmp.ne.s32.totalorder %s219, %s221
    %p225 = scmp.eq.s32.totalorder %s17, 0
    %p226 = por %p224, %p225
    %p227 = scmp.ne.s32.totalorder %s219, %s221
    %p228 = scmp.eq.s32.totalorder %s22, 1
    %p229 = por %p227, %p228
    %p230 = scmp.ne.s32.totalorder %s221, %s222
    %p231 = scmp.eq.s32.totalorder %s22, 0
    %p232 = por %p230, %p231
    %p233 = scmp.ne.s32.totalorder %s221, %s222
    %p234 = scmp.eq.s32.totalorder %s23, 1
    %p235 = por %p233, %p234
    %p237 = scmp.ne.s32.totalorder %s222, %s236
    %p238 = scmp.eq.s32.totalorder %s23, 0
    %p239 = por %p237, %p238
    %s241 = sadd.s32 %s240, 1
    %p244 = scmp.eq.s32.totalorder %s17, 1
    %p245 = scmp.ne.s32.totalorder %s240, %s242
    %p246 = scmp.eq.s32.totalorder %s17, 0
    %p247 = por %p245, %p246
    %p248 = scmp.ne.s32.totalorder %s240, %s242
    %p249 = scmp.eq.s32.totalorder %s22, 1
    %p250 = por %p248, %p249
    %p251 = scmp.ne.s32.totalorder %s242, %s243
    %p252 = scmp.eq.s32.totalorder %s22, 0
    %p253 = por %p251, %p252
    %p254 = scmp.ne.s32.totalorder %s242, %s243
    %p255 = scmp.eq.s32.totalorder %s23, 1
    %p256 = por %p254, %p255
    %p258 = scmp.ne.s32.totalorder %s243, %s257
    %p259 = scmp.eq.s32.totalorder %s23, 0
    %p260 = por %p258, %p259
    %s261 = ssub.s32 %s17, %s24
    %p262 = scmp.eq.s32.totalorder %s261, 0
    %s264 = sadd.s32 %s263, 1
    %s265 = scalar_select %p262, %s263, %s264
    %p268 = pneg %p262
    %p269 = scmp.eq.s32.totalorder %s17, 1
    %p270 = por %p268, %p269
    %p271 = scmp.ne.s32.totalorder %s263, %s266
    %p272 = scmp.eq.s32.totalorder %s17, 0
    %p273 = por %p271, %p272
    %p274 = scmp.ne.s32.totalorder %s263, %s266
    %p275 = scmp.eq.s32.totalorder %s22, 1
    %p276 = por %p274, %p275
    %p277 = scmp.ne.s32.totalorder %s266, %s267
    %p278 = scmp.eq.s32.totalorder %s22, 0
    %p279 = por %p277, %p278
    %p280 = scmp.ne.s32.totalorder %s266, %s267
    %p281 = scmp.eq.s32.totalorder %s23, 1
    %p282 = por %p280, %p281
    %p284 = scmp.ne.s32.totalorder %s267, %s283
    %p285 = scmp.eq.s32.totalorder %s23, 0
    %p286 = por %p284, %p285
    %p287 = scmp.le.s32.totalorder 1, %s17
    %p288 = scmp.lt.s32.totalorder %s17, 3
    %p289 = pnand %p287, %p288
    %p290 = pneg %p289
    // Predicated region
    $region9: #{shufflenet_v2_forward.15} parent=5 // pred_check
      _
    $region10: #{shufflenet_v2_forward.15} parent=5 // pred_check_branch
      %292 = sbr.rel (%p289) target = $region12
    $region11: #{shufflenet_v2_forward.15} parent=5 // pred_region
      %s293 = ssub.s32 %s17, 1
      // Predicated region
      $region13: #{shufflenet_v2_forward.15} parent=11 // pred_check
        %p294 = pneg %p64
      $region14: #{shufflenet_v2_forward.15} parent=11 // pred_check_branch
        %296 = sbr.rel (%p294) target = $region16
      $region15: #{shufflenet_v2_forward.15} parent=11 // pred_region
        _
      $region16: #{shufflenet_v2_forward.15} parent=11 // pred_fallthru
        _
      // Predicated region
      $region17: #{shufflenet_v2_forward.15} parent=11 // pred_check
        %p297 = pneg %p85
      $region18: #{shufflenet_v2_forward.15} parent=11 // pred_check_branch
        %299 = sbr.rel (%p297) target = $region20
      $region19: #{shufflenet_v2_forward.15} parent=11 // pred_region
        _
      $region20: #{shufflenet_v2_forward.15} parent=11 // pred_fallthru
        _
      // Predicated region
      $region21: #{shufflenet_v2_forward.15} parent=11 // pred_check
        %p300 = pneg %p106
      $region22: #{shufflenet_v2_forward.15} parent=11 // pred_check_branch
        %302 = sbr.rel (%p300) target = $region24
      $region23: #{shufflenet_v2_forward.15} parent=11 // pred_region
        _
      $region24: #{shufflenet_v2_forward.15} parent=11 // pred_fallthru
        _
      // Predicated region
      $region25: #{shufflenet_v2_forward.15} parent=11 // pred_check
        %p303 = pneg %p127
      $region26: #{shufflenet_v2_forward.15} parent=11 // pred_check_branch
        %305 = sbr.rel (%p303) target = $region28
      $region27: #{shufflenet_v2_forward.15} parent=11 // pred_region
        _
      $region28: #{shufflenet_v2_forward.15} parent=11 // pred_fallthru
        _
      // Predicated region
      $region29: #{shufflenet_v2_forward.15} parent=11 // pred_check
        %p306 = pneg %p148
      $region30: #{shufflenet_v2_forward.15} parent=11 // pred_check_branch
        %308 = sbr.rel (%p306) target = $region32
      $region31: #{shufflenet_v2_forward.15} parent=11 // pred_region
        _
      $region32: #{shufflenet_v2_forward.15} parent=11 // pred_fallthru
        _
      // Predicated region
      $region33: #{shufflenet_v2_forward.15} parent=11 // pred_check
        %p309 = pneg %p169
      $region34: #{shufflenet_v2_forward.15} parent=11 // pred_check_branch
        %311 = sbr.rel (%p309) target = $region36
      $region35: #{shufflenet_v2_forward.15} parent=11 // pred_region
        _
      $region36: #{shufflenet_v2_forward.15} parent=11 // pred_fallthru
        _
      // Predicated region
      $region37: #{shufflenet_v2_forward.15} parent=11 // pred_check
        %p312 = pneg %p190
      $region38: #{shufflenet_v2_forward.15} parent=11 // pred_check_branch
        %314 = sbr.rel (%p312) target = $region40
      $region39: #{shufflenet_v2_forward.15} parent=11 // pred_region
        _
      $region40: #{shufflenet_v2_forward.15} parent=11 // pred_fallthru
        _
      // Predicated region
      $region41: #{shufflenet_v2_forward.15} parent=11 // pred_check
        %p315 = pneg %p211
      $region42: #{shufflenet_v2_forward.15} parent=11 // pred_check_branch
        %317 = sbr.rel (%p315) target = $region44
      $region43: #{shufflenet_v2_forward.15} parent=11 // pred_region
        _
      $region44: #{shufflenet_v2_forward.15} parent=11 // pred_fallthru
        _
      // Predicated region
      $region45: #{shufflenet_v2_forward.15} parent=11 // pred_check
        %p318 = pneg %p232
      $region46: #{shufflenet_v2_forward.15} parent=11 // pred_check_branch
        %320 = sbr.rel (%p318) target = $region48
      $region47: #{shufflenet_v2_forward.15} parent=11 // pred_region
        _
      $region48: #{shufflenet_v2_forward.15} parent=11 // pred_fallthru
        _
      // Predicated region
      $region49: #{shufflenet_v2_forward.15} parent=11 // pred_check
        %p321 = pneg %p253
      $region50: #{shufflenet_v2_forward.15} parent=11 // pred_check_branch
        %323 = sbr.rel (%p321) target = $region52
      $region51: #{shufflenet_v2_forward.15} parent=11 // pred_region
        _
      $region52: #{shufflenet_v2_forward.15} parent=11 // pred_fallthru
        _
    $region12: #{shufflenet_v2_forward.15} parent=5 // pred_fallthru
      _
    %p324 = scmp.lt.s32.totalorder %s17, 2
    // Predicated region
    $region53: #{shufflenet_v2_forward.15} parent=5 // pred_check
      %p325 = pneg %p324
    $region54: #{shufflenet_v2_forward.15} parent=5 // pred_check_branch
      %327 = sbr.rel (%p325) target = $region56
    $region55: #{shufflenet_v2_forward.15} parent=5 // pred_region
      // Predicated region
      $region57: #{shufflenet_v2_forward.15} parent=55 // pred_check
        %p328 = pneg %p37
      $region58: #{shufflenet_v2_forward.15} parent=55 // pred_check_branch
        %330 = sbr.rel (%p328) target = $region60
      $region59: #{shufflenet_v2_forward.15} parent=55 // pred_region
        %p331 = scmp.lt.s32.totalorder %s17, 1
        %s332 = scalar_select %p331, %s17, 1
        %s333 = smul.addr %s332, 2
        %s334 = smul.addr %s333, 4
        %s335 = scalar_lea.vmem %s0, %s334
      $region60: #{shufflenet_v2_forward.15} parent=55 // pred_fallthru
        _
    $region56: #{shufflenet_v2_forward.15} parent=5 // pred_fallthru
      _
    %p336 = scmp.le.s32.totalorder 1, %s17
    %p337 = scmp.lt.s32.totalorder %s17, 3
    %p338 = pnand %p336, %p337
    %p339 = pneg %p338
    // Predicated region
    $region61: #{shufflenet_v2_forward.15} parent=5 // pred_check
      _
    $region62: #{shufflenet_v2_forward.15} parent=5 // pred_check_branch
      %341 = sbr.rel (%p338) target = $region64
    $region63: #{shufflenet_v2_forward.15} parent=5 // pred_region
      %s342 = ssub.s32 %s17, 1
      %p343 = scmp.lt.s32.totalorder %s22, 1
      %s344 = scalar_select %p343, %s22, 1
      %s345 = smul.addr %s344, 2
      %s346 = smul.addr %s345, 4
      %s347 = scalar_lea.vmem %s0, %s346
      %p348 = pneg %p43
      %p349 = pneg %p40
      %p350 = pneg %p64
      %p351 = pneg %p61
      %p352 = pneg %p85
      %p353 = pneg %p82
      %p354 = pneg %p106
      %p355 = pneg %p103
      %p356 = pneg %p127
      %p357 = pneg %p124
      %p358 = pneg %p148
      %p359 = pneg %p145
      %p360 = pneg %p169
      %p361 = pneg %p166
      %p362 = pneg %p190
      %p363 = pneg %p187
      %p364 = pneg %p211
      %p365 = pneg %p208
      %p366 = pneg %p232
      %p367 = pneg %p229
      %p368 = pneg %p253
      %p369 = pneg %p250
      %p370 = pneg %p279
      %p371 = pneg %p276
      %p372 = scmp.lt.s32.totalorder %s22, 1
      %s373 = scalar_select %p372, %s22, 1
      %s374 = scalar_lea.vmem %s11, %s373
      %p375 = scmp.lt.s32.totalorder %s22, 1
      %s376 = scalar_select %p375, %s22, 1
      %s377 = smul.addr %s376, 2
      %s378 = smul.addr %s377, 4
      %s379 = scalar_lea.vmem %s0, %s378
      %p380 = scmp.lt.s32.totalorder %s22, 1
      %s381 = scalar_select %p380, %s22, 1
      %s382 = scalar_lea.vmem %s11, %s381
      %v384 = vld [vmem:[%s379] sm:$0xf]
      %v385 = vld [vmem:[%s379 + $0x4] sm:$0xf]
      %v386 = vld [vmem:[%s5] sm:$0xf]
      %v387 = vld [vmem:[%s5 + $0x4] sm:$0xf]
      %v388 = vld [vmem:[%s5 + $0x8] sm:$0xf]
      %v389 = vld [vmem:[%s5 + $0xc] sm:$0xf]
      %v390 = vld [vmem:[%s6] sm:$0x1]
      %v392 = vlaneseq
      %v393 = vshrl.u32 %v392, 7
      %v394 = vsub.s32 0, %v393
      %v395 = vrot.slane %v390, %v394
      %v399 = vunpack.c.l.b16 %v384
      %v400 = vunpack.c.l.b16 %v385
      %v401 = vpack.c.b16 %v400, %v399
      %v406 = vunpack.c.l.b16 %v386
      %v407 = vunpack.c.l.b16 %v387
      %v408 = vunpack.c.l.b16 %v388
      %v409 = vunpack.c.l.b16 %v389
      %v410 = vpack.c.b16 %v407, %v406
      %v411 = vpack.c.b16 %v409, %v408
      %vm414 = vcmask 261120
      %v416 = vsel %vm414, %v401, 0
      %418 = vmatprep.subr.bf16.mxu0 0
      %419 = vmatpush1.bf16.msra.mxu0 %v410
      %420 = vmatprep.subr.bf16.mxu0 0
      %421 = vmatpush1.bf16.msra.mxu0 %v411
      %422 = vmatprep.subr.bf16.mxu0 0
      %423 = vmatpush1.bf16.msra.mxu0 0
      %424 = vmatprep.subr.bf16.mxu0 0
      %425 = vmatpush1.bf16.msra.mxu0 0
      %426 = vmatprep.subr.bf16.mxu0 0
      %427 = vmatpush1.bf16.msra.mxu0 0
      %428 = vmatprep.subr.bf16.mxu0 0
      %429 = vmatpush1.bf16.msra.mxu0 0
      %430 = vmatprep.subr.bf16.mxu0 0
      %431 = vmatpush1.bf16.msra.mxu0 0
      %432 = vmatprep.subr.bf16.mxu0 0
      %433 = vmatpush1.bf16.msra.mxu0 0
      %434 = vmatprep.subr.bf16.mxu0 0
      %435 = vmatpush1.bf16.msra.mxu0 0
      %436 = vmatprep.subr.bf16.mxu0 0
      %437 = vmatpush1.bf16.msra.mxu0 0
      %438 = vmatprep.subr.bf16.mxu0 0
      %439 = vmatpush1.bf16.msra.mxu0 0
      %440 = vmatprep.subr.bf16.mxu0 0
      %441 = vmatpush1.bf16.msra.mxu0 0
      %442 = vmatprep.subr.bf16.mxu0 0
      %443 = vmatpush1.bf16.msra.mxu0 0
      %444 = vmatprep.subr.bf16.mxu0 0
      %445 = vmatpush1.bf16.msra.mxu0 0
      %446 = vmatprep.subr.bf16.mxu0 0
      %447 = vmatpush1.bf16.msra.mxu0 0
      %448 = vmatprep.subr.bf16.mxu0 0
      %449 = vmatpush1.bf16.msra.mxu0 0
      %450 = vmatprep.mubr.bf16.mxu0 0
      %451 = vmatmul.mubr.bf16.gmra.mrb[0].mxu0 %v416
      %v452 = vpop.f32.mrb[0].mxu0
      %v453 = vadd.f32 %v395, %v452
      %v454 = vpop.f32.mrb[0].mxu0
      %v455 = vpop.f32.mrb[0].mxu0
      %v456 = vadd.f32 %v395, %v455
      %v457 = vpop.f32.mrb[0].mxu0
      %458 = vdwg.mxu0
      %v459 = vmax.f32 %v453, 0.0
      %v460 = vmax.f32 %v456, 0.0
      %v461 = vlaneseq
      %v462 = vshrl.u32 %v461, 7
      %v463 = vadd.s32 %v462, 8
      %v464 = vcvt.s32.f32 %v462
      %v465 = vcvt.s32.f32 %v463
      %v466 = vadd.f32 %v464, 0.5
      %v467 = vadd.f32 %v465, 0.5
      %v468 = vmul.f32 %v466, 0.25
      %v469 = vmul.f32 %v467, 0.25
      %v470 = vfloor.f32 %v468
      %v471 = vfloor.f32 %v469
      %v472 = vmul.f32 %v470, 4.0
      %v473 = vmul.f32 %v471, 4.0
      %v474 = vsub.f32 %v464, %v472
      %v475 = vsub.f32 %v465, %v473
      %v476 = vadd.f32 %v474, 0.5
      %v477 = vadd.f32 %v475, 0.5
      %v478 = vmul.f32 %v476, 0.5
      %v479 = vmul.f32 %v477, 0.5
      %v480 = vfloor.f32 %v478
      %v481 = vfloor.f32 %v479
      %v482 = vmul.f32 %v480, 2.0
      %v483 = vmul.f32 %v481, 2.0
      %v484 = vsub.f32 %v474, %v482
      %v485 = vsub.f32 %v475, %v483
      %vm486 = vcmp.lt.f32.partialorder %v470, 1.5
      %vm487 = vcmp.lt.f32.partialorder %v471, 1.5
      %vm488 = vcmp.lt.f32.partialorder %v470, 0.5
      %vm489 = vcmp.lt.f32.partialorder %v471, 0.5
      %vm490 = vcmp.gt.f32.partialorder %v470, 1.5
      %vm491 = vcmp.gt.f32.partialorder %v471, 1.5
      %vm492 = vcmp.lt.f32.partialorder %v470, 2.5
      %vm493 = vcmp.lt.f32.partialorder %v471, 2.5
      %vm494 = vmand %vm490, %vm492
      %vm495 = vmand %vm491, %vm493
      %vm496 = vmor %vm488, %vm494
      %vm497 = vmor %vm489, %vm495
      %vm498 = vcmp.lt.f32.partialorder %v480, 0.5
      %vm499 = vcmp.lt.f32.partialorder %v481, 0.5
      %vm500 = vmand %vm486, %vm498
      %vm501 = vmand %vm487, %vm499
      %vm502 = vmxor %vm486, 1
      %vm503 = vmxor %vm487, 1
      %vm504 = vcmp.gt.f32.partialorder %v480, 0.5
      %vm505 = vcmp.gt.f32.partialorder %v481, 0.5
      %vm506 = vmand %vm502, %vm504
      %vm507 = vmand %vm503, %vm505
      %vm508 = vmor %vm500, %vm506
      %vm509 = vmor %vm501, %vm507
      %vm510 = vcmp.lt.f32.partialorder %v484, 0.5
      %vm511 = vcmp.lt.f32.partialorder %v485, 0.5
      %vm512 = vmand %vm496, %vm510
      %vm513 = vmand %vm497, %vm511
      %vm514 = vmor %vm508, %vm512
      %vm515 = vmor %vm509, %vm513
      %vm516 = vmxor %vm496, 1
      %vm517 = vmxor %vm497, 1
      %vm518 = vcmp.gt.f32.partialorder %v484, 0.5
      %vm519 = vcmp.gt.f32.partialorder %v485, 0.5
      %vm520 = vmand %vm516, %vm518
      %vm521 = vmand %vm517, %vm519
      %vm522 = vmor %vm514, %vm520
      %vm523 = vmor %vm515, %vm521
      %v524 = vsel %vm522, 1, 0
      %v525 = vsel %vm523, 1, 0
      %v526 = vcvt.s32.f32 %v524
      %v527 = vcvt.s32.f32 %v525
      %v528 = vsub.f32 1.0, %v526
      %v529 = vsub.f32 1.0, %v527
      %v530 = vmul.f32 %v459, %v528
      %v531 = vmul.f32 %v460, %v529
      %v532 = vunpack.c.l.bf16 %v384
      %v533 = vunpack.c.l.bf16 %v385
      %v534 = vld [vmem:[%s1] sm:$0x1]
      %v535 = vmul.f32 %v532, %v534
      %v536 = vadd.f32 %v535, 0.0
      %v537 = vld [vmem:[%s7] sm:$0x1]
      %v538 = vmul.f32 %v530, %v537
      %v539 = vadd.f32 %v538, 0.0
      %s540 = scalar_lea.vmem %s1, 1
      %v541 = vld [vmem:[%s540] sm:$0x1]
      %v543 = vlaneseq
      %v544 = vshrl.u32 %v543, 7
      %v545 = vsub.s32 0, %v544
      %v546 = vrot.slane %v541, %v545
      %v548 = vmul.f32 %v532, %v546
      %v550 = vrot.slane %v548, 4
      %v552 = vadd.f32 %v536, %v550
      %s553 = scalar_lea.vmem %s7, 1
      %v554 = vld [vmem:[%s553] sm:$0x1]
      %v556 = vlaneseq
      %v557 = vshrl.u32 %v556, 7
      %v558 = vsub.s32 0, %v557
      %v559 = vrot.slane %v554, %v558
      %v561 = vmul.f32 %v530, %v559
      %v563 = vrot.slane %v561, 4
      %v565 = vadd.f32 %v539, %v563
      %s566 = scalar_lea.vmem %s1, 2
      %v567 = vld [vmem:[%s566] sm:$0x1]
      %v569 = vlaneseq
      %v570 = vshrl.u32 %v569, 7
      %v571 = vsub.s32 0, %v570
      %v572 = vrot.slane %v567, %v571
      %v574 = vmul.f32 %v532, %v572
      %v576 = vrot.slane %v574, 1
      %v578 = vadd.f32 %v552, %v576
      %s579 = scalar_lea.vmem %s7, 2
      %v580 = vld [vmem:[%s579] sm:$0x1]
      %v582 = vlaneseq
      %v583 = vshrl.u32 %v582, 7
      %v584 = vsub.s32 0, %v583
      %v585 = vrot.slane %v580, %v584
      %v587 = vmul.f32 %v530, %v585
      %v589 = vrot.slane %v587, 1
      %v591 = vadd.f32 %v565, %v589
      %s592 = scalar_lea.vmem %s1, 3
      %v593 = vld [vmem:[%s592] sm:$0x1]
      %v594 = vmul.f32 %v533, %v593
      %v595 = vadd.f32 %v578, %v594
      %s596 = scalar_lea.vmem %s7, 3
      %v597 = vld [vmem:[%s596] sm:$0x1]
      %v598 = vmul.f32 %v531, %v597
      %v599 = vadd.f32 %v591, %v598
      %s600 = scalar_lea.vmem %s1, 4
      %v601 = vld [vmem:[%s600] sm:$0x1]
      %v603 = vlaneseq
      %v604 = vshrl.u32 %v603, 7
      %v605 = vsub.s32 0, %v604
      %v606 = vrot.slane %v601, %v605
      %v608 = vmul.f32 %v533, %v606
      %v610 = vrot.slane %v608, 4
      %v612 = vadd.f32 %v595, %v610
      %s613 = scalar_lea.vmem %s7, 4
      %v614 = vld [vmem:[%s613] sm:$0x1]
      %v616 = vlaneseq
      %v617 = vshrl.u32 %v616, 7
      %v618 = vsub.s32 0, %v617
      %v619 = vrot.slane %v614, %v618
      %v621 = vmul.f32 %v531, %v619
      %v623 = vrot.slane %v621, 4
      %v625 = vadd.f32 %v599, %v623
      %s626 = scalar_lea.vmem %s1, 5
      %v627 = vld [vmem:[%s626] sm:$0x1]
      %v629 = vlaneseq
      %v630 = vshrl.u32 %v629, 7
      %v631 = vsub.s32 0, %v630
      %v632 = vrot.slane %v627, %v631
      %v634 = vmul.f32 %v533, %v632
      %v636 = vrot.slane %v634, 1
      %v638 = vadd.f32 %v612, %v636
      %s639 = scalar_lea.vmem %s7, 5
      %v640 = vld [vmem:[%s639] sm:$0x1]
      %v642 = vlaneseq
      %v643 = vshrl.u32 %v642, 7
      %v644 = vsub.s32 0, %v643
      %v645 = vrot.slane %v640, %v644
      %v647 = vmul.f32 %v531, %v645
      %v649 = vrot.slane %v647, 1
      %v651 = vadd.f32 %v625, %v649
      %s652 = scalar_lea.vmem %s1, 6
      %v653 = vld [vmem:[%s652] sm:$0x1]
      %v655 = vlaneseq
      %v656 = vshrl.u32 %v655, 7
      %v657 = vsub.s32 0, %v656
      %v658 = vrot.slane %v653, %v657
      %v660 = vmul.f32 %v532, %v658
      %v662 = vrot.slane %v660, 2
      %v664 = vadd.f32 %v638, %v662
      %s665 = scalar_lea.vmem %s7, 6
      %v666 = vld [vmem:[%s665] sm:$0x1]
      %v668 = vlaneseq
      %v669 = vshrl.u32 %v668, 7
      %v670 = vsub.s32 0, %v669
      %v671 = vrot.slane %v666, %v670
      %v673 = vmul.f32 %v530, %v671
      %v675 = vrot.slane %v673, 2
      %v677 = vadd.f32 %v651, %v675
      %s678 = scalar_lea.vmem %s1, 7
      %v679 = vld [vmem:[%s678] sm:$0x1]
      %v681 = vlaneseq
      %v682 = vshrl.u32 %v681, 7
      %v683 = vsub.s32 0, %v682
      %v684 = vrot.slane %v679, %v683
      %v686 = vmul.f32 %v532, %v684
      %v688 = vrot.slane %v686, 6
      %v690 = vadd.f32 %v664, %v688
      %s691 = scalar_lea.vmem %s7, 7
      %v692 = vld [vmem:[%s691] sm:$0x1]
      %v694 = vlaneseq
      %v695 = vshrl.u32 %v694, 7
      %v696 = vsub.s32 0, %v695
      %v697 = vrot.slane %v692, %v696
      %v699 = vmul.f32 %v530, %v697
      %v701 = vrot.slane %v699, 6
      %v703 = vadd.f32 %v677, %v701
      %s704 = scalar_lea.vmem %s1, 8
      %v705 = vld [vmem:[%s704] sm:$0x1]
      %v707 = vlaneseq
      %v708 = vshrl.u32 %v707, 7
      %v709 = vsub.s32 0, %v708
      %v710 = vrot.slane %v705, %v709
      %v712 = vmul.f32 %v532, %v710
      %v714 = vrot.slane %v712, 3
      %v716 = vadd.f32 %v690, %v714
      %s717 = scalar_lea.vmem %s7, 8
      %v718 = vld [vmem:[%s717] sm:$0x1]
      %v720 = vlaneseq
      %v721 = vshrl.u32 %v720, 7
      %v722 = vsub.s32 0, %v721
      %v723 = vrot.slane %v718, %v722
      %v725 = vmul.f32 %v530, %v723
      %v727 = vrot.slane %v725, 3
      %v729 = vadd.f32 %v703, %v727
      %v730 = vld [vmem:[%s2] sm:$0x1]
      %v731 = vadd.f32 %v716, %v730
      %v732 = vld [vmem:[%s8] sm:$0x1]
      %v733 = vadd.f32 %v729, %v732
      %v734 = vpack.c.bf16 %v731, %v731
      %v735 = vld [vmem:[%s3] sm:$0xf]
      %v736 = vld [vmem:[%s3 + $0x4] sm:$0xf]
      %v737 = vld [vmem:[%s3 + $0x8] sm:$0xf]
      %v738 = vld [vmem:[%s3 + $0xc] sm:$0xf]
      %v739 = vld [vmem:[%s4] sm:$0x1]
      %v744 = vunpack.c.l.b16 %v735
      %v745 = vunpack.c.l.b16 %v736
      %v746 = vunpack.c.l.b16 %v737
      %v747 = vunpack.c.l.b16 %v738
      %v748 = vpack.c.b16 %v745, %v744
      %v749 = vpack.c.b16 %v747, %v746
      %v753 = vsel %vm414, %v734, 0
      %755 = vmatprep.subr.bf16.mxu0 0
      %756 = vmatpush1.bf16.msra.mxu0 %v748
      %757 = vmatprep.subr.bf16.mxu0 0
      %758 = vmatpush1.bf16.msra.mxu0 %v749
      %759 = vmatprep.subr.bf16.mxu0 0
      %760 = vmatpush1.bf16.msra.mxu0 0
      %761 = vmatprep.subr.bf16.mxu0 0
      %762 = vmatpush1.bf16.msra.mxu0 0
      %763 = vmatprep.subr.bf16.mxu0 0
      %764 = vmatpush1.bf16.msra.mxu0 0
      %765 = vmatprep.subr.bf16.mxu0 0
      %766 = vmatpush1.bf16.msra.mxu0 0
      %767 = vmatprep.subr.bf16.mxu0 0
      %768 = vmatpush1.bf16.msra.mxu0 0
      %769 = vmatprep.subr.bf16.mxu0 0
      %770 = vmatpush1.bf16.msra.mxu0 0
      %771 = vmatprep.subr.bf16.mxu0 0
      %772 = vmatpush1.bf16.msra.mxu0 0
      %773 = vmatprep.subr.bf16.mxu0 0
      %774 = vmatpush1.bf16.msra.mxu0 0
      %775 = vmatprep.subr.bf16.mxu0 0
      %776 = vmatpush1.bf16.msra.mxu0 0
      %777 = vmatprep.subr.bf16.mxu0 0
      %778 = vmatpush1.bf16.msra.mxu0 0
      %779 = vmatprep.subr.bf16.mxu0 0
      %780 = vmatpush1.bf16.msra.mxu0 0
      %781 = vmatprep.subr.bf16.mxu0 0
      %782 = vmatpush1.bf16.msra.mxu0 0
      %783 = vmatprep.subr.bf16.mxu0 0
      %784 = vmatpush1.bf16.msra.mxu0 0
      %785 = vmatprep.subr.bf16.mxu0 0
      %786 = vmatpush1.bf16.msra.mxu0 0
      %787 = vmatprep.mubr.bf16.mxu0 0
      %788 = vmatmul.mubr.bf16.gmra.mrb[0].mxu0 %v753
      %v789 = vpop.f32.mrb[0].mxu0
      %v790 = vadd.f32 %v739, %v789
      %v791 = vpop.f32.mrb[0].mxu0
      %v792 = vpop.f32.mrb[0].mxu0
      %v793 = vpop.f32.mrb[0].mxu0
      %794 = vdwg.mxu0
      %v795 = vmax.f32 %v790, 0.0
      %v796 = vpack.c.bf16 %v733, %v733
      %v797 = vld [vmem:[%s9] sm:$0xf]
      %v798 = vld [vmem:[%s9 + $0x4] sm:$0xf]
      %v799 = vld [vmem:[%s9 + $0x8] sm:$0xf]
      %v800 = vld [vmem:[%s9 + $0xc] sm:$0xf]
      %v801 = vld [vmem:[%s10] sm:$0x1]
      %v806 = vunpack.c.l.b16 %v797
      %v807 = vunpack.c.l.b16 %v798
      %v808 = vunpack.c.l.b16 %v799
      %v809 = vunpack.c.l.b16 %v800
      %v810 = vpack.c.b16 %v807, %v806
      %v811 = vpack.c.b16 %v809, %v808
      %v815 = vsel %vm414, %v796, 0
      %817 = vmatprep.subr.bf16.mxu0 0
      %818 = vmatpush1.bf16.msra.mxu0 %v810
      %819 = vmatprep.subr.bf16.mxu0 0
      %820 = vmatpush1.bf16.msra.mxu0 %v811
      %821 = vmatprep.subr.bf16.mxu0 0
      %822 = vmatpush1.bf16.msra.mxu0 0
      %823 = vmatprep.subr.bf16.mxu0 0
      %824 = vmatpush1.bf16.msra.mxu0 0
      %825 = vmatprep.subr.bf16.mxu0 0
      %826 = vmatpush1.bf16.msra.mxu0 0
      %827 = vmatprep.subr.bf16.mxu0 0
      %828 = vmatpush1.bf16.msra.mxu0 0
      %829 = vmatprep.subr.bf16.mxu0 0
      %830 = vmatpush1.bf16.msra.mxu0 0
      %831 = vmatprep.subr.bf16.mxu0 0
      %832 = vmatpush1.bf16.msra.mxu0 0
      %833 = vmatprep.subr.bf16.mxu0 0
      %834 = vmatpush1.bf16.msra.mxu0 0
      %835 = vmatprep.subr.bf16.mxu0 0
      %836 = vmatpush1.bf16.msra.mxu0 0
      %837 = vmatprep.subr.bf16.mxu0 0
      %838 = vmatpush1.bf16.msra.mxu0 0
      %839 = vmatprep.subr.bf16.mxu0 0
      %840 = vmatpush1.bf16.msra.mxu0 0
      %841 = vmatprep.subr.bf16.mxu0 0
      %842 = vmatpush1.bf16.msra.mxu0 0
      %843 = vmatprep.subr.bf16.mxu0 0
      %844 = vmatpush1.bf16.msra.mxu0 0
      %845 = vmatprep.subr.bf16.mxu0 0
      %846 = vmatpush1.bf16.msra.mxu0 0
      %847 = vmatprep.subr.bf16.mxu0 0
      %848 = vmatpush1.bf16.msra.mxu0 0
      %849 = vmatprep.mubr.bf16.mxu0 0
      %850 = vmatmul.mubr.bf16.gmra.mrb[0].mxu0 %v815
      %v851 = vpop.f32.mrb[0].mxu0
      %v852 = vadd.f32 %v801, %v851
      %v853 = vpop.f32.mrb[0].mxu0
      %v854 = vpop.f32.mrb[0].mxu0
      %v855 = vpop.f32.mrb[0].mxu0
      %856 = vdwg.mxu0
      %v857 = vmax.f32 %v852, 0.0
      %v858 = vadd.f32 %v795, %v857
      %v859 = vpack.c.bf16 %v858, %v858
      %vm860 = vcmask 516096
      %vm861 = vsmask.f32 256
      %vm862 = vmand %vm860, %vm861
      %v863 = vld [vmem:[%s382] sm:$0x1]
      %v864 = vsel %vm862, %v859, %v863
      %865 = vst [vmem:[%s382] sm:$0x1] %v864
      %p866 = scmp.lt.s32.totalorder %s22, 1
      %s867 = scalar_select %p866, %s22, 1
      %s868 = scalar_lea.vmem %s11, %s867
      // Predicated region
      $region65: #{shufflenet_v2_forward.15} parent=63 // pred_check
        %p869 = pneg %p276
      $region66: #{shufflenet_v2_forward.15} parent=63 // pred_check_branch
        %871 = sbr.rel (%p869) target = $region68
      $region67: #{shufflenet_v2_forward.15} parent=63 // pred_region
        _
      $region68: #{shufflenet_v2_forward.15} parent=63 // pred_fallthru
        _
    $region64: #{shufflenet_v2_forward.15} parent=5 // pred_fallthru
      _
    %p872 = scmp.le.s32.totalorder 2, %s17
    // Predicated region
    $region69: #{shufflenet_v2_forward.15} parent=5 // pred_check
      %p873 = pneg %p872
    $region70: #{shufflenet_v2_forward.15} parent=5 // pred_check_branch
      %875 = sbr.rel (%p873) target = $region72
    $region71: #{shufflenet_v2_forward.15} parent=5 // pred_region
      %s876 = ssub.s32 %s17, 2
      // Predicated region
      $region73: #{shufflenet_v2_forward.15} parent=71 // pred_check
        %p877 = pneg %p282
      $region74: #{shufflenet_v2_forward.15} parent=71 // pred_check_branch
        %879 = sbr.rel (%p877) target = $region76
      $region75: #{shufflenet_v2_forward.15} parent=71 // pred_region
        %p880 = scmp.lt.s32.totalorder %s23, 1
        %s881 = scalar_select %p880, %s23, 1
        %s882 = scalar_lea.vmem %s11, %s881
      $region76: #{shufflenet_v2_forward.15} parent=71 // pred_fallthru
        _
    $region72: #{shufflenet_v2_forward.15} parent=5 // pred_fallthru
      _
  $region6: #{shufflenet_v2_forward.15} parent=0 // loop_footer
    %s21 = sadd.s32 1, %s17
  $region7: #{shufflenet_v2_forward.15} parent=0 // loop_footer_branch
    %16 = sbr.rel target = $region3
  $region8: #{shufflenet_v2_forward.15} parent=0 // loop_exit
    _

// kernel: shufflenet_v2_forward.17
$region0: #{shufflenet_v2_forward.17}
  #allocation0 [shape = 'u32[]', space=smem, size = 0x4, offset = 0x4, fixed_abs, tag = 'smem constant byte address 0x4 - core index']
  #allocation1 [shape = 'u32[144,128]{1,0:T(1,128)}', space=vmem, size = 0x12000, scoped, tag = 'internal scratch']
  %s0 = inlined_call_operand.vmem [shape: bf16[2,1,64], index: 0, kind: input, shape index: {}]
  %s1 = inlined_call_operand.vmem [shape: bf16[64,128], index: 1, kind: input, shape index: {}]
  %s2 = inlined_call_operand.vmem [shape: f32[1,128], index: 2, kind: input, shape index: {}]
  %s3 = inlined_call_operand.vmem [shape: bf16[128,128], index: 3, kind: input, shape index: {}]
  %s4 = inlined_call_operand.vmem [shape: f32[1,128], index: 4, kind: input, shape index: {}]
  %s5 = inlined_call_operand.hbm [shape: f32[2,1,128], index: 5, kind: output, shape index: {}]
  %s6 = sld [smem:[#allocation0]]
  $region53: #{shufflenet_v2_forward.17} parent=0
    _
  %s8 = ssub.s32 1, %s6
  %s9 = scalar_select 0, %s8, %s6
  $region1: #{shufflenet_v2_forward.17} parent=0
    #allocation2 [shape = 'u8[1024]{0}', space=vmem, size = 0x400, scoped, tag = 'output window, operand 0']
    #allocation3 [shape = 's32[2]{0}', space=sflag, size = 0x8, scoped, tag = 'scoped memory for shufflenet_v2_forward.17']
    %10 = vsyncpa [#allocation3], 0
    %s11 = scalar_lea.sflag [#allocation3], 1
    %12 = vsyncpa %s11, 0
    loop: start=0, step=1, limit=4
    $region2: #{shufflenet_v2_forward.17} parent=1 // loop_pre_header
      _
    $region3: #{shufflenet_v2_forward.17} parent=1 // loop_header
      %s14 = sphi 0, %s18
      %p15 = scmp.ge.s32.totalorder %s14, 4
      %s24 = sphi 0, %s26
      %s27 = sphi 0, %s24
      %s28 = sphi 0, %s27
      %s44 = sphi 0, %s28
      %s48 = sphi 0, %s48
      %s50 = sphi 0, %s48
      %s51 = sphi 0, %s50
      %s65 = sphi 0, %s51
      %s69 = sphi 0, %s69
      %s71 = sphi 0, %s69
      %s72 = sphi 0, %s71
      %s86 = sphi 0, %s72
      %s90 = sphi 0, %s90
      %s92 = sphi 0, %s90
      %s93 = sphi 0, %s92
      %s107 = sphi 0, %s93
      %s111 = sphi 0, %s111
      %s113 = sphi 0, %s111
      %s114 = sphi 0, %s113
      %s128 = sphi 0, %s114
      %s134 = sphi 0, %s136
      %s137 = sphi 0, %s134
      %s138 = sphi 0, %s137
      %s154 = sphi 0, %s138
    $region4: #{shufflenet_v2_forward.17} parent=1 // loop_header_branch
      %17 = sbr.rel (%p15) target = $region8
    $region5: #{shufflenet_v2_forward.17} parent=1 // loop_body
      %s19 = ssub.s32 %s14, 1
      %s20 = ssub.s32 %s14, 2
      %s21 = sadd.s32 %s14, 1
      %s22 = ssub.s32 %s14, %s21
      %p23 = scmp.eq.s32.totalorder %s22, 0
      %s25 = sadd.s32 %s24, 1
      %s26 = scalar_select %p23, %s24, %s25
      %p29 = pneg %p23
      %p30 = scmp.eq.s32.totalorder %s14, 1
      %p31 = por %p29, %p30
      %p32 = scmp.ne.s32.totalorder %s24, %s27
      %p33 = scmp.eq.s32.totalorder %s14, 0
      %p34 = por %p32, %p33
      %p35 = scmp.ne.s32.totalorder %s24, %s27
      %p36 = scmp.eq.s32.totalorder %s19, 1
      %p37 = por %p35, %p36
      %p38 = scmp.ne.s32.totalorder %s27, %s28
      %p39 = scmp.eq.s32.totalorder %s19, 0
      %p40 = por %p38, %p39
      %p41 = scmp.ne.s32.totalorder %s27, %s28
      %p42 = scmp.eq.s32.totalorder %s20, 1
      %p43 = por %p41, %p42
      %p45 = scmp.ne.s32.totalorder %s28, %s44
      %p46 = scmp.eq.s32.totalorder %s20, 0
      %p47 = por %p45, %p46
      %s49 = sadd.s32 %s48, 1
      %p52 = scmp.eq.s32.totalorder %s14, 1
      %p53 = scmp.ne.s32.totalorder %s48, %s50
      %p54 = scmp.eq.s32.totalorder %s14, 0
      %p55 = por %p53, %p54
      %p56 = scmp.ne.s32.totalorder %s48, %s50
      %p57 = scmp.eq.s32.totalorder %s19, 1
      %p58 = por %p56, %p57
      %p59 = scmp.ne.s32.totalorder %s50, %s51
      %p60 = scmp.eq.s32.totalorder %s19, 0
      %p61 = por %p59, %p60
      %p62 = scmp.ne.s32.totalorder %s50, %s51
      %p63 = scmp.eq.s32.totalorder %s20, 1
      %p64 = por %p62, %p63
      %p66 = scmp.ne.s32.totalorder %s51, %s65
      %p67 = scmp.eq.s32.totalorder %s20, 0
      %p68 = por %p66, %p67
      %s70 = sadd.s32 %s69, 1
      %p73 = scmp.eq.s32.totalorder %s14, 1
      %p74 = scmp.ne.s32.totalorder %s69, %s71
      %p75 = scmp.eq.s32.totalorder %s14, 0
      %p76 = por %p74, %p75
      %p77 = scmp.ne.s32.totalorder %s69, %s71
      %p78 = scmp.eq.s32.totalorder %s19, 1
      %p79 = por %p77, %p78
      %p80 = scmp.ne.s32.totalorder %s71, %s72
      %p81 = scmp.eq.s32.totalorder %s19, 0
      %p82 = por %p80, %p81
      %p83 = scmp.ne.s32.totalorder %s71, %s72
      %p84 = scmp.eq.s32.totalorder %s20, 1
      %p85 = por %p83, %p84
      %p87 = scmp.ne.s32.totalorder %s72, %s86
      %p88 = scmp.eq.s32.totalorder %s20, 0
      %p89 = por %p87, %p88
      %s91 = sadd.s32 %s90, 1
      %p94 = scmp.eq.s32.totalorder %s14, 1
      %p95 = scmp.ne.s32.totalorder %s90, %s92
      %p96 = scmp.eq.s32.totalorder %s14, 0
      %p97 = por %p95, %p96
      %p98 = scmp.ne.s32.totalorder %s90, %s92
      %p99 = scmp.eq.s32.totalorder %s19, 1
      %p100 = por %p98, %p99
      %p101 = scmp.ne.s32.totalorder %s92, %s93
      %p102 = scmp.eq.s32.totalorder %s19, 0
      %p103 = por %p101, %p102
      %p104 = scmp.ne.s32.totalorder %s92, %s93
      %p105 = scmp.eq.s32.totalorder %s20, 1
      %p106 = por %p104, %p105
      %p108 = scmp.ne.s32.totalorder %s93, %s107
      %p109 = scmp.eq.s32.totalorder %s20, 0
      %p110 = por %p108, %p109
      %s112 = sadd.s32 %s111, 1
      %p115 = scmp.eq.s32.totalorder %s14, 1
      %p116 = scmp.ne.s32.totalorder %s111, %s113
      %p117 = scmp.eq.s32.totalorder %s14, 0
      %p118 = por %p116, %p117
      %p119 = scmp.ne.s32.totalorder %s111, %s113
      %p120 = scmp.eq.s32.totalorder %s19, 1
      %p121 = por %p119, %p120
      %p122 = scmp.ne.s32.totalorder %s113, %s114
      %p123 = scmp.eq.s32.totalorder %s19, 0
      %p124 = por %p122, %p123
      %p125 = scmp.ne.s32.totalorder %s113, %s114
      %p126 = scmp.eq.s32.totalorder %s20, 1
      %p127 = por %p125, %p126
      %p129 = scmp.ne.s32.totalorder %s114, %s128
      %p130 = scmp.eq.s32.totalorder %s20, 0
      %p131 = por %p129, %p130
      %s132 = ssub.s32 %s14, %s21
      %p133 = scmp.eq.s32.totalorder %s132, 0
      %s135 = sadd.s32 %s134, 1
      %s136 = scalar_select %p133, %s134, %s135
      %p139 = pneg %p133
      %p140 = scmp.eq.s32.totalorder %s14, 1
      %p141 = por %p139, %p140
      %p142 = scmp.ne.s32.totalorder %s134, %s137
      %p143 = scmp.eq.s32.totalorder %s14, 0
      %p144 = por %p142, %p143
      %p145 = scmp.ne.s32.totalorder %s134, %s137
      %p146 = scmp.eq.s32.totalorder %s19, 1
      %p147 = por %p145, %p146
      %p148 = scmp.ne.s32.totalorder %s137, %s138
      %p149 = scmp.eq.s32.totalorder %s19, 0
      %p150 = por %p148, %p149
      %p151 = scmp.ne.s32.totalorder %s137, %s138
      %p152 = scmp.eq.s32.totalorder %s20, 1
      %p153 = por %p151, %p152
      %p155 = scmp.ne.s32.totalorder %s138, %s154
      %p156 = scmp.eq.s32.totalorder %s20, 0
      %p157 = por %p155, %p156
      %p158 = scmp.le.s32.totalorder 1, %s14
      %p159 = scmp.lt.s32.totalorder %s14, 3
      %p160 = pnand %p158, %p159
      %p161 = pneg %p160
      // Predicated region
      $region9: #{shufflenet_v2_forward.17} parent=5 // pred_check
        _
      $region10: #{shufflenet_v2_forward.17} parent=5 // pred_check_branch
        %163 = sbr.rel (%p160) target = $region12
      $region11: #{shufflenet_v2_forward.17} parent=5 // pred_region
        %s164 = ssub.s32 %s14, 1
        // Predicated region
        $region13: #{shufflenet_v2_forward.17} parent=11 // pred_check
          %p165 = pneg %p61
        $region14: #{shufflenet_v2_forward.17} parent=11 // pred_check_branch
          %167 = sbr.rel (%p165) target = $region16
        $region15: #{shufflenet_v2_forward.17} parent=11 // pred_region
          _
        $region16: #{shufflenet_v2_forward.17} parent=11 // pred_fallthru
          _
        // Predicated region
        $region17: #{shufflenet_v2_forward.17} parent=11 // pred_check
          %p168 = pneg %p82
        $region18: #{shufflenet_v2_forward.17} parent=11 // pred_check_branch
          %170 = sbr.rel (%p168) target = $region20
        $region19: #{shufflenet_v2_forward.17} parent=11 // pred_region
          _
        $region20: #{shufflenet_v2_forward.17} parent=11 // pred_fallthru
          _
        // Predicated region
        $region21: #{shufflenet_v2_forward.17} parent=11 // pred_check
          %p171 = pneg %p103
        $region22: #{shufflenet_v2_forward.17} parent=11 // pred_check_branch
          %173 = sbr.rel (%p171) target = $region24
        $region23: #{shufflenet_v2_forward.17} parent=11 // pred_region
          _
        $region24: #{shufflenet_v2_forward.17} parent=11 // pred_fallthru
          _
        // Predicated region
        $region25: #{shufflenet_v2_forward.17} parent=11 // pred_check
          %p174 = pneg %p124
        $region26: #{shufflenet_v2_forward.17} parent=11 // pred_check_branch
          %176 = sbr.rel (%p174) target = $region28
        $region27: #{shufflenet_v2_forward.17} parent=11 // pred_region
          _
        $region28: #{shufflenet_v2_forward.17} parent=11 // pred_fallthru
          _
      $region12: #{shufflenet_v2_forward.17} parent=5 // pred_fallthru
        _
      %p177 = scmp.lt.s32.totalorder %s14, 2
      // Predicated region
      $region29: #{shufflenet_v2_forward.17} parent=5 // pred_check
        %p178 = pneg %p177
      $region30: #{shufflenet_v2_forward.17} parent=5 // pred_check_branch
        %180 = sbr.rel (%p178) target = $region32
      $region31: #{shufflenet_v2_forward.17} parent=5 // pred_region
        // Predicated region
        $region33: #{shufflenet_v2_forward.17} parent=31 // pred_check
          %p181 = pneg %p34
        $region34: #{shufflenet_v2_forward.17} parent=31 // pred_check_branch
          %183 = sbr.rel (%p181) target = $region36
        $region35: #{shufflenet_v2_forward.17} parent=31 // pred_region
          %p184 = scmp.lt.s32.totalorder %s14, 1
          %s185 = scalar_select %p184, %s14, 1
          %s186 = scalar_lea.vmem %s0, %s185
        $region36: #{shufflenet_v2_forward.17} parent=31 // pred_fallthru
          _
      $region32: #{shufflenet_v2_forward.17} parent=5 // pred_fallthru
        _
      %p187 = scmp.le.s32.totalorder 1, %s14
      %p188 = scmp.lt.s32.totalorder %s14, 3
      %p189 = pnand %p187, %p188
      %p190 = pneg %p189
      // Predicated region
      $region37: #{shufflenet_v2_forward.17} parent=5 // pred_check
        _
      $region38: #{shufflenet_v2_forward.17} parent=5 // pred_check_branch
        %192 = sbr.rel (%p189) target = $region40
      $region39: #{shufflenet_v2_forward.17} parent=5 // pred_region
        %s193 = ssub.s32 %s14, 1
        %p194 = scmp.lt.s32.totalorder %s19, 1
        %s195 = scalar_select %p194, %s19, 1
        %s196 = scalar_lea.vmem %s0, %s195
        %p197 = pneg %p40
        %p198 = pneg %p37
        %p199 = pneg %p61
        %p200 = pneg %p58
        %p201 = pneg %p82
        %p202 = pneg %p79
        %p203 = pneg %p103
        %p204 = pneg %p100
        %p205 = pneg %p124
        %p206 = pneg %p121
        %p207 = pneg %p150
        %p208 = pneg %p147
        %s209 = sand.u32 %s137, 1
        %s210 = scalar_lea.sflag [#allocation3], %s209
        %s211 = sand.u32 %s137, 1
        %s212 = scalar_lea.vmem [#allocation2], %s211
        %p213 = scmp.lt.s32.totalorder %s19, 1
        %s214 = scalar_select %p213, %s19, 1
        %s215 = scalar_lea.vmem %s0, %s214
        %v217 = vld [vmem:[%s215] sm:$0x1]
        %v218 = vld [vmem:[%s1] sm:$0xf]
        %v219 = vld [vmem:[%s1 + $0x4] sm:$0xf]
        %v220 = vld [vmem:[%s1 + $0x8] sm:$0xf]
        %v221 = vld [vmem:[%s1 + $0xc] sm:$0xf]
        %v222 = vld [vmem:[%s1 + $0x10] sm:$0xf]
        %v223 = vld [vmem:[%s1 + $0x14] sm:$0xf]
        %v224 = vld [vmem:[%s1 + $0x18] sm:$0xf]
        %v225 = vld [vmem:[%s1 + $0x1c] sm:$0xf]
        %v226 = vld [vmem:[%s2] sm:$0x1]
        %v235 = vunpack.c.l.b16 %v218
        %v236 = vunpack.c.l.b16 %v219
        %v237 = vunpack.c.l.b16 %v220
        %v238 = vunpack.c.l.b16 %v221
        %v239 = vunpack.c.l.b16 %v222
        %v240 = vunpack.c.l.b16 %v223
        %v241 = vunpack.c.l.b16 %v224
        %v242 = vunpack.c.l.b16 %v225
        %v243 = vpack.c.b16 %v236, %v235
        %v244 = vpack.c.b16 %v238, %v237
        %v245 = vpack.c.b16 %v240, %v239
        %v246 = vpack.c.b16 %v242, %v241
        %vm251 = vcmask 523264
        %v253 = vsel %vm251, %v217, 0
        %255 = vmatprep.subr.bf16.mxu0 0
        %256 = vmatpush1.bf16.msra.mxu0 %v243
        %257 = vmatprep.subr.bf16.mxu0 0
        %258 = vmatpush1.bf16.msra.mxu0 %v244
        %259 = vmatprep.subr.bf16.mxu0 0
        %260 = vmatpush1.bf16.msra.mxu0 %v245
        %261 = vmatprep.subr.bf16.mxu0 0
        %262 = vmatpush1.bf16.msra.mxu0 %v246
        %263 = vmatprep.subr.bf16.mxu0 0
        %264 = vmatpush1.bf16.msra.mxu0 0
        %265 = vmatprep.subr.bf16.mxu0 0
        %266 = vmatpush1.bf16.msra.mxu0 0
        %267 = vmatprep.subr.bf16.mxu0 0
        %268 = vmatpush1.bf16.msra.mxu0 0
        %269 = vmatprep.subr.bf16.mxu0 0
        %270 = vmatpush1.bf16.msra.mxu0 0
        %271 = vmatprep.subr.bf16.mxu0 0
        %272 = vmatpush1.bf16.msra.mxu0 0
        %273 = vmatprep.subr.bf16.mxu0 0
        %274 = vmatpush1.bf16.msra.mxu0 0
        %275 = vmatprep.subr.bf16.mxu0 0
        %276 = vmatpush1.bf16.msra.mxu0 0
        %277 = vmatprep.subr.bf16.mxu0 0
        %278 = vmatpush1.bf16.msra.mxu0 0
        %279 = vmatprep.subr.bf16.mxu0 0
        %280 = vmatpush1.bf16.msra.mxu0 0
        %281 = vmatprep.subr.bf16.mxu0 0
        %282 = vmatpush1.bf16.msra.mxu0 0
        %283 = vmatprep.subr.bf16.mxu0 0
        %284 = vmatpush1.bf16.msra.mxu0 0
        %285 = vmatprep.subr.bf16.mxu0 0
        %286 = vmatpush1.bf16.msra.mxu0 0
        %287 = vmatprep.mubr.bf16.mxu0 0
        %288 = vmatmul.mubr.bf16.gmra.mrb[0].mxu0 %v253
        %v289 = vpop.f32.mrb[0].mxu0
        %v290 = vadd.f32 %v226, %v289
        %v291 = vpop.f32.mrb[0].mxu0
        %v292 = vpop.f32.mrb[0].mxu0
        %v293 = vpop.f32.mrb[0].mxu0
        %294 = vdwg.mxu0
        %v295 = vmax.f32 %v290, 0.0
        %v296 = vadd.f32 %v295, 0.0
        %v297 = vpack.c.bf16 %v296, %v296
        %v298 = vld [vmem:[%s3] sm:$0xf]
        %v299 = vld [vmem:[%s3 + $0x4] sm:$0xf]
        %v300 = vld [vmem:[%s3 + $0x8] sm:$0xf]
        %v301 = vld [vmem:[%s3 + $0xc] sm:$0xf]
        %v302 = vld [vmem:[%s3 + $0x10] sm:$0xf]
        %v303 = vld [vmem:[%s3 + $0x14] sm:$0xf]
        %v304 = vld [vmem:[%s3 + $0x18] sm:$0xf]
        %v305 = vld [vmem:[%s3 + $0x1c] sm:$0xf]
        %v306 = vld [vmem:[%s3 + $0x20] sm:$0xf]
        %v307 = vld [vmem:[%s3 + $0x24] sm:$0xf]
        %v308 = vld [vmem:[%s3 + $0x28] sm:$0xf]
        %v309 = vld [vmem:[%s3 + $0x2c] sm:$0xf]
        %v310 = vld [vmem:[%s3 + $0x30] sm:$0xf]
        %v311 = vld [vmem:[%s3 + $0x34] sm:$0xf]
        %v312 = vld [vmem:[%s3 + $0x38] sm:$0xf]
        %v313 = vld [vmem:[%s3 + $0x3c] sm:$0xf]
        %v314 = vld [vmem:[%s4] sm:$0x1]
        %v331 = vunpack.c.l.b16 %v298
        %v332 = vunpack.c.l.b16 %v299
        %v333 = vunpack.c.l.b16 %v300
        %v334 = vunpack.c.l.b16 %v301
        %v335 = vunpack.c.l.b16 %v302
        %v336 = vunpack.c.l.b16 %v303
        %v337 = vunpack.c.l.b16 %v304
        %v338 = vunpack.c.l.b16 %v305
        %v339 = vunpack.c.l.b16 %v306
        %v340 = vunpack.c.l.b16 %v307
        %v341 = vunpack.c.l.b16 %v308
        %v342 = vunpack.c.l.b16 %v309
        %v343 = vunpack.c.l.b16 %v310
        %v344 = vunpack.c.l.b16 %v311
        %v345 = vunpack.c.l.b16 %v312
        %v346 = vunpack.c.l.b16 %v313
        %v347 = vpack.c.b16 %v332, %v331
        %v348 = vpack.c.b16 %v334, %v333
        %v349 = vpack.c.b16 %v336, %v335
        %v350 = vpack.c.b16 %v338, %v337
        %v351 = vpack.c.b16 %v340, %v339
        %v352 = vpack.c.b16 %v342, %v341
        %v353 = vpack.c.b16 %v344, %v343
        %v354 = vpack.c.b16 %v346, %v345
        %363 = vmatprep.subr.bf16.mxu0 0
        %364 = vmatpush1.bf16.msra.mxu0 %v347
        %365 = vmatprep.subr.bf16.mxu0 0
        %366 = vmatpush1.bf16.msra.mxu0 %v348
        %367 = vmatprep.subr.bf16.mxu0 0
        %368 = vmatpush1.bf16.msra.mxu0 %v349
        %369 = vmatprep.subr.bf16.mxu0 0
        %370 = vmatpush1.bf16.msra.mxu0 %v350
        %371 = vmatprep.subr.bf16.mxu0 0
        %372 = vmatpush1.bf16.msra.mxu0 %v351
        %373 = vmatprep.subr.bf16.mxu0 0
        %374 = vmatpush1.bf16.msra.mxu0 %v352
        %375 = vmatprep.subr.bf16.mxu0 0
        %376 = vmatpush1.bf16.msra.mxu0 %v353
        %377 = vmatprep.subr.bf16.mxu0 0
        %378 = vmatpush1.bf16.msra.mxu0 %v354
        %379 = vmatprep.subr.bf16.mxu0 0
        %380 = vmatpush1.bf16.msra.mxu0 0
        %381 = vmatprep.subr.bf16.mxu0 0
        %382 = vmatpush1.bf16.msra.mxu0 0
        %383 = vmatprep.subr.bf16.mxu0 0
        %384 = vmatpush1.bf16.msra.mxu0 0
        %385 = vmatprep.subr.bf16.mxu0 0
        %386 = vmatpush1.bf16.msra.mxu0 0
        %387 = vmatprep.subr.bf16.mxu0 0
        %388 = vmatpush1.bf16.msra.mxu0 0
        %389 = vmatprep.subr.bf16.mxu0 0
        %390 = vmatpush1.bf16.msra.mxu0 0
        %391 = vmatprep.subr.bf16.mxu0 0
        %392 = vmatpush1.bf16.msra.mxu0 0
        %393 = vmatprep.subr.bf16.mxu0 0
        %394 = vmatpush1.bf16.msra.mxu0 0
        %395 = vmatprep.mubr.bf16.mxu0 0
        %396 = vmatmul.mubr.bf16.gmra.mrb[0].mxu0 %v297
        %v397 = vpop.f32.mrb[0].mxu0
        %v398 = vadd.f32 %v314, %v397
        %v399 = vpop.f32.mrb[0].mxu0
        %v400 = vpop.f32.mrb[0].mxu0
        %v401 = vpop.f32.mrb[0].mxu0
        %402 = vdwg.mxu0
        %403 = vst [vmem:[%s212] sm:$0x1] %v398
        %s404 = sand.u32 %s137, 1
        %s405 = scalar_lea.sflag [#allocation3], %s404
        %s406 = sand.u32 %s137, 1
        %s407 = scalar_lea.vmem [#allocation2], %s406
        // Predicated region
        $region41: #{shufflenet_v2_forward.17} parent=39 // pred_check
          %p408 = pneg %p147
        $region42: #{shufflenet_v2_forward.17} parent=39 // pred_check_branch
          %410 = sbr.rel (%p408) target = $region44
        $region43: #{shufflenet_v2_forward.17} parent=39 // pred_region
          %s412 = ssub.s32 16, 16
          %413 = vsyncadd %s405, %s412
          %s414 = smul.addr %s19, 16
          %s415 = scalar_lea.hbm %s5, %s414
          %s417 = sshll.u32 %s407, 4
          %s418 = int_to_ptr.vmem [resolvable:$true] %s417
          %420 = dma.vmem_to_hbm [thread:$0]  %s418, 16, %s415, %s405
        $region44: #{shufflenet_v2_forward.17} parent=39 // pred_fallthru
          _
      $region40: #{shufflenet_v2_forward.17} parent=5 // pred_fallthru
        _
      %p421 = scmp.le.s32.totalorder 2, %s14
      // Predicated region
      $region45: #{shufflenet_v2_forward.17} parent=5 // pred_check
        %p422 = pneg %p421
      $region46: #{shufflenet_v2_forward.17} parent=5 // pred_check_branch
        %424 = sbr.rel (%p422) target = $region48
      $region47: #{shufflenet_v2_forward.17} parent=5 // pred_region
        %s425 = ssub.s32 %s14, 2
        // Predicated region
        $region49: #{shufflenet_v2_forward.17} parent=47 // pred_check
          %p426 = pneg %p153
        $region50: #{shufflenet_v2_forward.17} parent=47 // pred_check_branch
          %428 = sbr.rel (%p426) target = $region52
        $region51: #{shufflenet_v2_forward.17} parent=47 // pred_region
          %s429 = sand.u32 %s138, 1
          %s430 = scalar_lea.sflag [#allocation3], %s429
          %s431 = sand.u32 %s138, 1
          %s432 = scalar_lea.vmem [#allocation2], %s431
          %433 = dma.done %s430, 16
        $region52: #{shufflenet_v2_forward.17} parent=47 // pred_fallthru
          _
      $region48: #{shufflenet_v2_forward.17} parent=5 // pred_fallthru
        _
    $region6: #{shufflenet_v2_forward.17} parent=1 // loop_footer
      %s18 = sadd.s32 1, %s14
    $region7: #{shufflenet_v2_forward.17} parent=1 // loop_footer_branch
      %13 = sbr.rel target = $region3
    $region8: #{shufflenet_v2_forward.17} parent=1 // loop_exit
      _
    %434 = vsyncpa [#allocation3], 1
    %s435 = scalar_lea.sflag [#allocation3], 1
    %436 = vsyncpa %s435, 1

// kernel: shufflenet_v2_forward.16
$region0: #{shufflenet_v2_forward.16}
  #allocation0 [shape = 'u32[]', space=smem, size = 0x4, offset = 0x4, fixed_abs, tag = 'smem constant byte address 0x4 - core index']
  #allocation1 [shape = 'u32[144,128]{1,0:T(1,128)}', space=vmem, size = 0x12000, scoped, tag = 'internal scratch']
  %s0 = inlined_call_operand.vmem [shape: bf16[2,1,64], index: 0, kind: input, shape index: {}]
  %s1 = inlined_call_operand.vmem [shape: bf16[32,32], index: 1, kind: input, shape index: {}]
  %s2 = inlined_call_operand.vmem [shape: f32[1,32], index: 2, kind: input, shape index: {}]
  %s3 = inlined_call_operand.vmem [shape: f32[9,1,32], index: 3, kind: input, shape index: {}]
  %s4 = inlined_call_operand.vmem [shape: f32[1,32], index: 4, kind: input, shape index: {}]
  %s5 = inlined_call_operand.vmem [shape: bf16[32,64], index: 5, kind: input, shape index: {}]
  %s6 = inlined_call_operand.vmem [shape: f32[1,64], index: 6, kind: input, shape index: {}]
  %s7 = inlined_call_operand.vmem [shape: bf16[2,1,64], index: 7, kind: output, shape index: {}]
  %s8 = sld [smem:[#allocation0]]
  $region61: #{shufflenet_v2_forward.16} parent=0
    _
  %s10 = ssub.s32 1, %s8
  %s11 = scalar_select 0, %s10, %s8
  loop: start=0, step=1, limit=4
  $region2: #{shufflenet_v2_forward.16} parent=0 // loop_pre_header
    _
  $region3: #{shufflenet_v2_forward.16} parent=0 // loop_header
    %s13 = sphi 0, %s17
    %p14 = scmp.ge.s32.totalorder %s13, 4
    %s23 = sphi 0, %s25
    %s26 = sphi 0, %s23
    %s27 = sphi 0, %s26
    %s43 = sphi 0, %s27
    %s47 = sphi 0, %s47
    %s49 = sphi 0, %s47
    %s50 = sphi 0, %s49
    %s64 = sphi 0, %s50
    %s68 = sphi 0, %s68
    %s70 = sphi 0, %s68
    %s71 = sphi 0, %s70
    %s85 = sphi 0, %s71
    %s89 = sphi 0, %s89
    %s91 = sphi 0, %s89
    %s92 = sphi 0, %s91
    %s106 = sphi 0, %s92
    %s110 = sphi 0, %s110
    %s112 = sphi 0, %s110
    %s113 = sphi 0, %s112
    %s127 = sphi 0, %s113
    %s131 = sphi 0, %s131
    %s133 = sphi 0, %s131
    %s134 = sphi 0, %s133
    %s148 = sphi 0, %s134
    %s152 = sphi 0, %s152
    %s154 = sphi 0, %s152
    %s155 = sphi 0, %s154
    %s169 = sphi 0, %s155
    %s175 = sphi 0, %s177
    %s178 = sphi 0, %s175
    %s179 = sphi 0, %s178
    %s195 = sphi 0, %s179
  $region4: #{shufflenet_v2_forward.16} parent=0 // loop_header_branch
    %16 = sbr.rel (%p14) target = $region8
  $region5: #{shufflenet_v2_forward.16} parent=0 // loop_body
    %s18 = ssub.s32 %s13, 1
    %s19 = ssub.s32 %s13, 2
    %s20 = sadd.s32 %s13, 1
    %s21 = ssub.s32 %s13, %s20
    %p22 = scmp.eq.s32.totalorder %s21, 0
    %s24 = sadd.s32 %s23, 1
    %s25 = scalar_select %p22, %s23, %s24
    %p28 = pneg %p22
    %p29 = scmp.eq.s32.totalorder %s13, 1
    %p30 = por %p28, %p29
    %p31 = scmp.ne.s32.totalorder %s23, %s26
    %p32 = scmp.eq.s32.totalorder %s13, 0
    %p33 = por %p31, %p32
    %p34 = scmp.ne.s32.totalorder %s23, %s26
    %p35 = scmp.eq.s32.totalorder %s18, 1
    %p36 = por %p34, %p35
    %p37 = scmp.ne.s32.totalorder %s26, %s27
    %p38 = scmp.eq.s32.totalorder %s18, 0
    %p39 = por %p37, %p38
    %p40 = scmp.ne.s32.totalorder %s26, %s27
    %p41 = scmp.eq.s32.totalorder %s19, 1
    %p42 = por %p40, %p41
    %p44 = scmp.ne.s32.totalorder %s27, %s43
    %p45 = scmp.eq.s32.totalorder %s19, 0
    %p46 = por %p44, %p45
    %s48 = sadd.s32 %s47, 1
    %p51 = scmp.eq.s32.totalorder %s13, 1
    %p52 = scmp.ne.s32.totalorder %s47, %s49
    %p53 = scmp.eq.s32.totalorder %s13, 0
    %p54 = por %p52, %p53
    %p55 = scmp.ne.s32.totalorder %s47, %s49
    %p56 = scmp.eq.s32.totalorder %s18, 1
    %p57 = por %p55, %p56
    %p58 = scmp.ne.s32.totalorder %s49, %s50
    %p59 = scmp.eq.s32.totalorder %s18, 0
    %p60 = por %p58, %p59
    %p61 = scmp.ne.s32.totalorder %s49, %s50
    %p62 = scmp.eq.s32.totalorder %s19, 1
    %p63 = por %p61, %p62
    %p65 = scmp.ne.s32.totalorder %s50, %s64
    %p66 = scmp.eq.s32.totalorder %s19, 0
    %p67 = por %p65, %p66
    %s69 = sadd.s32 %s68, 1
    %p72 = scmp.eq.s32.totalorder %s13, 1
    %p73 = scmp.ne.s32.totalorder %s68, %s70
    %p74 = scmp.eq.s32.totalorder %s13, 0
    %p75 = por %p73, %p74
    %p76 = scmp.ne.s32.totalorder %s68, %s70
    %p77 = scmp.eq.s32.totalorder %s18, 1
    %p78 = por %p76, %p77
    %p79 = scmp.ne.s32.totalorder %s70, %s71
    %p80 = scmp.eq.s32.totalorder %s18, 0
    %p81 = por %p79, %p80
    %p82 = scmp.ne.s32.totalorder %s70, %s71
    %p83 = scmp.eq.s32.totalorder %s19, 1
    %p84 = por %p82, %p83
    %p86 = scmp.ne.s32.totalorder %s71, %s85
    %p87 = scmp.eq.s32.totalorder %s19, 0
    %p88 = por %p86, %p87
    %s90 = sadd.s32 %s89, 1
    %p93 = scmp.eq.s32.totalorder %s13, 1
    %p94 = scmp.ne.s32.totalorder %s89, %s91
    %p95 = scmp.eq.s32.totalorder %s13, 0
    %p96 = por %p94, %p95
    %p97 = scmp.ne.s32.totalorder %s89, %s91
    %p98 = scmp.eq.s32.totalorder %s18, 1
    %p99 = por %p97, %p98
    %p100 = scmp.ne.s32.totalorder %s91, %s92
    %p101 = scmp.eq.s32.totalorder %s18, 0
    %p102 = por %p100, %p101
    %p103 = scmp.ne.s32.totalorder %s91, %s92
    %p104 = scmp.eq.s32.totalorder %s19, 1
    %p105 = por %p103, %p104
    %p107 = scmp.ne.s32.totalorder %s92, %s106
    %p108 = scmp.eq.s32.totalorder %s19, 0
    %p109 = por %p107, %p108
    %s111 = sadd.s32 %s110, 1
    %p114 = scmp.eq.s32.totalorder %s13, 1
    %p115 = scmp.ne.s32.totalorder %s110, %s112
    %p116 = scmp.eq.s32.totalorder %s13, 0
    %p117 = por %p115, %p116
    %p118 = scmp.ne.s32.totalorder %s110, %s112
    %p119 = scmp.eq.s32.totalorder %s18, 1
    %p120 = por %p118, %p119
    %p121 = scmp.ne.s32.totalorder %s112, %s113
    %p122 = scmp.eq.s32.totalorder %s18, 0
    %p123 = por %p121, %p122
    %p124 = scmp.ne.s32.totalorder %s112, %s113
    %p125 = scmp.eq.s32.totalorder %s19, 1
    %p126 = por %p124, %p125
    %p128 = scmp.ne.s32.totalorder %s113, %s127
    %p129 = scmp.eq.s32.totalorder %s19, 0
    %p130 = por %p128, %p129
    %s132 = sadd.s32 %s131, 1
    %p135 = scmp.eq.s32.totalorder %s13, 1
    %p136 = scmp.ne.s32.totalorder %s131, %s133
    %p137 = scmp.eq.s32.totalorder %s13, 0
    %p138 = por %p136, %p137
    %p139 = scmp.ne.s32.totalorder %s131, %s133
    %p140 = scmp.eq.s32.totalorder %s18, 1
    %p141 = por %p139, %p140
    %p142 = scmp.ne.s32.totalorder %s133, %s134
    %p143 = scmp.eq.s32.totalorder %s18, 0
    %p144 = por %p142, %p143
    %p145 = scmp.ne.s32.totalorder %s133, %s134
    %p146 = scmp.eq.s32.totalorder %s19, 1
    %p147 = por %p145, %p146
    %p149 = scmp.ne.s32.totalorder %s134, %s148
    %p150 = scmp.eq.s32.totalorder %s19, 0
    %p151 = por %p149, %p150
    %s153 = sadd.s32 %s152, 1
    %p156 = scmp.eq.s32.totalorder %s13, 1
    %p157 = scmp.ne.s32.totalorder %s152, %s154
    %p158 = scmp.eq.s32.totalorder %s13, 0
    %p159 = por %p157, %p158
    %p160 = scmp.ne.s32.totalorder %s152, %s154
    %p161 = scmp.eq.s32.totalorder %s18, 1
    %p162 = por %p160, %p161
    %p163 = scmp.ne.s32.totalorder %s154, %s155
    %p164 = scmp.eq.s32.totalorder %s18, 0
    %p165 = por %p163, %p164
    %p166 = scmp.ne.s32.totalorder %s154, %s155
    %p167 = scmp.eq.s32.totalorder %s19, 1
    %p168 = por %p166, %p167
    %p170 = scmp.ne.s32.totalorder %s155, %s169
    %p171 = scmp.eq.s32.totalorder %s19, 0
    %p172 = por %p170, %p171
    %s173 = ssub.s32 %s13, %s20
    %p174 = scmp.eq.s32.totalorder %s173, 0
    %s176 = sadd.s32 %s175, 1
    %s177 = scalar_select %p174, %s175, %s176
    %p180 = pneg %p174
    %p181 = scmp.eq.s32.totalorder %s13, 1
    %p182 = por %p180, %p181
    %p183 = scmp.ne.s32.totalorder %s175, %s178
    %p184 = scmp.eq.s32.totalorder %s13, 0
    %p185 = por %p183, %p184
    %p186 = scmp.ne.s32.totalorder %s175, %s178
    %p187 = scmp.eq.s32.totalorder %s18, 1
    %p188 = por %p186, %p187
    %p189 = scmp.ne.s32.totalorder %s178, %s179
    %p190 = scmp.eq.s32.totalorder %s18, 0
    %p191 = por %p189, %p190
    %p192 = scmp.ne.s32.totalorder %s178, %s179
    %p193 = scmp.eq.s32.totalorder %s19, 1
    %p194 = por %p192, %p193
    %p196 = scmp.ne.s32.totalorder %s179, %s195
    %p197 = scmp.eq.s32.totalorder %s19, 0
    %p198 = por %p196, %p197
    %p199 = scmp.le.s32.totalorder 1, %s13
    %p200 = scmp.lt.s32.totalorder %s13, 3
    %p201 = pnand %p199, %p200
    %p202 = pneg %p201
    // Predicated region
    $region9: #{shufflenet_v2_forward.16} parent=5 // pred_check
      _
    $region10: #{shufflenet_v2_forward.16} parent=5 // pred_check_branch
      %204 = sbr.rel (%p201) target = $region12
    $region11: #{shufflenet_v2_forward.16} parent=5 // pred_region
      %s205 = ssub.s32 %s13, 1
      // Predicated region
      $region13: #{shufflenet_v2_forward.16} parent=11 // pred_check
        %p206 = pneg %p60
      $region14: #{shufflenet_v2_forward.16} parent=11 // pred_check_branch
        %208 = sbr.rel (%p206) target = $region16
      $region15: #{shufflenet_v2_forward.16} parent=11 // pred_region
        _
      $region16: #{shufflenet_v2_forward.16} parent=11 // pred_fallthru
        _
      // Predicated region
      $region17: #{shufflenet_v2_forward.16} parent=11 // pred_check
        %p209 = pneg %p81
      $region18: #{shufflenet_v2_forward.16} parent=11 // pred_check_branch
        %211 = sbr.rel (%p209) target = $region20
      $region19: #{shufflenet_v2_forward.16} parent=11 // pred_region
        _
      $region20: #{shufflenet_v2_forward.16} parent=11 // pred_fallthru
        _
      // Predicated region
      $region21: #{shufflenet_v2_forward.16} parent=11 // pred_check
        %p212 = pneg %p102
      $region22: #{shufflenet_v2_forward.16} parent=11 // pred_check_branch
        %214 = sbr.rel (%p212) target = $region24
      $region23: #{shufflenet_v2_forward.16} parent=11 // pred_region
        _
      $region24: #{shufflenet_v2_forward.16} parent=11 // pred_fallthru
        _
      // Predicated region
      $region25: #{shufflenet_v2_forward.16} parent=11 // pred_check
        %p215 = pneg %p123
      $region26: #{shufflenet_v2_forward.16} parent=11 // pred_check_branch
        %217 = sbr.rel (%p215) target = $region28
      $region27: #{shufflenet_v2_forward.16} parent=11 // pred_region
        _
      $region28: #{shufflenet_v2_forward.16} parent=11 // pred_fallthru
        _
      // Predicated region
      $region29: #{shufflenet_v2_forward.16} parent=11 // pred_check
        %p218 = pneg %p144
      $region30: #{shufflenet_v2_forward.16} parent=11 // pred_check_branch
        %220 = sbr.rel (%p218) target = $region32
      $region31: #{shufflenet_v2_forward.16} parent=11 // pred_region
        _
      $region32: #{shufflenet_v2_forward.16} parent=11 // pred_fallthru
        _
      // Predicated region
      $region33: #{shufflenet_v2_forward.16} parent=11 // pred_check
        %p221 = pneg %p165
      $region34: #{shufflenet_v2_forward.16} parent=11 // pred_check_branch
        %223 = sbr.rel (%p221) target = $region36
      $region35: #{shufflenet_v2_forward.16} parent=11 // pred_region
        _
      $region36: #{shufflenet_v2_forward.16} parent=11 // pred_fallthru
        _
    $region12: #{shufflenet_v2_forward.16} parent=5 // pred_fallthru
      _
    %p224 = scmp.lt.s32.totalorder %s13, 2
    // Predicated region
    $region37: #{shufflenet_v2_forward.16} parent=5 // pred_check
      %p225 = pneg %p224
    $region38: #{shufflenet_v2_forward.16} parent=5 // pred_check_branch
      %227 = sbr.rel (%p225) target = $region40
    $region39: #{shufflenet_v2_forward.16} parent=5 // pred_region
      // Predicated region
      $region41: #{shufflenet_v2_forward.16} parent=39 // pred_check
        %p228 = pneg %p33
      $region42: #{shufflenet_v2_forward.16} parent=39 // pred_check_branch
        %230 = sbr.rel (%p228) target = $region44
      $region43: #{shufflenet_v2_forward.16} parent=39 // pred_region
        %p231 = scmp.lt.s32.totalorder %s13, 1
        %s232 = scalar_select %p231, %s13, 1
        %s233 = scalar_lea.vmem %s0, %s232
      $region44: #{shufflenet_v2_forward.16} parent=39 // pred_fallthru
        _
    $region40: #{shufflenet_v2_forward.16} parent=5 // pred_fallthru
      _
    %p234 = scmp.le.s32.totalorder 1, %s13
    %p235 = scmp.lt.s32.totalorder %s13, 3
    %p236 = pnand %p234, %p235
    %p237 = pneg %p236
    // Predicated region
    $region45: #{shufflenet_v2_forward.16} parent=5 // pred_check
      _
    $region46: #{shufflenet_v2_forward.16} parent=5 // pred_check_branch
      %239 = sbr.rel (%p236) target = $region48
    $region47: #{shufflenet_v2_forward.16} parent=5 // pred_region
      %s240 = ssub.s32 %s13, 1
      %p241 = scmp.lt.s32.totalorder %s18, 1
      %s242 = scalar_select %p241, %s18, 1
      %s243 = scalar_lea.vmem %s0, %s242
      %p244 = pneg %p39
      %p245 = pneg %p36
      %p246 = pneg %p60
      %p247 = pneg %p57
      %p248 = pneg %p81
      %p249 = pneg %p78
      %p250 = pneg %p102
      %p251 = pneg %p99
      %p252 = pneg %p123
      %p253 = pneg %p120
      %p254 = pneg %p144
      %p255 = pneg %p141
      %p256 = pneg %p165
      %p257 = pneg %p162
      %p258 = pneg %p191
      %p259 = pneg %p188
      %p260 = scmp.lt.s32.totalorder %s18, 1
      %s261 = scalar_select %p260, %s18, 1
      %s262 = scalar_lea.vmem %s7, %s261
      %p263 = scmp.lt.s32.totalorder %s18, 1
      %s264 = scalar_select %p263, %s18, 1
      %s265 = scalar_lea.vmem %s0, %s264
      %p266 = scmp.lt.s32.totalorder %s18, 1
      %s267 = scalar_select %p266, %s18, 1
      %s268 = scalar_lea.vmem %s7, %s267
      %v270 = vld [vmem:[%s265] sm:$0x1]
      %v271 = vld [vmem:[%s1] sm:$0xf]
      %v272 = vld [vmem:[%s1 + $0x4] sm:$0xf]
      %v273 = vld [vmem:[%s1 + $0x8] sm:$0xf]
      %v274 = vld [vmem:[%s1 + $0xc] sm:$0xf]
      %v275 = vld [vmem:[%s2] sm:$0x1]
      %v278 = vunpack.c.l.s4 1966171168
      %v279 = vunpack.c.0.s8 %v278
      %v280 = vlaneseq
      %v281 = vshrl.u32 %v280, 7
      %v282 = vsub.s32 %v279, %v281
      %v283 = vrot.slane %v270, %v282
      %v285 = vunpack.c.l.s4 1966171168
      %v286 = vunpack.c.0.s8 %v285
      %v287 = vlaneseq
      %v288 = vshrl.u32 %v287, 7
      %v289 = vsub.s32 %v286, %v288
      %v290 = vrot.slane %v283, %v289
      %291 = vrot.lane.b32.xlu0 %v290, 96
      %v292 = vpop.permute.xlu0 %291
      %v297 = vunpack.c.l.b16 %v271
      %v298 = vunpack.c.l.b16 %v272
      %v299 = vunpack.c.l.b16 %v273
      %v300 = vunpack.c.l.b16 %v274
      %v301 = vpack.c.b16 %v298, %v297
      %v302 = vpack.c.b16 %v300, %v299
      %vm305 = vcmask 261120
      %v307 = vsel %vm305, %v292, 0
      %309 = vmatprep.subr.bf16.mxu0 0
      %310 = vmatpush1.bf16.msra.mxu0 %v301
      %311 = vmatprep.subr.bf16.mxu0 0
      %312 = vmatpush1.bf16.msra.mxu0 %v302
      %313 = vmatprep.subr.bf16.mxu0 0
      %314 = vmatpush1.bf16.msra.mxu0 0
      %315 = vmatprep.subr.bf16.mxu0 0
      %316 = vmatpush1.bf16.msra.mxu0 0
      %317 = vmatprep.subr.bf16.mxu0 0
      %318 = vmatpush1.bf16.msra.mxu0 0
      %319 = vmatprep.subr.bf16.mxu0 0
      %320 = vmatpush1.bf16.msra.mxu0 0
      %321 = vmatprep.subr.bf16.mxu0 0
      %322 = vmatpush1.bf16.msra.mxu0 0
      %323 = vmatprep.subr.bf16.mxu0 0
      %324 = vmatpush1.bf16.msra.mxu0 0
      %325 = vmatprep.subr.bf16.mxu0 0
      %326 = vmatpush1.bf16.msra.mxu0 0
      %327 = vmatprep.subr.bf16.mxu0 0
      %328 = vmatpush1.bf16.msra.mxu0 0
      %329 = vmatprep.subr.bf16.mxu0 0
      %330 = vmatpush1.bf16.msra.mxu0 0
      %331 = vmatprep.subr.bf16.mxu0 0
      %332 = vmatpush1.bf16.msra.mxu0 0
      %333 = vmatprep.subr.bf16.mxu0 0
      %334 = vmatpush1.bf16.msra.mxu0 0
      %335 = vmatprep.subr.bf16.mxu0 0
      %336 = vmatpush1.bf16.msra.mxu0 0
      %337 = vmatprep.subr.bf16.mxu0 0
      %338 = vmatpush1.bf16.msra.mxu0 0
      %339 = vmatprep.subr.bf16.mxu0 0
      %340 = vmatpush1.bf16.msra.mxu0 0
      %341 = vmatprep.mubr.bf16.mxu0 0
      %342 = vmatmul.mubr.bf16.gmra.mrb[0].mxu0 %v307
      %v343 = vpop.f32.mrb[0].mxu0
      %v344 = vadd.f32 %v275, %v343
      %v345 = vpop.f32.mrb[0].mxu0
      %v346 = vpop.f32.mrb[0].mxu0
      %v347 = vpop.f32.mrb[0].mxu0
      %348 = vdwg.mxu0
      %v349 = vmax.f32 %v344, 0.0
      %v350 = vlaneseq
      %v351 = vshrl.u32 %v350, 7
      %v352 = vcvt.s32.f32 %v351
      %v353 = vadd.f32 %v352, 0.5
      %v354 = vfloor.f32 %v353
      %v355 = vsub.f32 %v352, %v354
      %vm356 = vcmp.ge.f32.partialorder %v355, 0.5
      %v357 = vsel %vm356, 1, 0
      %v358 = vcvt.s32.f32 %v357
      %vm359 = vcmp.le.f32.partialorder %v355, -0.5
      %v360 = vsel %vm359, 1, 0
      %v361 = vcvt.s32.f32 %v360
      %v363 = vrot.slane %v349, 6
      %vm365 = vcmask 1041408
      %v366 = vsel %vm365, 0.0, %v363
      %vm367 = vcmask 1042432
      %v368 = vsel %vm367, %v366, 0.0
      %v369 = vmul.f32 %v368, %v358
      %v370 = vld [vmem:[%s3] sm:$0x1]
      %v371 = vmul.f32 %v369, %v370
      %v372 = vadd.f32 %v371, 0.0
      %s373 = scalar_lea.vmem %s3, 1
      %v374 = vld [vmem:[%s373] sm:$0x1]
      %v376 = vlaneseq
      %v377 = vshrl.u32 %v376, 7
      %v378 = vsub.s32 0, %v377
      %v379 = vrot.slane %v374, %v378
      %v381 = vmul.f32 %v368, %v379
      %v383 = vrot.slane %v381, 1
      %v385 = vadd.f32 %v372, %v383
      %v387 = vrot.slane %v361, 6
      %v389 = vmul.f32 %v368, %v387
      %s390 = scalar_lea.vmem %s3, 2
      %v391 = vld [vmem:[%s390] sm:$0x1]
      %v393 = vlaneseq
      %v394 = vshrl.u32 %v393, 7
      %v395 = vsub.s32 0, %v394
      %v396 = vrot.slane %v391, %v395
      %v398 = vmul.f32 %v389, %v396
      %v400 = vrot.slane %v398, 2
      %v402 = vadd.f32 %v385, %v400
      %v404 = vrot.slane %v358, 7
      %v406 = vmul.f32 %v368, %v404
      %s407 = scalar_lea.vmem %s3, 3
      %v408 = vld [vmem:[%s407] sm:$0x1]
      %v410 = vlaneseq
      %v411 = vshrl.u32 %v410, 7
      %v412 = vsub.s32 0, %v411
      %v413 = vrot.slane %v408, %v412
      %v415 = vmul.f32 %v406, %v413
      %v417 = vrot.slane %v415, 1
      %v419 = vadd.f32 %v402, %v417
      %s420 = scalar_lea.vmem %s3, 4
      %v421 = vld [vmem:[%s420] sm:$0x1]
      %v423 = vlaneseq
      %v424 = vshrl.u32 %v423, 7
      %v425 = vsub.s32 0, %v424
      %v426 = vrot.slane %v421, %v425
      %v428 = vmul.f32 %v368, %v426
      %v430 = vrot.slane %v428, 2
      %v432 = vadd.f32 %v419, %v430
      %v433 = vrot.slane %v361, 5
      %v435 = vmul.f32 %v368, %v433
      %s436 = scalar_lea.vmem %s3, 5
      %v437 = vld [vmem:[%s436] sm:$0x1]
      %v439 = vlaneseq
      %v440 = vshrl.u32 %v439, 7
      %v441 = vsub.s32 0, %v440
      %v442 = vrot.slane %v437, %v441
      %v444 = vmul.f32 %v435, %v442
      %v446 = vrot.slane %v444, 3
      %v448 = vadd.f32 %v432, %v446
      %v449 = vrot.slane %v358, 6
      %v451 = vmul.f32 %v368, %v449
      %s452 = scalar_lea.vmem %s3, 6
      %v453 = vld [vmem:[%s452] sm:$0x1]
      %v455 = vlaneseq
      %v456 = vshrl.u32 %v455, 7
      %v457 = vsub.s32 0, %v456
      %v458 = vrot.slane %v453, %v457
      %v460 = vmul.f32 %v451, %v458
      %v462 = vrot.slane %v460, 2
      %v464 = vadd.f32 %v448, %v462
      %s465 = scalar_lea.vmem %s3, 7
      %v466 = vld [vmem:[%s465] sm:$0x1]
      %v468 = vlaneseq
      %v469 = vshrl.u32 %v468, 7
      %v470 = vsub.s32 0, %v469
      %v471 = vrot.slane %v466, %v470
      %v473 = vmul.f32 %v368, %v471
      %v475 = vrot.slane %v473, 3
      %v477 = vadd.f32 %v464, %v475
      %v478 = vrot.slane %v361, 4
      %v480 = vmul.f32 %v368, %v478
      %s481 = scalar_lea.vmem %s3, 8
      %v482 = vld [vmem:[%s481] sm:$0x1]
      %v484 = vlaneseq
      %v485 = vshrl.u32 %v484, 7
      %v486 = vsub.s32 0, %v485
      %v487 = vrot.slane %v482, %v486
      %v489 = vmul.f32 %v480, %v487
      %v491 = vrot.slane %v489, 4
      %v493 = vadd.f32 %v477, %v491
      %v494 = vld [vmem:[%s4] sm:$0x1]
      %v495 = vadd.f32 %v493, %v494
      %v496 = vpack.c.bf16 %v495, %v495
      %v497 = vld [vmem:[%s5] sm:$0xf]
      %v498 = vld [vmem:[%s5 + $0x4] sm:$0xf]
      %v499 = vld [vmem:[%s5 + $0x8] sm:$0xf]
      %v500 = vld [vmem:[%s5 + $0xc] sm:$0xf]
      %v501 = vld [vmem:[%s6] sm:$0x1]
      %v506 = vunpack.c.l.b16 %v497
      %v507 = vunpack.c.l.b16 %v498
      %v508 = vunpack.c.l.b16 %v499
      %v509 = vunpack.c.l.b16 %v500
      %v510 = vpack.c.b16 %v507, %v506
      %v511 = vpack.c.b16 %v509, %v508
      %v515 = vsel %vm305, %v496, 0
      %517 = vmatprep.subr.bf16.mxu0 0
      %518 = vmatpush1.bf16.msra.mxu0 %v510
      %519 = vmatprep.subr.bf16.mxu0 0
      %520 = vmatpush1.bf16.msra.mxu0 %v511
      %521 = vmatprep.subr.bf16.mxu0 0
      %522 = vmatpush1.bf16.msra.mxu0 0
      %523 = vmatprep.subr.bf16.mxu0 0
      %524 = vmatpush1.bf16.msra.mxu0 0
      %525 = vmatprep.subr.bf16.mxu0 0
      %526 = vmatpush1.bf16.msra.mxu0 0
      %527 = vmatprep.subr.bf16.mxu0 0
      %528 = vmatpush1.bf16.msra.mxu0 0
      %529 = vmatprep.subr.bf16.mxu0 0
      %530 = vmatpush1.bf16.msra.mxu0 0
      %531 = vmatprep.subr.bf16.mxu0 0
      %532 = vmatpush1.bf16.msra.mxu0 0
      %533 = vmatprep.subr.bf16.mxu0 0
      %534 = vmatpush1.bf16.msra.mxu0 0
      %535 = vmatprep.subr.bf16.mxu0 0
      %536 = vmatpush1.bf16.msra.mxu0 0
      %537 = vmatprep.subr.bf16.mxu0 0
      %538 = vmatpush1.bf16.msra.mxu0 0
      %539 = vmatprep.subr.bf16.mxu0 0
      %540 = vmatpush1.bf16.msra.mxu0 0
      %541 = vmatprep.subr.bf16.mxu0 0
      %542 = vmatpush1.bf16.msra.mxu0 0
      %543 = vmatprep.subr.bf16.mxu0 0
      %544 = vmatpush1.bf16.msra.mxu0 0
      %545 = vmatprep.subr.bf16.mxu0 0
      %546 = vmatpush1.bf16.msra.mxu0 0
      %547 = vmatprep.subr.bf16.mxu0 0
      %548 = vmatpush1.bf16.msra.mxu0 0
      %549 = vmatprep.mubr.bf16.mxu0 0
      %550 = vmatmul.mubr.bf16.gmra.mrb[0].mxu0 %v515
      %v551 = vpop.f32.mrb[0].mxu0
      %v552 = vadd.f32 %v501, %v551
      %v553 = vpop.f32.mrb[0].mxu0
      %v554 = vpop.f32.mrb[0].mxu0
      %v555 = vpop.f32.mrb[0].mxu0
      %556 = vdwg.mxu0
      %v557 = vmax.f32 %v552, 0.0
      %v558 = vadd.s32 %v351, 8
      %v559 = vadd.s32 %v351, 16
      %v560 = vadd.s32 %v351, 24
      %v561 = vlaneseq
      %v562 = vand.u32 %v561, 127
      %v563 = vmul.u32 %v351, 2
      %v564 = vmul.u32 %v558, 2
      %v565 = vmul.u32 %v559, 2
      %v566 = vmul.u32 %v560, 2
      %vm567 = vcmp.eq.s32.totalorder %v562, %v563
      %vm568 = vcmp.eq.s32.totalorder %v562, %v564
      %vm569 = vcmp.eq.s32.totalorder %v562, %v565
      %vm570 = vcmp.eq.s32.totalorder %v562, %v566
      %v571 = vsel %vm567, 1, 0
      %v572 = vsel %vm568, 1, 0
      %v573 = vsel %vm569, 1, 0
      %v574 = vsel %vm570, 1, 0
      %v575 = vcvt.s32.f32 %v571
      %v576 = vcvt.s32.f32 %v572
      %v577 = vcvt.s32.f32 %v573
      %v578 = vcvt.s32.f32 %v574
      %v579 = vpack.c.bf16 %v576, %v575
      %v580 = vpack.c.bf16 %v578, %v577
      %v582 = vsel %vm305, %v270, 0
      %584 = vmatprep.subr.bf16.mxu0 0
      %585 = vmatpush1.bf16.msra.mxu0 %v579
      %586 = vmatprep.subr.bf16.mxu0 0
      %587 = vmatpush1.bf16.msra.mxu0 %v580
      %588 = vmatprep.subr.bf16.mxu0 0
      %589 = vmatpush1.bf16.msra.mxu0 0
      %590 = vmatprep.subr.bf16.mxu0 0
      %591 = vmatpush1.bf16.msra.mxu0 0
      %592 = vmatprep.subr.bf16.mxu0 0
      %593 = vmatpush1.bf16.msra.mxu0 0
      %594 = vmatprep.subr.bf16.mxu0 0
      %595 = vmatpush1.bf16.msra.mxu0 0
      %596 = vmatprep.subr.bf16.mxu0 0
      %597 = vmatpush1.bf16.msra.mxu0 0
      %598 = vmatprep.subr.bf16.mxu0 0
      %599 = vmatpush1.bf16.msra.mxu0 0
      %600 = vmatprep.subr.bf16.mxu0 0
      %601 = vmatpush1.bf16.msra.mxu0 0
      %602 = vmatprep.subr.bf16.mxu0 0
      %603 = vmatpush1.bf16.msra.mxu0 0
      %604 = vmatprep.subr.bf16.mxu0 0
      %605 = vmatpush1.bf16.msra.mxu0 0
      %606 = vmatprep.subr.bf16.mxu0 0
      %607 = vmatpush1.bf16.msra.mxu0 0
      %608 = vmatprep.subr.bf16.mxu0 0
      %609 = vmatpush1.bf16.msra.mxu0 0
      %610 = vmatprep.subr.bf16.mxu0 0
      %611 = vmatpush1.bf16.msra.mxu0 0
      %612 = vmatprep.subr.bf16.mxu0 0
      %613 = vmatpush1.bf16.msra.mxu0 0
      %614 = vmatprep.subr.bf16.mxu0 0
      %615 = vmatpush1.bf16.msra.mxu0 0
      %616 = vmatprep.mubr.bf16.mxu0 0
      %617 = vmatmul.mubr.bf16.gmra.mrb[0].mxu0 %v582
      %v618 = vpop.f32.mrb[0].mxu0
      %v619 = vadd.f32 %v557, %v618
      %v620 = vpop.f32.mrb[0].mxu0
      %v621 = vpop.f32.mrb[0].mxu0
      %v622 = vpop.f32.mrb[0].mxu0
      %623 = vdwg.mxu0
      %v624 = vpack.c.bf16 %v619, %v619
      %vm625 = vcmask 516096
      %vm626 = vsmask.f32 256
      %vm627 = vmand %vm625, %vm626
      %v628 = vld [vmem:[%s268] sm:$0x1]
      %v629 = vsel %vm627, %v624, %v628
      %630 = vst [vmem:[%s268] sm:$0x1] %v629
      %p631 = scmp.lt.s32.totalorder %s18, 1
      %s632 = scalar_select %p631, %s18, 1
      %s633 = scalar_lea.vmem %s7, %s632
      // Predicated region
      $region49: #{shufflenet_v2_forward.16} parent=47 // pred_check
        %p634 = pneg %p188
      $region50: #{shufflenet_v2_forward.16} parent=47 // pred_check_branch
        %636 = sbr.rel (%p634) target = $region52
      $region51: #{shufflenet_v2_forward.16} parent=47 // pred_region
        _
      $region52: #{shufflenet_v2_forward.16} parent=47 // pred_fallthru
        _
    $region48: #{shufflenet_v2_forward.16} parent=5 // pred_fallthru
      _
    %p637 = scmp.le.s32.totalorder 2, %s13
    // Predicated region
    $region53: #{shufflenet_v2_forward.16} parent=5 // pred_check
      %p638 = pneg %p637
    $region54: #{shufflenet_v2_forward.16} parent=5 // pred_check_branch
      %640 = sbr.rel (%p638) target = $region56
    $region55: #{shufflenet_v2_forward.16} parent=5 // pred_region
      %s641 = ssub.s32 %s13, 2
      // Predicated region
      $region57: #{shufflenet_v2_forward.16} parent=55 // pred_check
        %p642 = pneg %p194
      $region58: #{shufflenet_v2_forward.16} parent=55 // pred_check_branch
        %644 = sbr.rel (%p642) target = $region60
      $region59: #{shufflenet_v2_forward.16} parent=55 // pred_region
        %p645 = scmp.lt.s32.totalorder %s19, 1
        %s646 = scalar_select %p645, %s19, 1
        %s647 = scalar_lea.vmem %s7, %s646
      $region60: #{shufflenet_v2_forward.16} parent=55 // pred_fallthru
        _
    $region56: #{shufflenet_v2_forward.16} parent=5 // pred_fallthru
      _
  $region6: #{shufflenet_v2_forward.16} parent=0 // loop_footer
    %s17 = sadd.s32 1, %s13
  $region7: #{shufflenet_v2_forward.16} parent=0 // loop_footer_branch
    %12 = sbr.rel target = $region3
  $region8: #{shufflenet_v2_forward.16} parent=0 // loop_exit
    _

</llo_original>
